<compile_context>
chip_gen: v7x
topology: tpu7x:2x2x1
jax: 0.10.0
libtpu: 0.0.40
codegen_flags: <defaults>
</compile_context>

<pallas_src>
import math
from functools import partial

import jax
import jax.numpy as jnp
from jax.experimental import pallas as pl
from jax.experimental.pallas import tpu as pltpu


def _attention_block_kernel(x_ref, gn_w_ref, gn_b_ref,
                            wq_ref, wk_ref, wv_ref,
                            bq_ref, bk_ref, bv_ref,
                            proj_w_ref, proj_b_ref,
                            out_ref,
                            *, num_heads, num_groups, eps, t_real, q_tile,
                            matmul_dtype, approx_recip):
    # x_ref block: [1, C, Tp]  (Tp = T padded to a multiple of 128, zeros in the pad)
    x = x_ref[0]                                   # [C, Tp]
    C, Tp = x.shape
    g = C // num_groups
    ch = C // num_heads
    H = num_heads

    # ---- GroupNorm (f32, matches GroupNorm32) ------------------------------------
    xf = x.astype(jnp.float32)
    xg = xf.reshape(num_groups, g, Tp)             # leading-dim split only (layout-friendly)
    cnt = float(g * t_real)                        # padded columns are zero -> sums exact
    s1 = jnp.sum(jnp.sum(xg, axis=2, keepdims=True), axis=1, keepdims=True)      # [G,1,1]
    s2 = jnp.sum(jnp.sum(xg * xg, axis=2, keepdims=True), axis=1, keepdims=True)  # [G,1,1]
    mu = s1 / cnt
    var = jnp.maximum(s2 / cnt - mu * mu, 0.0)     # clamp: one-pass cancellation safety
    xn = ((xg - mu) * jax.lax.rsqrt(var + eps)).reshape(C, Tp)
    xn = xn * gn_w_ref[...] + gn_b_ref[...]        # [C,1] affine broadcast over lanes
    xn_md = xn.astype(matmul_dtype)

    # ---- q/k/v 1x1 convs ----------------------------------------------------------
    # Weights are pre-permuted to head-major blocks on the host (q rows already carry
    # the ch**-0.5 attention scale) and pre-cast to matmul_dtype, so the results drop
    # straight into the batched attention layout [H, ch, Tp].
    def conv(w_ref, b_ref):
        y = jnp.dot(w_ref[...], xn_md, preferred_element_type=jnp.float32) + b_ref[...]
        return y.astype(matmul_dtype).reshape(H, ch, Tp)

    q = conv(wq_ref, bq_ref)
    k = conv(wk_ref, bk_ref)
    v = conv(wv_ref, bv_ref)

    # Hoisted additive key-pad mask: one sublane-broadcast add per q-tile.
    if t_real < Tp:
        col = jax.lax.broadcasted_iota(jnp.int32, (1, 1, Tp), 2)
        key_bias = jnp.where(col < t_real, 0.0, -1e30).astype(jnp.float32)   # [1,1,Tp]
    else:
        key_bias = None

    proj_w = proj_w_ref[...]                       # matmul_dtype [C, C]
    proj_b = proj_b_ref[...]                       # f32 [C, 1]

    # ---- attention (heads batched) + fused output projection / residual -----------
    # Heads are batched, so only this short q-tile loop is statically unrolled; each
    # iteration's temporaries are consumed by its own out_ref store.
    n_qt = Tp // q_tile
    for t in range(n_qt):
        t0 = t * q_tile
        qt = q[:, :, t0:t0 + q_tile]               # [H, ch, q_tile] (tile-aligned slice)
        # scores[h, q, s] = sum_c q[h, c, q] * k[h, c, s]; transpose folded into the MXU
        s = jax.lax.dot_general(
            qt, k, dimension_numbers=(((1,), (1,)), ((0,), (0,))),
            preferred_element_type=jnp.float32)    # [H, q_tile, Tp] f32
        if key_bias is not None:
            s = s + key_bias                       # exp(-1e30 - max) == 0 exactly
        s = s - jnp.max(s, axis=-1, keepdims=True)
        p = jnp.exp(s)
        # approx reciprocal on the bf16 fast path (rows may not sum exactly to 1).
        p = p * pl.reciprocal(jnp.sum(p, axis=-1, keepdims=True), approx=approx_recip)
        # a[h, c, q] = sum_s p[h, q, s] * v[h, c, s]
        a = jax.lax.dot_general(
            v, p.astype(matmul_dtype),
            dimension_numbers=(((2,), (2,)), ((0,), (0,))),
            preferred_element_type=jnp.float32)    # [H, ch, q_tile]
        a2 = a.reshape(C, q_tile).astype(matmul_dtype)
        proj = jnp.dot(proj_w, a2, preferred_element_type=jnp.float32)       # [C, q_tile]
        xres = x_ref[0, :, t0:t0 + q_tile].astype(jnp.float32)
        out_ref[0, :, t0:t0 + q_tile] = (xres + proj + proj_b).astype(out_ref.dtype)


def _tpu_vmem_and_kind():
    try:
        vmem_cap = int(pltpu.get_tpu_info().vmem_capacity_bytes)
    except Exception:
        vmem_cap = 128 * 1024 * 1024
    try:
        kind = jax.devices()[0].device_kind.lower()
    except Exception:
        kind = ""
    return vmem_cap, kind


def _pick_q_tile(tp, num_heads, vmem_cap, kind):
    # v5e: 128-wide MXU + single vst slot -> 128.  v7x (64 MiB VMEM/TC): cap at 256.
    # v6e / other 128 MiB parts: spend VMEM on bigger score tiles.
    if "v5" in kind:
        prefs = (128,)
    elif vmem_cap <= 64 * 1024 * 1024 or "v7" in kind:
        prefs = (256, 128)
    else:
        prefs = (512, 256, 128)
    for qt in prefs:
        if tp % qt == 0 and 2 * num_heads * qt * tp * 4 <= vmem_cap // 4:
            return qt
    return 128


def attention_block_forward(x, params, *, num_heads, num_groups=32, eps=1e-5,
                            matmul_dtype=jnp.bfloat16, lane_multiple=128):
    """x: [B, C, *spatial]. Returns same shape, matching AttentionBlock._forward."""
    b, c, *spatial = x.shape
    assert c % num_groups == 0 and c % num_heads == 0
    ch = c // num_heads
    # ch % 16 == 0 recommended for the bf16 fast path (unmasked sublane tiles); smaller
    # ch is correct but uses padded/masked sublane ops.
    T = math.prod(spatial)
    Tp = ((T + lane_multiple - 1) // lane_multiple) * lane_multiple   # lane-dense T
    x3 = x.reshape(b, c, T)
    if Tp != T:
        x3 = jnp.pad(x3, ((0, 0), (0, 0), (0, Tp - T)))               # zeros, masked in-kernel

    vmem_cap, kind = _tpu_vmem_and_kind()
    q_tile = _pick_q_tile(Tp, num_heads, vmem_cap, kind)

    # Host-side weight prep (one-time parameter transform, not per-token input scaling):
    #  * legacy per-head [q;k;v] row interleave permuted to head-major q/k/v blocks,
    #  * QKVAttentionLegacy scale (ch**-0.25 on q and k => ch**-0.5) folded into q rows,
    #  * matmul weights pre-cast to matmul_dtype (biases / GN affine stay f32).
    scale = 1.0 / math.sqrt(ch)
    w3 = params["qkv_w"].reshape(num_heads, 3, ch, c)
    b3 = params["qkv_b"].reshape(num_heads, 3, ch)
    wq = (w3[:, 0] * scale).reshape(c, c).astype(matmul_dtype)
    wk = w3[:, 1].reshape(c, c).astype(matmul_dtype)
    wv = w3[:, 2].reshape(c, c).astype(matmul_dtype)
    bq = (b3[:, 0] * scale).reshape(c, 1).astype(jnp.float32)
    bk = b3[:, 1].reshape(c, 1).astype(jnp.float32)
    bv = b3[:, 2].reshape(c, 1).astype(jnp.float32)
    proj_w = params["proj_w"].astype(matmul_dtype)
    proj_b = params["proj_b"].reshape(c, 1).astype(jnp.float32)
    gn_w = params["gn_w"].reshape(c, 1).astype(jnp.float32)
    gn_b = params["gn_b"].reshape(c, 1).astype(jnp.float32)

    approx_recip = jnp.dtype(matmul_dtype) == jnp.dtype(jnp.bfloat16)
    kernel = partial(_attention_block_kernel,
                     num_heads=num_heads, num_groups=num_groups, eps=eps,
                     t_real=T, q_tile=q_tile,
                     matmul_dtype=matmul_dtype, approx_recip=approx_recip)

    xb = jnp.dtype(x.dtype).itemsize
    mb = jnp.dtype(matmul_dtype).itemsize
    vmem_cap_usable = (vmem_cap * 7) // 8          # headroom for Mosaic internal scratch

    def run(single_buffer_weights):
        if single_buffer_weights:
            def wspec(shape):
                return pl.BlockSpec(shape, lambda i: (0, 0), pipeline_mode=pl.Buffered(1))
            w_bufs = 1
        else:
            def wspec(shape):
                return pl.BlockSpec(shape, lambda i: (0, 0))
            w_bufs = 2
        est = (2 * 2 * c * Tp * xb                       # x in + out blocks, double-buffered
               + w_bufs * (4 * c * c * mb + 10 * c * 4)  # weights + biases + GN affine
               + c * Tp * (4 + mb)                       # xn (f32 + matmul_dtype)
               + 3 * c * Tp * mb                         # q, k, v
               + 2 * num_heads * q_tile * Tp * 4         # scores + probs
               + 3 * c * q_tile * 4)                     # a / proj / residual tiles
        vmem_limit = int(min(vmem_cap_usable, max(int(est * 1.4), 16 * 1024 * 1024)))
        return pl.pallas_call(
            kernel,
            out_shape=jax.ShapeDtypeStruct((b, c, Tp), x.dtype),
            grid_spec=pltpu.PrefetchScalarGridSpec(
                num_scalar_prefetch=0,
                grid=(b,),
                in_specs=[
                    pl.BlockSpec((1, c, Tp), lambda i: (i, 0, 0)),   # x
                    wspec((c, 1)), wspec((c, 1)),                    # gn_w, gn_b
                    wspec((c, c)), wspec((c, c)), wspec((c, c)),     # wq, wk, wv
                    wspec((c, 1)), wspec((c, 1)), wspec((c, 1)),     # bq, bk, bv
                    wspec((c, c)), wspec((c, 1)),                    # proj_w, proj_b
                ],
                out_specs=pl.BlockSpec((1, c, Tp), lambda i: (i, 0, 0)),
            ),
            compiler_params=pltpu.CompilerParams(
                dimension_semantics=("parallel",),
                vmem_limit_bytes=vmem_limit),
        )(x3, gn_w, gn_b, wq, wk, wv, bq, bk, bv, proj_w, proj_b)

    try:
        out = run(True)            # single-buffer the grid-invariant weight operands
    except Exception:              # pipeline_mode / Buffered(1) unsupported -> default
        out = run(False)

    if Tp != T:
        out = out[:, :, :T]
    return out.reshape(b, c, *spatial)


def reference_forward(x, params, *, num_heads, num_groups=32, eps=1e-5):
    """Plain-JAX reference mirroring AttentionBlock._forward (QKVAttentionLegacy)."""
    b, c, *spatial = x.shape
    T = math.prod(spatial)
    xr = x.reshape(b, c, T)

    xg = xr.reshape(b, num_groups, -1)
    mu = xg.mean(-1, keepdims=True)
    var = ((xg - mu) ** 2).mean(-1, keepdims=True)
    xn = ((xg - mu) / jnp.sqrt(var + eps)).reshape(b, c, T)
    xn = xn * params["gn_w"][None, :, None] + params["gn_b"][None, :, None]

    qkv = jnp.einsum("oc,bct->bot", params["qkv_w"], xn) + params["qkv_b"][None, :, None]
    ch = c // num_heads
    qkv = qkv.reshape(b * num_heads, 3 * ch, T)
    q, k, v = qkv[:, :ch], qkv[:, ch:2 * ch], qkv[:, 2 * ch:]
    scale = 1.0 / math.sqrt(math.sqrt(ch))
    w = jnp.einsum("bct,bcs->bts", q * scale, k * scale)
    w = jax.nn.softmax(w, axis=-1)
    a = jnp.einsum("bts,bcs->bct", w, v).reshape(b, c, T)
    h = jnp.einsum("oc,bct->bot", params["proj_w"], a) + params["proj_b"][None, :, None]
    return (xr + h).reshape(b, c, *spatial)


if __name__ == "__main__":
    # Channels divisible by 32 (GroupNorm32) and by num_heads.
    B, C, NUM_HEADS = 2, 32, 4

    key = jax.random.PRNGKey(0)
    kx, k1, k2, k3, k4, k5, k6 = jax.random.split(key, 7)

    # NOTE: in the PyTorch module proj_out is zero_module()-initialized; we use small
    # nonzero values so the full kernel path is exercised.
    params = {
        "gn_w": 1.0 + 0.05 * jax.random.normal(k1, (C,), jnp.float32),
        "gn_b": 0.05 * jax.random.normal(k2, (C,), jnp.float32),
        "qkv_w": 0.1 * jax.random.normal(k3, (3 * C, C), jnp.float32),
        "qkv_b": 0.05 * jax.random.normal(k4, (3 * C,), jnp.float32),
        "proj_w": 0.1 * jax.random.normal(k5, (C, C), jnp.float32),
        "proj_b": 0.05 * jax.random.normal(k6, (C,), jnp.float32),
    }

    # Case 1: lane-aligned spatial (8x16 -> T=128), strict check with f32 MXU operands.
    x1 = jax.random.normal(kx, (B, C, 8, 16), dtype=jnp.float32)
    out1 = jax.block_until_ready(
        attention_block_forward(x1, params, num_heads=NUM_HEADS, matmul_dtype=jnp.float32))
    ref1 = reference_forward(x1, params, num_heads=NUM_HEADS)
    assert out1.shape == x1.shape and out1.dtype == x1.dtype
    assert jnp.allclose(out1, ref1, atol=1e-4, rtol=1e-4), \
        f"f32 path max abs err {jnp.max(jnp.abs(out1 - ref1))}"

    # Case 2: default fast path (bf16 MXU operands, f32 accumulation, approx softmax
    # reciprocal) -> relaxed tolerance.
    out2 = jax.block_until_ready(
        attention_block_forward(x1, params, num_heads=NUM_HEADS))
    assert jnp.allclose(out2, ref1, atol=2e-2, rtol=2e-2), \
        f"bf16 path max abs err {jnp.max(jnp.abs(out2 - ref1))}"

    # Case 3: non-lane-multiple spatial (8x12 -> T=96): padding + key-mask path, f32.
    x3 = jax.random.normal(kx, (B, C, 8, 12), dtype=jnp.float32)
    out3 = jax.block_until_ready(
        attention_block_forward(x3, params, num_heads=NUM_HEADS, matmul_dtype=jnp.float32))
    ref3 = reference_forward(x3, params, num_heads=NUM_HEADS)
    assert out3.shape == x3.shape
    assert jnp.allclose(out3, ref3, atol=1e-4, rtol=1e-4), \
        f"padded path max abs err {jnp.max(jnp.abs(out3 - ref3))}"

    # Case 4: T=272 -> Tp=384 exercises the multi-q-tile loop + padding, f32 strict.
    x4 = jax.random.normal(kx, (B, C, 16, 17), dtype=jnp.float32)
    out4 = jax.block_until_ready(
        attention_block_forward(x4, params, num_heads=NUM_HEADS, matmul_dtype=jnp.float32))
    ref4 = reference_forward(x4, params, num_heads=NUM_HEADS)
    assert jnp.allclose(out4, ref4, atol=1e-4, rtol=1e-4), \
        f"multi-tile path max abs err {jnp.max(jnp.abs(out4 - ref4))}"

    print("KERNEL_OK")
</pallas_src>

<mosaic_0001>
module attributes {stable_mosaic.version = 11 : i64} {
  func.func @_attention_block_kernel(%arg0: i32, %arg1: memref<1x32x128xf32, #tpu.memory_space<vmem>>, %arg2: memref<32x1xf32, #tpu.memory_space<vmem>>, %arg3: memref<32x1xf32, #tpu.memory_space<vmem>>, %arg4: memref<32x32xf32, #tpu.memory_space<vmem>>, %arg5: memref<32x32xf32, #tpu.memory_space<vmem>>, %arg6: memref<32x32xf32, #tpu.memory_space<vmem>>, %arg7: memref<32x1xf32, #tpu.memory_space<vmem>>, %arg8: memref<32x1xf32, #tpu.memory_space<vmem>>, %arg9: memref<32x1xf32, #tpu.memory_space<vmem>>, %arg10: memref<32x32xf32, #tpu.memory_space<vmem>>, %arg11: memref<32x1xf32, #tpu.memory_space<vmem>>, %arg12: memref<1x32x128xf32, #tpu.memory_space<vmem>>) attributes {dimension_semantics = [#tpu.dimension_semantics<parallel>], iteration_bounds = array<i64: 2>, scalar_prefetch = 0 : i64, scratch_operands = 0 : i64, tpu.core_type = #tpu.core_type<tc>, window_params = [{transform_indices = @transform_0, window_bounds = array<i64: 1, 32, 128>}, {pipeline_mode = #tpu.pipeline_mode<synchronous>, transform_indices = @transform_1, window_bounds = array<i64: 32, 1>}, {pipeline_mode = #tpu.pipeline_mode<synchronous>, transform_indices = @transform_2, window_bounds = array<i64: 32, 1>}, {pipeline_mode = #tpu.pipeline_mode<synchronous>, transform_indices = @transform_3, window_bounds = array<i64: 32, 32>}, {pipeline_mode = #tpu.pipeline_mode<synchronous>, transform_indices = @transform_4, window_bounds = array<i64: 32, 32>}, {pipeline_mode = #tpu.pipeline_mode<synchronous>, transform_indices = @transform_5, window_bounds = array<i64: 32, 32>}, {pipeline_mode = #tpu.pipeline_mode<synchronous>, transform_indices = @transform_6, window_bounds = array<i64: 32, 1>}, {pipeline_mode = #tpu.pipeline_mode<synchronous>, transform_indices = @transform_7, window_bounds = array<i64: 32, 1>}, {pipeline_mode = #tpu.pipeline_mode<synchronous>, transform_indices = @transform_8, window_bounds = array<i64: 32, 1>}, {pipeline_mode = #tpu.pipeline_mode<synchronous>, transform_indices = @transform_9, window_bounds = array<i64: 32, 32>}, {pipeline_mode = #tpu.pipeline_mode<synchronous>, transform_indices = @transform_10, window_bounds = array<i64: 32, 1>}, {transform_indices = @transform_11, window_bounds = array<i64: 1, 32, 128>}]} {
    %c0 = arith.constant 0 : index
    %c0_0 = arith.constant 0 : index
    %c0_1 = arith.constant 0 : index
    %0 = vector.load %arg1[%c0, %c0_0, %c0_1] : memref<1x32x128xf32, #tpu.memory_space<vmem>>, vector<1x32x128xf32>
    %1 = vector.shape_cast %0 : vector<1x32x128xf32> to vector<32x128xf32>
    %2 = vector.shape_cast %1 : vector<32x128xf32> to vector<32x1x128xf32>
    %cst = arith.constant dense<0.000000e+00> : vector<32x1xf32>
    %3 = vector.multi_reduction <add>, %2, %cst [2] : vector<32x1x128xf32> to vector<32x1xf32>
    %4 = vector.shape_cast %3 : vector<32x1xf32> to vector<32x1x1xf32>
    %cst_2 = arith.constant dense<0.000000e+00> : vector<32x1xf32>
    %5 = vector.multi_reduction <add>, %4, %cst_2 [1] : vector<32x1x1xf32> to vector<32x1xf32>
    %6 = vector.shape_cast %5 : vector<32x1xf32> to vector<32x1x1xf32>
    %7 = arith.mulf %2, %2 : vector<32x1x128xf32>
    %cst_3 = arith.constant dense<0.000000e+00> : vector<32x1xf32>
    %8 = vector.multi_reduction <add>, %7, %cst_3 [2] : vector<32x1x128xf32> to vector<32x1xf32>
    %9 = vector.shape_cast %8 : vector<32x1xf32> to vector<32x1x1xf32>
    %cst_4 = arith.constant dense<0.000000e+00> : vector<32x1xf32>
    %10 = vector.multi_reduction <add>, %9, %cst_4 [1] : vector<32x1x1xf32> to vector<32x1xf32>
    %11 = vector.shape_cast %10 : vector<32x1xf32> to vector<32x1x1xf32>
    %cst_5 = arith.constant 1.280000e+02 : f32
    %12 = vector.broadcast %cst_5 : f32 to vector<32x1x1xf32>
    %13 = arith.divf %6, %12 : vector<32x1x1xf32>
    %cst_6 = arith.constant 1.280000e+02 : f32
    %14 = vector.broadcast %cst_6 : f32 to vector<32x1x1xf32>
    %15 = arith.divf %11, %14 : vector<32x1x1xf32>
    %16 = arith.mulf %13, %13 : vector<32x1x1xf32>
    %17 = arith.subf %15, %16 : vector<32x1x1xf32>
    %cst_7 = arith.constant 0.000000e+00 : f32
    %18 = vector.broadcast %cst_7 : f32 to vector<32x1x1xf32>
    %19 = arith.maximumf %17, %18 : vector<32x1x1xf32>
    %20 = vector.broadcast %13 : vector<32x1x1xf32> to vector<32x1x128xf32>
    %21 = arith.subf %2, %20 : vector<32x1x128xf32>
    %cst_8 = arith.constant 9.99999974E-6 : f32
    %22 = vector.broadcast %cst_8 : f32 to vector<32x1x1xf32>
    %23 = arith.addf %19, %22 : vector<32x1x1xf32>
    %24 = math.rsqrt %23 : vector<32x1x1xf32>
    %25 = vector.broadcast %24 : vector<32x1x1xf32> to vector<32x1x128xf32>
    %26 = arith.mulf %21, %25 : vector<32x1x128xf32>
    %27 = vector.shape_cast %26 : vector<32x1x128xf32> to vector<32x128xf32>
    %c0_9 = arith.constant 0 : index
    %c0_10 = arith.constant 0 : index
    %28 = vector.load %arg2[%c0_9, %c0_10] : memref<32x1xf32, #tpu.memory_space<vmem>>, vector<32x1xf32>
    %29 = vector.broadcast %28 : vector<32x1xf32> to vector<32x128xf32>
    %30 = arith.mulf %27, %29 : vector<32x128xf32>
    %c0_11 = arith.constant 0 : index
    %c0_12 = arith.constant 0 : index
    %31 = vector.load %arg3[%c0_11, %c0_12] : memref<32x1xf32, #tpu.memory_space<vmem>>, vector<32x1xf32>
    %32 = vector.broadcast %31 : vector<32x1xf32> to vector<32x128xf32>
    %33 = arith.addf %30, %32 : vector<32x128xf32>
    %c0_13 = arith.constant 0 : index
    %c0_14 = arith.constant 0 : index
    %34 = vector.load %arg4[%c0_13, %c0_14] : memref<32x32xf32, #tpu.memory_space<vmem>>, vector<32x32xf32>
    %cst_15 = arith.constant dense<0.000000e+00> : vector<32x128xf32>
    %35 = tpu.matmul %34, %33, %cst_15 {dimension_numbers = #tpu.dot_dimension_numbers<[1], [0], [0], [1], [0, 0, 1, 1], [], []>} : vector<32x32xf32>, vector<32x128xf32>, vector<32x128xf32> -> vector<32x128xf32>
    %c0_16 = arith.constant 0 : index
    %c0_17 = arith.constant 0 : index
    %36 = vector.load %arg7[%c0_16, %c0_17] : memref<32x1xf32, #tpu.memory_space<vmem>>, vector<32x1xf32>
    %37 = vector.broadcast %36 : vector<32x1xf32> to vector<32x128xf32>
    %38 = arith.addf %35, %37 : vector<32x128xf32>
    %39 = vector.shape_cast %38 : vector<32x128xf32> to vector<4x8x128xf32>
    %c0_18 = arith.constant 0 : index
    %c0_19 = arith.constant 0 : index
    %40 = vector.load %arg5[%c0_18, %c0_19] : memref<32x32xf32, #tpu.memory_space<vmem>>, vector<32x32xf32>
    %cst_20 = arith.constant dense<0.000000e+00> : vector<32x128xf32>
    %41 = tpu.matmul %40, %33, %cst_20 {dimension_numbers = #tpu.dot_dimension_numbers<[1], [0], [0], [1], [0, 0, 1, 1], [], []>} : vector<32x32xf32>, vector<32x128xf32>, vector<32x128xf32> -> vector<32x128xf32>
    %c0_21 = arith.constant 0 : index
    %c0_22 = arith.constant 0 : index
    %42 = vector.load %arg8[%c0_21, %c0_22] : memref<32x1xf32, #tpu.memory_space<vmem>>, vector<32x1xf32>
    %43 = vector.broadcast %42 : vector<32x1xf32> to vector<32x128xf32>
    %44 = arith.addf %41, %43 : vector<32x128xf32>
    %45 = vector.shape_cast %44 : vector<32x128xf32> to vector<4x8x128xf32>
    %c0_23 = arith.constant 0 : index
    %c0_24 = arith.constant 0 : index
    %46 = vector.load %arg6[%c0_23, %c0_24] : memref<32x32xf32, #tpu.memory_space<vmem>>, vector<32x32xf32>
    %cst_25 = arith.constant dense<0.000000e+00> : vector<32x128xf32>
    %47 = tpu.matmul %46, %33, %cst_25 {dimension_numbers = #tpu.dot_dimension_numbers<[1], [0], [0], [1], [0, 0, 1, 1], [], []>} : vector<32x32xf32>, vector<32x128xf32>, vector<32x128xf32> -> vector<32x128xf32>
    %c0_26 = arith.constant 0 : index
    %c0_27 = arith.constant 0 : index
    %48 = vector.load %arg9[%c0_26, %c0_27] : memref<32x1xf32, #tpu.memory_space<vmem>>, vector<32x1xf32>
    %49 = vector.broadcast %48 : vector<32x1xf32> to vector<32x128xf32>
    %50 = arith.addf %47, %49 : vector<32x128xf32>
    %51 = vector.shape_cast %50 : vector<32x128xf32> to vector<4x8x128xf32>
    %c0_28 = arith.constant 0 : index
    %c0_29 = arith.constant 0 : index
    %52 = vector.load %arg10[%c0_28, %c0_29] : memref<32x32xf32, #tpu.memory_space<vmem>>, vector<32x32xf32>
    %c0_30 = arith.constant 0 : index
    %c0_31 = arith.constant 0 : index
    %53 = vector.load %arg11[%c0_30, %c0_31] : memref<32x1xf32, #tpu.memory_space<vmem>>, vector<32x1xf32>
    %cst_32 = arith.constant dense<0.000000e+00> : vector<4x128x128xf32>
    %54 = tpu.matmul %39, %45, %cst_32 {dimension_numbers = #tpu.dot_dimension_numbers<[1], [1], [2], [2], [0, 0, 0, 2, 1, 2], [0], [0]>} : vector<4x8x128xf32>, vector<4x8x128xf32>, vector<4x128x128xf32> -> vector<4x128x128xf32>
    %cst_33 = arith.constant dense<0xFF800000> : vector<4x128xf32>
    %55 = vector.multi_reduction <maximumf>, %54, %cst_33 [2] : vector<4x128x128xf32> to vector<4x128xf32>
    %56 = vector.shape_cast %55 : vector<4x128xf32> to vector<4x128x1xf32>
    %57 = vector.broadcast %56 : vector<4x128x1xf32> to vector<4x128x128xf32>
    %58 = arith.subf %54, %57 : vector<4x128x128xf32>
    %59 = math.exp %58 : vector<4x128x128xf32>
    %cst_34 = arith.constant dense<0.000000e+00> : vector<4x128xf32>
    %60 = vector.multi_reduction <add>, %59, %cst_34 [2] : vector<4x128x128xf32> to vector<4x128xf32>
    %61 = vector.shape_cast %60 : vector<4x128xf32> to vector<4x128x1xf32>
    %62 = tpu.reciprocal %61 : vector<4x128x1xf32> -> vector<4x128x1xf32>
    %63 = vector.broadcast %62 : vector<4x128x1xf32> to vector<4x128x128xf32>
    %64 = arith.mulf %59, %63 : vector<4x128x128xf32>
    %cst_35 = arith.constant dense<0.000000e+00> : vector<4x8x128xf32>
    %65 = tpu.matmul %51, %64, %cst_35 {dimension_numbers = #tpu.dot_dimension_numbers<[2], [2], [1], [1], [0, 0, 0, 1, 1, 1], [0], [0]>} : vector<4x8x128xf32>, vector<4x128x128xf32>, vector<4x8x128xf32> -> vector<4x8x128xf32>
    %66 = vector.shape_cast %65 : vector<4x8x128xf32> to vector<32x128xf32>
    %cst_36 = arith.constant dense<0.000000e+00> : vector<32x128xf32>
    %67 = tpu.matmul %52, %66, %cst_36 {dimension_numbers = #tpu.dot_dimension_numbers<[1], [0], [0], [1], [0, 0, 1, 1], [], []>} : vector<32x32xf32>, vector<32x128xf32>, vector<32x128xf32> -> vector<32x128xf32>
    %c0_37 = arith.constant 0 : index
    %c0_38 = arith.constant 0 : index
    %c0_39 = arith.constant 0 : index
    %68 = vector.load %arg1[%c0_37, %c0_38, %c0_39] : memref<1x32x128xf32, #tpu.memory_space<vmem>>, vector<1x32x128xf32>
    %69 = vector.shape_cast %68 : vector<1x32x128xf32> to vector<32x128xf32>
    %70 = arith.addf %69, %67 : vector<32x128xf32>
    %71 = vector.broadcast %53 : vector<32x1xf32> to vector<32x128xf32>
    %72 = arith.addf %70, %71 : vector<32x128xf32>
    %c0_40 = arith.constant 0 : index
    %c0_41 = arith.constant 0 : index
    %c0_42 = arith.constant 0 : index
    %73 = vector.load %arg12[%c0_40, %c0_41, %c0_42] : memref<1x32x128xf32, #tpu.memory_space<vmem>>, vector<1x32x128xf32>
    %74 = vector.shape_cast %73 : vector<1x32x128xf32> to vector<32x128xf32>
    %75 = vector.shape_cast %72 : vector<32x128xf32> to vector<1x32x128xf32>
    tpu.vector_store %arg12[%c0_40, %c0_41, %c0_42], %75 {strides = array<i32>} : memref<1x32x128xf32, #tpu.memory_space<vmem>>, vector<1x32x128xf32>,
    return
  }
  func.func @transform_0(%arg0: i32) -> (i32, i32, i32) {
    %c0_i32 = arith.constant 0 : i32
    %c0_i32_0 = arith.constant 0 : i32
    %c0_i32_1 = arith.constant 0 : i32
    return %arg0, %c0_i32, %c0_i32_0 : i32, i32, i32
  }
  func.func @transform_1(%arg0: i32) -> (i32, i32) {
    %c0_i32 = arith.constant 0 : i32
    %c0_i32_0 = arith.constant 0 : i32
    %c0_i32_1 = arith.constant 0 : i32
    return %c0_i32, %c0_i32_0 : i32, i32
  }
  func.func @transform_2(%arg0: i32) -> (i32, i32) {
    %c0_i32 = arith.constant 0 : i32
    %c0_i32_0 = arith.constant 0 : i32
    %c0_i32_1 = arith.constant 0 : i32
    return %c0_i32, %c0_i32_0 : i32, i32
  }
  func.func @transform_3(%arg0: i32) -> (i32, i32) {
    %c0_i32 = arith.constant 0 : i32
    %c0_i32_0 = arith.constant 0 : i32
    %c0_i32_1 = arith.constant 0 : i32
    return %c0_i32, %c0_i32_0 : i32, i32
  }
  func.func @transform_4(%arg0: i32) -> (i32, i32) {
    %c0_i32 = arith.constant 0 : i32
    %c0_i32_0 = arith.constant 0 : i32
    %c0_i32_1 = arith.constant 0 : i32
    return %c0_i32, %c0_i32_0 : i32, i32
  }
  func.func @transform_5(%arg0: i32) -> (i32, i32) {
    %c0_i32 = arith.constant 0 : i32
    %c0_i32_0 = arith.constant 0 : i32
    %c0_i32_1 = arith.constant 0 : i32
    return %c0_i32, %c0_i32_0 : i32, i32
  }
  func.func @transform_6(%arg0: i32) -> (i32, i32) {
    %c0_i32 = arith.constant 0 : i32
    %c0_i32_0 = arith.constant 0 : i32
    %c0_i32_1 = arith.constant 0 : i32
    return %c0_i32, %c0_i32_0 : i32, i32
  }
  func.func @transform_7(%arg0: i32) -> (i32, i32) {
    %c0_i32 = arith.constant 0 : i32
    %c0_i32_0 = arith.constant 0 : i32
    %c0_i32_1 = arith.constant 0 : i32
    return %c0_i32, %c0_i32_0 : i32, i32
  }
  func.func @transform_8(%arg0: i32) -> (i32, i32) {
    %c0_i32 = arith.constant 0 : i32
    %c0_i32_0 = arith.constant 0 : i32
    %c0_i32_1 = arith.constant 0 : i32
    return %c0_i32, %c0_i32_0 : i32, i32
  }
  func.func @transform_9(%arg0: i32) -> (i32, i32) {
    %c0_i32 = arith.constant 0 : i32
    %c0_i32_0 = arith.constant 0 : i32
    %c0_i32_1 = arith.constant 0 : i32
    return %c0_i32, %c0_i32_0 : i32, i32
  }
  func.func @transform_10(%arg0: i32) -> (i32, i32) {
    %c0_i32 = arith.constant 0 : i32
    %c0_i32_0 = arith.constant 0 : i32
    %c0_i32_1 = arith.constant 0 : i32
    return %c0_i32, %c0_i32_0 : i32, i32
  }
  func.func @transform_11(%arg0: i32) -> (i32, i32, i32) {
    %c0_i32 = arith.constant 0 : i32
    %c0_i32_0 = arith.constant 0 : i32
    %c0_i32_1 = arith.constant 0 : i32
    return %arg0, %c0_i32, %c0_i32_0 : i32, i32, i32
  }
}

module attributes {stable_mosaic.version = 11 : i64} {
  func.func @_attention_block_kernel(%arg0: i32, %arg1: memref<1x32x128xf32, #tpu.memory_space<vmem>>, %arg2: memref<32x1xf32, #tpu.memory_space<vmem>>, %arg3: memref<32x1xf32, #tpu.memory_space<vmem>>, %arg4: memref<32x32xf32, #tpu.memory_space<vmem>>, %arg5: memref<32x32xf32, #tpu.memory_space<vmem>>, %arg6: memref<32x32xf32, #tpu.memory_space<vmem>>, %arg7: memref<32x1xf32, #tpu.memory_space<vmem>>, %arg8: memref<32x1xf32, #tpu.memory_space<vmem>>, %arg9: memref<32x1xf32, #tpu.memory_space<vmem>>, %arg10: memref<32x32xf32, #tpu.memory_space<vmem>>, %arg11: memref<32x1xf32, #tpu.memory_space<vmem>>, %arg12: memref<1x32x128xf32, #tpu.memory_space<vmem>>) attributes {dimension_semantics = [#tpu.dimension_semantics<parallel>], iteration_bounds = array<i64: 2>, scalar_prefetch = 0 : i64, scratch_operands = 0 : i64, tpu.core_type = #tpu.core_type<tc>, window_params = [{transform_indices = @transform_0, window_bounds = array<i64: 1, 32, 128>}, {pipeline_mode = #tpu.pipeline_mode<synchronous>, transform_indices = @transform_1, window_bounds = array<i64: 32, 1>}, {pipeline_mode = #tpu.pipeline_mode<synchronous>, transform_indices = @transform_2, window_bounds = array<i64: 32, 1>}, {pipeline_mode = #tpu.pipeline_mode<synchronous>, transform_indices = @transform_3, window_bounds = array<i64: 32, 32>}, {pipeline_mode = #tpu.pipeline_mode<synchronous>, transform_indices = @transform_4, window_bounds = array<i64: 32, 32>}, {pipeline_mode = #tpu.pipeline_mode<synchronous>, transform_indices = @transform_5, window_bounds = array<i64: 32, 32>}, {pipeline_mode = #tpu.pipeline_mode<synchronous>, transform_indices = @transform_6, window_bounds = array<i64: 32, 1>}, {pipeline_mode = #tpu.pipeline_mode<synchronous>, transform_indices = @transform_7, window_bounds = array<i64: 32, 1>}, {pipeline_mode = #tpu.pipeline_mode<synchronous>, transform_indices = @transform_8, window_bounds = array<i64: 32, 1>}, {pipeline_mode = #tpu.pipeline_mode<synchronous>, transform_indices = @transform_9, window_bounds = array<i64: 32, 32>}, {pipeline_mode = #tpu.pipeline_mode<synchronous>, transform_indices = @transform_10, window_bounds = array<i64: 32, 1>}, {transform_indices = @transform_11, window_bounds = array<i64: 1, 32, 128>}]} {
    %c0 = arith.constant 0 : index
    %c0_0 = arith.constant 0 : index
    %c0_1 = arith.constant 0 : index
    %0 = vector.load %arg1[%c0, %c0_0, %c0_1] : memref<1x32x128xf32, #tpu.memory_space<vmem>>, vector<1x32x128xf32>
    %1 = vector.shape_cast %0 : vector<1x32x128xf32> to vector<32x128xf32>
    %2 = vector.shape_cast %1 : vector<32x128xf32> to vector<32x1x128xf32>
    %cst = arith.constant dense<0.000000e+00> : vector<32x1xf32>
    %3 = vector.multi_reduction <add>, %2, %cst [2] : vector<32x1x128xf32> to vector<32x1xf32>
    %4 = vector.shape_cast %3 : vector<32x1xf32> to vector<32x1x1xf32>
    %cst_2 = arith.constant dense<0.000000e+00> : vector<32x1xf32>
    %5 = vector.multi_reduction <add>, %4, %cst_2 [1] : vector<32x1x1xf32> to vector<32x1xf32>
    %6 = vector.shape_cast %5 : vector<32x1xf32> to vector<32x1x1xf32>
    %7 = arith.mulf %2, %2 : vector<32x1x128xf32>
    %cst_3 = arith.constant dense<0.000000e+00> : vector<32x1xf32>
    %8 = vector.multi_reduction <add>, %7, %cst_3 [2] : vector<32x1x128xf32> to vector<32x1xf32>
    %9 = vector.shape_cast %8 : vector<32x1xf32> to vector<32x1x1xf32>
    %cst_4 = arith.constant dense<0.000000e+00> : vector<32x1xf32>
    %10 = vector.multi_reduction <add>, %9, %cst_4 [1] : vector<32x1x1xf32> to vector<32x1xf32>
    %11 = vector.shape_cast %10 : vector<32x1xf32> to vector<32x1x1xf32>
    %cst_5 = arith.constant 1.280000e+02 : f32
    %12 = vector.broadcast %cst_5 : f32 to vector<32x1x1xf32>
    %13 = arith.divf %6, %12 : vector<32x1x1xf32>
    %cst_6 = arith.constant 1.280000e+02 : f32
    %14 = vector.broadcast %cst_6 : f32 to vector<32x1x1xf32>
    %15 = arith.divf %11, %14 : vector<32x1x1xf32>
    %16 = arith.mulf %13, %13 : vector<32x1x1xf32>
    %17 = arith.subf %15, %16 : vector<32x1x1xf32>
    %cst_7 = arith.constant 0.000000e+00 : f32
    %18 = vector.broadcast %cst_7 : f32 to vector<32x1x1xf32>
    %19 = arith.maximumf %17, %18 : vector<32x1x1xf32>
    %20 = vector.broadcast %13 : vector<32x1x1xf32> to vector<32x1x128xf32>
    %21 = arith.subf %2, %20 : vector<32x1x128xf32>
    %cst_8 = arith.constant 9.99999974E-6 : f32
    %22 = vector.broadcast %cst_8 : f32 to vector<32x1x1xf32>
    %23 = arith.addf %19, %22 : vector<32x1x1xf32>
    %24 = math.rsqrt %23 : vector<32x1x1xf32>
    %25 = vector.broadcast %24 : vector<32x1x1xf32> to vector<32x1x128xf32>
    %26 = arith.mulf %21, %25 : vector<32x1x128xf32>
    %27 = vector.shape_cast %26 : vector<32x1x128xf32> to vector<32x128xf32>
    %c0_9 = arith.constant 0 : index
    %c0_10 = arith.constant 0 : index
    %28 = vector.load %arg2[%c0_9, %c0_10] : memref<32x1xf32, #tpu.memory_space<vmem>>, vector<32x1xf32>
    %29 = vector.broadcast %28 : vector<32x1xf32> to vector<32x128xf32>
    %30 = arith.mulf %27, %29 : vector<32x128xf32>
    %c0_11 = arith.constant 0 : index
    %c0_12 = arith.constant 0 : index
    %31 = vector.load %arg3[%c0_11, %c0_12] : memref<32x1xf32, #tpu.memory_space<vmem>>, vector<32x1xf32>
    %32 = vector.broadcast %31 : vector<32x1xf32> to vector<32x128xf32>
    %33 = arith.addf %30, %32 : vector<32x128xf32>
    %c0_13 = arith.constant 0 : index
    %c0_14 = arith.constant 0 : index
    %34 = vector.load %arg4[%c0_13, %c0_14] : memref<32x32xf32, #tpu.memory_space<vmem>>, vector<32x32xf32>
    %cst_15 = arith.constant dense<0.000000e+00> : vector<32x128xf32>
    %35 = tpu.matmul %34, %33, %cst_15 {dimension_numbers = #tpu.dot_dimension_numbers<[1], [0], [0], [1], [0, 0, 1, 1], [], []>} : vector<32x32xf32>, vector<32x128xf32>, vector<32x128xf32> -> vector<32x128xf32>
    %c0_16 = arith.constant 0 : index
    %c0_17 = arith.constant 0 : index
    %36 = vector.load %arg7[%c0_16, %c0_17] : memref<32x1xf32, #tpu.memory_space<vmem>>, vector<32x1xf32>
    %37 = vector.broadcast %36 : vector<32x1xf32> to vector<32x128xf32>
    %38 = arith.addf %35, %37 : vector<32x128xf32>
    %39 = vector.shape_cast %38 : vector<32x128xf32> to vector<4x8x128xf32>
    %c0_18 = arith.constant 0 : index
    %c0_19 = arith.constant 0 : index
    %40 = vector.load %arg5[%c0_18, %c0_19] : memref<32x32xf32, #tpu.memory_space<vmem>>, vector<32x32xf32>
    %cst_20 = arith.constant dense<0.000000e+00> : vector<32x128xf32>
    %41 = tpu.matmul %40, %33, %cst_20 {dimension_numbers = #tpu.dot_dimension_numbers<[1], [0], [0], [1], [0, 0, 1, 1], [], []>} : vector<32x32xf32>, vector<32x128xf32>, vector<32x128xf32> -> vector<32x128xf32>
    %c0_21 = arith.constant 0 : index
    %c0_22 = arith.constant 0 : index
    %42 = vector.load %arg8[%c0_21, %c0_22] : memref<32x1xf32, #tpu.memory_space<vmem>>, vector<32x1xf32>
    %43 = vector.broadcast %42 : vector<32x1xf32> to vector<32x128xf32>
    %44 = arith.addf %41, %43 : vector<32x128xf32>
    %45 = vector.shape_cast %44 : vector<32x128xf32> to vector<4x8x128xf32>
    %c0_23 = arith.constant 0 : index
    %c0_24 = arith.constant 0 : index
    %46 = vector.load %arg6[%c0_23, %c0_24] : memref<32x32xf32, #tpu.memory_space<vmem>>, vector<32x32xf32>
    %cst_25 = arith.constant dense<0.000000e+00> : vector<32x128xf32>
    %47 = tpu.matmul %46, %33, %cst_25 {dimension_numbers = #tpu.dot_dimension_numbers<[1], [0], [0], [1], [0, 0, 1, 1], [], []>} : vector<32x32xf32>, vector<32x128xf32>, vector<32x128xf32> -> vector<32x128xf32>
    %c0_26 = arith.constant 0 : index
    %c0_27 = arith.constant 0 : index
    %48 = vector.load %arg9[%c0_26, %c0_27] : memref<32x1xf32, #tpu.memory_space<vmem>>, vector<32x1xf32>
    %49 = vector.broadcast %48 : vector<32x1xf32> to vector<32x128xf32>
    %50 = arith.addf %47, %49 : vector<32x128xf32>
    %51 = vector.shape_cast %50 : vector<32x128xf32> to vector<4x8x128xf32>
    %c0_28 = arith.constant 0 : index
    %c0_29 = arith.constant 0 : index
    %52 = vector.load %arg10[%c0_28, %c0_29] : memref<32x32xf32, #tpu.memory_space<vmem>>, vector<32x32xf32>
    %c0_30 = arith.constant 0 : index
    %c0_31 = arith.constant 0 : index
    %53 = vector.load %arg11[%c0_30, %c0_31] : memref<32x1xf32, #tpu.memory_space<vmem>>, vector<32x1xf32>
    %cst_32 = arith.constant dense<0.000000e+00> : vector<4x128x128xf32>
    %54 = tpu.matmul %39, %45, %cst_32 {dimension_numbers = #tpu.dot_dimension_numbers<[1], [1], [2], [2], [0, 0, 0, 2, 1, 2], [0], [0]>} : vector<4x8x128xf32>, vector<4x8x128xf32>, vector<4x128x128xf32> -> vector<4x128x128xf32>
    %cst_33 = arith.constant dense<0xFF800000> : vector<4x128xf32>
    %55 = vector.multi_reduction <maximumf>, %54, %cst_33 [2] : vector<4x128x128xf32> to vector<4x128xf32>
    %56 = vector.shape_cast %55 : vector<4x128xf32> to vector<4x128x1xf32>
    %57 = vector.broadcast %56 : vector<4x128x1xf32> to vector<4x128x128xf32>
    %58 = arith.subf %54, %57 : vector<4x128x128xf32>
    %59 = math.exp %58 : vector<4x128x128xf32>
    %cst_34 = arith.constant dense<0.000000e+00> : vector<4x128xf32>
    %60 = vector.multi_reduction <add>, %59, %cst_34 [2] : vector<4x128x128xf32> to vector<4x128xf32>
    %61 = vector.shape_cast %60 : vector<4x128xf32> to vector<4x128x1xf32>
    %62 = tpu.reciprocal %61 : vector<4x128x1xf32> -> vector<4x128x1xf32>
    %63 = vector.broadcast %62 : vector<4x128x1xf32> to vector<4x128x128xf32>
    %64 = arith.mulf %59, %63 : vector<4x128x128xf32>
    %cst_35 = arith.constant dense<0.000000e+00> : vector<4x8x128xf32>
    %65 = tpu.matmul %51, %64, %cst_35 {dimension_numbers = #tpu.dot_dimension_numbers<[2], [2], [1], [1], [0, 0, 0, 1, 1, 1], [0], [0]>} : vector<4x8x128xf32>, vector<4x128x128xf32>, vector<4x8x128xf32> -> vector<4x8x128xf32>
    %66 = vector.shape_cast %65 : vector<4x8x128xf32> to vector<32x128xf32>
    %cst_36 = arith.constant dense<0.000000e+00> : vector<32x128xf32>
    %67 = tpu.matmul %52, %66, %cst_36 {dimension_numbers = #tpu.dot_dimension_numbers<[1], [0], [0], [1], [0, 0, 1, 1], [], []>} : vector<32x32xf32>, vector<32x128xf32>, vector<32x128xf32> -> vector<32x128xf32>
    %c0_37 = arith.constant 0 : index
    %c0_38 = arith.constant 0 : index
    %c0_39 = arith.constant 0 : index
    %68 = vector.load %arg1[%c0_37, %c0_38, %c0_39] : memref<1x32x128xf32, #tpu.memory_space<vmem>>, vector<1x32x128xf32>
    %69 = vector.shape_cast %68 : vector<1x32x128xf32> to vector<32x128xf32>
    %70 = arith.addf %69, %67 : vector<32x128xf32>
    %71 = vector.broadcast %53 : vector<32x1xf32> to vector<32x128xf32>
    %72 = arith.addf %70, %71 : vector<32x128xf32>
    %c0_40 = arith.constant 0 : index
    %c0_41 = arith.constant 0 : index
    %c0_42 = arith.constant 0 : index
    %73 = vector.load %arg12[%c0_40, %c0_41, %c0_42] : memref<1x32x128xf32, #tpu.memory_space<vmem>>, vector<1x32x128xf32>
    %74 = vector.shape_cast %73 : vector<1x32x128xf32> to vector<32x128xf32>
    %75 = vector.shape_cast %72 : vector<32x128xf32> to vector<1x32x128xf32>
    tpu.vector_store %arg12[%c0_40, %c0_41, %c0_42], %75 {strides = array<i32>} : memref<1x32x128xf32, #tpu.memory_space<vmem>>, vector<1x32x128xf32>,
    return
  }
  func.func @transform_0(%arg0: i32) -> (i32, i32, i32) {
    %c0_i32 = arith.constant 0 : i32
    %c0_i32_0 = arith.constant 0 : i32
    %c0_i32_1 = arith.constant 0 : i32
    return %arg0, %c0_i32, %c0_i32_0 : i32, i32, i32
  }
  func.func @transform_1(%arg0: i32) -> (i32, i32) {
    %c0_i32 = arith.constant 0 : i32
    %c0_i32_0 = arith.constant 0 : i32
    %c0_i32_1 = arith.constant 0 : i32
    return %c0_i32, %c0_i32_0 : i32, i32
  }
  func.func @transform_2(%arg0: i32) -> (i32, i32) {
    %c0_i32 = arith.constant 0 : i32
    %c0_i32_0 = arith.constant 0 : i32
    %c0_i32_1 = arith.constant 0 : i32
    return %c0_i32, %c0_i32_0 : i32, i32
  }
  func.func @transform_3(%arg0: i32) -> (i32, i32) {
    %c0_i32 = arith.constant 0 : i32
    %c0_i32_0 = arith.constant 0 : i32
    %c0_i32_1 = arith.constant 0 : i32
    return %c0_i32, %c0_i32_0 : i32, i32
  }
  func.func @transform_4(%arg0: i32) -> (i32, i32) {
    %c0_i32 = arith.constant 0 : i32
    %c0_i32_0 = arith.constant 0 : i32
    %c0_i32_1 = arith.constant 0 : i32
    return %c0_i32, %c0_i32_0 : i32, i32
  }
  func.func @transform_5(%arg0: i32) -> (i32, i32) {
    %c0_i32 = arith.constant 0 : i32
    %c0_i32_0 = arith.constant 0 : i32
    %c0_i32_1 = arith.constant 0 : i32
    return %c0_i32, %c0_i32_0 : i32, i32
  }
  func.func @transform_6(%arg0: i32) -> (i32, i32) {
    %c0_i32 = arith.constant 0 : i32
    %c0_i32_0 = arith.constant 0 : i32
    %c0_i32_1 = arith.constant 0 : i32
    return %c0_i32, %c0_i32_0 : i32, i32
  }
  func.func @transform_7(%arg0: i32) -> (i32, i32) {
    %c0_i32 = arith.constant 0 : i32
    %c0_i32_0 = arith.constant 0 : i32
    %c0_i32_1 = arith.constant 0 : i32
    return %c0_i32, %c0_i32_0 : i32, i32
  }
  func.func @transform_8(%arg0: i32) -> (i32, i32) {
    %c0_i32 = arith.constant 0 : i32
    %c0_i32_0 = arith.constant 0 : i32
    %c0_i32_1 = arith.constant 0 : i32
    return %c0_i32, %c0_i32_0 : i32, i32
  }
  func.func @transform_9(%arg0: i32) -> (i32, i32) {
    %c0_i32 = arith.constant 0 : i32
    %c0_i32_0 = arith.constant 0 : i32
    %c0_i32_1 = arith.constant 0 : i32
    return %c0_i32, %c0_i32_0 : i32, i32
  }
  func.func @transform_10(%arg0: i32) -> (i32, i32) {
    %c0_i32 = arith.constant 0 : i32
    %c0_i32_0 = arith.constant 0 : i32
    %c0_i32_1 = arith.constant 0 : i32
    return %c0_i32, %c0_i32_0 : i32, i32
  }
  func.func @transform_11(%arg0: i32) -> (i32, i32, i32) {
    %c0_i32 = arith.constant 0 : i32
    %c0_i32_0 = arith.constant 0 : i32
    %c0_i32_1 = arith.constant 0 : i32
    return %arg0, %c0_i32, %c0_i32_0 : i32, i32, i32
  }
}

</mosaic_0001>

<llo_original>
// kernel: tpu_custom_call.1
$region0: #{tpu_custom_call.1}
  #allocation0 [shape = 'u32[]', space=smem, size = 0x4, offset = 0x4, fixed_abs, tag = 'smem constant byte address 0x4 - core index']
  #allocation1 [shape = 'u32[144,128]{1,0:T(1,128)}', space=vmem, size = 0x12000, scoped, tag = 'internal scratch']
  %s0 = inlined_call_operand.vmem [shape: f32[2,32,128], index: 0, kind: input, shape index: {}]
  %s1 = inlined_call_operand.vmem [shape: f32[32,1], index: 1, kind: input, shape index: {}]
  %s2 = inlined_call_operand.vmem [shape: f32[32,1], index: 2, kind: input, shape index: {}]
  %s3 = inlined_call_operand.vmem [shape: f32[32,32], index: 3, kind: input, shape index: {}]
  %s4 = inlined_call_operand.vmem [shape: f32[32,32], index: 4, kind: input, shape index: {}]
  %s5 = inlined_call_operand.vmem [shape: f32[32,32], index: 5, kind: input, shape index: {}]
  %s6 = inlined_call_operand.vmem [shape: f32[32,1], index: 6, kind: input, shape index: {}]
  %s7 = inlined_call_operand.vmem [shape: f32[32,1], index: 7, kind: input, shape index: {}]
  %s8 = inlined_call_operand.vmem [shape: f32[32,1], index: 8, kind: input, shape index: {}]
  %s9 = inlined_call_operand.vmem [shape: f32[32,32], index: 9, kind: input, shape index: {}]
  %s10 = inlined_call_operand.vmem [shape: f32[32,1], index: 10, kind: input, shape index: {}]
  %s11 = inlined_call_operand.hbm [shape: f32[2,32,128], index: 11, kind: output, shape index: {}]
  %s12 = sld [smem:[#allocation0]]
  $region77: #{tpu_custom_call.1} parent=0
    _
  %s14 = ssub.s32 1, %s12
  %s15 = scalar_select 0, %s14, %s12
  $region1: #{tpu_custom_call.1} parent=0
    #allocation2 [shape = 'u8[32768]{0}', space=vmem, size = 0x8000, scoped, tag = 'output window, operand 0']
    #allocation3 [shape = 's32[2]{0}', space=sflag, size = 0x8, scoped, tag = 'scoped memory for tpu_custom_call.1']
    %16 = vsyncpa [#allocation3], 0
    %s17 = scalar_lea.sflag [#allocation3], 1
    %18 = vsyncpa %s17, 0
    loop: start=0, step=1, limit=4
    $region2: #{tpu_custom_call.1} parent=1 // loop_pre_header
      _
    $region3: #{tpu_custom_call.1} parent=1 // loop_header
      %s20 = sphi 0, %s24
      %p21 = scmp.ge.s32.totalorder %s20, 4
      %s30 = sphi 0, %s32
      %s33 = sphi 0, %s30
      %s34 = sphi 0, %s33
      %s50 = sphi 0, %s34
      %s54 = sphi 0, %s54
      %s56 = sphi 0, %s54
      %s57 = sphi 0, %s56
      %s71 = sphi 0, %s57
      %s75 = sphi 0, %s75
      %s77 = sphi 0, %s75
      %s78 = sphi 0, %s77
      %s92 = sphi 0, %s78
      %s96 = sphi 0, %s96
      %s98 = sphi 0, %s96
      %s99 = sphi 0, %s98
      %s113 = sphi 0, %s99
      %s117 = sphi 0, %s117
      %s119 = sphi 0, %s117
      %s120 = sphi 0, %s119
      %s134 = sphi 0, %s120
      %s138 = sphi 0, %s138
      %s140 = sphi 0, %s138
      %s141 = sphi 0, %s140
      %s155 = sphi 0, %s141
      %s159 = sphi 0, %s159
      %s161 = sphi 0, %s159
      %s162 = sphi 0, %s161
      %s176 = sphi 0, %s162
      %s180 = sphi 0, %s180
      %s182 = sphi 0, %s180
      %s183 = sphi 0, %s182
      %s197 = sphi 0, %s183
      %s201 = sphi 0, %s201
      %s203 = sphi 0, %s201
      %s204 = sphi 0, %s203
      %s218 = sphi 0, %s204
      %s222 = sphi 0, %s222
      %s224 = sphi 0, %s222
      %s225 = sphi 0, %s224
      %s239 = sphi 0, %s225
      %s243 = sphi 0, %s243
      %s245 = sphi 0, %s243
      %s246 = sphi 0, %s245
      %s260 = sphi 0, %s246
      %s266 = sphi 0, %s268
      %s269 = sphi 0, %s266
      %s270 = sphi 0, %s269
      %s286 = sphi 0, %s270
    $region4: #{tpu_custom_call.1} parent=1 // loop_header_branch
      %23 = sbr.rel (%p21) target = $region8
    $region5: #{tpu_custom_call.1} parent=1 // loop_body
      %s25 = ssub.s32 %s20, 1
      %s26 = ssub.s32 %s20, 2
      %s27 = sadd.s32 %s20, 1
      %s28 = ssub.s32 %s20, %s27
      %p29 = scmp.eq.s32.totalorder %s28, 0
      %s31 = sadd.s32 %s30, 1
      %s32 = scalar_select %p29, %s30, %s31
      %p35 = pneg %p29
      %p36 = scmp.eq.s32.totalorder %s20, 1
      %p37 = por %p35, %p36
      %p38 = scmp.ne.s32.totalorder %s30, %s33
      %p39 = scmp.eq.s32.totalorder %s20, 0
      %p40 = por %p38, %p39
      %p41 = scmp.ne.s32.totalorder %s30, %s33
      %p42 = scmp.eq.s32.totalorder %s25, 1
      %p43 = por %p41, %p42
      %p44 = scmp.ne.s32.totalorder %s33, %s34
      %p45 = scmp.eq.s32.totalorder %s25, 0
      %p46 = por %p44, %p45
      %p47 = scmp.ne.s32.totalorder %s33, %s34
      %p48 = scmp.eq.s32.totalorder %s26, 1
      %p49 = por %p47, %p48
      %p51 = scmp.ne.s32.totalorder %s34, %s50
      %p52 = scmp.eq.s32.totalorder %s26, 0
      %p53 = por %p51, %p52
      %s55 = sadd.s32 %s54, 1
      %p58 = scmp.eq.s32.totalorder %s20, 1
      %p59 = scmp.ne.s32.totalorder %s54, %s56
      %p60 = scmp.eq.s32.totalorder %s20, 0
      %p61 = por %p59, %p60
      %p62 = scmp.ne.s32.totalorder %s54, %s56
      %p63 = scmp.eq.s32.totalorder %s25, 1
      %p64 = por %p62, %p63
      %p65 = scmp.ne.s32.totalorder %s56, %s57
      %p66 = scmp.eq.s32.totalorder %s25, 0
      %p67 = por %p65, %p66
      %p68 = scmp.ne.s32.totalorder %s56, %s57
      %p69 = scmp.eq.s32.totalorder %s26, 1
      %p70 = por %p68, %p69
      %p72 = scmp.ne.s32.totalorder %s57, %s71
      %p73 = scmp.eq.s32.totalorder %s26, 0
      %p74 = por %p72, %p73
      %s76 = sadd.s32 %s75, 1
      %p79 = scmp.eq.s32.totalorder %s20, 1
      %p80 = scmp.ne.s32.totalorder %s75, %s77
      %p81 = scmp.eq.s32.totalorder %s20, 0
      %p82 = por %p80, %p81
      %p83 = scmp.ne.s32.totalorder %s75, %s77
      %p84 = scmp.eq.s32.totalorder %s25, 1
      %p85 = por %p83, %p84
      %p86 = scmp.ne.s32.totalorder %s77, %s78
      %p87 = scmp.eq.s32.totalorder %s25, 0
      %p88 = por %p86, %p87
      %p89 = scmp.ne.s32.totalorder %s77, %s78
      %p90 = scmp.eq.s32.totalorder %s26, 1
      %p91 = por %p89, %p90
      %p93 = scmp.ne.s32.totalorder %s78, %s92
      %p94 = scmp.eq.s32.totalorder %s26, 0
      %p95 = por %p93, %p94
      %s97 = sadd.s32 %s96, 1
      %p100 = scmp.eq.s32.totalorder %s20, 1
      %p101 = scmp.ne.s32.totalorder %s96, %s98
      %p102 = scmp.eq.s32.totalorder %s20, 0
      %p103 = por %p101, %p102
      %p104 = scmp.ne.s32.totalorder %s96, %s98
      %p105 = scmp.eq.s32.totalorder %s25, 1
      %p106 = por %p104, %p105
      %p107 = scmp.ne.s32.totalorder %s98, %s99
      %p108 = scmp.eq.s32.totalorder %s25, 0
      %p109 = por %p107, %p108
      %p110 = scmp.ne.s32.totalorder %s98, %s99
      %p111 = scmp.eq.s32.totalorder %s26, 1
      %p112 = por %p110, %p111
      %p114 = scmp.ne.s32.totalorder %s99, %s113
      %p115 = scmp.eq.s32.totalorder %s26, 0
      %p116 = por %p114, %p115
      %s118 = sadd.s32 %s117, 1
      %p121 = scmp.eq.s32.totalorder %s20, 1
      %p122 = scmp.ne.s32.totalorder %s117, %s119
      %p123 = scmp.eq.s32.totalorder %s20, 0
      %p124 = por %p122, %p123
      %p125 = scmp.ne.s32.totalorder %s117, %s119
      %p126 = scmp.eq.s32.totalorder %s25, 1
      %p127 = por %p125, %p126
      %p128 = scmp.ne.s32.totalorder %s119, %s120
      %p129 = scmp.eq.s32.totalorder %s25, 0
      %p130 = por %p128, %p129
      %p131 = scmp.ne.s32.totalorder %s119, %s120
      %p132 = scmp.eq.s32.totalorder %s26, 1
      %p133 = por %p131, %p132
      %p135 = scmp.ne.s32.totalorder %s120, %s134
      %p136 = scmp.eq.s32.totalorder %s26, 0
      %p137 = por %p135, %p136
      %s139 = sadd.s32 %s138, 1
      %p142 = scmp.eq.s32.totalorder %s20, 1
      %p143 = scmp.ne.s32.totalorder %s138, %s140
      %p144 = scmp.eq.s32.totalorder %s20, 0
      %p145 = por %p143, %p144
      %p146 = scmp.ne.s32.totalorder %s138, %s140
      %p147 = scmp.eq.s32.totalorder %s25, 1
      %p148 = por %p146, %p147
      %p149 = scmp.ne.s32.totalorder %s140, %s141
      %p150 = scmp.eq.s32.totalorder %s25, 0
      %p151 = por %p149, %p150
      %p152 = scmp.ne.s32.totalorder %s140, %s141
      %p153 = scmp.eq.s32.totalorder %s26, 1
      %p154 = por %p152, %p153
      %p156 = scmp.ne.s32.totalorder %s141, %s155
      %p157 = scmp.eq.s32.totalorder %s26, 0
      %p158 = por %p156, %p157
      %s160 = sadd.s32 %s159, 1
      %p163 = scmp.eq.s32.totalorder %s20, 1
      %p164 = scmp.ne.s32.totalorder %s159, %s161
      %p165 = scmp.eq.s32.totalorder %s20, 0
      %p166 = por %p164, %p165
      %p167 = scmp.ne.s32.totalorder %s159, %s161
      %p168 = scmp.eq.s32.totalorder %s25, 1
      %p169 = por %p167, %p168
      %p170 = scmp.ne.s32.totalorder %s161, %s162
      %p171 = scmp.eq.s32.totalorder %s25, 0
      %p172 = por %p170, %p171
      %p173 = scmp.ne.s32.totalorder %s161, %s162
      %p174 = scmp.eq.s32.totalorder %s26, 1
      %p175 = por %p173, %p174
      %p177 = scmp.ne.s32.totalorder %s162, %s176
      %p178 = scmp.eq.s32.totalorder %s26, 0
      %p179 = por %p177, %p178
      %s181 = sadd.s32 %s180, 1
      %p184 = scmp.eq.s32.totalorder %s20, 1
      %p185 = scmp.ne.s32.totalorder %s180, %s182
      %p186 = scmp.eq.s32.totalorder %s20, 0
      %p187 = por %p185, %p186
      %p188 = scmp.ne.s32.totalorder %s180, %s182
      %p189 = scmp.eq.s32.totalorder %s25, 1
      %p190 = por %p188, %p189
      %p191 = scmp.ne.s32.totalorder %s182, %s183
      %p192 = scmp.eq.s32.totalorder %s25, 0
      %p193 = por %p191, %p192
      %p194 = scmp.ne.s32.totalorder %s182, %s183
      %p195 = scmp.eq.s32.totalorder %s26, 1
      %p196 = por %p194, %p195
      %p198 = scmp.ne.s32.totalorder %s183, %s197
      %p199 = scmp.eq.s32.totalorder %s26, 0
      %p200 = por %p198, %p199
      %s202 = sadd.s32 %s201, 1
      %p205 = scmp.eq.s32.totalorder %s20, 1
      %p206 = scmp.ne.s32.totalorder %s201, %s203
      %p207 = scmp.eq.s32.totalorder %s20, 0
      %p208 = por %p206, %p207
      %p209 = scmp.ne.s32.totalorder %s201, %s203
      %p210 = scmp.eq.s32.totalorder %s25, 1
      %p211 = por %p209, %p210
      %p212 = scmp.ne.s32.totalorder %s203, %s204
      %p213 = scmp.eq.s32.totalorder %s25, 0
      %p214 = por %p212, %p213
      %p215 = scmp.ne.s32.totalorder %s203, %s204
      %p216 = scmp.eq.s32.totalorder %s26, 1
      %p217 = por %p215, %p216
      %p219 = scmp.ne.s32.totalorder %s204, %s218
      %p220 = scmp.eq.s32.totalorder %s26, 0
      %p221 = por %p219, %p220
      %s223 = sadd.s32 %s222, 1
      %p226 = scmp.eq.s32.totalorder %s20, 1
      %p227 = scmp.ne.s32.totalorder %s222, %s224
      %p228 = scmp.eq.s32.totalorder %s20, 0
      %p229 = por %p227, %p228
      %p230 = scmp.ne.s32.totalorder %s222, %s224
      %p231 = scmp.eq.s32.totalorder %s25, 1
      %p232 = por %p230, %p231
      %p233 = scmp.ne.s32.totalorder %s224, %s225
      %p234 = scmp.eq.s32.totalorder %s25, 0
      %p235 = por %p233, %p234
      %p236 = scmp.ne.s32.totalorder %s224, %s225
      %p237 = scmp.eq.s32.totalorder %s26, 1
      %p238 = por %p236, %p237
      %p240 = scmp.ne.s32.totalorder %s225, %s239
      %p241 = scmp.eq.s32.totalorder %s26, 0
      %p242 = por %p240, %p241
      %s244 = sadd.s32 %s243, 1
      %p247 = scmp.eq.s32.totalorder %s20, 1
      %p248 = scmp.ne.s32.totalorder %s243, %s245
      %p249 = scmp.eq.s32.totalorder %s20, 0
      %p250 = por %p248, %p249
      %p251 = scmp.ne.s32.totalorder %s243, %s245
      %p252 = scmp.eq.s32.totalorder %s25, 1
      %p253 = por %p251, %p252
      %p254 = scmp.ne.s32.totalorder %s245, %s246
      %p255 = scmp.eq.s32.totalorder %s25, 0
      %p256 = por %p254, %p255
      %p257 = scmp.ne.s32.totalorder %s245, %s246
      %p258 = scmp.eq.s32.totalorder %s26, 1
      %p259 = por %p257, %p258
      %p261 = scmp.ne.s32.totalorder %s246, %s260
      %p262 = scmp.eq.s32.totalorder %s26, 0
      %p263 = por %p261, %p262
      %s264 = ssub.s32 %s20, %s27
      %p265 = scmp.eq.s32.totalorder %s264, 0
      %s267 = sadd.s32 %s266, 1
      %s268 = scalar_select %p265, %s266, %s267
      %p271 = pneg %p265
      %p272 = scmp.eq.s32.totalorder %s20, 1
      %p273 = por %p271, %p272
      %p274 = scmp.ne.s32.totalorder %s266, %s269
      %p275 = scmp.eq.s32.totalorder %s20, 0
      %p276 = por %p274, %p275
      %p277 = scmp.ne.s32.totalorder %s266, %s269
      %p278 = scmp.eq.s32.totalorder %s25, 1
      %p279 = por %p277, %p278
      %p280 = scmp.ne.s32.totalorder %s269, %s270
      %p281 = scmp.eq.s32.totalorder %s25, 0
      %p282 = por %p280, %p281
      %p283 = scmp.ne.s32.totalorder %s269, %s270
      %p284 = scmp.eq.s32.totalorder %s26, 1
      %p285 = por %p283, %p284
      %p287 = scmp.ne.s32.totalorder %s270, %s286
      %p288 = scmp.eq.s32.totalorder %s26, 0
      %p289 = por %p287, %p288
      %p290 = scmp.le.s32.totalorder 1, %s20
      %p291 = scmp.lt.s32.totalorder %s20, 3
      %p292 = pnand %p290, %p291
      %p293 = pneg %p292
      // Predicated region
      $region9: #{tpu_custom_call.1} parent=5 // pred_check
        _
      $region10: #{tpu_custom_call.1} parent=5 // pred_check_branch
        %295 = sbr.rel (%p292) target = $region12
      $region11: #{tpu_custom_call.1} parent=5 // pred_region
        %s296 = ssub.s32 %s20, 1
        // Predicated region
        $region13: #{tpu_custom_call.1} parent=11 // pred_check
          %p297 = pneg %p67
        $region14: #{tpu_custom_call.1} parent=11 // pred_check_branch
          %299 = sbr.rel (%p297) target = $region16
        $region15: #{tpu_custom_call.1} parent=11 // pred_region
          _
        $region16: #{tpu_custom_call.1} parent=11 // pred_fallthru
          _
        // Predicated region
        $region17: #{tpu_custom_call.1} parent=11 // pred_check
          %p300 = pneg %p88
        $region18: #{tpu_custom_call.1} parent=11 // pred_check_branch
          %302 = sbr.rel (%p300) target = $region20
        $region19: #{tpu_custom_call.1} parent=11 // pred_region
          _
        $region20: #{tpu_custom_call.1} parent=11 // pred_fallthru
          _
        // Predicated region
        $region21: #{tpu_custom_call.1} parent=11 // pred_check
          %p303 = pneg %p109
        $region22: #{tpu_custom_call.1} parent=11 // pred_check_branch
          %305 = sbr.rel (%p303) target = $region24
        $region23: #{tpu_custom_call.1} parent=11 // pred_region
          _
        $region24: #{tpu_custom_call.1} parent=11 // pred_fallthru
          _
        // Predicated region
        $region25: #{tpu_custom_call.1} parent=11 // pred_check
          %p306 = pneg %p130
        $region26: #{tpu_custom_call.1} parent=11 // pred_check_branch
          %308 = sbr.rel (%p306) target = $region28
        $region27: #{tpu_custom_call.1} parent=11 // pred_region
          _
        $region28: #{tpu_custom_call.1} parent=11 // pred_fallthru
          _
        // Predicated region
        $region29: #{tpu_custom_call.1} parent=11 // pred_check
          %p309 = pneg %p151
        $region30: #{tpu_custom_call.1} parent=11 // pred_check_branch
          %311 = sbr.rel (%p309) target = $region32
        $region31: #{tpu_custom_call.1} parent=11 // pred_region
          _
        $region32: #{tpu_custom_call.1} parent=11 // pred_fallthru
          _
        // Predicated region
        $region33: #{tpu_custom_call.1} parent=11 // pred_check
          %p312 = pneg %p172
        $region34: #{tpu_custom_call.1} parent=11 // pred_check_branch
          %314 = sbr.rel (%p312) target = $region36
        $region35: #{tpu_custom_call.1} parent=11 // pred_region
          _
        $region36: #{tpu_custom_call.1} parent=11 // pred_fallthru
          _
        // Predicated region
        $region37: #{tpu_custom_call.1} parent=11 // pred_check
          %p315 = pneg %p193
        $region38: #{tpu_custom_call.1} parent=11 // pred_check_branch
          %317 = sbr.rel (%p315) target = $region40
        $region39: #{tpu_custom_call.1} parent=11 // pred_region
          _
        $region40: #{tpu_custom_call.1} parent=11 // pred_fallthru
          _
        // Predicated region
        $region41: #{tpu_custom_call.1} parent=11 // pred_check
          %p318 = pneg %p214
        $region42: #{tpu_custom_call.1} parent=11 // pred_check_branch
          %320 = sbr.rel (%p318) target = $region44
        $region43: #{tpu_custom_call.1} parent=11 // pred_region
          _
        $region44: #{tpu_custom_call.1} parent=11 // pred_fallthru
          _
        // Predicated region
        $region45: #{tpu_custom_call.1} parent=11 // pred_check
          %p321 = pneg %p235
        $region46: #{tpu_custom_call.1} parent=11 // pred_check_branch
          %323 = sbr.rel (%p321) target = $region48
        $region47: #{tpu_custom_call.1} parent=11 // pred_region
          _
        $region48: #{tpu_custom_call.1} parent=11 // pred_fallthru
          _
        // Predicated region
        $region49: #{tpu_custom_call.1} parent=11 // pred_check
          %p324 = pneg %p256
        $region50: #{tpu_custom_call.1} parent=11 // pred_check_branch
          %326 = sbr.rel (%p324) target = $region52
        $region51: #{tpu_custom_call.1} parent=11 // pred_region
          _
        $region52: #{tpu_custom_call.1} parent=11 // pred_fallthru
          _
      $region12: #{tpu_custom_call.1} parent=5 // pred_fallthru
        _
      %p327 = scmp.lt.s32.totalorder %s20, 2
      // Predicated region
      $region53: #{tpu_custom_call.1} parent=5 // pred_check
        %p328 = pneg %p327
      $region54: #{tpu_custom_call.1} parent=5 // pred_check_branch
        %330 = sbr.rel (%p328) target = $region56
      $region55: #{tpu_custom_call.1} parent=5 // pred_region
        // Predicated region
        $region57: #{tpu_custom_call.1} parent=55 // pred_check
          %p331 = pneg %p40
        $region58: #{tpu_custom_call.1} parent=55 // pred_check_branch
          %333 = sbr.rel (%p331) target = $region60
        $region59: #{tpu_custom_call.1} parent=55 // pred_region
          %p334 = scmp.lt.s32.totalorder %s20, 1
          %s335 = scalar_select %p334, %s20, 1
          %s336 = smul.addr %s335, 4
          %s337 = smul.addr %s336, 8
          %s338 = scalar_lea.vmem %s0, %s337
        $region60: #{tpu_custom_call.1} parent=55 // pred_fallthru
          _
      $region56: #{tpu_custom_call.1} parent=5 // pred_fallthru
        _
      %p339 = scmp.le.s32.totalorder 1, %s20
      %p340 = scmp.lt.s32.totalorder %s20, 3
      %p341 = pnand %p339, %p340
      %p342 = pneg %p341
      // Predicated region
      $region61: #{tpu_custom_call.1} parent=5 // pred_check
        _
      $region62: #{tpu_custom_call.1} parent=5 // pred_check_branch
        %344 = sbr.rel (%p341) target = $region64
      $region63: #{tpu_custom_call.1} parent=5 // pred_region
        %s345 = ssub.s32 %s20, 1
        %p346 = scmp.lt.s32.totalorder %s25, 1
        %s347 = scalar_select %p346, %s25, 1
        %s348 = smul.addr %s347, 4
        %s349 = smul.addr %s348, 8
        %s350 = scalar_lea.vmem %s0, %s349
        %p351 = pneg %p46
        %p352 = pneg %p43
        %p353 = pneg %p67
        %p354 = pneg %p64
        %p355 = pneg %p88
        %p356 = pneg %p85
        %p357 = pneg %p109
        %p358 = pneg %p106
        %p359 = pneg %p130
        %p360 = pneg %p127
        %p361 = pneg %p151
        %p362 = pneg %p148
        %p363 = pneg %p172
        %p364 = pneg %p169
        %p365 = pneg %p193
        %p366 = pneg %p190
        %p367 = pneg %p214
        %p368 = pneg %p211
        %p369 = pneg %p235
        %p370 = pneg %p232
        %p371 = pneg %p256
        %p372 = pneg %p253
        %p373 = pneg %p282
        %p374 = pneg %p279
        %s375 = sand.u32 %s269, 1
        %s376 = scalar_lea.sflag [#allocation3], %s375
        %s377 = sand.u32 %s269, 1
        %s378 = smul.addr %s377, 32
        %s379 = scalar_lea.vmem [#allocation2], %s378
        %p380 = scmp.lt.s32.totalorder %s25, 1
        %s381 = scalar_select %p380, %s25, 1
        %s382 = smul.addr %s381, 4
        %s383 = smul.addr %s382, 8
        %s384 = scalar_lea.vmem %s0, %s383
        %v385 = vld [vmem:[%s384] sm:$0xff]
        %v386 = vld [vmem:[%s384 + $0x8] sm:$0xff]
        %v387 = vld [vmem:[%s384 + $0x10] sm:$0xff]
        %v388 = vld [vmem:[%s384 + $0x18] sm:$0xff]
        %v393 = vcombine.high %v385, %v385
        %v395 = vunpack.c.l.s4 1966171168
        %v396 = vunpack.c.0.s8 %v395
        %v397 = vlaneseq
        %v398 = vshrl.u32 %v397, 7
        %v399 = vsub.s32 %v396, %v398
        %v400 = vrot.slane %v385, %v399
        %v402 = vunpack.c.l.s4 1966171168
        %v403 = vunpack.c.0.s8 %v402
        %v404 = vlaneseq
        %v405 = vshrl.u32 %v404, 7
        %v406 = vsub.s32 %v403, %v405
        %v407 = vrot.slane %v393, %v406
        %v408 = vcombine.high %v400, %v400
        %v409 = vcombine.high %v407, %v407
        %v411 = vunpack.c.l.s4 1966171168
        %v412 = vunpack.c.0.s8 %v411
        %v413 = vlaneseq
        %v414 = vshrl.u32 %v413, 7
        %v415 = vsub.s32 %v412, %v414
        %v416 = vrot.slane %v400, %v415
        %v418 = vunpack.c.l.s4 1966171168
        %v419 = vunpack.c.0.s8 %v418
        %v420 = vlaneseq
        %v421 = vshrl.u32 %v420, 7
        %v422 = vsub.s32 %v419, %v421
        %v423 = vrot.slane %v407, %v422
        %v425 = vunpack.c.l.s4 1966171168
        %v426 = vunpack.c.0.s8 %v425
        %v427 = vlaneseq
        %v428 = vshrl.u32 %v427, 7
        %v429 = vsub.s32 %v426, %v428
        %v430 = vrot.slane %v408, %v429
        %v432 = vunpack.c.l.s4 1966171168
        %v433 = vunpack.c.0.s8 %v432
        %v434 = vlaneseq
        %v435 = vshrl.u32 %v434, 7
        %v436 = vsub.s32 %v433, %v435
        %v437 = vrot.slane %v409, %v436
        %v438 = vcombine.high %v416, %v416
        %v439 = vcombine.high %v423, %v423
        %v440 = vcombine.high %v430, %v430
        %v441 = vcombine.high %v437, %v437
        %v442 = vcombine.high %v386, %v386
        %v444 = vunpack.c.l.s4 1966171168
        %v445 = vunpack.c.0.s8 %v444
        %v446 = vlaneseq
        %v447 = vshrl.u32 %v446, 7
        %v448 = vsub.s32 %v445, %v447
        %v449 = vrot.slane %v386, %v448
        %v451 = vunpack.c.l.s4 1966171168
        %v452 = vunpack.c.0.s8 %v451
        %v453 = vlaneseq
        %v454 = vshrl.u32 %v453, 7
        %v455 = vsub.s32 %v452, %v454
        %v456 = vrot.slane %v442, %v455
        %v457 = vcombine.high %v449, %v449
        %v458 = vcombine.high %v456, %v456
        %v460 = vunpack.c.l.s4 1966171168
        %v461 = vunpack.c.0.s8 %v460
        %v462 = vlaneseq
        %v463 = vshrl.u32 %v462, 7
        %v464 = vsub.s32 %v461, %v463
        %v465 = vrot.slane %v449, %v464
        %v467 = vunpack.c.l.s4 1966171168
        %v468 = vunpack.c.0.s8 %v467
        %v469 = vlaneseq
        %v470 = vshrl.u32 %v469, 7
        %v471 = vsub.s32 %v468, %v470
        %v472 = vrot.slane %v456, %v471
        %v474 = vunpack.c.l.s4 1966171168
        %v475 = vunpack.c.0.s8 %v474
        %v476 = vlaneseq
        %v477 = vshrl.u32 %v476, 7
        %v478 = vsub.s32 %v475, %v477
        %v479 = vrot.slane %v457, %v478
        %v481 = vunpack.c.l.s4 1966171168
        %v482 = vunpack.c.0.s8 %v481
        %v483 = vlaneseq
        %v484 = vshrl.u32 %v483, 7
        %v485 = vsub.s32 %v482, %v484
        %v486 = vrot.slane %v458, %v485
        %v487 = vcombine.high %v465, %v465
        %v488 = vcombine.high %v472, %v472
        %v489 = vcombine.high %v479, %v479
        %v490 = vcombine.high %v486, %v486
        %v491 = vcombine.high %v387, %v387
        %v493 = vunpack.c.l.s4 1966171168
        %v494 = vunpack.c.0.s8 %v493
        %v495 = vlaneseq
        %v496 = vshrl.u32 %v495, 7
        %v497 = vsub.s32 %v494, %v496
        %v498 = vrot.slane %v387, %v497
        %v500 = vunpack.c.l.s4 1966171168
        %v501 = vunpack.c.0.s8 %v500
        %v502 = vlaneseq
        %v503 = vshrl.u32 %v502, 7
        %v504 = vsub.s32 %v501, %v503
        %v505 = vrot.slane %v491, %v504
        %v506 = vcombine.high %v498, %v498
        %v507 = vcombine.high %v505, %v505
        %v509 = vunpack.c.l.s4 1966171168
        %v510 = vunpack.c.0.s8 %v509
        %v511 = vlaneseq
        %v512 = vshrl.u32 %v511, 7
        %v513 = vsub.s32 %v510, %v512
        %v514 = vrot.slane %v498, %v513
        %v516 = vunpack.c.l.s4 1966171168
        %v517 = vunpack.c.0.s8 %v516
        %v518 = vlaneseq
        %v519 = vshrl.u32 %v518, 7
        %v520 = vsub.s32 %v517, %v519
        %v521 = vrot.slane %v505, %v520
        %v523 = vunpack.c.l.s4 1966171168
        %v524 = vunpack.c.0.s8 %v523
        %v525 = vlaneseq
        %v526 = vshrl.u32 %v525, 7
        %v527 = vsub.s32 %v524, %v526
        %v528 = vrot.slane %v506, %v527
        %v530 = vunpack.c.l.s4 1966171168
        %v531 = vunpack.c.0.s8 %v530
        %v532 = vlaneseq
        %v533 = vshrl.u32 %v532, 7
        %v534 = vsub.s32 %v531, %v533
        %v535 = vrot.slane %v507, %v534
        %v536 = vcombine.high %v514, %v514
        %v537 = vcombine.high %v521, %v521
        %v538 = vcombine.high %v528, %v528
        %v539 = vcombine.high %v535, %v535
        %v540 = vcombine.high %v388, %v388
        %v542 = vunpack.c.l.s4 1966171168
        %v543 = vunpack.c.0.s8 %v542
        %v544 = vlaneseq
        %v545 = vshrl.u32 %v544, 7
        %v546 = vsub.s32 %v543, %v545
        %v547 = vrot.slane %v388, %v546
        %v549 = vunpack.c.l.s4 1966171168
        %v550 = vunpack.c.0.s8 %v549
        %v551 = vlaneseq
        %v552 = vshrl.u32 %v551, 7
        %v553 = vsub.s32 %v550, %v552
        %v554 = vrot.slane %v540, %v553
        %v555 = vcombine.high %v547, %v547
        %v556 = vcombine.high %v554, %v554
        %v558 = vunpack.c.l.s4 1966171168
        %v559 = vunpack.c.0.s8 %v558
        %v560 = vlaneseq
        %v561 = vshrl.u32 %v560, 7
        %v562 = vsub.s32 %v559, %v561
        %v563 = vrot.slane %v547, %v562
        %v565 = vunpack.c.l.s4 1966171168
        %v566 = vunpack.c.0.s8 %v565
        %v567 = vlaneseq
        %v568 = vshrl.u32 %v567, 7
        %v569 = vsub.s32 %v566, %v568
        %v570 = vrot.slane %v554, %v569
        %v572 = vunpack.c.l.s4 1966171168
        %v573 = vunpack.c.0.s8 %v572
        %v574 = vlaneseq
        %v575 = vshrl.u32 %v574, 7
        %v576 = vsub.s32 %v573, %v575
        %v577 = vrot.slane %v555, %v576
        %v579 = vunpack.c.l.s4 1966171168
        %v580 = vunpack.c.0.s8 %v579
        %v581 = vlaneseq
        %v582 = vshrl.u32 %v581, 7
        %v583 = vsub.s32 %v580, %v582
        %v584 = vrot.slane %v556, %v583
        %v585 = vcombine.high %v563, %v563
        %v586 = vcombine.high %v570, %v570
        %v587 = vcombine.high %v577, %v577
        %v588 = vcombine.high %v584, %v584
        %vm621 = vcmask 1040384
        %v622 = vsel %vm621, %v416, 0.0
        %623 = vadd.xlane.f32.xlu0 %v622
        %v624 = vpop.xlane.xlu0 %623
        %v625 = vsel %vm621, %v430, 0.0
        %626 = vadd.xlane.f32.xlu0 %v625
        %v627 = vpop.xlane.xlu0 %626
        %v628 = vsel %vm621, %v438, 0.0
        %629 = vadd.xlane.f32.xlu0 %v628
        %v630 = vpop.xlane.xlu0 %629
        %v631 = vsel %vm621, %v440, 0.0
        %632 = vadd.xlane.f32.xlu0 %v631
        %v633 = vpop.xlane.xlu0 %632
        %v634 = vsel %vm621, %v423, 0.0
        %635 = vadd.xlane.f32.xlu0 %v634
        %v636 = vpop.xlane.xlu0 %635
        %v637 = vsel %vm621, %v437, 0.0
        %638 = vadd.xlane.f32.xlu0 %v637
        %v639 = vpop.xlane.xlu0 %638
        %v640 = vsel %vm621, %v439, 0.0
        %641 = vadd.xlane.f32.xlu0 %v640
        %v642 = vpop.xlane.xlu0 %641
        %v643 = vsel %vm621, %v441, 0.0
        %644 = vadd.xlane.f32.xlu0 %v643
        %v645 = vpop.xlane.xlu0 %644
        %v646 = vsel %vm621, %v465, 0.0
        %647 = vadd.xlane.f32.xlu0 %v646
        %v648 = vpop.xlane.xlu0 %647
        %v649 = vsel %vm621, %v479, 0.0
        %650 = vadd.xlane.f32.xlu0 %v649
        %v651 = vpop.xlane.xlu0 %650
        %v652 = vsel %vm621, %v487, 0.0
        %653 = vadd.xlane.f32.xlu0 %v652
        %v654 = vpop.xlane.xlu0 %653
        %v655 = vsel %vm621, %v489, 0.0
        %656 = vadd.xlane.f32.xlu0 %v655
        %v657 = vpop.xlane.xlu0 %656
        %v658 = vsel %vm621, %v472, 0.0
        %659 = vadd.xlane.f32.xlu0 %v658
        %v660 = vpop.xlane.xlu0 %659
        %v661 = vsel %vm621, %v486, 0.0
        %662 = vadd.xlane.f32.xlu0 %v661
        %v663 = vpop.xlane.xlu0 %662
        %v664 = vsel %vm621, %v488, 0.0
        %665 = vadd.xlane.f32.xlu0 %v664
        %v666 = vpop.xlane.xlu0 %665
        %v667 = vsel %vm621, %v490, 0.0
        %668 = vadd.xlane.f32.xlu0 %v667
        %v669 = vpop.xlane.xlu0 %668
        %v670 = vsel %vm621, %v514, 0.0
        %671 = vadd.xlane.f32.xlu0 %v670
        %v672 = vpop.xlane.xlu0 %671
        %v673 = vsel %vm621, %v528, 0.0
        %674 = vadd.xlane.f32.xlu0 %v673
        %v675 = vpop.xlane.xlu0 %674
        %v676 = vsel %vm621, %v536, 0.0
        %677 = vadd.xlane.f32.xlu0 %v676
        %v678 = vpop.xlane.xlu0 %677
        %v679 = vsel %vm621, %v538, 0.0
        %680 = vadd.xlane.f32.xlu0 %v679
        %v681 = vpop.xlane.xlu0 %680
        %v682 = vsel %vm621, %v521, 0.0
        %683 = vadd.xlane.f32.xlu0 %v682
        %v684 = vpop.xlane.xlu0 %683
        %v685 = vsel %vm621, %v535, 0.0
        %686 = vadd.xlane.f32.xlu0 %v685
        %v687 = vpop.xlane.xlu0 %686
        %v688 = vsel %vm621, %v537, 0.0
        %689 = vadd.xlane.f32.xlu0 %v688
        %v690 = vpop.xlane.xlu0 %689
        %v691 = vsel %vm621, %v539, 0.0
        %692 = vadd.xlane.f32.xlu0 %v691
        %v693 = vpop.xlane.xlu0 %692
        %v694 = vsel %vm621, %v563, 0.0
        %695 = vadd.xlane.f32.xlu0 %v694
        %v696 = vpop.xlane.xlu0 %695
        %v697 = vsel %vm621, %v577, 0.0
        %698 = vadd.xlane.f32.xlu0 %v697
        %v699 = vpop.xlane.xlu0 %698
        %v700 = vsel %vm621, %v585, 0.0
        %701 = vadd.xlane.f32.xlu0 %v700
        %v702 = vpop.xlane.xlu0 %701
        %v703 = vsel %vm621, %v587, 0.0
        %704 = vadd.xlane.f32.xlu0 %v703
        %v705 = vpop.xlane.xlu0 %704
        %v706 = vsel %vm621, %v570, 0.0
        %707 = vadd.xlane.f32.xlu0 %v706
        %v708 = vpop.xlane.xlu0 %707
        %v709 = vsel %vm621, %v584, 0.0
        %710 = vadd.xlane.f32.xlu0 %v709
        %v711 = vpop.xlane.xlu0 %710
        %v712 = vsel %vm621, %v586, 0.0
        %713 = vadd.xlane.f32.xlu0 %v712
        %v714 = vpop.xlane.xlu0 %713
        %v715 = vsel %vm621, %v588, 0.0
        %716 = vadd.xlane.f32.xlu0 %v715
        %v717 = vpop.xlane.xlu0 %716
        %v718 = vadd.f32 %v624, 0.0
        %v719 = vadd.f32 %v627, 0.0
        %v720 = vadd.f32 %v630, 0.0
        %v721 = vadd.f32 %v633, 0.0
        %v722 = vadd.f32 %v636, 0.0
        %v723 = vadd.f32 %v639, 0.0
        %v724 = vadd.f32 %v642, 0.0
        %v725 = vadd.f32 %v645, 0.0
        %v726 = vadd.f32 %v648, 0.0
        %v727 = vadd.f32 %v651, 0.0
        %v728 = vadd.f32 %v654, 0.0
        %v729 = vadd.f32 %v657, 0.0
        %v730 = vadd.f32 %v660, 0.0
        %v731 = vadd.f32 %v663, 0.0
        %v732 = vadd.f32 %v666, 0.0
        %v733 = vadd.f32 %v669, 0.0
        %v734 = vadd.f32 %v672, 0.0
        %v735 = vadd.f32 %v675, 0.0
        %v736 = vadd.f32 %v678, 0.0
        %v737 = vadd.f32 %v681, 0.0
        %v738 = vadd.f32 %v684, 0.0
        %v739 = vadd.f32 %v687, 0.0
        %v740 = vadd.f32 %v690, 0.0
        %v741 = vadd.f32 %v693, 0.0
        %v742 = vadd.f32 %v696, 0.0
        %v743 = vadd.f32 %v699, 0.0
        %v744 = vadd.f32 %v702, 0.0
        %v745 = vadd.f32 %v705, 0.0
        %v746 = vadd.f32 %v708, 0.0
        %v747 = vadd.f32 %v711, 0.0
        %v748 = vadd.f32 %v714, 0.0
        %v749 = vadd.f32 %v717, 0.0
        %v750 = vmul.f32 %v416, %v416
        %v751 = vmul.f32 %v430, %v430
        %v752 = vmul.f32 %v438, %v438
        %v753 = vmul.f32 %v440, %v440
        %v754 = vmul.f32 %v423, %v423
        %v755 = vmul.f32 %v437, %v437
        %v756 = vmul.f32 %v439, %v439
        %v757 = vmul.f32 %v441, %v441
        %v758 = vmul.f32 %v465, %v465
        %v759 = vmul.f32 %v479, %v479
        %v760 = vmul.f32 %v487, %v487
        %v761 = vmul.f32 %v489, %v489
        %v762 = vmul.f32 %v472, %v472
        %v763 = vmul.f32 %v486, %v486
        %v764 = vmul.f32 %v488, %v488
        %v765 = vmul.f32 %v490, %v490
        %v766 = vmul.f32 %v514, %v514
        %v767 = vmul.f32 %v528, %v528
        %v768 = vmul.f32 %v536, %v536
        %v769 = vmul.f32 %v538, %v538
        %v770 = vmul.f32 %v521, %v521
        %v771 = vmul.f32 %v535, %v535
        %v772 = vmul.f32 %v537, %v537
        %v773 = vmul.f32 %v539, %v539
        %v774 = vmul.f32 %v563, %v563
        %v775 = vmul.f32 %v577, %v577
        %v776 = vmul.f32 %v585, %v585
        %v777 = vmul.f32 %v587, %v587
        %v778 = vmul.f32 %v570, %v570
        %v779 = vmul.f32 %v584, %v584
        %v780 = vmul.f32 %v586, %v586
        %v781 = vmul.f32 %v588, %v588
        %v782 = vsel %vm621, %v750, 0.0
        %783 = vadd.xlane.f32.xlu0 %v782
        %v784 = vpop.xlane.xlu0 %783
        %v785 = vsel %vm621, %v751, 0.0
        %786 = vadd.xlane.f32.xlu0 %v785
        %v787 = vpop.xlane.xlu0 %786
        %v788 = vsel %vm621, %v752, 0.0
        %789 = vadd.xlane.f32.xlu0 %v788
        %v790 = vpop.xlane.xlu0 %789
        %v791 = vsel %vm621, %v753, 0.0
        %792 = vadd.xlane.f32.xlu0 %v791
        %v793 = vpop.xlane.xlu0 %792
        %v794 = vsel %vm621, %v754, 0.0
        %795 = vadd.xlane.f32.xlu0 %v794
        %v796 = vpop.xlane.xlu0 %795
        %v797 = vsel %vm621, %v755, 0.0
        %798 = vadd.xlane.f32.xlu0 %v797
        %v799 = vpop.xlane.xlu0 %798
        %v800 = vsel %vm621, %v756, 0.0
        %801 = vadd.xlane.f32.xlu0 %v800
        %v802 = vpop.xlane.xlu0 %801
        %v803 = vsel %vm621, %v757, 0.0
        %804 = vadd.xlane.f32.xlu0 %v803
        %v805 = vpop.xlane.xlu0 %804
        %v806 = vsel %vm621, %v758, 0.0
        %807 = vadd.xlane.f32.xlu0 %v806
        %v808 = vpop.xlane.xlu0 %807
        %v809 = vsel %vm621, %v759, 0.0
        %810 = vadd.xlane.f32.xlu0 %v809
        %v811 = vpop.xlane.xlu0 %810
        %v812 = vsel %vm621, %v760, 0.0
        %813 = vadd.xlane.f32.xlu0 %v812
        %v814 = vpop.xlane.xlu0 %813
        %v815 = vsel %vm621, %v761, 0.0
        %816 = vadd.xlane.f32.xlu0 %v815
        %v817 = vpop.xlane.xlu0 %816
        %v818 = vsel %vm621, %v762, 0.0
        %819 = vadd.xlane.f32.xlu0 %v818
        %v820 = vpop.xlane.xlu0 %819
        %v821 = vsel %vm621, %v763, 0.0
        %822 = vadd.xlane.f32.xlu0 %v821
        %v823 = vpop.xlane.xlu0 %822
        %v824 = vsel %vm621, %v764, 0.0
        %825 = vadd.xlane.f32.xlu0 %v824
        %v826 = vpop.xlane.xlu0 %825
        %v827 = vsel %vm621, %v765, 0.0
        %828 = vadd.xlane.f32.xlu0 %v827
        %v829 = vpop.xlane.xlu0 %828
        %v830 = vsel %vm621, %v766, 0.0
        %831 = vadd.xlane.f32.xlu0 %v830
        %v832 = vpop.xlane.xlu0 %831
        %v833 = vsel %vm621, %v767, 0.0
        %834 = vadd.xlane.f32.xlu0 %v833
        %v835 = vpop.xlane.xlu0 %834
        %v836 = vsel %vm621, %v768, 0.0
        %837 = vadd.xlane.f32.xlu0 %v836
        %v838 = vpop.xlane.xlu0 %837
        %v839 = vsel %vm621, %v769, 0.0
        %840 = vadd.xlane.f32.xlu0 %v839
        %v841 = vpop.xlane.xlu0 %840
        %v842 = vsel %vm621, %v770, 0.0
        %843 = vadd.xlane.f32.xlu0 %v842
        %v844 = vpop.xlane.xlu0 %843
        %v845 = vsel %vm621, %v771, 0.0
        %846 = vadd.xlane.f32.xlu0 %v845
        %v847 = vpop.xlane.xlu0 %846
        %v848 = vsel %vm621, %v772, 0.0
        %849 = vadd.xlane.f32.xlu0 %v848
        %v850 = vpop.xlane.xlu0 %849
        %v851 = vsel %vm621, %v773, 0.0
        %852 = vadd.xlane.f32.xlu0 %v851
        %v853 = vpop.xlane.xlu0 %852
        %v854 = vsel %vm621, %v774, 0.0
        %855 = vadd.xlane.f32.xlu0 %v854
        %v856 = vpop.xlane.xlu0 %855
        %v857 = vsel %vm621, %v775, 0.0
        %858 = vadd.xlane.f32.xlu0 %v857
        %v859 = vpop.xlane.xlu0 %858
        %v860 = vsel %vm621, %v776, 0.0
        %861 = vadd.xlane.f32.xlu0 %v860
        %v862 = vpop.xlane.xlu0 %861
        %v863 = vsel %vm621, %v777, 0.0
        %864 = vadd.xlane.f32.xlu0 %v863
        %v865 = vpop.xlane.xlu0 %864
        %v866 = vsel %vm621, %v778, 0.0
        %867 = vadd.xlane.f32.xlu0 %v866
        %v868 = vpop.xlane.xlu0 %867
        %v869 = vsel %vm621, %v779, 0.0
        %870 = vadd.xlane.f32.xlu0 %v869
        %v871 = vpop.xlane.xlu0 %870
        %v872 = vsel %vm621, %v780, 0.0
        %873 = vadd.xlane.f32.xlu0 %v872
        %v874 = vpop.xlane.xlu0 %873
        %v875 = vsel %vm621, %v781, 0.0
        %876 = vadd.xlane.f32.xlu0 %v875
        %v877 = vpop.xlane.xlu0 %876
        %v878 = vadd.f32 %v784, 0.0
        %v879 = vadd.f32 %v787, 0.0
        %v880 = vadd.f32 %v790, 0.0
        %v881 = vadd.f32 %v793, 0.0
        %v882 = vadd.f32 %v796, 0.0
        %v883 = vadd.f32 %v799, 0.0
        %v884 = vadd.f32 %v802, 0.0
        %v885 = vadd.f32 %v805, 0.0
        %v886 = vadd.f32 %v808, 0.0
        %v887 = vadd.f32 %v811, 0.0
        %v888 = vadd.f32 %v814, 0.0
        %v889 = vadd.f32 %v817, 0.0
        %v890 = vadd.f32 %v820, 0.0
        %v891 = vadd.f32 %v823, 0.0
        %v892 = vadd.f32 %v826, 0.0
        %v893 = vadd.f32 %v829, 0.0
        %v894 = vadd.f32 %v832, 0.0
        %v895 = vadd.f32 %v835, 0.0
        %v896 = vadd.f32 %v838, 0.0
        %v897 = vadd.f32 %v841, 0.0
        %v898 = vadd.f32 %v844, 0.0
        %v899 = vadd.f32 %v847, 0.0
        %v900 = vadd.f32 %v850, 0.0
        %v901 = vadd.f32 %v853, 0.0
        %v902 = vadd.f32 %v856, 0.0
        %v903 = vadd.f32 %v859, 0.0
        %v904 = vadd.f32 %v862, 0.0
        %v905 = vadd.f32 %v865, 0.0
        %v906 = vadd.f32 %v868, 0.0
        %v907 = vadd.f32 %v871, 0.0
        %v908 = vadd.f32 %v874, 0.0
        %v909 = vadd.f32 %v877, 0.0
        %v910 = vrcp.pop 128.0
        %v911 = vmul.f32 %v718, %v910
        %v912 = vmul.f32 %v719, %v910
        %v913 = vmul.f32 %v720, %v910
        %v914 = vmul.f32 %v721, %v910
        %v915 = vmul.f32 %v722, %v910
        %v916 = vmul.f32 %v723, %v910
        %v917 = vmul.f32 %v724, %v910
        %v918 = vmul.f32 %v725, %v910
        %v919 = vmul.f32 %v726, %v910
        %v920 = vmul.f32 %v727, %v910
        %v921 = vmul.f32 %v728, %v910
        %v922 = vmul.f32 %v729, %v910
        %v923 = vmul.f32 %v730, %v910
        %v924 = vmul.f32 %v731, %v910
        %v925 = vmul.f32 %v732, %v910
        %v926 = vmul.f32 %v733, %v910
        %v927 = vmul.f32 %v734, %v910
        %v928 = vmul.f32 %v735, %v910
        %v929 = vmul.f32 %v736, %v910
        %v930 = vmul.f32 %v737, %v910
        %v931 = vmul.f32 %v738, %v910
        %v932 = vmul.f32 %v739, %v910
        %v933 = vmul.f32 %v740, %v910
        %v934 = vmul.f32 %v741, %v910
        %v935 = vmul.f32 %v742, %v910
        %v936 = vmul.f32 %v743, %v910
        %v937 = vmul.f32 %v744, %v910
        %v938 = vmul.f32 %v745, %v910
        %v939 = vmul.f32 %v746, %v910
        %v940 = vmul.f32 %v747, %v910
        %v941 = vmul.f32 %v748, %v910
        %v942 = vmul.f32 %v749, %v910
        %v943 = vmul.f32 %v878, %v910
        %v944 = vmul.f32 %v879, %v910
        %v945 = vmul.f32 %v880, %v910
        %v946 = vmul.f32 %v881, %v910
        %v947 = vmul.f32 %v882, %v910
        %v948 = vmul.f32 %v883, %v910
        %v949 = vmul.f32 %v884, %v910
        %v950 = vmul.f32 %v885, %v910
        %v951 = vmul.f32 %v886, %v910
        %v952 = vmul.f32 %v887, %v910
        %v953 = vmul.f32 %v888, %v910
        %v954 = vmul.f32 %v889, %v910
        %v955 = vmul.f32 %v890, %v910
        %v956 = vmul.f32 %v891, %v910
        %v957 = vmul.f32 %v892, %v910
        %v958 = vmul.f32 %v893, %v910
        %v959 = vmul.f32 %v894, %v910
        %v960 = vmul.f32 %v895, %v910
        %v961 = vmul.f32 %v896, %v910
        %v962 = vmul.f32 %v897, %v910
        %v963 = vmul.f32 %v898, %v910
        %v964 = vmul.f32 %v899, %v910
        %v965 = vmul.f32 %v900, %v910
        %v966 = vmul.f32 %v901, %v910
        %v967 = vmul.f32 %v902, %v910
        %v968 = vmul.f32 %v903, %v910
        %v969 = vmul.f32 %v904, %v910
        %v970 = vmul.f32 %v905, %v910
        %v971 = vmul.f32 %v906, %v910
        %v972 = vmul.f32 %v907, %v910
        %v973 = vmul.f32 %v908, %v910
        %v974 = vmul.f32 %v909, %v910
        %v975 = vmul.f32 %v911, %v911
        %v976 = vmul.f32 %v912, %v912
        %v977 = vmul.f32 %v913, %v913
        %v978 = vmul.f32 %v914, %v914
        %v979 = vmul.f32 %v915, %v915
        %v980 = vmul.f32 %v916, %v916
        %v981 = vmul.f32 %v917, %v917
        %v982 = vmul.f32 %v918, %v918
        %v983 = vmul.f32 %v919, %v919
        %v984 = vmul.f32 %v920, %v920
        %v985 = vmul.f32 %v921, %v921
        %v986 = vmul.f32 %v922, %v922
        %v987 = vmul.f32 %v923, %v923
        %v988 = vmul.f32 %v924, %v924
        %v989 = vmul.f32 %v925, %v925
        %v990 = vmul.f32 %v926, %v926
        %v991 = vmul.f32 %v927, %v927
        %v992 = vmul.f32 %v928, %v928
        %v993 = vmul.f32 %v929, %v929
        %v994 = vmul.f32 %v930, %v930
        %v995 = vmul.f32 %v931, %v931
        %v996 = vmul.f32 %v932, %v932
        %v997 = vmul.f32 %v933, %v933
        %v998 = vmul.f32 %v934, %v934
        %v999 = vmul.f32 %v935, %v935
        %v1000 = vmul.f32 %v936, %v936
        %v1001 = vmul.f32 %v937, %v937
        %v1002 = vmul.f32 %v938, %v938
        %v1003 = vmul.f32 %v939, %v939
        %v1004 = vmul.f32 %v940, %v940
        %v1005 = vmul.f32 %v941, %v941
        %v1006 = vmul.f32 %v942, %v942
        %v1007 = vsub.f32 %v943, %v975
        %v1008 = vsub.f32 %v944, %v976
        %v1009 = vsub.f32 %v945, %v977
        %v1010 = vsub.f32 %v946, %v978
        %v1011 = vsub.f32 %v947, %v979
        %v1012 = vsub.f32 %v948, %v980
        %v1013 = vsub.f32 %v949, %v981
        %v1014 = vsub.f32 %v950, %v982
        %v1015 = vsub.f32 %v951, %v983
        %v1016 = vsub.f32 %v952, %v984
        %v1017 = vsub.f32 %v953, %v985
        %v1018 = vsub.f32 %v954, %v986
        %v1019 = vsub.f32 %v955, %v987
        %v1020 = vsub.f32 %v956, %v988
        %v1021 = vsub.f32 %v957, %v989
        %v1022 = vsub.f32 %v958, %v990
        %v1023 = vsub.f32 %v959, %v991
        %v1024 = vsub.f32 %v960, %v992
        %v1025 = vsub.f32 %v961, %v993
        %v1026 = vsub.f32 %v962, %v994
        %v1027 = vsub.f32 %v963, %v995
        %v1028 = vsub.f32 %v964, %v996
        %v1029 = vsub.f32 %v965, %v997
        %v1030 = vsub.f32 %v966, %v998
        %v1031 = vsub.f32 %v967, %v999
        %v1032 = vsub.f32 %v968, %v1000
        %v1033 = vsub.f32 %v969, %v1001
        %v1034 = vsub.f32 %v970, %v1002
        %v1035 = vsub.f32 %v971, %v1003
        %v1036 = vsub.f32 %v972, %v1004
        %v1037 = vsub.f32 %v973, %v1005
        %v1038 = vsub.f32 %v974, %v1006
        %v1039 = vmax.f32 %v1007, 0.0
        %v1040 = vmax.f32 %v1008, 0.0
        %v1041 = vmax.f32 %v1009, 0.0
        %v1042 = vmax.f32 %v1010, 0.0
        %v1043 = vmax.f32 %v1011, 0.0
        %v1044 = vmax.f32 %v1012, 0.0
        %v1045 = vmax.f32 %v1013, 0.0
        %v1046 = vmax.f32 %v1014, 0.0
        %v1047 = vmax.f32 %v1015, 0.0
        %v1048 = vmax.f32 %v1016, 0.0
        %v1049 = vmax.f32 %v1017, 0.0
        %v1050 = vmax.f32 %v1018, 0.0
        %v1051 = vmax.f32 %v1019, 0.0
        %v1052 = vmax.f32 %v1020, 0.0
        %v1053 = vmax.f32 %v1021, 0.0
        %v1054 = vmax.f32 %v1022, 0.0
        %v1055 = vmax.f32 %v1023, 0.0
        %v1056 = vmax.f32 %v1024, 0.0
        %v1057 = vmax.f32 %v1025, 0.0
        %v1058 = vmax.f32 %v1026, 0.0
        %v1059 = vmax.f32 %v1027, 0.0
        %v1060 = vmax.f32 %v1028, 0.0
        %v1061 = vmax.f32 %v1029, 0.0
        %v1062 = vmax.f32 %v1030, 0.0
        %v1063 = vmax.f32 %v1031, 0.0
        %v1064 = vmax.f32 %v1032, 0.0
        %v1065 = vmax.f32 %v1033, 0.0
        %v1066 = vmax.f32 %v1034, 0.0
        %v1067 = vmax.f32 %v1035, 0.0
        %v1068 = vmax.f32 %v1036, 0.0
        %v1069 = vmax.f32 %v1037, 0.0
        %v1070 = vmax.f32 %v1038, 0.0
        %v1071 = vsub.f32 %v416, %v911
        %v1072 = vsub.f32 %v430, %v912
        %v1073 = vsub.f32 %v438, %v913
        %v1074 = vsub.f32 %v440, %v914
        %v1075 = vsub.f32 %v423, %v915
        %v1076 = vsub.f32 %v437, %v916
        %v1077 = vsub.f32 %v439, %v917
        %v1078 = vsub.f32 %v441, %v918
        %v1079 = vsub.f32 %v465, %v919
        %v1080 = vsub.f32 %v479, %v920
        %v1081 = vsub.f32 %v487, %v921
        %v1082 = vsub.f32 %v489, %v922
        %v1083 = vsub.f32 %v472, %v923
        %v1084 = vsub.f32 %v486, %v924
        %v1085 = vsub.f32 %v488, %v925
        %v1086 = vsub.f32 %v490, %v926
        %v1087 = vsub.f32 %v514, %v927
        %v1088 = vsub.f32 %v528, %v928
        %v1089 = vsub.f32 %v536, %v929
        %v1090 = vsub.f32 %v538, %v930
        %v1091 = vsub.f32 %v521, %v931
        %v1092 = vsub.f32 %v535, %v932
        %v1093 = vsub.f32 %v537, %v933
        %v1094 = vsub.f32 %v539, %v934
        %v1095 = vsub.f32 %v563, %v935
        %v1096 = vsub.f32 %v577, %v936
        %v1097 = vsub.f32 %v585, %v937
        %v1098 = vsub.f32 %v587, %v938
        %v1099 = vsub.f32 %v570, %v939
        %v1100 = vsub.f32 %v584, %v940
        %v1101 = vsub.f32 %v586, %v941
        %v1102 = vsub.f32 %v588, %v942
        %v1103 = vadd.f32 %v1039, 1e-05
        %v1104 = vadd.f32 %v1040, 1e-05
        %v1105 = vadd.f32 %v1041, 1e-05
        %v1106 = vadd.f32 %v1042, 1e-05
        %v1107 = vadd.f32 %v1043, 1e-05
        %v1108 = vadd.f32 %v1044, 1e-05
        %v1109 = vadd.f32 %v1045, 1e-05
        %v1110 = vadd.f32 %v1046, 1e-05
        %v1111 = vadd.f32 %v1047, 1e-05
        %v1112 = vadd.f32 %v1048, 1e-05
        %v1113 = vadd.f32 %v1049, 1e-05
        %v1114 = vadd.f32 %v1050, 1e-05
        %v1115 = vadd.f32 %v1051, 1e-05
        %v1116 = vadd.f32 %v1052, 1e-05
        %v1117 = vadd.f32 %v1053, 1e-05
        %v1118 = vadd.f32 %v1054, 1e-05
        %v1119 = vadd.f32 %v1055, 1e-05
        %v1120 = vadd.f32 %v1056, 1e-05
        %v1121 = vadd.f32 %v1057, 1e-05
        %v1122 = vadd.f32 %v1058, 1e-05
        %v1123 = vadd.f32 %v1059, 1e-05
        %v1124 = vadd.f32 %v1060, 1e-05
        %v1125 = vadd.f32 %v1061, 1e-05
        %v1126 = vadd.f32 %v1062, 1e-05
        %v1127 = vadd.f32 %v1063, 1e-05
        %v1128 = vadd.f32 %v1064, 1e-05
        %v1129 = vadd.f32 %v1065, 1e-05
        %v1130 = vadd.f32 %v1066, 1e-05
        %v1131 = vadd.f32 %v1067, 1e-05
        %v1132 = vadd.f32 %v1068, 1e-05
        %v1133 = vadd.f32 %v1069, 1e-05
        %v1134 = vadd.f32 %v1070, 1e-05
        %v1135 = vrsqrt.pop %v1103
        %v1136 = vrsqrt.pop %v1104
        %v1137 = vrsqrt.pop %v1105
        %v1138 = vrsqrt.pop %v1106
        %v1139 = vrsqrt.pop %v1107
        %v1140 = vrsqrt.pop %v1108
        %v1141 = vrsqrt.pop %v1109
        %v1142 = vrsqrt.pop %v1110
        %v1143 = vrsqrt.pop %v1111
        %v1144 = vrsqrt.pop %v1112
        %v1145 = vrsqrt.pop %v1113
        %v1146 = vrsqrt.pop %v1114
        %v1147 = vrsqrt.pop %v1115
        %v1148 = vrsqrt.pop %v1116
        %v1149 = vrsqrt.pop %v1117
        %v1150 = vrsqrt.pop %v1118
        %v1151 = vrsqrt.pop %v1119
        %v1152 = vrsqrt.pop %v1120
        %v1153 = vrsqrt.pop %v1121
        %v1154 = vrsqrt.pop %v1122
        %v1155 = vrsqrt.pop %v1123
        %v1156 = vrsqrt.pop %v1124
        %v1157 = vrsqrt.pop %v1125
        %v1158 = vrsqrt.pop %v1126
        %v1159 = vrsqrt.pop %v1127
        %v1160 = vrsqrt.pop %v1128
        %v1161 = vrsqrt.pop %v1129
        %v1162 = vrsqrt.pop %v1130
        %v1163 = vrsqrt.pop %v1131
        %v1164 = vrsqrt.pop %v1132
        %v1165 = vrsqrt.pop %v1133
        %v1166 = vrsqrt.pop %v1134
        %v1167 = vmul.f32 %v1071, %v1135
        %v1168 = vmul.f32 %v1072, %v1136
        %v1169 = vmul.f32 %v1073, %v1137
        %v1170 = vmul.f32 %v1074, %v1138
        %v1171 = vmul.f32 %v1075, %v1139
        %v1172 = vmul.f32 %v1076, %v1140
        %v1173 = vmul.f32 %v1077, %v1141
        %v1174 = vmul.f32 %v1078, %v1142
        %v1175 = vmul.f32 %v1079, %v1143
        %v1176 = vmul.f32 %v1080, %v1144
        %v1177 = vmul.f32 %v1081, %v1145
        %v1178 = vmul.f32 %v1082, %v1146
        %v1179 = vmul.f32 %v1083, %v1147
        %v1180 = vmul.f32 %v1084, %v1148
        %v1181 = vmul.f32 %v1085, %v1149
        %v1182 = vmul.f32 %v1086, %v1150
        %v1183 = vmul.f32 %v1087, %v1151
        %v1184 = vmul.f32 %v1088, %v1152
        %v1185 = vmul.f32 %v1089, %v1153
        %v1186 = vmul.f32 %v1090, %v1154
        %v1187 = vmul.f32 %v1091, %v1155
        %v1188 = vmul.f32 %v1092, %v1156
        %v1189 = vmul.f32 %v1093, %v1157
        %v1190 = vmul.f32 %v1094, %v1158
        %v1191 = vmul.f32 %v1095, %v1159
        %v1192 = vmul.f32 %v1096, %v1160
        %v1193 = vmul.f32 %v1097, %v1161
        %v1194 = vmul.f32 %v1098, %v1162
        %v1195 = vmul.f32 %v1099, %v1163
        %v1196 = vmul.f32 %v1100, %v1164
        %v1197 = vmul.f32 %v1101, %v1165
        %v1198 = vmul.f32 %v1102, %v1166
        %v1199 = vld [vmem:[%s1] sm:$0xff]
        %v1200 = vld [vmem:[%s1 + $0x8] sm:$0xff]
        %v1201 = vld [vmem:[%s1 + $0x10] sm:$0xff]
        %v1202 = vld [vmem:[%s1 + $0x18] sm:$0xff]
        %1204 = vset.pattern.permute.xlu0 0
        %1205 = vperm.xlu0 %1204, %v1199
        %v1206 = vpop.permute.xlu0 %1205
        %1208 = vset.pattern.permute.xlu0 0
        %1209 = vperm.xlu0 %1208, %v1200
        %v1210 = vpop.permute.xlu0 %1209
        %1212 = vset.pattern.permute.xlu0 0
        %1213 = vperm.xlu0 %1212, %v1201
        %v1214 = vpop.permute.xlu0 %1213
        %1216 = vset.pattern.permute.xlu0 0
        %1217 = vperm.xlu0 %1216, %v1202
        %v1218 = vpop.permute.xlu0 %1217
        %v1219 = vlaneseq
        %v1220 = vshrl.u32 %v1219, 7
        %v1221 = vsub.s32 0, %v1220
        %v1222 = vrot.slane %v1206, %v1221
        %v1223 = vlaneseq
        %v1224 = vshrl.u32 %v1223, 7
        %v1225 = vsub.s32 1, %v1224
        %v1226 = vrot.slane %v1206, %v1225
        %v1227 = vlaneseq
        %v1228 = vshrl.u32 %v1227, 7
        %v1229 = vsub.s32 2, %v1228
        %v1230 = vrot.slane %v1206, %v1229
        %v1231 = vlaneseq
        %v1232 = vshrl.u32 %v1231, 7
        %v1233 = vsub.s32 3, %v1232
        %v1234 = vrot.slane %v1206, %v1233
        %v1235 = vlaneseq
        %v1236 = vshrl.u32 %v1235, 7
        %v1237 = vsub.s32 4, %v1236
        %v1238 = vrot.slane %v1206, %v1237
        %v1239 = vlaneseq
        %v1240 = vshrl.u32 %v1239, 7
        %v1241 = vsub.s32 5, %v1240
        %v1242 = vrot.slane %v1206, %v1241
        %v1243 = vlaneseq
        %v1244 = vshrl.u32 %v1243, 7
        %v1245 = vsub.s32 6, %v1244
        %v1246 = vrot.slane %v1206, %v1245
        %v1247 = vlaneseq
        %v1248 = vshrl.u32 %v1247, 7
        %v1249 = vsub.s32 7, %v1248
        %v1250 = vrot.slane %v1206, %v1249
        %v1251 = vlaneseq
        %v1252 = vshrl.u32 %v1251, 7
        %v1253 = vsub.s32 0, %v1252
        %v1254 = vrot.slane %v1210, %v1253
        %v1255 = vlaneseq
        %v1256 = vshrl.u32 %v1255, 7
        %v1257 = vsub.s32 1, %v1256
        %v1258 = vrot.slane %v1210, %v1257
        %v1259 = vlaneseq
        %v1260 = vshrl.u32 %v1259, 7
        %v1261 = vsub.s32 2, %v1260
        %v1262 = vrot.slane %v1210, %v1261
        %v1263 = vlaneseq
        %v1264 = vshrl.u32 %v1263, 7
        %v1265 = vsub.s32 3, %v1264
        %v1266 = vrot.slane %v1210, %v1265
        %v1267 = vlaneseq
        %v1268 = vshrl.u32 %v1267, 7
        %v1269 = vsub.s32 4, %v1268
        %v1270 = vrot.slane %v1210, %v1269
        %v1271 = vlaneseq
        %v1272 = vshrl.u32 %v1271, 7
        %v1273 = vsub.s32 5, %v1272
        %v1274 = vrot.slane %v1210, %v1273
        %v1275 = vlaneseq
        %v1276 = vshrl.u32 %v1275, 7
        %v1277 = vsub.s32 6, %v1276
        %v1278 = vrot.slane %v1210, %v1277
        %v1279 = vlaneseq
        %v1280 = vshrl.u32 %v1279, 7
        %v1281 = vsub.s32 7, %v1280
        %v1282 = vrot.slane %v1210, %v1281
        %v1283 = vlaneseq
        %v1284 = vshrl.u32 %v1283, 7
        %v1285 = vsub.s32 0, %v1284
        %v1286 = vrot.slane %v1214, %v1285
        %v1287 = vlaneseq
        %v1288 = vshrl.u32 %v1287, 7
        %v1289 = vsub.s32 1, %v1288
        %v1290 = vrot.slane %v1214, %v1289
        %v1291 = vlaneseq
        %v1292 = vshrl.u32 %v1291, 7
        %v1293 = vsub.s32 2, %v1292
        %v1294 = vrot.slane %v1214, %v1293
        %v1295 = vlaneseq
        %v1296 = vshrl.u32 %v1295, 7
        %v1297 = vsub.s32 3, %v1296
        %v1298 = vrot.slane %v1214, %v1297
        %v1299 = vlaneseq
        %v1300 = vshrl.u32 %v1299, 7
        %v1301 = vsub.s32 4, %v1300
        %v1302 = vrot.slane %v1214, %v1301
        %v1303 = vlaneseq
        %v1304 = vshrl.u32 %v1303, 7
        %v1305 = vsub.s32 5, %v1304
        %v1306 = vrot.slane %v1214, %v1305
        %v1307 = vlaneseq
        %v1308 = vshrl.u32 %v1307, 7
        %v1309 = vsub.s32 6, %v1308
        %v1310 = vrot.slane %v1214, %v1309
        %v1311 = vlaneseq
        %v1312 = vshrl.u32 %v1311, 7
        %v1313 = vsub.s32 7, %v1312
        %v1314 = vrot.slane %v1214, %v1313
        %v1315 = vlaneseq
        %v1316 = vshrl.u32 %v1315, 7
        %v1317 = vsub.s32 0, %v1316
        %v1318 = vrot.slane %v1218, %v1317
        %v1319 = vlaneseq
        %v1320 = vshrl.u32 %v1319, 7
        %v1321 = vsub.s32 1, %v1320
        %v1322 = vrot.slane %v1218, %v1321
        %v1323 = vlaneseq
        %v1324 = vshrl.u32 %v1323, 7
        %v1325 = vsub.s32 2, %v1324
        %v1326 = vrot.slane %v1218, %v1325
        %v1327 = vlaneseq
        %v1328 = vshrl.u32 %v1327, 7
        %v1329 = vsub.s32 3, %v1328
        %v1330 = vrot.slane %v1218, %v1329
        %v1331 = vlaneseq
        %v1332 = vshrl.u32 %v1331, 7
        %v1333 = vsub.s32 4, %v1332
        %v1334 = vrot.slane %v1218, %v1333
        %v1335 = vlaneseq
        %v1336 = vshrl.u32 %v1335, 7
        %v1337 = vsub.s32 5, %v1336
        %v1338 = vrot.slane %v1218, %v1337
        %v1339 = vlaneseq
        %v1340 = vshrl.u32 %v1339, 7
        %v1341 = vsub.s32 6, %v1340
        %v1342 = vrot.slane %v1218, %v1341
        %v1343 = vlaneseq
        %v1344 = vshrl.u32 %v1343, 7
        %v1345 = vsub.s32 7, %v1344
        %v1346 = vrot.slane %v1218, %v1345
        %v1379 = vmul.f32 %v1167, %v1222
        %v1380 = vmul.f32 %v1168, %v1226
        %v1381 = vmul.f32 %v1169, %v1230
        %v1382 = vmul.f32 %v1170, %v1234
        %v1383 = vmul.f32 %v1171, %v1238
        %v1384 = vmul.f32 %v1172, %v1242
        %v1385 = vmul.f32 %v1173, %v1246
        %v1386 = vmul.f32 %v1174, %v1250
        %v1387 = vmul.f32 %v1175, %v1254
        %v1388 = vmul.f32 %v1176, %v1258
        %v1389 = vmul.f32 %v1177, %v1262
        %v1390 = vmul.f32 %v1178, %v1266
        %v1391 = vmul.f32 %v1179, %v1270
        %v1392 = vmul.f32 %v1180, %v1274
        %v1393 = vmul.f32 %v1181, %v1278
        %v1394 = vmul.f32 %v1182, %v1282
        %v1395 = vmul.f32 %v1183, %v1286
        %v1396 = vmul.f32 %v1184, %v1290
        %v1397 = vmul.f32 %v1185, %v1294
        %v1398 = vmul.f32 %v1186, %v1298
        %v1399 = vmul.f32 %v1187, %v1302
        %v1400 = vmul.f32 %v1188, %v1306
        %v1401 = vmul.f32 %v1189, %v1310
        %v1402 = vmul.f32 %v1190, %v1314
        %v1403 = vmul.f32 %v1191, %v1318
        %v1404 = vmul.f32 %v1192, %v1322
        %v1405 = vmul.f32 %v1193, %v1326
        %v1406 = vmul.f32 %v1194, %v1330
        %v1407 = vmul.f32 %v1195, %v1334
        %v1408 = vmul.f32 %v1196, %v1338
        %v1409 = vmul.f32 %v1197, %v1342
        %v1410 = vmul.f32 %v1198, %v1346
        %v1411 = vld [vmem:[%s2] sm:$0xff]
        %v1412 = vld [vmem:[%s2 + $0x8] sm:$0xff]
        %v1413 = vld [vmem:[%s2 + $0x10] sm:$0xff]
        %v1414 = vld [vmem:[%s2 + $0x18] sm:$0xff]
        %1416 = vset.pattern.permute.xlu0 0
        %1417 = vperm.xlu0 %1416, %v1411
        %v1418 = vpop.permute.xlu0 %1417
        %1420 = vset.pattern.permute.xlu0 0
        %1421 = vperm.xlu0 %1420, %v1412
        %v1422 = vpop.permute.xlu0 %1421
        %1424 = vset.pattern.permute.xlu0 0
        %1425 = vperm.xlu0 %1424, %v1413
        %v1426 = vpop.permute.xlu0 %1425
        %1428 = vset.pattern.permute.xlu0 0
        %1429 = vperm.xlu0 %1428, %v1414
        %v1430 = vpop.permute.xlu0 %1429
        %v1431 = vlaneseq
        %v1432 = vshrl.u32 %v1431, 7
        %v1433 = vsub.s32 0, %v1432
        %v1434 = vrot.slane %v1418, %v1433
        %v1435 = vlaneseq
        %v1436 = vshrl.u32 %v1435, 7
        %v1437 = vsub.s32 1, %v1436
        %v1438 = vrot.slane %v1418, %v1437
        %v1439 = vlaneseq
        %v1440 = vshrl.u32 %v1439, 7
        %v1441 = vsub.s32 2, %v1440
        %v1442 = vrot.slane %v1418, %v1441
        %v1443 = vlaneseq
        %v1444 = vshrl.u32 %v1443, 7
        %v1445 = vsub.s32 3, %v1444
        %v1446 = vrot.slane %v1418, %v1445
        %v1447 = vlaneseq
        %v1448 = vshrl.u32 %v1447, 7
        %v1449 = vsub.s32 4, %v1448
        %v1450 = vrot.slane %v1418, %v1449
        %v1451 = vlaneseq
        %v1452 = vshrl.u32 %v1451, 7
        %v1453 = vsub.s32 5, %v1452
        %v1454 = vrot.slane %v1418, %v1453
        %v1455 = vlaneseq
        %v1456 = vshrl.u32 %v1455, 7
        %v1457 = vsub.s32 6, %v1456
        %v1458 = vrot.slane %v1418, %v1457
        %v1459 = vlaneseq
        %v1460 = vshrl.u32 %v1459, 7
        %v1461 = vsub.s32 7, %v1460
        %v1462 = vrot.slane %v1418, %v1461
        %v1463 = vlaneseq
        %v1464 = vshrl.u32 %v1463, 7
        %v1465 = vsub.s32 0, %v1464
        %v1466 = vrot.slane %v1422, %v1465
        %v1467 = vlaneseq
        %v1468 = vshrl.u32 %v1467, 7
        %v1469 = vsub.s32 1, %v1468
        %v1470 = vrot.slane %v1422, %v1469
        %v1471 = vlaneseq
        %v1472 = vshrl.u32 %v1471, 7
        %v1473 = vsub.s32 2, %v1472
        %v1474 = vrot.slane %v1422, %v1473
        %v1475 = vlaneseq
        %v1476 = vshrl.u32 %v1475, 7
        %v1477 = vsub.s32 3, %v1476
        %v1478 = vrot.slane %v1422, %v1477
        %v1479 = vlaneseq
        %v1480 = vshrl.u32 %v1479, 7
        %v1481 = vsub.s32 4, %v1480
        %v1482 = vrot.slane %v1422, %v1481
        %v1483 = vlaneseq
        %v1484 = vshrl.u32 %v1483, 7
        %v1485 = vsub.s32 5, %v1484
        %v1486 = vrot.slane %v1422, %v1485
        %v1487 = vlaneseq
        %v1488 = vshrl.u32 %v1487, 7
        %v1489 = vsub.s32 6, %v1488
        %v1490 = vrot.slane %v1422, %v1489
        %v1491 = vlaneseq
        %v1492 = vshrl.u32 %v1491, 7
        %v1493 = vsub.s32 7, %v1492
        %v1494 = vrot.slane %v1422, %v1493
        %v1495 = vlaneseq
        %v1496 = vshrl.u32 %v1495, 7
        %v1497 = vsub.s32 0, %v1496
        %v1498 = vrot.slane %v1426, %v1497
        %v1499 = vlaneseq
        %v1500 = vshrl.u32 %v1499, 7
        %v1501 = vsub.s32 1, %v1500
        %v1502 = vrot.slane %v1426, %v1501
        %v1503 = vlaneseq
        %v1504 = vshrl.u32 %v1503, 7
        %v1505 = vsub.s32 2, %v1504
        %v1506 = vrot.slane %v1426, %v1505
        %v1507 = vlaneseq
        %v1508 = vshrl.u32 %v1507, 7
        %v1509 = vsub.s32 3, %v1508
        %v1510 = vrot.slane %v1426, %v1509
        %v1511 = vlaneseq
        %v1512 = vshrl.u32 %v1511, 7
        %v1513 = vsub.s32 4, %v1512
        %v1514 = vrot.slane %v1426, %v1513
        %v1515 = vlaneseq
        %v1516 = vshrl.u32 %v1515, 7
        %v1517 = vsub.s32 5, %v1516
        %v1518 = vrot.slane %v1426, %v1517
        %v1519 = vlaneseq
        %v1520 = vshrl.u32 %v1519, 7
        %v1521 = vsub.s32 6, %v1520
        %v1522 = vrot.slane %v1426, %v1521
        %v1523 = vlaneseq
        %v1524 = vshrl.u32 %v1523, 7
        %v1525 = vsub.s32 7, %v1524
        %v1526 = vrot.slane %v1426, %v1525
        %v1527 = vlaneseq
        %v1528 = vshrl.u32 %v1527, 7
        %v1529 = vsub.s32 0, %v1528
        %v1530 = vrot.slane %v1430, %v1529
        %v1531 = vlaneseq
        %v1532 = vshrl.u32 %v1531, 7
        %v1533 = vsub.s32 1, %v1532
        %v1534 = vrot.slane %v1430, %v1533
        %v1535 = vlaneseq
        %v1536 = vshrl.u32 %v1535, 7
        %v1537 = vsub.s32 2, %v1536
        %v1538 = vrot.slane %v1430, %v1537
        %v1539 = vlaneseq
        %v1540 = vshrl.u32 %v1539, 7
        %v1541 = vsub.s32 3, %v1540
        %v1542 = vrot.slane %v1430, %v1541
        %v1543 = vlaneseq
        %v1544 = vshrl.u32 %v1543, 7
        %v1545 = vsub.s32 4, %v1544
        %v1546 = vrot.slane %v1430, %v1545
        %v1547 = vlaneseq
        %v1548 = vshrl.u32 %v1547, 7
        %v1549 = vsub.s32 5, %v1548
        %v1550 = vrot.slane %v1430, %v1549
        %v1551 = vlaneseq
        %v1552 = vshrl.u32 %v1551, 7
        %v1553 = vsub.s32 6, %v1552
        %v1554 = vrot.slane %v1430, %v1553
        %v1555 = vlaneseq
        %v1556 = vshrl.u32 %v1555, 7
        %v1557 = vsub.s32 7, %v1556
        %v1558 = vrot.slane %v1430, %v1557
        %v1591 = vadd.f32 %v1379, %v1434
        %v1592 = vadd.f32 %v1380, %v1438
        %v1593 = vadd.f32 %v1381, %v1442
        %v1594 = vadd.f32 %v1382, %v1446
        %v1595 = vadd.f32 %v1383, %v1450
        %v1596 = vadd.f32 %v1384, %v1454
        %v1597 = vadd.f32 %v1385, %v1458
        %v1598 = vadd.f32 %v1386, %v1462
        %v1599 = vadd.f32 %v1387, %v1466
        %v1600 = vadd.f32 %v1388, %v1470
        %v1601 = vadd.f32 %v1389, %v1474
        %v1602 = vadd.f32 %v1390, %v1478
        %v1603 = vadd.f32 %v1391, %v1482
        %v1604 = vadd.f32 %v1392, %v1486
        %v1605 = vadd.f32 %v1393, %v1490
        %v1606 = vadd.f32 %v1394, %v1494
        %v1607 = vadd.f32 %v1395, %v1498
        %v1608 = vadd.f32 %v1396, %v1502
        %v1609 = vadd.f32 %v1397, %v1506
        %v1610 = vadd.f32 %v1398, %v1510
        %v1611 = vadd.f32 %v1399, %v1514
        %v1612 = vadd.f32 %v1400, %v1518
        %v1613 = vadd.f32 %v1401, %v1522
        %v1614 = vadd.f32 %v1402, %v1526
        %v1615 = vadd.f32 %v1403, %v1530
        %v1616 = vadd.f32 %v1404, %v1534
        %v1617 = vadd.f32 %v1405, %v1538
        %v1618 = vadd.f32 %v1406, %v1542
        %v1619 = vadd.f32 %v1407, %v1546
        %v1620 = vadd.f32 %v1408, %v1550
        %v1621 = vadd.f32 %v1409, %v1554
        %v1622 = vadd.f32 %v1410, %v1558
        %v1623 = vld [vmem:[%s3] sm:$0xff]
        %v1624 = vld [vmem:[%s3 + $0x8] sm:$0xff]
        %v1625 = vld [vmem:[%s3 + $0x10] sm:$0xff]
        %v1626 = vld [vmem:[%s3 + $0x18] sm:$0xff]
        %v1627 = vld [vmem:[%s6] sm:$0xff]
        %v1628 = vld [vmem:[%s6 + $0x8] sm:$0xff]
        %v1629 = vld [vmem:[%s6 + $0x10] sm:$0xff]
        %v1630 = vld [vmem:[%s6 + $0x18] sm:$0xff]
        %1632 = vset.pattern.permute.xlu0 0
        %1633 = vperm.xlu0 %1632, %v1627
        %v1634 = vpop.permute.xlu0 %1633
        %1637 = vset.pattern.permute.xlu0 0
        %1638 = vperm.xlu0 %1637, %v1628
        %v1639 = vpop.permute.xlu0 %1638
        %1642 = vset.pattern.permute.xlu0 0
        %1643 = vperm.xlu0 %1642, %v1629
        %v1644 = vpop.permute.xlu0 %1643
        %1647 = vset.pattern.permute.xlu0 0
        %1648 = vperm.xlu0 %1647, %v1630
        %v1649 = vpop.permute.xlu0 %1648
        %v1683 = vcombine.low %v1591, %v1592
        %v1684 = vcombine.low %v1593, %v1594
        %v1685 = vcombine.low %v1595, %v1596
        %v1686 = vcombine.low %v1597, %v1598
        %v1688 = vunpack.c.l.s4 1966171168
        %v1689 = vunpack.c.0.s8 %v1688
        %v1690 = vlaneseq
        %v1691 = vshrl.u32 %v1690, 7
        %v1692 = vsub.s32 %v1689, %v1691
        %v1693 = vrot.slane %v1683, %v1692
        %v1695 = vunpack.c.l.s4 1966171168
        %v1696 = vunpack.c.0.s8 %v1695
        %v1697 = vlaneseq
        %v1698 = vshrl.u32 %v1697, 7
        %v1699 = vsub.s32 %v1696, %v1698
        %v1700 = vrot.slane %v1684, %v1699
        %v1702 = vunpack.c.l.s4 1966171168
        %v1703 = vunpack.c.0.s8 %v1702
        %v1704 = vlaneseq
        %v1705 = vshrl.u32 %v1704, 7
        %v1706 = vsub.s32 %v1703, %v1705
        %v1707 = vrot.slane %v1685, %v1706
        %v1709 = vunpack.c.l.s4 1966171168
        %v1710 = vunpack.c.0.s8 %v1709
        %v1711 = vlaneseq
        %v1712 = vshrl.u32 %v1711, 7
        %v1713 = vsub.s32 %v1710, %v1712
        %v1714 = vrot.slane %v1686, %v1713
        %v1715 = vcombine.low %v1693, %v1700
        %v1716 = vcombine.low %v1707, %v1714
        %v1718 = vunpack.c.l.s4 1966171168
        %v1719 = vunpack.c.0.s8 %v1718
        %v1720 = vlaneseq
        %v1721 = vshrl.u32 %v1720, 7
        %v1722 = vsub.s32 %v1719, %v1721
        %v1723 = vrot.slane %v1715, %v1722
        %v1725 = vunpack.c.l.s4 1966171168
        %v1726 = vunpack.c.0.s8 %v1725
        %v1727 = vlaneseq
        %v1728 = vshrl.u32 %v1727, 7
        %v1729 = vsub.s32 %v1726, %v1728
        %v1730 = vrot.slane %v1716, %v1729
        %v1731 = vcombine.low %v1723, %v1730
        %v1732 = vcombine.low %v1599, %v1600
        %v1733 = vcombine.low %v1601, %v1602
        %v1734 = vcombine.low %v1603, %v1604
        %v1735 = vcombine.low %v1605, %v1606
        %v1737 = vunpack.c.l.s4 1966171168
        %v1738 = vunpack.c.0.s8 %v1737
        %v1739 = vlaneseq
        %v1740 = vshrl.u32 %v1739, 7
        %v1741 = vsub.s32 %v1738, %v1740
        %v1742 = vrot.slane %v1732, %v1741
        %v1744 = vunpack.c.l.s4 1966171168
        %v1745 = vunpack.c.0.s8 %v1744
        %v1746 = vlaneseq
        %v1747 = vshrl.u32 %v1746, 7
        %v1748 = vsub.s32 %v1745, %v1747
        %v1749 = vrot.slane %v1733, %v1748
        %v1751 = vunpack.c.l.s4 1966171168
        %v1752 = vunpack.c.0.s8 %v1751
        %v1753 = vlaneseq
        %v1754 = vshrl.u32 %v1753, 7
        %v1755 = vsub.s32 %v1752, %v1754
        %v1756 = vrot.slane %v1734, %v1755
        %v1758 = vunpack.c.l.s4 1966171168
        %v1759 = vunpack.c.0.s8 %v1758
        %v1760 = vlaneseq
        %v1761 = vshrl.u32 %v1760, 7
        %v1762 = vsub.s32 %v1759, %v1761
        %v1763 = vrot.slane %v1735, %v1762
        %v1764 = vcombine.low %v1742, %v1749
        %v1765 = vcombine.low %v1756, %v1763
        %v1767 = vunpack.c.l.s4 1966171168
        %v1768 = vunpack.c.0.s8 %v1767
        %v1769 = vlaneseq
        %v1770 = vshrl.u32 %v1769, 7
        %v1771 = vsub.s32 %v1768, %v1770
        %v1772 = vrot.slane %v1764, %v1771
        %v1774 = vunpack.c.l.s4 1966171168
        %v1775 = vunpack.c.0.s8 %v1774
        %v1776 = vlaneseq
        %v1777 = vshrl.u32 %v1776, 7
        %v1778 = vsub.s32 %v1775, %v1777
        %v1779 = vrot.slane %v1765, %v1778
        %v1780 = vcombine.low %v1772, %v1779
        %v1781 = vcombine.low %v1607, %v1608
        %v1782 = vcombine.low %v1609, %v1610
        %v1783 = vcombine.low %v1611, %v1612
        %v1784 = vcombine.low %v1613, %v1614
        %v1786 = vunpack.c.l.s4 1966171168
        %v1787 = vunpack.c.0.s8 %v1786
        %v1788 = vlaneseq
        %v1789 = vshrl.u32 %v1788, 7
        %v1790 = vsub.s32 %v1787, %v1789
        %v1791 = vrot.slane %v1781, %v1790
        %v1793 = vunpack.c.l.s4 1966171168
        %v1794 = vunpack.c.0.s8 %v1793
        %v1795 = vlaneseq
        %v1796 = vshrl.u32 %v1795, 7
        %v1797 = vsub.s32 %v1794, %v1796
        %v1798 = vrot.slane %v1782, %v1797
        %v1800 = vunpack.c.l.s4 1966171168
        %v1801 = vunpack.c.0.s8 %v1800
        %v1802 = vlaneseq
        %v1803 = vshrl.u32 %v1802, 7
        %v1804 = vsub.s32 %v1801, %v1803
        %v1805 = vrot.slane %v1783, %v1804
        %v1807 = vunpack.c.l.s4 1966171168
        %v1808 = vunpack.c.0.s8 %v1807
        %v1809 = vlaneseq
        %v1810 = vshrl.u32 %v1809, 7
        %v1811 = vsub.s32 %v1808, %v1810
        %v1812 = vrot.slane %v1784, %v1811
        %v1813 = vcombine.low %v1791, %v1798
        %v1814 = vcombine.low %v1805, %v1812
        %v1816 = vunpack.c.l.s4 1966171168
        %v1817 = vunpack.c.0.s8 %v1816
        %v1818 = vlaneseq
        %v1819 = vshrl.u32 %v1818, 7
        %v1820 = vsub.s32 %v1817, %v1819
        %v1821 = vrot.slane %v1813, %v1820
        %v1823 = vunpack.c.l.s4 1966171168
        %v1824 = vunpack.c.0.s8 %v1823
        %v1825 = vlaneseq
        %v1826 = vshrl.u32 %v1825, 7
        %v1827 = vsub.s32 %v1824, %v1826
        %v1828 = vrot.slane %v1814, %v1827
        %v1829 = vcombine.low %v1821, %v1828
        %v1830 = vcombine.low %v1615, %v1616
        %v1831 = vcombine.low %v1617, %v1618
        %v1832 = vcombine.low %v1619, %v1620
        %v1833 = vcombine.low %v1621, %v1622
        %v1835 = vunpack.c.l.s4 1966171168
        %v1836 = vunpack.c.0.s8 %v1835
        %v1837 = vlaneseq
        %v1838 = vshrl.u32 %v1837, 7
        %v1839 = vsub.s32 %v1836, %v1838
        %v1840 = vrot.slane %v1830, %v1839
        %v1842 = vunpack.c.l.s4 1966171168
        %v1843 = vunpack.c.0.s8 %v1842
        %v1844 = vlaneseq
        %v1845 = vshrl.u32 %v1844, 7
        %v1846 = vsub.s32 %v1843, %v1845
        %v1847 = vrot.slane %v1831, %v1846
        %v1849 = vunpack.c.l.s4 1966171168
        %v1850 = vunpack.c.0.s8 %v1849
        %v1851 = vlaneseq
        %v1852 = vshrl.u32 %v1851, 7
        %v1853 = vsub.s32 %v1850, %v1852
        %v1854 = vrot.slane %v1832, %v1853
        %v1856 = vunpack.c.l.s4 1966171168
        %v1857 = vunpack.c.0.s8 %v1856
        %v1858 = vlaneseq
        %v1859 = vshrl.u32 %v1858, 7
        %v1860 = vsub.s32 %v1857, %v1859
        %v1861 = vrot.slane %v1833, %v1860
        %v1862 = vcombine.low %v1840, %v1847
        %v1863 = vcombine.low %v1854, %v1861
        %v1865 = vunpack.c.l.s4 1966171168
        %v1866 = vunpack.c.0.s8 %v1865
        %v1867 = vlaneseq
        %v1868 = vshrl.u32 %v1867, 7
        %v1869 = vsub.s32 %v1866, %v1868
        %v1870 = vrot.slane %v1862, %v1869
        %v1872 = vunpack.c.l.s4 1966171168
        %v1873 = vunpack.c.0.s8 %v1872
        %v1874 = vlaneseq
        %v1875 = vshrl.u32 %v1874, 7
        %v1876 = vsub.s32 %v1873, %v1875
        %v1877 = vrot.slane %v1863, %v1876
        %v1878 = vcombine.low %v1870, %v1877
        %vm1883 = vcmask 261120
        %v1885 = vsel %vm1883, %v1623, 0
        %v1888 = vsel %vm1883, %v1624, 0
        %v1891 = vsel %vm1883, %v1625, 0
        %v1894 = vsel %vm1883, %v1626, 0
        %1896 = vmatprep.subr.mxu0 0.0
        %1897 = vmatpush1.msra.mxu0 %v1731
        %1898 = vmatprep.subr.mxu0 0.0
        %1899 = vmatpush1.msra.mxu0 %v1780
        %1900 = vmatprep.subr.mxu0 0.0
        %1901 = vmatpush1.msra.mxu0 %v1829
        %1902 = vmatprep.subr.mxu0 0.0
        %1903 = vmatpush1.msra.mxu0 %v1878
        %1904 = vmatprep.subr.mxu0 0.0
        %1905 = vmatpush1.msra.mxu0 0.0
        %1906 = vmatprep.subr.mxu0 0.0
        %1907 = vmatpush1.msra.mxu0 0.0
        %1908 = vmatprep.subr.mxu0 0.0
        %1909 = vmatpush1.msra.mxu0 0.0
        %1910 = vmatprep.subr.mxu0 0.0
        %1911 = vmatpush1.msra.mxu0 0.0
        %1912 = vmatprep.subr.mxu0 0.0
        %1913 = vmatpush1.msra.mxu0 0.0
        %1914 = vmatprep.subr.mxu0 0.0
        %1915 = vmatpush1.msra.mxu0 0.0
        %1916 = vmatprep.subr.mxu0 0.0
        %1917 = vmatpush1.msra.mxu0 0.0
        %1918 = vmatprep.subr.mxu0 0.0
        %1919 = vmatpush1.msra.mxu0 0.0
        %1920 = vmatprep.subr.mxu0 0.0
        %1921 = vmatpush1.msra.mxu0 0.0
        %1922 = vmatprep.subr.mxu0 0.0
        %1923 = vmatpush1.msra.mxu0 0.0
        %1924 = vmatprep.subr.mxu0 0.0
        %1925 = vmatpush1.msra.mxu0 0.0
        %1926 = vmatprep.subr.mxu0 0.0
        %1927 = vmatpush1.msra.mxu0 0.0
        %1928 = vmatprep.subr.mxu0 0.0
        %1929 = vmatpush1.msra.mxu0 0.0
        %1930 = vmatprep.subr.mxu0 0.0
        %1931 = vmatpush1.msra.mxu0 0.0
        %1932 = vmatprep.subr.mxu0 0.0
        %1933 = vmatpush1.msra.mxu0 0.0
        %1934 = vmatprep.subr.mxu0 0.0
        %1935 = vmatpush1.msra.mxu0 0.0
        %1936 = vmatprep.subr.mxu0 0.0
        %1937 = vmatpush1.msra.mxu0 0.0
        %1938 = vmatprep.subr.mxu0 0.0
        %1939 = vmatpush1.msra.mxu0 0.0
        %1940 = vmatprep.subr.mxu0 0.0
        %1941 = vmatpush1.msra.mxu0 0.0
        %1942 = vmatprep.subr.mxu0 0.0
        %1943 = vmatpush1.msra.mxu0 0.0
        %1944 = vmatprep.subr.mxu0 0.0
        %1945 = vmatpush1.msra.mxu0 0.0
        %1946 = vmatprep.subr.mxu0 0.0
        %1947 = vmatpush1.msra.mxu0 0.0
        %1948 = vmatprep.subr.mxu0 0.0
        %1949 = vmatpush1.msra.mxu0 0.0
        %1950 = vmatprep.subr.mxu0 0.0
        %1951 = vmatpush1.msra.mxu0 0.0
        %1952 = vmatprep.subr.mxu0 0.0
        %1953 = vmatpush1.msra.mxu0 0.0
        %1954 = vmatprep.subr.mxu0 0.0
        %1955 = vmatpush1.msra.mxu0 0.0
        %1956 = vmatprep.subr.mxu0 0.0
        %1957 = vmatpush1.msra.mxu0 0.0
        %1958 = vmatprep.subr.mxu0 0.0
        %1959 = vmatpush1.msra.mxu0 0.0
        %1960 = vmatprep.mubr.f32.mxu0 0.0
        %1961 = vmatmul.mubr.f32.gmra.mrb[0].mxu0 %v1885
        %v1962 = vpop.f32.mrb[0].mxu0
        %v1963 = vadd.f32 %v1634, %v1962
        %v1964 = vpop.f32.mrb[0].mxu0
        %1965 = vmatprep.mubr.f32.mxu0 0.0
        %1966 = vmatmul.mubr.f32.gmra.mrb[0].mxu0 %v1888
        %v1967 = vpop.f32.mrb[0].mxu0
        %v1968 = vadd.f32 %v1639, %v1967
        %v1969 = vpop.f32.mrb[0].mxu0
        %1970 = vmatprep.mubr.f32.mxu0 0.0
        %1971 = vmatmul.mubr.f32.gmra.mrb[0].mxu0 %v1891
        %v1972 = vpop.f32.mrb[0].mxu0
        %v1973 = vadd.f32 %v1644, %v1972
        %v1974 = vpop.f32.mrb[0].mxu0
        %1975 = vmatprep.mubr.f32.mxu0 0.0
        %1976 = vmatmul.mubr.f32.gmra.mrb[0].mxu0 %v1894
        %v1977 = vpop.f32.mrb[0].mxu0
        %v1978 = vadd.f32 %v1649, %v1977
        %v1979 = vpop.f32.mrb[0].mxu0
        %1980 = vdwg.mxu0
        %v1981 = vld [vmem:[%s4] sm:$0xff]
        %v1982 = vld [vmem:[%s4 + $0x8] sm:$0xff]
        %v1983 = vld [vmem:[%s4 + $0x10] sm:$0xff]
        %v1984 = vld [vmem:[%s4 + $0x18] sm:$0xff]
        %v1985 = vld [vmem:[%s7] sm:$0xff]
        %v1986 = vld [vmem:[%s7 + $0x8] sm:$0xff]
        %v1987 = vld [vmem:[%s7 + $0x10] sm:$0xff]
        %v1988 = vld [vmem:[%s7 + $0x18] sm:$0xff]
        %1990 = vset.pattern.permute.xlu0 0
        %1991 = vperm.xlu0 %1990, %v1985
        %v1992 = vpop.permute.xlu0 %1991
        %1995 = vset.pattern.permute.xlu0 0
        %1996 = vperm.xlu0 %1995, %v1986
        %v1997 = vpop.permute.xlu0 %1996
        %2000 = vset.pattern.permute.xlu0 0
        %2001 = vperm.xlu0 %2000, %v1987
        %v2002 = vpop.permute.xlu0 %2001
        %2005 = vset.pattern.permute.xlu0 0
        %2006 = vperm.xlu0 %2005, %v1988
        %v2007 = vpop.permute.xlu0 %2006
        %v2010 = vsel %vm1883, %v1981, 0
        %v2013 = vsel %vm1883, %v1982, 0
        %v2016 = vsel %vm1883, %v1983, 0
        %v2019 = vsel %vm1883, %v1984, 0
        %2021 = vmatprep.subr.mxu0 0.0
        %2022 = vmatpush1.msra.mxu0 %v1731
        %2023 = vmatprep.subr.mxu0 0.0
        %2024 = vmatpush1.msra.mxu0 %v1780
        %2025 = vmatprep.subr.mxu0 0.0
        %2026 = vmatpush1.msra.mxu0 %v1829
        %2027 = vmatprep.subr.mxu0 0.0
        %2028 = vmatpush1.msra.mxu0 %v1878
        %2029 = vmatprep.subr.mxu0 0.0
        %2030 = vmatpush1.msra.mxu0 0.0
        %2031 = vmatprep.subr.mxu0 0.0
        %2032 = vmatpush1.msra.mxu0 0.0
        %2033 = vmatprep.subr.mxu0 0.0
        %2034 = vmatpush1.msra.mxu0 0.0
        %2035 = vmatprep.subr.mxu0 0.0
        %2036 = vmatpush1.msra.mxu0 0.0
        %2037 = vmatprep.subr.mxu0 0.0
        %2038 = vmatpush1.msra.mxu0 0.0
        %2039 = vmatprep.subr.mxu0 0.0
        %2040 = vmatpush1.msra.mxu0 0.0
        %2041 = vmatprep.subr.mxu0 0.0
        %2042 = vmatpush1.msra.mxu0 0.0
        %2043 = vmatprep.subr.mxu0 0.0
        %2044 = vmatpush1.msra.mxu0 0.0
        %2045 = vmatprep.subr.mxu0 0.0
        %2046 = vmatpush1.msra.mxu0 0.0
        %2047 = vmatprep.subr.mxu0 0.0
        %2048 = vmatpush1.msra.mxu0 0.0
        %2049 = vmatprep.subr.mxu0 0.0
        %2050 = vmatpush1.msra.mxu0 0.0
        %2051 = vmatprep.subr.mxu0 0.0
        %2052 = vmatpush1.msra.mxu0 0.0
        %2053 = vmatprep.subr.mxu0 0.0
        %2054 = vmatpush1.msra.mxu0 0.0
        %2055 = vmatprep.subr.mxu0 0.0
        %2056 = vmatpush1.msra.mxu0 0.0
        %2057 = vmatprep.subr.mxu0 0.0
        %2058 = vmatpush1.msra.mxu0 0.0
        %2059 = vmatprep.subr.mxu0 0.0
        %2060 = vmatpush1.msra.mxu0 0.0
        %2061 = vmatprep.subr.mxu0 0.0
        %2062 = vmatpush1.msra.mxu0 0.0
        %2063 = vmatprep.subr.mxu0 0.0
        %2064 = vmatpush1.msra.mxu0 0.0
        %2065 = vmatprep.subr.mxu0 0.0
        %2066 = vmatpush1.msra.mxu0 0.0
        %2067 = vmatprep.subr.mxu0 0.0
        %2068 = vmatpush1.msra.mxu0 0.0
        %2069 = vmatprep.subr.mxu0 0.0
        %2070 = vmatpush1.msra.mxu0 0.0
        %2071 = vmatprep.subr.mxu0 0.0
        %2072 = vmatpush1.msra.mxu0 0.0
        %2073 = vmatprep.subr.mxu0 0.0
        %2074 = vmatpush1.msra.mxu0 0.0
        %2075 = vmatprep.subr.mxu0 0.0
        %2076 = vmatpush1.msra.mxu0 0.0
        %2077 = vmatprep.subr.mxu0 0.0
        %2078 = vmatpush1.msra.mxu0 0.0
        %2079 = vmatprep.subr.mxu0 0.0
        %2080 = vmatpush1.msra.mxu0 0.0
        %2081 = vmatprep.subr.mxu0 0.0
        %2082 = vmatpush1.msra.mxu0 0.0
        %2083 = vmatprep.subr.mxu0 0.0
        %2084 = vmatpush1.msra.mxu0 0.0
        %2085 = vmatprep.mubr.f32.mxu0 0.0
        %2086 = vmatmul.mubr.f32.gmra.mrb[0].mxu0 %v2010
        %v2087 = vpop.f32.mrb[0].mxu0
        %v2088 = vadd.f32 %v1992, %v2087
        %v2089 = vpop.f32.mrb[0].mxu0
        %2090 = vmatprep.mubr.f32.mxu0 0.0
        %2091 = vmatmul.mubr.f32.gmra.mrb[0].mxu0 %v2013
        %v2092 = vpop.f32.mrb[0].mxu0
        %v2093 = vadd.f32 %v1997, %v2092
        %v2094 = vpop.f32.mrb[0].mxu0
        %2095 = vmatprep.mubr.f32.mxu0 0.0
        %2096 = vmatmul.mubr.f32.gmra.mrb[0].mxu0 %v2016
        %v2097 = vpop.f32.mrb[0].mxu0
        %v2098 = vadd.f32 %v2002, %v2097
        %v2099 = vpop.f32.mrb[0].mxu0
        %2100 = vmatprep.mubr.f32.mxu0 0.0
        %2101 = vmatmul.mubr.f32.gmra.mrb[0].mxu0 %v2019
        %v2102 = vpop.f32.mrb[0].mxu0
        %v2103 = vadd.f32 %v2007, %v2102
        %v2104 = vpop.f32.mrb[0].mxu0
        %2105 = vdwg.mxu0
        %v2106 = vld [vmem:[%s5] sm:$0xff]
        %v2107 = vld [vmem:[%s5 + $0x8] sm:$0xff]
        %v2108 = vld [vmem:[%s5 + $0x10] sm:$0xff]
        %v2109 = vld [vmem:[%s5 + $0x18] sm:$0xff]
        %v2110 = vld [vmem:[%s8] sm:$0xff]
        %v2111 = vld [vmem:[%s8 + $0x8] sm:$0xff]
        %v2112 = vld [vmem:[%s8 + $0x10] sm:$0xff]
        %v2113 = vld [vmem:[%s8 + $0x18] sm:$0xff]
        %2115 = vset.pattern.permute.xlu0 0
        %2116 = vperm.xlu0 %2115, %v2110
        %v2117 = vpop.permute.xlu0 %2116
        %2120 = vset.pattern.permute.xlu0 0
        %2121 = vperm.xlu0 %2120, %v2111
        %v2122 = vpop.permute.xlu0 %2121
        %2125 = vset.pattern.permute.xlu0 0
        %2126 = vperm.xlu0 %2125, %v2112
        %v2127 = vpop.permute.xlu0 %2126
        %2130 = vset.pattern.permute.xlu0 0
        %2131 = vperm.xlu0 %2130, %v2113
        %v2132 = vpop.permute.xlu0 %2131
        %v2135 = vsel %vm1883, %v2106, 0
        %v2138 = vsel %vm1883, %v2107, 0
        %v2141 = vsel %vm1883, %v2108, 0
        %v2144 = vsel %vm1883, %v2109, 0
        %2146 = vmatprep.subr.mxu0 0.0
        %2147 = vmatpush1.msra.mxu0 %v1731
        %2148 = vmatprep.subr.mxu0 0.0
        %2149 = vmatpush1.msra.mxu0 %v1780
        %2150 = vmatprep.subr.mxu0 0.0
        %2151 = vmatpush1.msra.mxu0 %v1829
        %2152 = vmatprep.subr.mxu0 0.0
        %2153 = vmatpush1.msra.mxu0 %v1878
        %2154 = vmatprep.subr.mxu0 0.0
        %2155 = vmatpush1.msra.mxu0 0.0
        %2156 = vmatprep.subr.mxu0 0.0
        %2157 = vmatpush1.msra.mxu0 0.0
        %2158 = vmatprep.subr.mxu0 0.0
        %2159 = vmatpush1.msra.mxu0 0.0
        %2160 = vmatprep.subr.mxu0 0.0
        %2161 = vmatpush1.msra.mxu0 0.0
        %2162 = vmatprep.subr.mxu0 0.0
        %2163 = vmatpush1.msra.mxu0 0.0
        %2164 = vmatprep.subr.mxu0 0.0
        %2165 = vmatpush1.msra.mxu0 0.0
        %2166 = vmatprep.subr.mxu0 0.0
        %2167 = vmatpush1.msra.mxu0 0.0
        %2168 = vmatprep.subr.mxu0 0.0
        %2169 = vmatpush1.msra.mxu0 0.0
        %2170 = vmatprep.subr.mxu0 0.0
        %2171 = vmatpush1.msra.mxu0 0.0
        %2172 = vmatprep.subr.mxu0 0.0
        %2173 = vmatpush1.msra.mxu0 0.0
        %2174 = vmatprep.subr.mxu0 0.0
        %2175 = vmatpush1.msra.mxu0 0.0
        %2176 = vmatprep.subr.mxu0 0.0
        %2177 = vmatpush1.msra.mxu0 0.0
        %2178 = vmatprep.subr.mxu0 0.0
        %2179 = vmatpush1.msra.mxu0 0.0
        %2180 = vmatprep.subr.mxu0 0.0
        %2181 = vmatpush1.msra.mxu0 0.0
        %2182 = vmatprep.subr.mxu0 0.0
        %2183 = vmatpush1.msra.mxu0 0.0
        %2184 = vmatprep.subr.mxu0 0.0
        %2185 = vmatpush1.msra.mxu0 0.0
        %2186 = vmatprep.subr.mxu0 0.0
        %2187 = vmatpush1.msra.mxu0 0.0
        %2188 = vmatprep.subr.mxu0 0.0
        %2189 = vmatpush1.msra.mxu0 0.0
        %2190 = vmatprep.subr.mxu0 0.0
        %2191 = vmatpush1.msra.mxu0 0.0
        %2192 = vmatprep.subr.mxu0 0.0
        %2193 = vmatpush1.msra.mxu0 0.0
        %2194 = vmatprep.subr.mxu0 0.0
        %2195 = vmatpush1.msra.mxu0 0.0
        %2196 = vmatprep.subr.mxu0 0.0
        %2197 = vmatpush1.msra.mxu0 0.0
        %2198 = vmatprep.subr.mxu0 0.0
        %2199 = vmatpush1.msra.mxu0 0.0
        %2200 = vmatprep.subr.mxu0 0.0
        %2201 = vmatpush1.msra.mxu0 0.0
        %2202 = vmatprep.subr.mxu0 0.0
        %2203 = vmatpush1.msra.mxu0 0.0
        %2204 = vmatprep.subr.mxu0 0.0
        %2205 = vmatpush1.msra.mxu0 0.0
        %2206 = vmatprep.subr.mxu0 0.0
        %2207 = vmatpush1.msra.mxu0 0.0
        %2208 = vmatprep.subr.mxu0 0.0
        %2209 = vmatpush1.msra.mxu0 0.0
        %2210 = vmatprep.mubr.f32.mxu0 0.0
        %2211 = vmatmul.mubr.f32.gmra.mrb[0].mxu0 %v2135
        %v2212 = vpop.f32.mrb[0].mxu0
        %v2213 = vadd.f32 %v2117, %v2212
        %v2214 = vpop.f32.mrb[0].mxu0
        %2215 = vmatprep.mubr.f32.mxu0 0.0
        %2216 = vmatmul.mubr.f32.gmra.mrb[0].mxu0 %v2138
        %v2217 = vpop.f32.mrb[0].mxu0
        %v2218 = vadd.f32 %v2122, %v2217
        %v2219 = vpop.f32.mrb[0].mxu0
        %2220 = vmatprep.mubr.f32.mxu0 0.0
        %2221 = vmatmul.mubr.f32.gmra.mrb[0].mxu0 %v2141
        %v2222 = vpop.f32.mrb[0].mxu0
        %v2223 = vadd.f32 %v2127, %v2222
        %v2224 = vpop.f32.mrb[0].mxu0
        %2225 = vmatprep.mubr.f32.mxu0 0.0
        %2226 = vmatmul.mubr.f32.gmra.mrb[0].mxu0 %v2144
        %v2227 = vpop.f32.mrb[0].mxu0
        %v2228 = vadd.f32 %v2132, %v2227
        %v2229 = vpop.f32.mrb[0].mxu0
        %2230 = vdwg.mxu0
        %v2231 = vld [vmem:[%s9] sm:$0xff]
        %v2232 = vld [vmem:[%s9 + $0x8] sm:$0xff]
        %v2233 = vld [vmem:[%s9 + $0x10] sm:$0xff]
        %v2234 = vld [vmem:[%s9 + $0x18] sm:$0xff]
        %v2235 = vld [vmem:[%s10] sm:$0xff]
        %v2236 = vld [vmem:[%s10 + $0x8] sm:$0xff]
        %v2237 = vld [vmem:[%s10 + $0x10] sm:$0xff]
        %v2238 = vld [vmem:[%s10 + $0x18] sm:$0xff]
        %2239 = vxpose.xlu0.b32.start [1/16] %v1963, 128
        %2240 = vxpose.xlu0.b32.cont [2/16] 0.0, 128
        %2241 = vxpose.xlu0.b32.cont [3/16] 0.0, 128
        %2242 = vxpose.xlu0.b32.cont [4/16] 0.0, 128
        %2243 = vxpose.xlu0.b32.cont [5/16] 0.0, 128
        %2244 = vxpose.xlu0.b32.cont [6/16] 0.0, 128
        %2245 = vxpose.xlu0.b32.cont [7/16] 0.0, 128
        %2246 = vxpose.xlu0.b32.cont [8/16] 0.0, 128
        %2247 = vxpose.xlu0.b32.cont [9/16] 0.0, 128
        %2248 = vxpose.xlu0.b32.cont [10/16] 0.0, 128
        %2249 = vxpose.xlu0.b32.cont [11/16] 0.0, 128
        %2250 = vxpose.xlu0.b32.cont [12/16] 0.0, 128
        %2251 = vxpose.xlu0.b32.cont [13/16] 0.0, 128
        %2252 = vxpose.xlu0.b32.cont [14/16] 0.0, 128
        %2253 = vxpose.xlu0.b32.cont [15/16] 0.0, 128
        %2254 = vxpose.xlu0.b32.end [16/16] 0.0, 128
        %v2255 = vpop.trf.xlu0
        %v2256 = vpop.trf.xlu0
        %v2257 = vpop.trf.xlu0
        %v2258 = vpop.trf.xlu0
        %v2259 = vpop.trf.xlu0
        %v2260 = vpop.trf.xlu0
        %v2261 = vpop.trf.xlu0
        %v2262 = vpop.trf.xlu0
        %v2263 = vpop.trf.xlu0
        %v2264 = vpop.trf.xlu0
        %v2265 = vpop.trf.xlu0
        %v2266 = vpop.trf.xlu0
        %v2267 = vpop.trf.xlu0
        %v2268 = vpop.trf.xlu0
        %v2269 = vpop.trf.xlu0
        %v2270 = vpop.trf.xlu0
        %vm2271 = vcmask 64512
        %v2273 = vsel %vm2271, %v2255, 0
        %v2276 = vsel %vm2271, %v2256, 0
        %v2279 = vsel %vm2271, %v2257, 0
        %v2282 = vsel %vm2271, %v2258, 0
        %v2285 = vsel %vm2271, %v2259, 0
        %v2288 = vsel %vm2271, %v2260, 0
        %v2291 = vsel %vm2271, %v2261, 0
        %v2294 = vsel %vm2271, %v2262, 0
        %v2297 = vsel %vm2271, %v2263, 0
        %v2300 = vsel %vm2271, %v2264, 0
        %v2303 = vsel %vm2271, %v2265, 0
        %v2306 = vsel %vm2271, %v2266, 0
        %v2309 = vsel %vm2271, %v2267, 0
        %v2312 = vsel %vm2271, %v2268, 0
        %v2315 = vsel %vm2271, %v2269, 0
        %v2318 = vsel %vm2271, %v2270, 0
        %2320 = vmatprep.subr.mxu0 0.0
        %2321 = vmatpush1.msra.mxu0 %v2088
        %2322 = vmatprep.subr.mxu0 0.0
        %2323 = vmatpush1.msra.mxu0 0.0
        %2324 = vmatprep.subr.mxu0 0.0
        %2325 = vmatpush1.msra.mxu0 0.0
        %2326 = vmatprep.subr.mxu0 0.0
        %2327 = vmatpush1.msra.mxu0 0.0
        %2328 = vmatprep.subr.mxu0 0.0
        %2329 = vmatpush1.msra.mxu0 0.0
        %2330 = vmatprep.subr.mxu0 0.0
        %2331 = vmatpush1.msra.mxu0 0.0
        %2332 = vmatprep.subr.mxu0 0.0
        %2333 = vmatpush1.msra.mxu0 0.0
        %2334 = vmatprep.subr.mxu0 0.0
        %2335 = vmatpush1.msra.mxu0 0.0
        %2336 = vmatprep.subr.mxu0 0.0
        %2337 = vmatpush1.msra.mxu0 0.0
        %2338 = vmatprep.subr.mxu0 0.0
        %2339 = vmatpush1.msra.mxu0 0.0
        %2340 = vmatprep.subr.mxu0 0.0
        %2341 = vmatpush1.msra.mxu0 0.0
        %2342 = vmatprep.subr.mxu0 0.0
        %2343 = vmatpush1.msra.mxu0 0.0
        %2344 = vmatprep.subr.mxu0 0.0
        %2345 = vmatpush1.msra.mxu0 0.0
        %2346 = vmatprep.subr.mxu0 0.0
        %2347 = vmatpush1.msra.mxu0 0.0
        %2348 = vmatprep.subr.mxu0 0.0
        %2349 = vmatpush1.msra.mxu0 0.0
        %2350 = vmatprep.subr.mxu0 0.0
        %2351 = vmatpush1.msra.mxu0 0.0
        %2352 = vmatprep.subr.mxu0 0.0
        %2353 = vmatpush1.msra.mxu0 0.0
        %2354 = vmatprep.subr.mxu0 0.0
        %2355 = vmatpush1.msra.mxu0 0.0
        %2356 = vmatprep.subr.mxu0 0.0
        %2357 = vmatpush1.msra.mxu0 0.0
        %2358 = vmatprep.subr.mxu0 0.0
        %2359 = vmatpush1.msra.mxu0 0.0
        %2360 = vmatprep.subr.mxu0 0.0
        %2361 = vmatpush1.msra.mxu0 0.0
        %2362 = vmatprep.subr.mxu0 0.0
        %2363 = vmatpush1.msra.mxu0 0.0
        %2364 = vmatprep.subr.mxu0 0.0
        %2365 = vmatpush1.msra.mxu0 0.0
        %2366 = vmatprep.subr.mxu0 0.0
        %2367 = vmatpush1.msra.mxu0 0.0
        %2368 = vmatprep.subr.mxu0 0.0
        %2369 = vmatpush1.msra.mxu0 0.0
        %2370 = vmatprep.subr.mxu0 0.0
        %2371 = vmatpush1.msra.mxu0 0.0
        %2372 = vmatprep.subr.mxu0 0.0
        %2373 = vmatpush1.msra.mxu0 0.0
        %2374 = vmatprep.subr.mxu0 0.0
        %2375 = vmatpush1.msra.mxu0 0.0
        %2376 = vmatprep.subr.mxu0 0.0
        %2377 = vmatpush1.msra.mxu0 0.0
        %2378 = vmatprep.subr.mxu0 0.0
        %2379 = vmatpush1.msra.mxu0 0.0
        %2380 = vmatprep.subr.mxu0 0.0
        %2381 = vmatpush1.msra.mxu0 0.0
        %2382 = vmatprep.subr.mxu0 0.0
        %2383 = vmatpush1.msra.mxu0 0.0
        %2384 = vmatprep.mubr.f32.mxu0 0.0
        %2385 = vmatmul.mubr.f32.gmra.mrb[0].mxu0 %v2273
        %v2386 = vpop.f32.mrb[0].mxu0
        %v2387 = vadd.f32 0.0, %v2386
        %v2388 = vpop.f32.mrb[0].mxu0
        %2389 = vmatprep.mubr.f32.mxu0 0.0
        %2390 = vmatmul.mubr.f32.gmra.mrb[0].mxu0 %v2276
        %v2391 = vpop.f32.mrb[0].mxu0
        %v2392 = vadd.f32 0.0, %v2391
        %v2393 = vpop.f32.mrb[0].mxu0
        %2394 = vmatprep.mubr.f32.mxu0 0.0
        %2395 = vmatmul.mubr.f32.gmra.mrb[0].mxu0 %v2279
        %v2396 = vpop.f32.mrb[0].mxu0
        %v2397 = vadd.f32 0.0, %v2396
        %v2398 = vpop.f32.mrb[0].mxu0
        %2399 = vmatprep.mubr.f32.mxu0 0.0
        %2400 = vmatmul.mubr.f32.gmra.mrb[0].mxu0 %v2282
        %v2401 = vpop.f32.mrb[0].mxu0
        %v2402 = vadd.f32 0.0, %v2401
        %v2403 = vpop.f32.mrb[0].mxu0
        %2404 = vmatprep.mubr.f32.mxu0 0.0
        %2405 = vmatmul.mubr.f32.gmra.mrb[0].mxu0 %v2285
        %v2406 = vpop.f32.mrb[0].mxu0
        %v2407 = vadd.f32 0.0, %v2406
        %v2408 = vpop.f32.mrb[0].mxu0
        %2409 = vmatprep.mubr.f32.mxu0 0.0
        %2410 = vmatmul.mubr.f32.gmra.mrb[0].mxu0 %v2288
        %v2411 = vpop.f32.mrb[0].mxu0
        %v2412 = vadd.f32 0.0, %v2411
        %v2413 = vpop.f32.mrb[0].mxu0
        %2414 = vmatprep.mubr.f32.mxu0 0.0
        %2415 = vmatmul.mubr.f32.gmra.mrb[0].mxu0 %v2291
        %v2416 = vpop.f32.mrb[0].mxu0
        %v2417 = vadd.f32 0.0, %v2416
        %v2418 = vpop.f32.mrb[0].mxu0
        %2419 = vmatprep.mubr.f32.mxu0 0.0
        %2420 = vmatmul.mubr.f32.gmra.mrb[0].mxu0 %v2294
        %v2421 = vpop.f32.mrb[0].mxu0
        %v2422 = vadd.f32 0.0, %v2421
        %v2423 = vpop.f32.mrb[0].mxu0
        %2424 = vmatprep.mubr.f32.mxu0 0.0
        %2425 = vmatmul.mubr.f32.gmra.mrb[0].mxu0 %v2297
        %v2426 = vpop.f32.mrb[0].mxu0
        %v2427 = vadd.f32 0.0, %v2426
        %v2428 = vpop.f32.mrb[0].mxu0
        %2429 = vmatprep.mubr.f32.mxu0 0.0
        %2430 = vmatmul.mubr.f32.gmra.mrb[0].mxu0 %v2300
        %v2431 = vpop.f32.mrb[0].mxu0
        %v2432 = vadd.f32 0.0, %v2431
        %v2433 = vpop.f32.mrb[0].mxu0
        %2434 = vmatprep.mubr.f32.mxu0 0.0
        %2435 = vmatmul.mubr.f32.gmra.mrb[0].mxu0 %v2303
        %v2436 = vpop.f32.mrb[0].mxu0
        %v2437 = vadd.f32 0.0, %v2436
        %v2438 = vpop.f32.mrb[0].mxu0
        %2439 = vmatprep.mubr.f32.mxu0 0.0
        %2440 = vmatmul.mubr.f32.gmra.mrb[0].mxu0 %v2306
        %v2441 = vpop.f32.mrb[0].mxu0
        %v2442 = vadd.f32 0.0, %v2441
        %v2443 = vpop.f32.mrb[0].mxu0
        %2444 = vmatprep.mubr.f32.mxu0 0.0
        %2445 = vmatmul.mubr.f32.gmra.mrb[0].mxu0 %v2309
        %v2446 = vpop.f32.mrb[0].mxu0
        %v2447 = vadd.f32 0.0, %v2446
        %v2448 = vpop.f32.mrb[0].mxu0
        %2449 = vmatprep.mubr.f32.mxu0 0.0
        %2450 = vmatmul.mubr.f32.gmra.mrb[0].mxu0 %v2312
        %v2451 = vpop.f32.mrb[0].mxu0
        %v2452 = vadd.f32 0.0, %v2451
        %v2453 = vpop.f32.mrb[0].mxu0
        %2454 = vmatprep.mubr.f32.mxu0 0.0
        %2455 = vmatmul.mubr.f32.gmra.mrb[0].mxu0 %v2315
        %v2456 = vpop.f32.mrb[0].mxu0
        %v2457 = vadd.f32 0.0, %v2456
        %v2458 = vpop.f32.mrb[0].mxu0
        %2459 = vmatprep.mubr.f32.mxu0 0.0
        %2460 = vmatmul.mubr.f32.gmra.mrb[0].mxu0 %v2318
        %v2461 = vpop.f32.mrb[0].mxu0
        %v2462 = vadd.f32 0.0, %v2461
        %v2463 = vpop.f32.mrb[0].mxu0
        %2464 = vdwg.mxu0
        %2465 = vxpose.xlu0.b32.start [1/16] %v1968, 128
        %2466 = vxpose.xlu0.b32.cont [2/16] 0.0, 128
        %2467 = vxpose.xlu0.b32.cont [3/16] 0.0, 128
        %2468 = vxpose.xlu0.b32.cont [4/16] 0.0, 128
        %2469 = vxpose.xlu0.b32.cont [5/16] 0.0, 128
        %2470 = vxpose.xlu0.b32.cont [6/16] 0.0, 128
        %2471 = vxpose.xlu0.b32.cont [7/16] 0.0, 128
        %2472 = vxpose.xlu0.b32.cont [8/16] 0.0, 128
        %2473 = vxpose.xlu0.b32.cont [9/16] 0.0, 128
        %2474 = vxpose.xlu0.b32.cont [10/16] 0.0, 128
        %2475 = vxpose.xlu0.b32.cont [11/16] 0.0, 128
        %2476 = vxpose.xlu0.b32.cont [12/16] 0.0, 128
        %2477 = vxpose.xlu0.b32.cont [13/16] 0.0, 128
        %2478 = vxpose.xlu0.b32.cont [14/16] 0.0, 128
        %2479 = vxpose.xlu0.b32.cont [15/16] 0.0, 128
        %2480 = vxpose.xlu0.b32.end [16/16] 0.0, 128
        %v2481 = vpop.trf.xlu0
        %v2482 = vpop.trf.xlu0
        %v2483 = vpop.trf.xlu0
        %v2484 = vpop.trf.xlu0
        %v2485 = vpop.trf.xlu0
        %v2486 = vpop.trf.xlu0
        %v2487 = vpop.trf.xlu0
        %v2488 = vpop.trf.xlu0
        %v2489 = vpop.trf.xlu0
        %v2490 = vpop.trf.xlu0
        %v2491 = vpop.trf.xlu0
        %v2492 = vpop.trf.xlu0
        %v2493 = vpop.trf.xlu0
        %v2494 = vpop.trf.xlu0
        %v2495 = vpop.trf.xlu0
        %v2496 = vpop.trf.xlu0
        %v2498 = vsel %vm2271, %v2481, 0
        %v2501 = vsel %vm2271, %v2482, 0
        %v2504 = vsel %vm2271, %v2483, 0
        %v2507 = vsel %vm2271, %v2484, 0
        %v2510 = vsel %vm2271, %v2485, 0
        %v2513 = vsel %vm2271, %v2486, 0
        %v2516 = vsel %vm2271, %v2487, 0
        %v2519 = vsel %vm2271, %v2488, 0
        %v2522 = vsel %vm2271, %v2489, 0
        %v2525 = vsel %vm2271, %v2490, 0
        %v2528 = vsel %vm2271, %v2491, 0
        %v2531 = vsel %vm2271, %v2492, 0
        %v2534 = vsel %vm2271, %v2493, 0
        %v2537 = vsel %vm2271, %v2494, 0
        %v2540 = vsel %vm2271, %v2495, 0
        %v2543 = vsel %vm2271, %v2496, 0
        %2545 = vmatprep.subr.mxu0 0.0
        %2546 = vmatpush1.msra.mxu0 %v2093
        %2547 = vmatprep.subr.mxu0 0.0
        %2548 = vmatpush1.msra.mxu0 0.0
        %2549 = vmatprep.subr.mxu0 0.0
        %2550 = vmatpush1.msra.mxu0 0.0
        %2551 = vmatprep.subr.mxu0 0.0
        %2552 = vmatpush1.msra.mxu0 0.0
        %2553 = vmatprep.subr.mxu0 0.0
        %2554 = vmatpush1.msra.mxu0 0.0
        %2555 = vmatprep.subr.mxu0 0.0
        %2556 = vmatpush1.msra.mxu0 0.0
        %2557 = vmatprep.subr.mxu0 0.0
        %2558 = vmatpush1.msra.mxu0 0.0
        %2559 = vmatprep.subr.mxu0 0.0
        %2560 = vmatpush1.msra.mxu0 0.0
        %2561 = vmatprep.subr.mxu0 0.0
        %2562 = vmatpush1.msra.mxu0 0.0
        %2563 = vmatprep.subr.mxu0 0.0
        %2564 = vmatpush1.msra.mxu0 0.0
        %2565 = vmatprep.subr.mxu0 0.0
        %2566 = vmatpush1.msra.mxu0 0.0
        %2567 = vmatprep.subr.mxu0 0.0
        %2568 = vmatpush1.msra.mxu0 0.0
        %2569 = vmatprep.subr.mxu0 0.0
        %2570 = vmatpush1.msra.mxu0 0.0
        %2571 = vmatprep.subr.mxu0 0.0
        %2572 = vmatpush1.msra.mxu0 0.0
        %2573 = vmatprep.subr.mxu0 0.0
        %2574 = vmatpush1.msra.mxu0 0.0
        %2575 = vmatprep.subr.mxu0 0.0
        %2576 = vmatpush1.msra.mxu0 0.0
        %2577 = vmatprep.subr.mxu0 0.0
        %2578 = vmatpush1.msra.mxu0 0.0
        %2579 = vmatprep.subr.mxu0 0.0
        %2580 = vmatpush1.msra.mxu0 0.0
        %2581 = vmatprep.subr.mxu0 0.0
        %2582 = vmatpush1.msra.mxu0 0.0
        %2583 = vmatprep.subr.mxu0 0.0
        %2584 = vmatpush1.msra.mxu0 0.0
        %2585 = vmatprep.subr.mxu0 0.0
        %2586 = vmatpush1.msra.mxu0 0.0
        %2587 = vmatprep.subr.mxu0 0.0
        %2588 = vmatpush1.msra.mxu0 0.0
        %2589 = vmatprep.subr.mxu0 0.0
        %2590 = vmatpush1.msra.mxu0 0.0
        %2591 = vmatprep.subr.mxu0 0.0
        %2592 = vmatpush1.msra.mxu0 0.0
        %2593 = vmatprep.subr.mxu0 0.0
        %2594 = vmatpush1.msra.mxu0 0.0
        %2595 = vmatprep.subr.mxu0 0.0
        %2596 = vmatpush1.msra.mxu0 0.0
        %2597 = vmatprep.subr.mxu0 0.0
        %2598 = vmatpush1.msra.mxu0 0.0
        %2599 = vmatprep.subr.mxu0 0.0
        %2600 = vmatpush1.msra.mxu0 0.0
        %2601 = vmatprep.subr.mxu0 0.0
        %2602 = vmatpush1.msra.mxu0 0.0
        %2603 = vmatprep.subr.mxu0 0.0
        %2604 = vmatpush1.msra.mxu0 0.0
        %2605 = vmatprep.subr.mxu0 0.0
        %2606 = vmatpush1.msra.mxu0 0.0
        %2607 = vmatprep.subr.mxu0 0.0
        %2608 = vmatpush1.msra.mxu0 0.0
        %2609 = vmatprep.mubr.f32.mxu0 0.0
        %2610 = vmatmul.mubr.f32.gmra.mrb[0].mxu0 %v2498
        %v2611 = vpop.f32.mrb[0].mxu0
        %v2612 = vadd.f32 0.0, %v2611
        %v2613 = vpop.f32.mrb[0].mxu0
        %2614 = vmatprep.mubr.f32.mxu0 0.0
        %2615 = vmatmul.mubr.f32.gmra.mrb[0].mxu0 %v2501
        %v2616 = vpop.f32.mrb[0].mxu0
        %v2617 = vadd.f32 0.0, %v2616
        %v2618 = vpop.f32.mrb[0].mxu0
        %2619 = vmatprep.mubr.f32.mxu0 0.0
        %2620 = vmatmul.mubr.f32.gmra.mrb[0].mxu0 %v2504
        %v2621 = vpop.f32.mrb[0].mxu0
        %v2622 = vadd.f32 0.0, %v2621
        %v2623 = vpop.f32.mrb[0].mxu0
        %2624 = vmatprep.mubr.f32.mxu0 0.0
        %2625 = vmatmul.mubr.f32.gmra.mrb[0].mxu0 %v2507
        %v2626 = vpop.f32.mrb[0].mxu0
        %v2627 = vadd.f32 0.0, %v2626
        %v2628 = vpop.f32.mrb[0].mxu0
        %2629 = vmatprep.mubr.f32.mxu0 0.0
        %2630 = vmatmul.mubr.f32.gmra.mrb[0].mxu0 %v2510
        %v2631 = vpop.f32.mrb[0].mxu0
        %v2632 = vadd.f32 0.0, %v2631
        %v2633 = vpop.f32.mrb[0].mxu0
        %2634 = vmatprep.mubr.f32.mxu0 0.0
        %2635 = vmatmul.mubr.f32.gmra.mrb[0].mxu0 %v2513
        %v2636 = vpop.f32.mrb[0].mxu0
        %v2637 = vadd.f32 0.0, %v2636
        %v2638 = vpop.f32.mrb[0].mxu0
        %2639 = vmatprep.mubr.f32.mxu0 0.0
        %2640 = vmatmul.mubr.f32.gmra.mrb[0].mxu0 %v2516
        %v2641 = vpop.f32.mrb[0].mxu0
        %v2642 = vadd.f32 0.0, %v2641
        %v2643 = vpop.f32.mrb[0].mxu0
        %2644 = vmatprep.mubr.f32.mxu0 0.0
        %2645 = vmatmul.mubr.f32.gmra.mrb[0].mxu0 %v2519
        %v2646 = vpop.f32.mrb[0].mxu0
        %v2647 = vadd.f32 0.0, %v2646
        %v2648 = vpop.f32.mrb[0].mxu0
        %2649 = vmatprep.mubr.f32.mxu0 0.0
        %2650 = vmatmul.mubr.f32.gmra.mrb[0].mxu0 %v2522
        %v2651 = vpop.f32.mrb[0].mxu0
        %v2652 = vadd.f32 0.0, %v2651
        %v2653 = vpop.f32.mrb[0].mxu0
        %2654 = vmatprep.mubr.f32.mxu0 0.0
        %2655 = vmatmul.mubr.f32.gmra.mrb[0].mxu0 %v2525
        %v2656 = vpop.f32.mrb[0].mxu0
        %v2657 = vadd.f32 0.0, %v2656
        %v2658 = vpop.f32.mrb[0].mxu0
        %2659 = vmatprep.mubr.f32.mxu0 0.0
        %2660 = vmatmul.mubr.f32.gmra.mrb[0].mxu0 %v2528
        %v2661 = vpop.f32.mrb[0].mxu0
        %v2662 = vadd.f32 0.0, %v2661
        %v2663 = vpop.f32.mrb[0].mxu0
        %2664 = vmatprep.mubr.f32.mxu0 0.0
        %2665 = vmatmul.mubr.f32.gmra.mrb[0].mxu0 %v2531
        %v2666 = vpop.f32.mrb[0].mxu0
        %v2667 = vadd.f32 0.0, %v2666
        %v2668 = vpop.f32.mrb[0].mxu0
        %2669 = vmatprep.mubr.f32.mxu0 0.0
        %2670 = vmatmul.mubr.f32.gmra.mrb[0].mxu0 %v2534
        %v2671 = vpop.f32.mrb[0].mxu0
        %v2672 = vadd.f32 0.0, %v2671
        %v2673 = vpop.f32.mrb[0].mxu0
        %2674 = vmatprep.mubr.f32.mxu0 0.0
        %2675 = vmatmul.mubr.f32.gmra.mrb[0].mxu0 %v2537
        %v2676 = vpop.f32.mrb[0].mxu0
        %v2677 = vadd.f32 0.0, %v2676
        %v2678 = vpop.f32.mrb[0].mxu0
        %2679 = vmatprep.mubr.f32.mxu0 0.0
        %2680 = vmatmul.mubr.f32.gmra.mrb[0].mxu0 %v2540
        %v2681 = vpop.f32.mrb[0].mxu0
        %v2682 = vadd.f32 0.0, %v2681
        %v2683 = vpop.f32.mrb[0].mxu0
        %2684 = vmatprep.mubr.f32.mxu0 0.0
        %2685 = vmatmul.mubr.f32.gmra.mrb[0].mxu0 %v2543
        %v2686 = vpop.f32.mrb[0].mxu0
        %v2687 = vadd.f32 0.0, %v2686
        %v2688 = vpop.f32.mrb[0].mxu0
        %2689 = vdwg.mxu0
        %2690 = vxpose.xlu0.b32.start [1/16] %v1973, 128
        %2691 = vxpose.xlu0.b32.cont [2/16] 0.0, 128
        %2692 = vxpose.xlu0.b32.cont [3/16] 0.0, 128
        %2693 = vxpose.xlu0.b32.cont [4/16] 0.0, 128
        %2694 = vxpose.xlu0.b32.cont [5/16] 0.0, 128
        %2695 = vxpose.xlu0.b32.cont [6/16] 0.0, 128
        %2696 = vxpose.xlu0.b32.cont [7/16] 0.0, 128
        %2697 = vxpose.xlu0.b32.cont [8/16] 0.0, 128
        %2698 = vxpose.xlu0.b32.cont [9/16] 0.0, 128
        %2699 = vxpose.xlu0.b32.cont [10/16] 0.0, 128
        %2700 = vxpose.xlu0.b32.cont [11/16] 0.0, 128
        %2701 = vxpose.xlu0.b32.cont [12/16] 0.0, 128
        %2702 = vxpose.xlu0.b32.cont [13/16] 0.0, 128
        %2703 = vxpose.xlu0.b32.cont [14/16] 0.0, 128
        %2704 = vxpose.xlu0.b32.cont [15/16] 0.0, 128
        %2705 = vxpose.xlu0.b32.end [16/16] 0.0, 128
        %v2706 = vpop.trf.xlu0
        %v2707 = vpop.trf.xlu0
        %v2708 = vpop.trf.xlu0
        %v2709 = vpop.trf.xlu0
        %v2710 = vpop.trf.xlu0
        %v2711 = vpop.trf.xlu0
        %v2712 = vpop.trf.xlu0
        %v2713 = vpop.trf.xlu0
        %v2714 = vpop.trf.xlu0
        %v2715 = vpop.trf.xlu0
        %v2716 = vpop.trf.xlu0
        %v2717 = vpop.trf.xlu0
        %v2718 = vpop.trf.xlu0
        %v2719 = vpop.trf.xlu0
        %v2720 = vpop.trf.xlu0
        %v2721 = vpop.trf.xlu0
        %v2723 = vsel %vm2271, %v2706, 0
        %v2726 = vsel %vm2271, %v2707, 0
        %v2729 = vsel %vm2271, %v2708, 0
        %v2732 = vsel %vm2271, %v2709, 0
        %v2735 = vsel %vm2271, %v2710, 0
        %v2738 = vsel %vm2271, %v2711, 0
        %v2741 = vsel %vm2271, %v2712, 0
        %v2744 = vsel %vm2271, %v2713, 0
        %v2747 = vsel %vm2271, %v2714, 0
        %v2750 = vsel %vm2271, %v2715, 0
        %v2753 = vsel %vm2271, %v2716, 0
        %v2756 = vsel %vm2271, %v2717, 0
        %v2759 = vsel %vm2271, %v2718, 0
        %v2762 = vsel %vm2271, %v2719, 0
        %v2765 = vsel %vm2271, %v2720, 0
        %v2768 = vsel %vm2271, %v2721, 0
        %2770 = vmatprep.subr.mxu0 0.0
        %2771 = vmatpush1.msra.mxu0 %v2098
        %2772 = vmatprep.subr.mxu0 0.0
        %2773 = vmatpush1.msra.mxu0 0.0
        %2774 = vmatprep.subr.mxu0 0.0
        %2775 = vmatpush1.msra.mxu0 0.0
        %2776 = vmatprep.subr.mxu0 0.0
        %2777 = vmatpush1.msra.mxu0 0.0
        %2778 = vmatprep.subr.mxu0 0.0
        %2779 = vmatpush1.msra.mxu0 0.0
        %2780 = vmatprep.subr.mxu0 0.0
        %2781 = vmatpush1.msra.mxu0 0.0
        %2782 = vmatprep.subr.mxu0 0.0
        %2783 = vmatpush1.msra.mxu0 0.0
        %2784 = vmatprep.subr.mxu0 0.0
        %2785 = vmatpush1.msra.mxu0 0.0
        %2786 = vmatprep.subr.mxu0 0.0
        %2787 = vmatpush1.msra.mxu0 0.0
        %2788 = vmatprep.subr.mxu0 0.0
        %2789 = vmatpush1.msra.mxu0 0.0
        %2790 = vmatprep.subr.mxu0 0.0
        %2791 = vmatpush1.msra.mxu0 0.0
        %2792 = vmatprep.subr.mxu0 0.0
        %2793 = vmatpush1.msra.mxu0 0.0
        %2794 = vmatprep.subr.mxu0 0.0
        %2795 = vmatpush1.msra.mxu0 0.0
        %2796 = vmatprep.subr.mxu0 0.0
        %2797 = vmatpush1.msra.mxu0 0.0
        %2798 = vmatprep.subr.mxu0 0.0
        %2799 = vmatpush1.msra.mxu0 0.0
        %2800 = vmatprep.subr.mxu0 0.0
        %2801 = vmatpush1.msra.mxu0 0.0
        %2802 = vmatprep.subr.mxu0 0.0
        %2803 = vmatpush1.msra.mxu0 0.0
        %2804 = vmatprep.subr.mxu0 0.0
        %2805 = vmatpush1.msra.mxu0 0.0
        %2806 = vmatprep.subr.mxu0 0.0
        %2807 = vmatpush1.msra.mxu0 0.0
        %2808 = vmatprep.subr.mxu0 0.0
        %2809 = vmatpush1.msra.mxu0 0.0
        %2810 = vmatprep.subr.mxu0 0.0
        %2811 = vmatpush1.msra.mxu0 0.0
        %2812 = vmatprep.subr.mxu0 0.0
        %2813 = vmatpush1.msra.mxu0 0.0
        %2814 = vmatprep.subr.mxu0 0.0
        %2815 = vmatpush1.msra.mxu0 0.0
        %2816 = vmatprep.subr.mxu0 0.0
        %2817 = vmatpush1.msra.mxu0 0.0
        %2818 = vmatprep.subr.mxu0 0.0
        %2819 = vmatpush1.msra.mxu0 0.0
        %2820 = vmatprep.subr.mxu0 0.0
        %2821 = vmatpush1.msra.mxu0 0.0
        %2822 = vmatprep.subr.mxu0 0.0
        %2823 = vmatpush1.msra.mxu0 0.0
        %2824 = vmatprep.subr.mxu0 0.0
        %2825 = vmatpush1.msra.mxu0 0.0
        %2826 = vmatprep.subr.mxu0 0.0
        %2827 = vmatpush1.msra.mxu0 0.0
        %2828 = vmatprep.subr.mxu0 0.0
        %2829 = vmatpush1.msra.mxu0 0.0
        %2830 = vmatprep.subr.mxu0 0.0
        %2831 = vmatpush1.msra.mxu0 0.0
        %2832 = vmatprep.subr.mxu0 0.0
        %2833 = vmatpush1.msra.mxu0 0.0
        %2834 = vmatprep.mubr.f32.mxu0 0.0
        %2835 = vmatmul.mubr.f32.gmra.mrb[0].mxu0 %v2723
        %v2836 = vpop.f32.mrb[0].mxu0
        %v2837 = vadd.f32 0.0, %v2836
        %v2838 = vpop.f32.mrb[0].mxu0
        %2839 = vmatprep.mubr.f32.mxu0 0.0
        %2840 = vmatmul.mubr.f32.gmra.mrb[0].mxu0 %v2726
        %v2841 = vpop.f32.mrb[0].mxu0
        %v2842 = vadd.f32 0.0, %v2841
        %v2843 = vpop.f32.mrb[0].mxu0
        %2844 = vmatprep.mubr.f32.mxu0 0.0
        %2845 = vmatmul.mubr.f32.gmra.mrb[0].mxu0 %v2729
        %v2846 = vpop.f32.mrb[0].mxu0
        %v2847 = vadd.f32 0.0, %v2846
        %v2848 = vpop.f32.mrb[0].mxu0
        %2849 = vmatprep.mubr.f32.mxu0 0.0
        %2850 = vmatmul.mubr.f32.gmra.mrb[0].mxu0 %v2732
        %v2851 = vpop.f32.mrb[0].mxu0
        %v2852 = vadd.f32 0.0, %v2851
        %v2853 = vpop.f32.mrb[0].mxu0
        %2854 = vmatprep.mubr.f32.mxu0 0.0
        %2855 = vmatmul.mubr.f32.gmra.mrb[0].mxu0 %v2735
        %v2856 = vpop.f32.mrb[0].mxu0
        %v2857 = vadd.f32 0.0, %v2856
        %v2858 = vpop.f32.mrb[0].mxu0
        %2859 = vmatprep.mubr.f32.mxu0 0.0
        %2860 = vmatmul.mubr.f32.gmra.mrb[0].mxu0 %v2738
        %v2861 = vpop.f32.mrb[0].mxu0
        %v2862 = vadd.f32 0.0, %v2861
        %v2863 = vpop.f32.mrb[0].mxu0
        %2864 = vmatprep.mubr.f32.mxu0 0.0
        %2865 = vmatmul.mubr.f32.gmra.mrb[0].mxu0 %v2741
        %v2866 = vpop.f32.mrb[0].mxu0
        %v2867 = vadd.f32 0.0, %v2866
        %v2868 = vpop.f32.mrb[0].mxu0
        %2869 = vmatprep.mubr.f32.mxu0 0.0
        %2870 = vmatmul.mubr.f32.gmra.mrb[0].mxu0 %v2744
        %v2871 = vpop.f32.mrb[0].mxu0
        %v2872 = vadd.f32 0.0, %v2871
        %v2873 = vpop.f32.mrb[0].mxu0
        %2874 = vmatprep.mubr.f32.mxu0 0.0
        %2875 = vmatmul.mubr.f32.gmra.mrb[0].mxu0 %v2747
        %v2876 = vpop.f32.mrb[0].mxu0
        %v2877 = vadd.f32 0.0, %v2876
        %v2878 = vpop.f32.mrb[0].mxu0
        %2879 = vmatprep.mubr.f32.mxu0 0.0
        %2880 = vmatmul.mubr.f32.gmra.mrb[0].mxu0 %v2750
        %v2881 = vpop.f32.mrb[0].mxu0
        %v2882 = vadd.f32 0.0, %v2881
        %v2883 = vpop.f32.mrb[0].mxu0
        %2884 = vmatprep.mubr.f32.mxu0 0.0
        %2885 = vmatmul.mubr.f32.gmra.mrb[0].mxu0 %v2753
        %v2886 = vpop.f32.mrb[0].mxu0
        %v2887 = vadd.f32 0.0, %v2886
        %v2888 = vpop.f32.mrb[0].mxu0
        %2889 = vmatprep.mubr.f32.mxu0 0.0
        %2890 = vmatmul.mubr.f32.gmra.mrb[0].mxu0 %v2756
        %v2891 = vpop.f32.mrb[0].mxu0
        %v2892 = vadd.f32 0.0, %v2891
        %v2893 = vpop.f32.mrb[0].mxu0
        %2894 = vmatprep.mubr.f32.mxu0 0.0
        %2895 = vmatmul.mubr.f32.gmra.mrb[0].mxu0 %v2759
        %v2896 = vpop.f32.mrb[0].mxu0
        %v2897 = vadd.f32 0.0, %v2896
        %v2898 = vpop.f32.mrb[0].mxu0
        %2899 = vmatprep.mubr.f32.mxu0 0.0
        %2900 = vmatmul.mubr.f32.gmra.mrb[0].mxu0 %v2762
        %v2901 = vpop.f32.mrb[0].mxu0
        %v2902 = vadd.f32 0.0, %v2901
        %v2903 = vpop.f32.mrb[0].mxu0
        %2904 = vmatprep.mubr.f32.mxu0 0.0
        %2905 = vmatmul.mubr.f32.gmra.mrb[0].mxu0 %v2765
        %v2906 = vpop.f32.mrb[0].mxu0
        %v2907 = vadd.f32 0.0, %v2906
        %v2908 = vpop.f32.mrb[0].mxu0
        %2909 = vmatprep.mubr.f32.mxu0 0.0
        %2910 = vmatmul.mubr.f32.gmra.mrb[0].mxu0 %v2768
        %v2911 = vpop.f32.mrb[0].mxu0
        %v2912 = vadd.f32 0.0, %v2911
        %v2913 = vpop.f32.mrb[0].mxu0
        %2914 = vdwg.mxu0
        %2915 = vxpose.xlu0.b32.start [1/16] %v1978, 128
        %2916 = vxpose.xlu0.b32.cont [2/16] 0.0, 128
        %2917 = vxpose.xlu0.b32.cont [3/16] 0.0, 128
        %2918 = vxpose.xlu0.b32.cont [4/16] 0.0, 128
        %2919 = vxpose.xlu0.b32.cont [5/16] 0.0, 128
        %2920 = vxpose.xlu0.b32.cont [6/16] 0.0, 128
        %2921 = vxpose.xlu0.b32.cont [7/16] 0.0, 128
        %2922 = vxpose.xlu0.b32.cont [8/16] 0.0, 128
        %2923 = vxpose.xlu0.b32.cont [9/16] 0.0, 128
        %2924 = vxpose.xlu0.b32.cont [10/16] 0.0, 128
        %2925 = vxpose.xlu0.b32.cont [11/16] 0.0, 128
        %2926 = vxpose.xlu0.b32.cont [12/16] 0.0, 128
        %2927 = vxpose.xlu0.b32.cont [13/16] 0.0, 128
        %2928 = vxpose.xlu0.b32.cont [14/16] 0.0, 128
        %2929 = vxpose.xlu0.b32.cont [15/16] 0.0, 128
        %2930 = vxpose.xlu0.b32.end [16/16] 0.0, 128
        %v2931 = vpop.trf.xlu0
        %v2932 = vpop.trf.xlu0
        %v2933 = vpop.trf.xlu0
        %v2934 = vpop.trf.xlu0
        %v2935 = vpop.trf.xlu0
        %v2936 = vpop.trf.xlu0
        %v2937 = vpop.trf.xlu0
        %v2938 = vpop.trf.xlu0
        %v2939 = vpop.trf.xlu0
        %v2940 = vpop.trf.xlu0
        %v2941 = vpop.trf.xlu0
        %v2942 = vpop.trf.xlu0
        %v2943 = vpop.trf.xlu0
        %v2944 = vpop.trf.xlu0
        %v2945 = vpop.trf.xlu0
        %v2946 = vpop.trf.xlu0
        %v2948 = vsel %vm2271, %v2931, 0
        %v2951 = vsel %vm2271, %v2932, 0
        %v2954 = vsel %vm2271, %v2933, 0
        %v2957 = vsel %vm2271, %v2934, 0
        %v2960 = vsel %vm2271, %v2935, 0
        %v2963 = vsel %vm2271, %v2936, 0
        %v2966 = vsel %vm2271, %v2937, 0
        %v2969 = vsel %vm2271, %v2938, 0
        %v2972 = vsel %vm2271, %v2939, 0
        %v2975 = vsel %vm2271, %v2940, 0
        %v2978 = vsel %vm2271, %v2941, 0
        %v2981 = vsel %vm2271, %v2942, 0
        %v2984 = vsel %vm2271, %v2943, 0
        %v2987 = vsel %vm2271, %v2944, 0
        %v2990 = vsel %vm2271, %v2945, 0
        %v2993 = vsel %vm2271, %v2946, 0
        %2995 = vmatprep.subr.mxu0 0.0
        %2996 = vmatpush1.msra.mxu0 %v2103
        %2997 = vmatprep.subr.mxu0 0.0
        %2998 = vmatpush1.msra.mxu0 0.0
        %2999 = vmatprep.subr.mxu0 0.0
        %3000 = vmatpush1.msra.mxu0 0.0
        %3001 = vmatprep.subr.mxu0 0.0
        %3002 = vmatpush1.msra.mxu0 0.0
        %3003 = vmatprep.subr.mxu0 0.0
        %3004 = vmatpush1.msra.mxu0 0.0
        %3005 = vmatprep.subr.mxu0 0.0
        %3006 = vmatpush1.msra.mxu0 0.0
        %3007 = vmatprep.subr.mxu0 0.0
        %3008 = vmatpush1.msra.mxu0 0.0
        %3009 = vmatprep.subr.mxu0 0.0
        %3010 = vmatpush1.msra.mxu0 0.0
        %3011 = vmatprep.subr.mxu0 0.0
        %3012 = vmatpush1.msra.mxu0 0.0
        %3013 = vmatprep.subr.mxu0 0.0
        %3014 = vmatpush1.msra.mxu0 0.0
        %3015 = vmatprep.subr.mxu0 0.0
        %3016 = vmatpush1.msra.mxu0 0.0
        %3017 = vmatprep.subr.mxu0 0.0
        %3018 = vmatpush1.msra.mxu0 0.0
        %3019 = vmatprep.subr.mxu0 0.0
        %3020 = vmatpush1.msra.mxu0 0.0
        %3021 = vmatprep.subr.mxu0 0.0
        %3022 = vmatpush1.msra.mxu0 0.0
        %3023 = vmatprep.subr.mxu0 0.0
        %3024 = vmatpush1.msra.mxu0 0.0
        %3025 = vmatprep.subr.mxu0 0.0
        %3026 = vmatpush1.msra.mxu0 0.0
        %3027 = vmatprep.subr.mxu0 0.0
        %3028 = vmatpush1.msra.mxu0 0.0
        %3029 = vmatprep.subr.mxu0 0.0
        %3030 = vmatpush1.msra.mxu0 0.0
        %3031 = vmatprep.subr.mxu0 0.0
        %3032 = vmatpush1.msra.mxu0 0.0
        %3033 = vmatprep.subr.mxu0 0.0
        %3034 = vmatpush1.msra.mxu0 0.0
        %3035 = vmatprep.subr.mxu0 0.0
        %3036 = vmatpush1.msra.mxu0 0.0
        %3037 = vmatprep.subr.mxu0 0.0
        %3038 = vmatpush1.msra.mxu0 0.0
        %3039 = vmatprep.subr.mxu0 0.0
        %3040 = vmatpush1.msra.mxu0 0.0
        %3041 = vmatprep.subr.mxu0 0.0
        %3042 = vmatpush1.msra.mxu0 0.0
        %3043 = vmatprep.subr.mxu0 0.0
        %3044 = vmatpush1.msra.mxu0 0.0
        %3045 = vmatprep.subr.mxu0 0.0
        %3046 = vmatpush1.msra.mxu0 0.0
        %3047 = vmatprep.subr.mxu0 0.0
        %3048 = vmatpush1.msra.mxu0 0.0
        %3049 = vmatprep.subr.mxu0 0.0
        %3050 = vmatpush1.msra.mxu0 0.0
        %3051 = vmatprep.subr.mxu0 0.0
        %3052 = vmatpush1.msra.mxu0 0.0
        %3053 = vmatprep.subr.mxu0 0.0
        %3054 = vmatpush1.msra.mxu0 0.0
        %3055 = vmatprep.subr.mxu0 0.0
        %3056 = vmatpush1.msra.mxu0 0.0
        %3057 = vmatprep.subr.mxu0 0.0
        %3058 = vmatpush1.msra.mxu0 0.0
        %3059 = vmatprep.mubr.f32.mxu0 0.0
        %3060 = vmatmul.mubr.f32.gmra.mrb[0].mxu0 %v2948
        %v3061 = vpop.f32.mrb[0].mxu0
        %v3062 = vadd.f32 0.0, %v3061
        %v3063 = vpop.f32.mrb[0].mxu0
        %3064 = vmatprep.mubr.f32.mxu0 0.0
        %3065 = vmatmul.mubr.f32.gmra.mrb[0].mxu0 %v2951
        %v3066 = vpop.f32.mrb[0].mxu0
        %v3067 = vadd.f32 0.0, %v3066
        %v3068 = vpop.f32.mrb[0].mxu0
        %3069 = vmatprep.mubr.f32.mxu0 0.0
        %3070 = vmatmul.mubr.f32.gmra.mrb[0].mxu0 %v2954
        %v3071 = vpop.f32.mrb[0].mxu0
        %v3072 = vadd.f32 0.0, %v3071
        %v3073 = vpop.f32.mrb[0].mxu0
        %3074 = vmatprep.mubr.f32.mxu0 0.0
        %3075 = vmatmul.mubr.f32.gmra.mrb[0].mxu0 %v2957
        %v3076 = vpop.f32.mrb[0].mxu0
        %v3077 = vadd.f32 0.0, %v3076
        %v3078 = vpop.f32.mrb[0].mxu0
        %3079 = vmatprep.mubr.f32.mxu0 0.0
        %3080 = vmatmul.mubr.f32.gmra.mrb[0].mxu0 %v2960
        %v3081 = vpop.f32.mrb[0].mxu0
        %v3082 = vadd.f32 0.0, %v3081
        %v3083 = vpop.f32.mrb[0].mxu0
        %3084 = vmatprep.mubr.f32.mxu0 0.0
        %3085 = vmatmul.mubr.f32.gmra.mrb[0].mxu0 %v2963
        %v3086 = vpop.f32.mrb[0].mxu0
        %v3087 = vadd.f32 0.0, %v3086
        %v3088 = vpop.f32.mrb[0].mxu0
        %3089 = vmatprep.mubr.f32.mxu0 0.0
        %3090 = vmatmul.mubr.f32.gmra.mrb[0].mxu0 %v2966
        %v3091 = vpop.f32.mrb[0].mxu0
        %v3092 = vadd.f32 0.0, %v3091
        %v3093 = vpop.f32.mrb[0].mxu0
        %3094 = vmatprep.mubr.f32.mxu0 0.0
        %3095 = vmatmul.mubr.f32.gmra.mrb[0].mxu0 %v2969
        %v3096 = vpop.f32.mrb[0].mxu0
        %v3097 = vadd.f32 0.0, %v3096
        %v3098 = vpop.f32.mrb[0].mxu0
        %3099 = vmatprep.mubr.f32.mxu0 0.0
        %3100 = vmatmul.mubr.f32.gmra.mrb[0].mxu0 %v2972
        %v3101 = vpop.f32.mrb[0].mxu0
        %v3102 = vadd.f32 0.0, %v3101
        %v3103 = vpop.f32.mrb[0].mxu0
        %3104 = vmatprep.mubr.f32.mxu0 0.0
        %3105 = vmatmul.mubr.f32.gmra.mrb[0].mxu0 %v2975
        %v3106 = vpop.f32.mrb[0].mxu0
        %v3107 = vadd.f32 0.0, %v3106
        %v3108 = vpop.f32.mrb[0].mxu0
        %3109 = vmatprep.mubr.f32.mxu0 0.0
        %3110 = vmatmul.mubr.f32.gmra.mrb[0].mxu0 %v2978
        %v3111 = vpop.f32.mrb[0].mxu0
        %v3112 = vadd.f32 0.0, %v3111
        %v3113 = vpop.f32.mrb[0].mxu0
        %3114 = vmatprep.mubr.f32.mxu0 0.0
        %3115 = vmatmul.mubr.f32.gmra.mrb[0].mxu0 %v2981
        %v3116 = vpop.f32.mrb[0].mxu0
        %v3117 = vadd.f32 0.0, %v3116
        %v3118 = vpop.f32.mrb[0].mxu0
        %3119 = vmatprep.mubr.f32.mxu0 0.0
        %3120 = vmatmul.mubr.f32.gmra.mrb[0].mxu0 %v2984
        %v3121 = vpop.f32.mrb[0].mxu0
        %v3122 = vadd.f32 0.0, %v3121
        %v3123 = vpop.f32.mrb[0].mxu0
        %3124 = vmatprep.mubr.f32.mxu0 0.0
        %3125 = vmatmul.mubr.f32.gmra.mrb[0].mxu0 %v2987
        %v3126 = vpop.f32.mrb[0].mxu0
        %v3127 = vadd.f32 0.0, %v3126
        %v3128 = vpop.f32.mrb[0].mxu0
        %3129 = vmatprep.mubr.f32.mxu0 0.0
        %3130 = vmatmul.mubr.f32.gmra.mrb[0].mxu0 %v2990
        %v3131 = vpop.f32.mrb[0].mxu0
        %v3132 = vadd.f32 0.0, %v3131
        %v3133 = vpop.f32.mrb[0].mxu0
        %3134 = vmatprep.mubr.f32.mxu0 0.0
        %3135 = vmatmul.mubr.f32.gmra.mrb[0].mxu0 %v2993
        %v3136 = vpop.f32.mrb[0].mxu0
        %v3137 = vadd.f32 0.0, %v3136
        %v3138 = vpop.f32.mrb[0].mxu0
        %3139 = vdwg.mxu0
        %3140 = vmax.xlane.f32.xlu0 %v2387
        %v3141 = vpop.xlane.xlu0 %3140
        %3142 = vmax.xlane.f32.xlu0 %v2392
        %v3143 = vpop.xlane.xlu0 %3142
        %3144 = vmax.xlane.f32.xlu0 %v2397
        %v3145 = vpop.xlane.xlu0 %3144
        %3146 = vmax.xlane.f32.xlu0 %v2402
        %v3147 = vpop.xlane.xlu0 %3146
        %3148 = vmax.xlane.f32.xlu0 %v2407
        %v3149 = vpop.xlane.xlu0 %3148
        %3150 = vmax.xlane.f32.xlu0 %v2412
        %v3151 = vpop.xlane.xlu0 %3150
        %3152 = vmax.xlane.f32.xlu0 %v2417
        %v3153 = vpop.xlane.xlu0 %3152
        %3154 = vmax.xlane.f32.xlu0 %v2422
        %v3155 = vpop.xlane.xlu0 %3154
        %3156 = vmax.xlane.f32.xlu0 %v2427
        %v3157 = vpop.xlane.xlu0 %3156
        %3158 = vmax.xlane.f32.xlu0 %v2432
        %v3159 = vpop.xlane.xlu0 %3158
        %3160 = vmax.xlane.f32.xlu0 %v2437
        %v3161 = vpop.xlane.xlu0 %3160
        %3162 = vmax.xlane.f32.xlu0 %v2442
        %v3163 = vpop.xlane.xlu0 %3162
        %3164 = vmax.xlane.f32.xlu0 %v2447
        %v3165 = vpop.xlane.xlu0 %3164
        %3166 = vmax.xlane.f32.xlu0 %v2452
        %v3167 = vpop.xlane.xlu0 %3166
        %3168 = vmax.xlane.f32.xlu0 %v2457
        %v3169 = vpop.xlane.xlu0 %3168
        %3170 = vmax.xlane.f32.xlu0 %v2462
        %v3171 = vpop.xlane.xlu0 %3170
        %3172 = vmax.xlane.f32.xlu0 %v2612
        %v3173 = vpop.xlane.xlu0 %3172
        %3174 = vmax.xlane.f32.xlu0 %v2617
        %v3175 = vpop.xlane.xlu0 %3174
        %3176 = vmax.xlane.f32.xlu0 %v2622
        %v3177 = vpop.xlane.xlu0 %3176
        %3178 = vmax.xlane.f32.xlu0 %v2627
        %v3179 = vpop.xlane.xlu0 %3178
        %3180 = vmax.xlane.f32.xlu0 %v2632
        %v3181 = vpop.xlane.xlu0 %3180
        %3182 = vmax.xlane.f32.xlu0 %v2637
        %v3183 = vpop.xlane.xlu0 %3182
        %3184 = vmax.xlane.f32.xlu0 %v2642
        %v3185 = vpop.xlane.xlu0 %3184
        %3186 = vmax.xlane.f32.xlu0 %v2647
        %v3187 = vpop.xlane.xlu0 %3186
        %3188 = vmax.xlane.f32.xlu0 %v2652
        %v3189 = vpop.xlane.xlu0 %3188
        %3190 = vmax.xlane.f32.xlu0 %v2657
        %v3191 = vpop.xlane.xlu0 %3190
        %3192 = vmax.xlane.f32.xlu0 %v2662
        %v3193 = vpop.xlane.xlu0 %3192
        %3194 = vmax.xlane.f32.xlu0 %v2667
        %v3195 = vpop.xlane.xlu0 %3194
        %3196 = vmax.xlane.f32.xlu0 %v2672
        %v3197 = vpop.xlane.xlu0 %3196
        %3198 = vmax.xlane.f32.xlu0 %v2677
        %v3199 = vpop.xlane.xlu0 %3198
        %3200 = vmax.xlane.f32.xlu0 %v2682
        %v3201 = vpop.xlane.xlu0 %3200
        %3202 = vmax.xlane.f32.xlu0 %v2687
        %v3203 = vpop.xlane.xlu0 %3202
        %3204 = vmax.xlane.f32.xlu0 %v2837
        %v3205 = vpop.xlane.xlu0 %3204
        %3206 = vmax.xlane.f32.xlu0 %v2842
        %v3207 = vpop.xlane.xlu0 %3206
        %3208 = vmax.xlane.f32.xlu0 %v2847
        %v3209 = vpop.xlane.xlu0 %3208
        %3210 = vmax.xlane.f32.xlu0 %v2852
        %v3211 = vpop.xlane.xlu0 %3210
        %3212 = vmax.xlane.f32.xlu0 %v2857
        %v3213 = vpop.xlane.xlu0 %3212
        %3214 = vmax.xlane.f32.xlu0 %v2862
        %v3215 = vpop.xlane.xlu0 %3214
        %3216 = vmax.xlane.f32.xlu0 %v2867
        %v3217 = vpop.xlane.xlu0 %3216
        %3218 = vmax.xlane.f32.xlu0 %v2872
        %v3219 = vpop.xlane.xlu0 %3218
        %3220 = vmax.xlane.f32.xlu0 %v2877
        %v3221 = vpop.xlane.xlu0 %3220
        %3222 = vmax.xlane.f32.xlu0 %v2882
        %v3223 = vpop.xlane.xlu0 %3222
        %3224 = vmax.xlane.f32.xlu0 %v2887
        %v3225 = vpop.xlane.xlu0 %3224
        %3226 = vmax.xlane.f32.xlu0 %v2892
        %v3227 = vpop.xlane.xlu0 %3226
        %3228 = vmax.xlane.f32.xlu0 %v2897
        %v3229 = vpop.xlane.xlu0 %3228
        %3230 = vmax.xlane.f32.xlu0 %v2902
        %v3231 = vpop.xlane.xlu0 %3230
        %3232 = vmax.xlane.f32.xlu0 %v2907
        %v3233 = vpop.xlane.xlu0 %3232
        %3234 = vmax.xlane.f32.xlu0 %v2912
        %v3235 = vpop.xlane.xlu0 %3234
        %3236 = vmax.xlane.f32.xlu0 %v3062
        %v3237 = vpop.xlane.xlu0 %3236
        %3238 = vmax.xlane.f32.xlu0 %v3067
        %v3239 = vpop.xlane.xlu0 %3238
        %3240 = vmax.xlane.f32.xlu0 %v3072
        %v3241 = vpop.xlane.xlu0 %3240
        %3242 = vmax.xlane.f32.xlu0 %v3077
        %v3243 = vpop.xlane.xlu0 %3242
        %3244 = vmax.xlane.f32.xlu0 %v3082
        %v3245 = vpop.xlane.xlu0 %3244
        %3246 = vmax.xlane.f32.xlu0 %v3087
        %v3247 = vpop.xlane.xlu0 %3246
        %3248 = vmax.xlane.f32.xlu0 %v3092
        %v3249 = vpop.xlane.xlu0 %3248
        %3250 = vmax.xlane.f32.xlu0 %v3097
        %v3251 = vpop.xlane.xlu0 %3250
        %3252 = vmax.xlane.f32.xlu0 %v3102
        %v3253 = vpop.xlane.xlu0 %3252
        %3254 = vmax.xlane.f32.xlu0 %v3107
        %v3255 = vpop.xlane.xlu0 %3254
        %3256 = vmax.xlane.f32.xlu0 %v3112
        %v3257 = vpop.xlane.xlu0 %3256
        %3258 = vmax.xlane.f32.xlu0 %v3117
        %v3259 = vpop.xlane.xlu0 %3258
        %3260 = vmax.xlane.f32.xlu0 %v3122
        %v3261 = vpop.xlane.xlu0 %3260
        %3262 = vmax.xlane.f32.xlu0 %v3127
        %v3263 = vpop.xlane.xlu0 %3262
        %3264 = vmax.xlane.f32.xlu0 %v3132
        %v3265 = vpop.xlane.xlu0 %3264
        %3266 = vmax.xlane.f32.xlu0 %v3137
        %v3267 = vpop.xlane.xlu0 %3266
        %v3268 = vsub.f32 %v2387, %v3141
        %v3269 = vsub.f32 %v2392, %v3143
        %v3270 = vsub.f32 %v2397, %v3145
        %v3271 = vsub.f32 %v2402, %v3147
        %v3272 = vsub.f32 %v2407, %v3149
        %v3273 = vsub.f32 %v2412, %v3151
        %v3274 = vsub.f32 %v2417, %v3153
        %v3275 = vsub.f32 %v2422, %v3155
        %v3276 = vsub.f32 %v2427, %v3157
        %v3277 = vsub.f32 %v2432, %v3159
        %v3278 = vsub.f32 %v2437, %v3161
        %v3279 = vsub.f32 %v2442, %v3163
        %v3280 = vsub.f32 %v2447, %v3165
        %v3281 = vsub.f32 %v2452, %v3167
        %v3282 = vsub.f32 %v2457, %v3169
        %v3283 = vsub.f32 %v2462, %v3171
        %v3284 = vsub.f32 %v2612, %v3173
        %v3285 = vsub.f32 %v2617, %v3175
        %v3286 = vsub.f32 %v2622, %v3177
        %v3287 = vsub.f32 %v2627, %v3179
        %v3288 = vsub.f32 %v2632, %v3181
        %v3289 = vsub.f32 %v2637, %v3183
        %v3290 = vsub.f32 %v2642, %v3185
        %v3291 = vsub.f32 %v2647, %v3187
        %v3292 = vsub.f32 %v2652, %v3189
        %v3293 = vsub.f32 %v2657, %v3191
        %v3294 = vsub.f32 %v2662, %v3193
        %v3295 = vsub.f32 %v2667, %v3195
        %v3296 = vsub.f32 %v2672, %v3197
        %v3297 = vsub.f32 %v2677, %v3199
        %v3298 = vsub.f32 %v2682, %v3201
        %v3299 = vsub.f32 %v2687, %v3203
        %v3300 = vsub.f32 %v2837, %v3205
        %v3301 = vsub.f32 %v2842, %v3207
        %v3302 = vsub.f32 %v2847, %v3209
        %v3303 = vsub.f32 %v2852, %v3211
        %v3304 = vsub.f32 %v2857, %v3213
        %v3305 = vsub.f32 %v2862, %v3215
        %v3306 = vsub.f32 %v2867, %v3217
        %v3307 = vsub.f32 %v2872, %v3219
        %v3308 = vsub.f32 %v2877, %v3221
        %v3309 = vsub.f32 %v2882, %v3223
        %v3310 = vsub.f32 %v2887, %v3225
        %v3311 = vsub.f32 %v2892, %v3227
        %v3312 = vsub.f32 %v2897, %v3229
        %v3313 = vsub.f32 %v2902, %v3231
        %v3314 = vsub.f32 %v2907, %v3233
        %v3315 = vsub.f32 %v2912, %v3235
        %v3316 = vsub.f32 %v3062, %v3237
        %v3317 = vsub.f32 %v3067, %v3239
        %v3318 = vsub.f32 %v3072, %v3241
        %v3319 = vsub.f32 %v3077, %v3243
        %v3320 = vsub.f32 %v3082, %v3245
        %v3321 = vsub.f32 %v3087, %v3247
        %v3322 = vsub.f32 %v3092, %v3249
        %v3323 = vsub.f32 %v3097, %v3251
        %v3324 = vsub.f32 %v3102, %v3253
        %v3325 = vsub.f32 %v3107, %v3255
        %v3326 = vsub.f32 %v3112, %v3257
        %v3327 = vsub.f32 %v3117, %v3259
        %v3328 = vsub.f32 %v3122, %v3261
        %v3329 = vsub.f32 %v3127, %v3263
        %v3330 = vsub.f32 %v3132, %v3265
        %v3331 = vsub.f32 %v3137, %v3267
        %v3332 = vmul.f32 %v3268, 1.442695
        %v3333 = vpow.pop %v3332
        %v3334 = vmul.f32 %v3269, 1.442695
        %v3335 = vpow.pop %v3334
        %v3336 = vmul.f32 %v3270, 1.442695
        %v3337 = vpow.pop %v3336
        %v3338 = vmul.f32 %v3271, 1.442695
        %v3339 = vpow.pop %v3338
        %v3340 = vmul.f32 %v3272, 1.442695
        %v3341 = vpow.pop %v3340
        %v3342 = vmul.f32 %v3273, 1.442695
        %v3343 = vpow.pop %v3342
        %v3344 = vmul.f32 %v3274, 1.442695
        %v3345 = vpow.pop %v3344
        %v3346 = vmul.f32 %v3275, 1.442695
        %v3347 = vpow.pop %v3346
        %v3348 = vmul.f32 %v3276, 1.442695
        %v3349 = vpow.pop %v3348
        %v3350 = vmul.f32 %v3277, 1.442695
        %v3351 = vpow.pop %v3350
        %v3352 = vmul.f32 %v3278, 1.442695
        %v3353 = vpow.pop %v3352
        %v3354 = vmul.f32 %v3279, 1.442695
        %v3355 = vpow.pop %v3354
        %v3356 = vmul.f32 %v3280, 1.442695
        %v3357 = vpow.pop %v3356
        %v3358 = vmul.f32 %v3281, 1.442695
        %v3359 = vpow.pop %v3358
        %v3360 = vmul.f32 %v3282, 1.442695
        %v3361 = vpow.pop %v3360
        %v3362 = vmul.f32 %v3283, 1.442695
        %v3363 = vpow.pop %v3362
        %v3364 = vmul.f32 %v3284, 1.442695
        %v3365 = vpow.pop %v3364
        %v3366 = vmul.f32 %v3285, 1.442695
        %v3367 = vpow.pop %v3366
        %v3368 = vmul.f32 %v3286, 1.442695
        %v3369 = vpow.pop %v3368
        %v3370 = vmul.f32 %v3287, 1.442695
        %v3371 = vpow.pop %v3370
        %v3372 = vmul.f32 %v3288, 1.442695
        %v3373 = vpow.pop %v3372
        %v3374 = vmul.f32 %v3289, 1.442695
        %v3375 = vpow.pop %v3374
        %v3376 = vmul.f32 %v3290, 1.442695
        %v3377 = vpow.pop %v3376
        %v3378 = vmul.f32 %v3291, 1.442695
        %v3379 = vpow.pop %v3378
        %v3380 = vmul.f32 %v3292, 1.442695
        %v3381 = vpow.pop %v3380
        %v3382 = vmul.f32 %v3293, 1.442695
        %v3383 = vpow.pop %v3382
        %v3384 = vmul.f32 %v3294, 1.442695
        %v3385 = vpow.pop %v3384
        %v3386 = vmul.f32 %v3295, 1.442695
        %v3387 = vpow.pop %v3386
        %v3388 = vmul.f32 %v3296, 1.442695
        %v3389 = vpow.pop %v3388
        %v3390 = vmul.f32 %v3297, 1.442695
        %v3391 = vpow.pop %v3390
        %v3392 = vmul.f32 %v3298, 1.442695
        %v3393 = vpow.pop %v3392
        %v3394 = vmul.f32 %v3299, 1.442695
        %v3395 = vpow.pop %v3394
        %v3396 = vmul.f32 %v3300, 1.442695
        %v3397 = vpow.pop %v3396
        %v3398 = vmul.f32 %v3301, 1.442695
        %v3399 = vpow.pop %v3398
        %v3400 = vmul.f32 %v3302, 1.442695
        %v3401 = vpow.pop %v3400
        %v3402 = vmul.f32 %v3303, 1.442695
        %v3403 = vpow.pop %v3402
        %v3404 = vmul.f32 %v3304, 1.442695
        %v3405 = vpow.pop %v3404
        %v3406 = vmul.f32 %v3305, 1.442695
        %v3407 = vpow.pop %v3406
        %v3408 = vmul.f32 %v3306, 1.442695
        %v3409 = vpow.pop %v3408
        %v3410 = vmul.f32 %v3307, 1.442695
        %v3411 = vpow.pop %v3410
        %v3412 = vmul.f32 %v3308, 1.442695
        %v3413 = vpow.pop %v3412
        %v3414 = vmul.f32 %v3309, 1.442695
        %v3415 = vpow.pop %v3414
        %v3416 = vmul.f32 %v3310, 1.442695
        %v3417 = vpow.pop %v3416
        %v3418 = vmul.f32 %v3311, 1.442695
        %v3419 = vpow.pop %v3418
        %v3420 = vmul.f32 %v3312, 1.442695
        %v3421 = vpow.pop %v3420
        %v3422 = vmul.f32 %v3313, 1.442695
        %v3423 = vpow.pop %v3422
        %v3424 = vmul.f32 %v3314, 1.442695
        %v3425 = vpow.pop %v3424
        %v3426 = vmul.f32 %v3315, 1.442695
        %v3427 = vpow.pop %v3426
        %v3428 = vmul.f32 %v3316, 1.442695
        %v3429 = vpow.pop %v3428
        %v3430 = vmul.f32 %v3317, 1.442695
        %v3431 = vpow.pop %v3430
        %v3432 = vmul.f32 %v3318, 1.442695
        %v3433 = vpow.pop %v3432
        %v3434 = vmul.f32 %v3319, 1.442695
        %v3435 = vpow.pop %v3434
        %v3436 = vmul.f32 %v3320, 1.442695
        %v3437 = vpow.pop %v3436
        %v3438 = vmul.f32 %v3321, 1.442695
        %v3439 = vpow.pop %v3438
        %v3440 = vmul.f32 %v3322, 1.442695
        %v3441 = vpow.pop %v3440
        %v3442 = vmul.f32 %v3323, 1.442695
        %v3443 = vpow.pop %v3442
        %v3444 = vmul.f32 %v3324, 1.442695
        %v3445 = vpow.pop %v3444
        %v3446 = vmul.f32 %v3325, 1.442695
        %v3447 = vpow.pop %v3446
        %v3448 = vmul.f32 %v3326, 1.442695
        %v3449 = vpow.pop %v3448
        %v3450 = vmul.f32 %v3327, 1.442695
        %v3451 = vpow.pop %v3450
        %v3452 = vmul.f32 %v3328, 1.442695
        %v3453 = vpow.pop %v3452
        %v3454 = vmul.f32 %v3329, 1.442695
        %v3455 = vpow.pop %v3454
        %v3456 = vmul.f32 %v3330, 1.442695
        %v3457 = vpow.pop %v3456
        %v3458 = vmul.f32 %v3331, 1.442695
        %v3459 = vpow.pop %v3458
        %3460 = vadd.xlane.f32.xlu0 %v3333
        %v3461 = vpop.xlane.xlu0 %3460
        %3462 = vadd.xlane.f32.xlu0 %v3335
        %v3463 = vpop.xlane.xlu0 %3462
        %3464 = vadd.xlane.f32.xlu0 %v3337
        %v3465 = vpop.xlane.xlu0 %3464
        %3466 = vadd.xlane.f32.xlu0 %v3339
        %v3467 = vpop.xlane.xlu0 %3466
        %3468 = vadd.xlane.f32.xlu0 %v3341
        %v3469 = vpop.xlane.xlu0 %3468
        %3470 = vadd.xlane.f32.xlu0 %v3343
        %v3471 = vpop.xlane.xlu0 %3470
        %3472 = vadd.xlane.f32.xlu0 %v3345
        %v3473 = vpop.xlane.xlu0 %3472
        %3474 = vadd.xlane.f32.xlu0 %v3347
        %v3475 = vpop.xlane.xlu0 %3474
        %3476 = vadd.xlane.f32.xlu0 %v3349
        %v3477 = vpop.xlane.xlu0 %3476
        %3478 = vadd.xlane.f32.xlu0 %v3351
        %v3479 = vpop.xlane.xlu0 %3478
        %3480 = vadd.xlane.f32.xlu0 %v3353
        %v3481 = vpop.xlane.xlu0 %3480
        %3482 = vadd.xlane.f32.xlu0 %v3355
        %v3483 = vpop.xlane.xlu0 %3482
        %3484 = vadd.xlane.f32.xlu0 %v3357
        %v3485 = vpop.xlane.xlu0 %3484
        %3486 = vadd.xlane.f32.xlu0 %v3359
        %v3487 = vpop.xlane.xlu0 %3486
        %3488 = vadd.xlane.f32.xlu0 %v3361
        %v3489 = vpop.xlane.xlu0 %3488
        %3490 = vadd.xlane.f32.xlu0 %v3363
        %v3491 = vpop.xlane.xlu0 %3490
        %3492 = vadd.xlane.f32.xlu0 %v3365
        %v3493 = vpop.xlane.xlu0 %3492
        %3494 = vadd.xlane.f32.xlu0 %v3367
        %v3495 = vpop.xlane.xlu0 %3494
        %3496 = vadd.xlane.f32.xlu0 %v3369
        %v3497 = vpop.xlane.xlu0 %3496
        %3498 = vadd.xlane.f32.xlu0 %v3371
        %v3499 = vpop.xlane.xlu0 %3498
        %3500 = vadd.xlane.f32.xlu0 %v3373
        %v3501 = vpop.xlane.xlu0 %3500
        %3502 = vadd.xlane.f32.xlu0 %v3375
        %v3503 = vpop.xlane.xlu0 %3502
        %3504 = vadd.xlane.f32.xlu0 %v3377
        %v3505 = vpop.xlane.xlu0 %3504
        %3506 = vadd.xlane.f32.xlu0 %v3379
        %v3507 = vpop.xlane.xlu0 %3506
        %3508 = vadd.xlane.f32.xlu0 %v3381
        %v3509 = vpop.xlane.xlu0 %3508
        %3510 = vadd.xlane.f32.xlu0 %v3383
        %v3511 = vpop.xlane.xlu0 %3510
        %3512 = vadd.xlane.f32.xlu0 %v3385
        %v3513 = vpop.xlane.xlu0 %3512
        %3514 = vadd.xlane.f32.xlu0 %v3387
        %v3515 = vpop.xlane.xlu0 %3514
        %3516 = vadd.xlane.f32.xlu0 %v3389
        %v3517 = vpop.xlane.xlu0 %3516
        %3518 = vadd.xlane.f32.xlu0 %v3391
        %v3519 = vpop.xlane.xlu0 %3518
        %3520 = vadd.xlane.f32.xlu0 %v3393
        %v3521 = vpop.xlane.xlu0 %3520
        %3522 = vadd.xlane.f32.xlu0 %v3395
        %v3523 = vpop.xlane.xlu0 %3522
        %3524 = vadd.xlane.f32.xlu0 %v3397
        %v3525 = vpop.xlane.xlu0 %3524
        %3526 = vadd.xlane.f32.xlu0 %v3399
        %v3527 = vpop.xlane.xlu0 %3526
        %3528 = vadd.xlane.f32.xlu0 %v3401
        %v3529 = vpop.xlane.xlu0 %3528
        %3530 = vadd.xlane.f32.xlu0 %v3403
        %v3531 = vpop.xlane.xlu0 %3530
        %3532 = vadd.xlane.f32.xlu0 %v3405
        %v3533 = vpop.xlane.xlu0 %3532
        %3534 = vadd.xlane.f32.xlu0 %v3407
        %v3535 = vpop.xlane.xlu0 %3534
        %3536 = vadd.xlane.f32.xlu0 %v3409
        %v3537 = vpop.xlane.xlu0 %3536
        %3538 = vadd.xlane.f32.xlu0 %v3411
        %v3539 = vpop.xlane.xlu0 %3538
        %3540 = vadd.xlane.f32.xlu0 %v3413
        %v3541 = vpop.xlane.xlu0 %3540
        %3542 = vadd.xlane.f32.xlu0 %v3415
        %v3543 = vpop.xlane.xlu0 %3542
        %3544 = vadd.xlane.f32.xlu0 %v3417
        %v3545 = vpop.xlane.xlu0 %3544
        %3546 = vadd.xlane.f32.xlu0 %v3419
        %v3547 = vpop.xlane.xlu0 %3546
        %3548 = vadd.xlane.f32.xlu0 %v3421
        %v3549 = vpop.xlane.xlu0 %3548
        %3550 = vadd.xlane.f32.xlu0 %v3423
        %v3551 = vpop.xlane.xlu0 %3550
        %3552 = vadd.xlane.f32.xlu0 %v3425
        %v3553 = vpop.xlane.xlu0 %3552
        %3554 = vadd.xlane.f32.xlu0 %v3427
        %v3555 = vpop.xlane.xlu0 %3554
        %3556 = vadd.xlane.f32.xlu0 %v3429
        %v3557 = vpop.xlane.xlu0 %3556
        %3558 = vadd.xlane.f32.xlu0 %v3431
        %v3559 = vpop.xlane.xlu0 %3558
        %3560 = vadd.xlane.f32.xlu0 %v3433
        %v3561 = vpop.xlane.xlu0 %3560
        %3562 = vadd.xlane.f32.xlu0 %v3435
        %v3563 = vpop.xlane.xlu0 %3562
        %3564 = vadd.xlane.f32.xlu0 %v3437
        %v3565 = vpop.xlane.xlu0 %3564
        %3566 = vadd.xlane.f32.xlu0 %v3439
        %v3567 = vpop.xlane.xlu0 %3566
        %3568 = vadd.xlane.f32.xlu0 %v3441
        %v3569 = vpop.xlane.xlu0 %3568
        %3570 = vadd.xlane.f32.xlu0 %v3443
        %v3571 = vpop.xlane.xlu0 %3570
        %3572 = vadd.xlane.f32.xlu0 %v3445
        %v3573 = vpop.xlane.xlu0 %3572
        %3574 = vadd.xlane.f32.xlu0 %v3447
        %v3575 = vpop.xlane.xlu0 %3574
        %3576 = vadd.xlane.f32.xlu0 %v3449
        %v3577 = vpop.xlane.xlu0 %3576
        %3578 = vadd.xlane.f32.xlu0 %v3451
        %v3579 = vpop.xlane.xlu0 %3578
        %3580 = vadd.xlane.f32.xlu0 %v3453
        %v3581 = vpop.xlane.xlu0 %3580
        %3582 = vadd.xlane.f32.xlu0 %v3455
        %v3583 = vpop.xlane.xlu0 %3582
        %3584 = vadd.xlane.f32.xlu0 %v3457
        %v3585 = vpop.xlane.xlu0 %3584
        %3586 = vadd.xlane.f32.xlu0 %v3459
        %v3587 = vpop.xlane.xlu0 %3586
        %v3588 = vrcp.pop %v3461
        %v3589 = vrcp.pop %v3463
        %v3590 = vrcp.pop %v3465
        %v3591 = vrcp.pop %v3467
        %v3592 = vrcp.pop %v3469
        %v3593 = vrcp.pop %v3471
        %v3594 = vrcp.pop %v3473
        %v3595 = vrcp.pop %v3475
        %v3596 = vrcp.pop %v3477
        %v3597 = vrcp.pop %v3479
        %v3598 = vrcp.pop %v3481
        %v3599 = vrcp.pop %v3483
        %v3600 = vrcp.pop %v3485
        %v3601 = vrcp.pop %v3487
        %v3602 = vrcp.pop %v3489
        %v3603 = vrcp.pop %v3491
        %v3604 = vrcp.pop %v3493
        %v3605 = vrcp.pop %v3495
        %v3606 = vrcp.pop %v3497
        %v3607 = vrcp.pop %v3499
        %v3608 = vrcp.pop %v3501
        %v3609 = vrcp.pop %v3503
        %v3610 = vrcp.pop %v3505
        %v3611 = vrcp.pop %v3507
        %v3612 = vrcp.pop %v3509
        %v3613 = vrcp.pop %v3511
        %v3614 = vrcp.pop %v3513
        %v3615 = vrcp.pop %v3515
        %v3616 = vrcp.pop %v3517
        %v3617 = vrcp.pop %v3519
        %v3618 = vrcp.pop %v3521
        %v3619 = vrcp.pop %v3523
        %v3620 = vrcp.pop %v3525
        %v3621 = vrcp.pop %v3527
        %v3622 = vrcp.pop %v3529
        %v3623 = vrcp.pop %v3531
        %v3624 = vrcp.pop %v3533
        %v3625 = vrcp.pop %v3535
        %v3626 = vrcp.pop %v3537
        %v3627 = vrcp.pop %v3539
        %v3628 = vrcp.pop %v3541
        %v3629 = vrcp.pop %v3543
        %v3630 = vrcp.pop %v3545
        %v3631 = vrcp.pop %v3547
        %v3632 = vrcp.pop %v3549
        %v3633 = vrcp.pop %v3551
        %v3634 = vrcp.pop %v3553
        %v3635 = vrcp.pop %v3555
        %v3636 = vrcp.pop %v3557
        %v3637 = vrcp.pop %v3559
        %v3638 = vrcp.pop %v3561
        %v3639 = vrcp.pop %v3563
        %v3640 = vrcp.pop %v3565
        %v3641 = vrcp.pop %v3567
        %v3642 = vrcp.pop %v3569
        %v3643 = vrcp.pop %v3571
        %v3644 = vrcp.pop %v3573
        %v3645 = vrcp.pop %v3575
        %v3646 = vrcp.pop %v3577
        %v3647 = vrcp.pop %v3579
        %v3648 = vrcp.pop %v3581
        %v3649 = vrcp.pop %v3583
        %v3650 = vrcp.pop %v3585
        %v3651 = vrcp.pop %v3587
        %v3652 = vmul.f32 %v3333, %v3588
        %v3653 = vmul.f32 %v3335, %v3589
        %v3654 = vmul.f32 %v3337, %v3590
        %v3655 = vmul.f32 %v3339, %v3591
        %v3656 = vmul.f32 %v3341, %v3592
        %v3657 = vmul.f32 %v3343, %v3593
        %v3658 = vmul.f32 %v3345, %v3594
        %v3659 = vmul.f32 %v3347, %v3595
        %v3660 = vmul.f32 %v3349, %v3596
        %v3661 = vmul.f32 %v3351, %v3597
        %v3662 = vmul.f32 %v3353, %v3598
        %v3663 = vmul.f32 %v3355, %v3599
        %v3664 = vmul.f32 %v3357, %v3600
        %v3665 = vmul.f32 %v3359, %v3601
        %v3666 = vmul.f32 %v3361, %v3602
        %v3667 = vmul.f32 %v3363, %v3603
        %v3668 = vmul.f32 %v3365, %v3604
        %v3669 = vmul.f32 %v3367, %v3605
        %v3670 = vmul.f32 %v3369, %v3606
        %v3671 = vmul.f32 %v3371, %v3607
        %v3672 = vmul.f32 %v3373, %v3608
        %v3673 = vmul.f32 %v3375, %v3609
        %v3674 = vmul.f32 %v3377, %v3610
        %v3675 = vmul.f32 %v3379, %v3611
        %v3676 = vmul.f32 %v3381, %v3612
        %v3677 = vmul.f32 %v3383, %v3613
        %v3678 = vmul.f32 %v3385, %v3614
        %v3679 = vmul.f32 %v3387, %v3615
        %v3680 = vmul.f32 %v3389, %v3616
        %v3681 = vmul.f32 %v3391, %v3617
        %v3682 = vmul.f32 %v3393, %v3618
        %v3683 = vmul.f32 %v3395, %v3619
        %v3684 = vmul.f32 %v3397, %v3620
        %v3685 = vmul.f32 %v3399, %v3621
        %v3686 = vmul.f32 %v3401, %v3622
        %v3687 = vmul.f32 %v3403, %v3623
        %v3688 = vmul.f32 %v3405, %v3624
        %v3689 = vmul.f32 %v3407, %v3625
        %v3690 = vmul.f32 %v3409, %v3626
        %v3691 = vmul.f32 %v3411, %v3627
        %v3692 = vmul.f32 %v3413, %v3628
        %v3693 = vmul.f32 %v3415, %v3629
        %v3694 = vmul.f32 %v3417, %v3630
        %v3695 = vmul.f32 %v3419, %v3631
        %v3696 = vmul.f32 %v3421, %v3632
        %v3697 = vmul.f32 %v3423, %v3633
        %v3698 = vmul.f32 %v3425, %v3634
        %v3699 = vmul.f32 %v3427, %v3635
        %v3700 = vmul.f32 %v3429, %v3636
        %v3701 = vmul.f32 %v3431, %v3637
        %v3702 = vmul.f32 %v3433, %v3638
        %v3703 = vmul.f32 %v3435, %v3639
        %v3704 = vmul.f32 %v3437, %v3640
        %v3705 = vmul.f32 %v3439, %v3641
        %v3706 = vmul.f32 %v3441, %v3642
        %v3707 = vmul.f32 %v3443, %v3643
        %v3708 = vmul.f32 %v3445, %v3644
        %v3709 = vmul.f32 %v3447, %v3645
        %v3710 = vmul.f32 %v3449, %v3646
        %v3711 = vmul.f32 %v3451, %v3647
        %v3712 = vmul.f32 %v3453, %v3648
        %v3713 = vmul.f32 %v3455, %v3649
        %v3714 = vmul.f32 %v3457, %v3650
        %v3715 = vmul.f32 %v3459, %v3651
        %3716 = vmatprep.subr.mxu0 0.0
        %3717 = vmatpush1.xpose.msra.mxu0 %v3652
        %3718 = vmatprep.subr.mxu0 0.0
        %3719 = vmatpush1.xpose.msra.mxu0 %v3653
        %3720 = vmatprep.subr.mxu0 0.0
        %3721 = vmatpush1.xpose.msra.mxu0 %v3654
        %3722 = vmatprep.subr.mxu0 0.0
        %3723 = vmatpush1.xpose.msra.mxu0 %v3655
        %3724 = vmatprep.subr.mxu0 0.0
        %3725 = vmatpush1.xpose.msra.mxu0 %v3656
        %3726 = vmatprep.subr.mxu0 0.0
        %3727 = vmatpush1.xpose.msra.mxu0 %v3657
        %3728 = vmatprep.subr.mxu0 0.0
        %3729 = vmatpush1.xpose.msra.mxu0 %v3658
        %3730 = vmatprep.subr.mxu0 0.0
        %3731 = vmatpush1.xpose.msra.mxu0 %v3659
        %3732 = vmatprep.subr.mxu0 0.0
        %3733 = vmatpush1.xpose.msra.mxu0 %v3660
        %3734 = vmatprep.subr.mxu0 0.0
        %3735 = vmatpush1.xpose.msra.mxu0 %v3661
        %3736 = vmatprep.subr.mxu0 0.0
        %3737 = vmatpush1.xpose.msra.mxu0 %v3662
        %3738 = vmatprep.subr.mxu0 0.0
        %3739 = vmatpush1.xpose.msra.mxu0 %v3663
        %3740 = vmatprep.subr.mxu0 0.0
        %3741 = vmatpush1.xpose.msra.mxu0 %v3664
        %3742 = vmatprep.subr.mxu0 0.0
        %3743 = vmatpush1.xpose.msra.mxu0 %v3665
        %3744 = vmatprep.subr.mxu0 0.0
        %3745 = vmatpush1.xpose.msra.mxu0 %v3666
        %3746 = vmatprep.subr.mxu0 0.0
        %3747 = vmatpush1.xpose.msra.mxu0 %v3667
        %3748 = vmatprep.subr.mxu0 0.0
        %3749 = vmatpush1.xpose.msra.mxu0 0.0
        %3750 = vmatprep.subr.mxu0 0.0
        %3751 = vmatpush1.xpose.msra.mxu0 0.0
        %3752 = vmatprep.subr.mxu0 0.0
        %3753 = vmatpush1.xpose.msra.mxu0 0.0
        %3754 = vmatprep.subr.mxu0 0.0
        %3755 = vmatpush1.xpose.msra.mxu0 0.0
        %3756 = vmatprep.subr.mxu0 0.0
        %3757 = vmatpush1.xpose.msra.mxu0 0.0
        %3758 = vmatprep.subr.mxu0 0.0
        %3759 = vmatpush1.xpose.msra.mxu0 0.0
        %3760 = vmatprep.subr.mxu0 0.0
        %3761 = vmatpush1.xpose.msra.mxu0 0.0
        %3762 = vmatprep.subr.mxu0 0.0
        %3763 = vmatpush1.xpose.msra.mxu0 0.0
        %3764 = vmatprep.subr.mxu0 0.0
        %3765 = vmatpush1.xpose.msra.mxu0 0.0
        %3766 = vmatprep.subr.mxu0 0.0
        %3767 = vmatpush1.xpose.msra.mxu0 0.0
        %3768 = vmatprep.subr.mxu0 0.0
        %3769 = vmatpush1.xpose.msra.mxu0 0.0
        %3770 = vmatprep.subr.mxu0 0.0
        %3771 = vmatpush1.xpose.msra.mxu0 0.0
        %3772 = vmatprep.subr.mxu0 0.0
        %3773 = vmatpush1.xpose.msra.mxu0 0.0
        %3774 = vmatprep.subr.mxu0 0.0
        %3775 = vmatpush1.xpose.msra.mxu0 0.0
        %3776 = vmatprep.subr.mxu0 0.0
        %3777 = vmatpush1.xpose.msra.mxu0 0.0
        %3778 = vmatprep.subr.mxu0 0.0
        %3779 = vmatpush1.xpose.msra.mxu0 0.0
        %3780 = vmatprep.mubr.f32.mxu0 0.0
        %3781 = vmatmul.mubr.f32.gmra.mrb[0].mxu0 %v2213
        %v3782 = vpop.f32.mrb[0].mxu0
        %v3783 = vadd.f32 0.0, %v3782
        %v3784 = vpop.f32.mrb[0].mxu0
        %3785 = vdwg.mxu0
        %3786 = vmatprep.subr.mxu0 0.0
        %3787 = vmatpush1.xpose.msra.mxu0 %v3668
        %3788 = vmatprep.subr.mxu0 0.0
        %3789 = vmatpush1.xpose.msra.mxu0 %v3669
        %3790 = vmatprep.subr.mxu0 0.0
        %3791 = vmatpush1.xpose.msra.mxu0 %v3670
        %3792 = vmatprep.subr.mxu0 0.0
        %3793 = vmatpush1.xpose.msra.mxu0 %v3671
        %3794 = vmatprep.subr.mxu0 0.0
        %3795 = vmatpush1.xpose.msra.mxu0 %v3672
        %3796 = vmatprep.subr.mxu0 0.0
        %3797 = vmatpush1.xpose.msra.mxu0 %v3673
        %3798 = vmatprep.subr.mxu0 0.0
        %3799 = vmatpush1.xpose.msra.mxu0 %v3674
        %3800 = vmatprep.subr.mxu0 0.0
        %3801 = vmatpush1.xpose.msra.mxu0 %v3675
        %3802 = vmatprep.subr.mxu0 0.0
        %3803 = vmatpush1.xpose.msra.mxu0 %v3676
        %3804 = vmatprep.subr.mxu0 0.0
        %3805 = vmatpush1.xpose.msra.mxu0 %v3677
        %3806 = vmatprep.subr.mxu0 0.0
        %3807 = vmatpush1.xpose.msra.mxu0 %v3678
        %3808 = vmatprep.subr.mxu0 0.0
        %3809 = vmatpush1.xpose.msra.mxu0 %v3679
        %3810 = vmatprep.subr.mxu0 0.0
        %3811 = vmatpush1.xpose.msra.mxu0 %v3680
        %3812 = vmatprep.subr.mxu0 0.0
        %3813 = vmatpush1.xpose.msra.mxu0 %v3681
        %3814 = vmatprep.subr.mxu0 0.0
        %3815 = vmatpush1.xpose.msra.mxu0 %v3682
        %3816 = vmatprep.subr.mxu0 0.0
        %3817 = vmatpush1.xpose.msra.mxu0 %v3683
        %3818 = vmatprep.subr.mxu0 0.0
        %3819 = vmatpush1.xpose.msra.mxu0 0.0
        %3820 = vmatprep.subr.mxu0 0.0
        %3821 = vmatpush1.xpose.msra.mxu0 0.0
        %3822 = vmatprep.subr.mxu0 0.0
        %3823 = vmatpush1.xpose.msra.mxu0 0.0
        %3824 = vmatprep.subr.mxu0 0.0
        %3825 = vmatpush1.xpose.msra.mxu0 0.0
        %3826 = vmatprep.subr.mxu0 0.0
        %3827 = vmatpush1.xpose.msra.mxu0 0.0
        %3828 = vmatprep.subr.mxu0 0.0
        %3829 = vmatpush1.xpose.msra.mxu0 0.0
        %3830 = vmatprep.subr.mxu0 0.0
        %3831 = vmatpush1.xpose.msra.mxu0 0.0
        %3832 = vmatprep.subr.mxu0 0.0
        %3833 = vmatpush1.xpose.msra.mxu0 0.0
        %3834 = vmatprep.subr.mxu0 0.0
        %3835 = vmatpush1.xpose.msra.mxu0 0.0
        %3836 = vmatprep.subr.mxu0 0.0
        %3837 = vmatpush1.xpose.msra.mxu0 0.0
        %3838 = vmatprep.subr.mxu0 0.0
        %3839 = vmatpush1.xpose.msra.mxu0 0.0
        %3840 = vmatprep.subr.mxu0 0.0
        %3841 = vmatpush1.xpose.msra.mxu0 0.0
        %3842 = vmatprep.subr.mxu0 0.0
        %3843 = vmatpush1.xpose.msra.mxu0 0.0
        %3844 = vmatprep.subr.mxu0 0.0
        %3845 = vmatpush1.xpose.msra.mxu0 0.0
        %3846 = vmatprep.subr.mxu0 0.0
        %3847 = vmatpush1.xpose.msra.mxu0 0.0
        %3848 = vmatprep.subr.mxu0 0.0
        %3849 = vmatpush1.xpose.msra.mxu0 0.0
        %3850 = vmatprep.mubr.f32.mxu0 0.0
        %3851 = vmatmul.mubr.f32.gmra.mrb[0].mxu0 %v2218
        %v3852 = vpop.f32.mrb[0].mxu0
        %v3853 = vadd.f32 0.0, %v3852
        %v3854 = vpop.f32.mrb[0].mxu0
        %3855 = vdwg.mxu0
        %3856 = vmatprep.subr.mxu0 0.0
        %3857 = vmatpush1.xpose.msra.mxu0 %v3684
        %3858 = vmatprep.subr.mxu0 0.0
        %3859 = vmatpush1.xpose.msra.mxu0 %v3685
        %3860 = vmatprep.subr.mxu0 0.0
        %3861 = vmatpush1.xpose.msra.mxu0 %v3686
        %3862 = vmatprep.subr.mxu0 0.0
        %3863 = vmatpush1.xpose.msra.mxu0 %v3687
        %3864 = vmatprep.subr.mxu0 0.0
        %3865 = vmatpush1.xpose.msra.mxu0 %v3688
        %3866 = vmatprep.subr.mxu0 0.0
        %3867 = vmatpush1.xpose.msra.mxu0 %v3689
        %3868 = vmatprep.subr.mxu0 0.0
        %3869 = vmatpush1.xpose.msra.mxu0 %v3690
        %3870 = vmatprep.subr.mxu0 0.0
        %3871 = vmatpush1.xpose.msra.mxu0 %v3691
        %3872 = vmatprep.subr.mxu0 0.0
        %3873 = vmatpush1.xpose.msra.mxu0 %v3692
        %3874 = vmatprep.subr.mxu0 0.0
        %3875 = vmatpush1.xpose.msra.mxu0 %v3693
        %3876 = vmatprep.subr.mxu0 0.0
        %3877 = vmatpush1.xpose.msra.mxu0 %v3694
        %3878 = vmatprep.subr.mxu0 0.0
        %3879 = vmatpush1.xpose.msra.mxu0 %v3695
        %3880 = vmatprep.subr.mxu0 0.0
        %3881 = vmatpush1.xpose.msra.mxu0 %v3696
        %3882 = vmatprep.subr.mxu0 0.0
        %3883 = vmatpush1.xpose.msra.mxu0 %v3697
        %3884 = vmatprep.subr.mxu0 0.0
        %3885 = vmatpush1.xpose.msra.mxu0 %v3698
        %3886 = vmatprep.subr.mxu0 0.0
        %3887 = vmatpush1.xpose.msra.mxu0 %v3699
        %3888 = vmatprep.subr.mxu0 0.0
        %3889 = vmatpush1.xpose.msra.mxu0 0.0
        %3890 = vmatprep.subr.mxu0 0.0
        %3891 = vmatpush1.xpose.msra.mxu0 0.0
        %3892 = vmatprep.subr.mxu0 0.0
        %3893 = vmatpush1.xpose.msra.mxu0 0.0
        %3894 = vmatprep.subr.mxu0 0.0
        %3895 = vmatpush1.xpose.msra.mxu0 0.0
        %3896 = vmatprep.subr.mxu0 0.0
        %3897 = vmatpush1.xpose.msra.mxu0 0.0
        %3898 = vmatprep.subr.mxu0 0.0
        %3899 = vmatpush1.xpose.msra.mxu0 0.0
        %3900 = vmatprep.subr.mxu0 0.0
        %3901 = vmatpush1.xpose.msra.mxu0 0.0
        %3902 = vmatprep.subr.mxu0 0.0
        %3903 = vmatpush1.xpose.msra.mxu0 0.0
        %3904 = vmatprep.subr.mxu0 0.0
        %3905 = vmatpush1.xpose.msra.mxu0 0.0
        %3906 = vmatprep.subr.mxu0 0.0
        %3907 = vmatpush1.xpose.msra.mxu0 0.0
        %3908 = vmatprep.subr.mxu0 0.0
        %3909 = vmatpush1.xpose.msra.mxu0 0.0
        %3910 = vmatprep.subr.mxu0 0.0
        %3911 = vmatpush1.xpose.msra.mxu0 0.0
        %3912 = vmatprep.subr.mxu0 0.0
        %3913 = vmatpush1.xpose.msra.mxu0 0.0
        %3914 = vmatprep.subr.mxu0 0.0
        %3915 = vmatpush1.xpose.msra.mxu0 0.0
        %3916 = vmatprep.subr.mxu0 0.0
        %3917 = vmatpush1.xpose.msra.mxu0 0.0
        %3918 = vmatprep.subr.mxu0 0.0
        %3919 = vmatpush1.xpose.msra.mxu0 0.0
        %3920 = vmatprep.mubr.f32.mxu0 0.0
        %3921 = vmatmul.mubr.f32.gmra.mrb[0].mxu0 %v2223
        %v3922 = vpop.f32.mrb[0].mxu0
        %v3923 = vadd.f32 0.0, %v3922
        %v3924 = vpop.f32.mrb[0].mxu0
        %3925 = vdwg.mxu0
        %3926 = vmatprep.subr.mxu0 0.0
        %3927 = vmatpush1.xpose.msra.mxu0 %v3700
        %3928 = vmatprep.subr.mxu0 0.0
        %3929 = vmatpush1.xpose.msra.mxu0 %v3701
        %3930 = vmatprep.subr.mxu0 0.0
        %3931 = vmatpush1.xpose.msra.mxu0 %v3702
        %3932 = vmatprep.subr.mxu0 0.0
        %3933 = vmatpush1.xpose.msra.mxu0 %v3703
        %3934 = vmatprep.subr.mxu0 0.0
        %3935 = vmatpush1.xpose.msra.mxu0 %v3704
        %3936 = vmatprep.subr.mxu0 0.0
        %3937 = vmatpush1.xpose.msra.mxu0 %v3705
        %3938 = vmatprep.subr.mxu0 0.0
        %3939 = vmatpush1.xpose.msra.mxu0 %v3706
        %3940 = vmatprep.subr.mxu0 0.0
        %3941 = vmatpush1.xpose.msra.mxu0 %v3707
        %3942 = vmatprep.subr.mxu0 0.0
        %3943 = vmatpush1.xpose.msra.mxu0 %v3708
        %3944 = vmatprep.subr.mxu0 0.0
        %3945 = vmatpush1.xpose.msra.mxu0 %v3709
        %3946 = vmatprep.subr.mxu0 0.0
        %3947 = vmatpush1.xpose.msra.mxu0 %v3710
        %3948 = vmatprep.subr.mxu0 0.0
        %3949 = vmatpush1.xpose.msra.mxu0 %v3711
        %3950 = vmatprep.subr.mxu0 0.0
        %3951 = vmatpush1.xpose.msra.mxu0 %v3712
        %3952 = vmatprep.subr.mxu0 0.0
        %3953 = vmatpush1.xpose.msra.mxu0 %v3713
        %3954 = vmatprep.subr.mxu0 0.0
        %3955 = vmatpush1.xpose.msra.mxu0 %v3714
        %3956 = vmatprep.subr.mxu0 0.0
        %3957 = vmatpush1.xpose.msra.mxu0 %v3715
        %3958 = vmatprep.subr.mxu0 0.0
        %3959 = vmatpush1.xpose.msra.mxu0 0.0
        %3960 = vmatprep.subr.mxu0 0.0
        %3961 = vmatpush1.xpose.msra.mxu0 0.0
        %3962 = vmatprep.subr.mxu0 0.0
        %3963 = vmatpush1.xpose.msra.mxu0 0.0
        %3964 = vmatprep.subr.mxu0 0.0
        %3965 = vmatpush1.xpose.msra.mxu0 0.0
        %3966 = vmatprep.subr.mxu0 0.0
        %3967 = vmatpush1.xpose.msra.mxu0 0.0
        %3968 = vmatprep.subr.mxu0 0.0
        %3969 = vmatpush1.xpose.msra.mxu0 0.0
        %3970 = vmatprep.subr.mxu0 0.0
        %3971 = vmatpush1.xpose.msra.mxu0 0.0
        %3972 = vmatprep.subr.mxu0 0.0
        %3973 = vmatpush1.xpose.msra.mxu0 0.0
        %3974 = vmatprep.subr.mxu0 0.0
        %3975 = vmatpush1.xpose.msra.mxu0 0.0
        %3976 = vmatprep.subr.mxu0 0.0
        %3977 = vmatpush1.xpose.msra.mxu0 0.0
        %3978 = vmatprep.subr.mxu0 0.0
        %3979 = vmatpush1.xpose.msra.mxu0 0.0
        %3980 = vmatprep.subr.mxu0 0.0
        %3981 = vmatpush1.xpose.msra.mxu0 0.0
        %3982 = vmatprep.subr.mxu0 0.0
        %3983 = vmatpush1.xpose.msra.mxu0 0.0
        %3984 = vmatprep.subr.mxu0 0.0
        %3985 = vmatpush1.xpose.msra.mxu0 0.0
        %3986 = vmatprep.subr.mxu0 0.0
        %3987 = vmatpush1.xpose.msra.mxu0 0.0
        %3988 = vmatprep.subr.mxu0 0.0
        %3989 = vmatpush1.xpose.msra.mxu0 0.0
        %3990 = vmatprep.mubr.f32.mxu0 0.0
        %3991 = vmatmul.mubr.f32.gmra.mrb[0].mxu0 %v2228
        %v3992 = vpop.f32.mrb[0].mxu0
        %v3993 = vadd.f32 0.0, %v3992
        %v3994 = vpop.f32.mrb[0].mxu0
        %3995 = vdwg.mxu0
        %v3997 = vsel %vm1883, %v2231, 0
        %v4000 = vsel %vm1883, %v2232, 0
        %v4003 = vsel %vm1883, %v2233, 0
        %v4006 = vsel %vm1883, %v2234, 0
        %4008 = vmatprep.subr.mxu0 0.0
        %4009 = vmatpush1.msra.mxu0 %v3783
        %4010 = vmatprep.subr.mxu0 0.0
        %4011 = vmatpush1.msra.mxu0 %v3853
        %4012 = vmatprep.subr.mxu0 0.0
        %4013 = vmatpush1.msra.mxu0 %v3923
        %4014 = vmatprep.subr.mxu0 0.0
        %4015 = vmatpush1.msra.mxu0 %v3993
        %4016 = vmatprep.subr.mxu0 0.0
        %4017 = vmatpush1.msra.mxu0 0.0
        %4018 = vmatprep.subr.mxu0 0.0
        %4019 = vmatpush1.msra.mxu0 0.0
        %4020 = vmatprep.subr.mxu0 0.0
        %4021 = vmatpush1.msra.mxu0 0.0
        %4022 = vmatprep.subr.mxu0 0.0
        %4023 = vmatpush1.msra.mxu0 0.0
        %4024 = vmatprep.subr.mxu0 0.0
        %4025 = vmatpush1.msra.mxu0 0.0
        %4026 = vmatprep.subr.mxu0 0.0
        %4027 = vmatpush1.msra.mxu0 0.0
        %4028 = vmatprep.subr.mxu0 0.0
        %4029 = vmatpush1.msra.mxu0 0.0
        %4030 = vmatprep.subr.mxu0 0.0
        %4031 = vmatpush1.msra.mxu0 0.0
        %4032 = vmatprep.subr.mxu0 0.0
        %4033 = vmatpush1.msra.mxu0 0.0
        %4034 = vmatprep.subr.mxu0 0.0
        %4035 = vmatpush1.msra.mxu0 0.0
        %4036 = vmatprep.subr.mxu0 0.0
        %4037 = vmatpush1.msra.mxu0 0.0
        %4038 = vmatprep.subr.mxu0 0.0
        %4039 = vmatpush1.msra.mxu0 0.0
        %4040 = vmatprep.subr.mxu0 0.0
        %4041 = vmatpush1.msra.mxu0 0.0
        %4042 = vmatprep.subr.mxu0 0.0
        %4043 = vmatpush1.msra.mxu0 0.0
        %4044 = vmatprep.subr.mxu0 0.0
        %4045 = vmatpush1.msra.mxu0 0.0
        %4046 = vmatprep.subr.mxu0 0.0
        %4047 = vmatpush1.msra.mxu0 0.0
        %4048 = vmatprep.subr.mxu0 0.0
        %4049 = vmatpush1.msra.mxu0 0.0
        %4050 = vmatprep.subr.mxu0 0.0
        %4051 = vmatpush1.msra.mxu0 0.0
        %4052 = vmatprep.subr.mxu0 0.0
        %4053 = vmatpush1.msra.mxu0 0.0
        %4054 = vmatprep.subr.mxu0 0.0
        %4055 = vmatpush1.msra.mxu0 0.0
        %4056 = vmatprep.subr.mxu0 0.0
        %4057 = vmatpush1.msra.mxu0 0.0
        %4058 = vmatprep.subr.mxu0 0.0
        %4059 = vmatpush1.msra.mxu0 0.0
        %4060 = vmatprep.subr.mxu0 0.0
        %4061 = vmatpush1.msra.mxu0 0.0
        %4062 = vmatprep.subr.mxu0 0.0
        %4063 = vmatpush1.msra.mxu0 0.0
        %4064 = vmatprep.subr.mxu0 0.0
        %4065 = vmatpush1.msra.mxu0 0.0
        %4066 = vmatprep.subr.mxu0 0.0
        %4067 = vmatpush1.msra.mxu0 0.0
        %4068 = vmatprep.subr.mxu0 0.0
        %4069 = vmatpush1.msra.mxu0 0.0
        %4070 = vmatprep.subr.mxu0 0.0
        %4071 = vmatpush1.msra.mxu0 0.0
        %4072 = vmatprep.mubr.f32.mxu0 0.0
        %4073 = vmatmul.mubr.f32.gmra.mrb[0].mxu0 %v3997
        %v4074 = vpop.f32.mrb[0].mxu0
        %v4075 = vadd.f32 0.0, %v4074
        %v4076 = vpop.f32.mrb[0].mxu0
        %4077 = vmatprep.mubr.f32.mxu0 0.0
        %4078 = vmatmul.mubr.f32.gmra.mrb[0].mxu0 %v4000
        %v4079 = vpop.f32.mrb[0].mxu0
        %v4080 = vadd.f32 0.0, %v4079
        %v4081 = vpop.f32.mrb[0].mxu0
        %4082 = vmatprep.mubr.f32.mxu0 0.0
        %4083 = vmatmul.mubr.f32.gmra.mrb[0].mxu0 %v4003
        %v4084 = vpop.f32.mrb[0].mxu0
        %v4085 = vadd.f32 0.0, %v4084
        %v4086 = vpop.f32.mrb[0].mxu0
        %4087 = vmatprep.mubr.f32.mxu0 0.0
        %4088 = vmatmul.mubr.f32.gmra.mrb[0].mxu0 %v4006
        %v4089 = vpop.f32.mrb[0].mxu0
        %v4090 = vadd.f32 0.0, %v4089
        %v4091 = vpop.f32.mrb[0].mxu0
        %4092 = vdwg.mxu0
        %v4093 = vadd.f32 %v385, %v4075
        %v4094 = vadd.f32 %v386, %v4080
        %v4095 = vadd.f32 %v387, %v4085
        %v4096 = vadd.f32 %v388, %v4090
        %4098 = vset.pattern.permute.xlu0 0
        %4099 = vperm.xlu0 %4098, %v2235
        %v4100 = vpop.permute.xlu0 %4099
        %4103 = vset.pattern.permute.xlu0 0
        %4104 = vperm.xlu0 %4103, %v2236
        %v4105 = vpop.permute.xlu0 %4104
        %4108 = vset.pattern.permute.xlu0 0
        %4109 = vperm.xlu0 %4108, %v2237
        %v4110 = vpop.permute.xlu0 %4109
        %4113 = vset.pattern.permute.xlu0 0
        %4114 = vperm.xlu0 %4113, %v2238
        %v4115 = vpop.permute.xlu0 %4114
        %v4117 = vadd.f32 %v4093, %v4100
        %v4118 = vadd.f32 %v4094, %v4105
        %v4119 = vadd.f32 %v4095, %v4110
        %v4120 = vadd.f32 %v4096, %v4115
        %4121 = vst [vmem:[%s379] sm:$0xff] %v4117
        %4122 = vst [vmem:[%s379 + $0x8] sm:$0xff] %v4118
        %4123 = vst [vmem:[%s379 + $0x10] sm:$0xff] %v4119
        %4124 = vst [vmem:[%s379 + $0x18] sm:$0xff] %v4120
        %s4125 = sand.u32 %s269, 1
        %s4126 = scalar_lea.sflag [#allocation3], %s4125
        %s4127 = sand.u32 %s269, 1
        %s4128 = smul.addr %s4127, 32
        %s4129 = scalar_lea.vmem [#allocation2], %s4128
        // Predicated region
        $region65: #{tpu_custom_call.1} parent=63 // pred_check
          %p4130 = pneg %p279
        $region66: #{tpu_custom_call.1} parent=63 // pred_check_branch
          %4132 = sbr.rel (%p4130) target = $region68
        $region67: #{tpu_custom_call.1} parent=63 // pred_region
          %s4134 = ssub.s32 512, 512
          %4135 = vsyncadd %s4126, %s4134
          %s4136 = smul.addr %s25, 4
          %s4137 = smul.addr %s4136, 128
          %s4138 = scalar_lea.hbm %s11, %s4137
          %s4139 = sshll.u32 %s4129, 4
          %s4140 = int_to_ptr.vmem [resolvable:$true] %s4139
          %4145 = dma.vmem_to_hbm [thread:$0]  %s4140, 512, %s4138, %s4126, 128, 128, 8
        $region68: #{tpu_custom_call.1} parent=63 // pred_fallthru
          _
      $region64: #{tpu_custom_call.1} parent=5 // pred_fallthru
        _
      %p4146 = scmp.le.s32.totalorder 2, %s20
      // Predicated region
      $region69: #{tpu_custom_call.1} parent=5 // pred_check
        %p4147 = pneg %p4146
      $region70: #{tpu_custom_call.1} parent=5 // pred_check_branch
        %4149 = sbr.rel (%p4147) target = $region72
      $region71: #{tpu_custom_call.1} parent=5 // pred_region
        %s4150 = ssub.s32 %s20, 2
        // Predicated region
        $region73: #{tpu_custom_call.1} parent=71 // pred_check
          %p4151 = pneg %p285
        $region74: #{tpu_custom_call.1} parent=71 // pred_check_branch
          %4153 = sbr.rel (%p4151) target = $region76
        $region75: #{tpu_custom_call.1} parent=71 // pred_region
          %s4154 = sand.u32 %s270, 1
          %s4155 = scalar_lea.sflag [#allocation3], %s4154
          %s4156 = sand.u32 %s270, 1
          %s4157 = smul.addr %s4156, 32
          %s4158 = scalar_lea.vmem [#allocation2], %s4157
          %4159 = dma.done %s4155, 512
        $region76: #{tpu_custom_call.1} parent=71 // pred_fallthru
          _
      $region72: #{tpu_custom_call.1} parent=5 // pred_fallthru
        _
    $region6: #{tpu_custom_call.1} parent=1 // loop_footer
      %s24 = sadd.s32 1, %s20
    $region7: #{tpu_custom_call.1} parent=1 // loop_footer_branch
      %19 = sbr.rel target = $region3
    $region8: #{tpu_custom_call.1} parent=1 // loop_exit
      _
    %4160 = vsyncpa [#allocation3], 1
    %s4161 = scalar_lea.sflag [#allocation3], 1
    %4162 = vsyncpa %s4161, 1

// kernel: tpu_custom_call.1
$region0: #{tpu_custom_call.1}
  #allocation0 [shape = 'u32[]', space=smem, size = 0x4, offset = 0x4, fixed_abs, tag = 'smem constant byte address 0x4 - core index']
  #allocation1 [shape = 'u32[144,128]{1,0:T(1,128)}', space=vmem, size = 0x12000, scoped, tag = 'internal scratch']
  %s0 = inlined_call_operand.vmem [shape: f32[2,32,128], index: 0, kind: input, shape index: {}]
  %s1 = inlined_call_operand.vmem [shape: f32[32,1], index: 1, kind: input, shape index: {}]
  %s2 = inlined_call_operand.vmem [shape: f32[32,1], index: 2, kind: input, shape index: {}]
  %s3 = inlined_call_operand.vmem [shape: f32[32,32], index: 3, kind: input, shape index: {}]
  %s4 = inlined_call_operand.vmem [shape: f32[32,32], index: 4, kind: input, shape index: {}]
  %s5 = inlined_call_operand.vmem [shape: f32[32,32], index: 5, kind: input, shape index: {}]
  %s6 = inlined_call_operand.vmem [shape: f32[32,1], index: 6, kind: input, shape index: {}]
  %s7 = inlined_call_operand.vmem [shape: f32[32,1], index: 7, kind: input, shape index: {}]
  %s8 = inlined_call_operand.vmem [shape: f32[32,1], index: 8, kind: input, shape index: {}]
  %s9 = inlined_call_operand.vmem [shape: f32[32,32], index: 9, kind: input, shape index: {}]
  %s10 = inlined_call_operand.vmem [shape: f32[32,1], index: 10, kind: input, shape index: {}]
  %s11 = inlined_call_operand.hbm [shape: f32[2,32,128], index: 11, kind: output, shape index: {}]
  %s12 = sld [smem:[#allocation0]]
  $region77: #{tpu_custom_call.1} parent=0
    _
  %s14 = ssub.s32 1, %s12
  %s15 = scalar_select 0, %s14, %s12
  $region1: #{tpu_custom_call.1} parent=0
    #allocation2 [shape = 'u8[32768]{0}', space=vmem, size = 0x8000, scoped, tag = 'output window, operand 0']
    #allocation3 [shape = 's32[2]{0}', space=sflag, size = 0x8, scoped, tag = 'scoped memory for tpu_custom_call.1']
    %16 = vsyncpa [#allocation3], 0
    %s17 = scalar_lea.sflag [#allocation3], 1
    %18 = vsyncpa %s17, 0
    loop: start=0, step=1, limit=4
    $region2: #{tpu_custom_call.1} parent=1 // loop_pre_header
      _
    $region3: #{tpu_custom_call.1} parent=1 // loop_header
      %s20 = sphi 0, %s24
      %p21 = scmp.ge.s32.totalorder %s20, 4
      %s30 = sphi 0, %s32
      %s33 = sphi 0, %s30
      %s34 = sphi 0, %s33
      %s50 = sphi 0, %s34
      %s54 = sphi 0, %s54
      %s56 = sphi 0, %s54
      %s57 = sphi 0, %s56
      %s71 = sphi 0, %s57
      %s75 = sphi 0, %s75
      %s77 = sphi 0, %s75
      %s78 = sphi 0, %s77
      %s92 = sphi 0, %s78
      %s96 = sphi 0, %s96
      %s98 = sphi 0, %s96
      %s99 = sphi 0, %s98
      %s113 = sphi 0, %s99
      %s117 = sphi 0, %s117
      %s119 = sphi 0, %s117
      %s120 = sphi 0, %s119
      %s134 = sphi 0, %s120
      %s138 = sphi 0, %s138
      %s140 = sphi 0, %s138
      %s141 = sphi 0, %s140
      %s155 = sphi 0, %s141
      %s159 = sphi 0, %s159
      %s161 = sphi 0, %s159
      %s162 = sphi 0, %s161
      %s176 = sphi 0, %s162
      %s180 = sphi 0, %s180
      %s182 = sphi 0, %s180
      %s183 = sphi 0, %s182
      %s197 = sphi 0, %s183
      %s201 = sphi 0, %s201
      %s203 = sphi 0, %s201
      %s204 = sphi 0, %s203
      %s218 = sphi 0, %s204
      %s222 = sphi 0, %s222
      %s224 = sphi 0, %s222
      %s225 = sphi 0, %s224
      %s239 = sphi 0, %s225
      %s243 = sphi 0, %s243
      %s245 = sphi 0, %s243
      %s246 = sphi 0, %s245
      %s260 = sphi 0, %s246
      %s266 = sphi 0, %s268
      %s269 = sphi 0, %s266
      %s270 = sphi 0, %s269
      %s286 = sphi 0, %s270
    $region4: #{tpu_custom_call.1} parent=1 // loop_header_branch
      %23 = sbr.rel (%p21) target = $region8
    $region5: #{tpu_custom_call.1} parent=1 // loop_body
      %s25 = ssub.s32 %s20, 1
      %s26 = ssub.s32 %s20, 2
      %s27 = sadd.s32 %s20, 1
      %s28 = ssub.s32 %s20, %s27
      %p29 = scmp.eq.s32.totalorder %s28, 0
      %s31 = sadd.s32 %s30, 1
      %s32 = scalar_select %p29, %s30, %s31
      %p35 = pneg %p29
      %p36 = scmp.eq.s32.totalorder %s20, 1
      %p37 = por %p35, %p36
      %p38 = scmp.ne.s32.totalorder %s30, %s33
      %p39 = scmp.eq.s32.totalorder %s20, 0
      %p40 = por %p38, %p39
      %p41 = scmp.ne.s32.totalorder %s30, %s33
      %p42 = scmp.eq.s32.totalorder %s25, 1
      %p43 = por %p41, %p42
      %p44 = scmp.ne.s32.totalorder %s33, %s34
      %p45 = scmp.eq.s32.totalorder %s25, 0
      %p46 = por %p44, %p45
      %p47 = scmp.ne.s32.totalorder %s33, %s34
      %p48 = scmp.eq.s32.totalorder %s26, 1
      %p49 = por %p47, %p48
      %p51 = scmp.ne.s32.totalorder %s34, %s50
      %p52 = scmp.eq.s32.totalorder %s26, 0
      %p53 = por %p51, %p52
      %s55 = sadd.s32 %s54, 1
      %p58 = scmp.eq.s32.totalorder %s20, 1
      %p59 = scmp.ne.s32.totalorder %s54, %s56
      %p60 = scmp.eq.s32.totalorder %s20, 0
      %p61 = por %p59, %p60
      %p62 = scmp.ne.s32.totalorder %s54, %s56
      %p63 = scmp.eq.s32.totalorder %s25, 1
      %p64 = por %p62, %p63
      %p65 = scmp.ne.s32.totalorder %s56, %s57
      %p66 = scmp.eq.s32.totalorder %s25, 0
      %p67 = por %p65, %p66
      %p68 = scmp.ne.s32.totalorder %s56, %s57
      %p69 = scmp.eq.s32.totalorder %s26, 1
      %p70 = por %p68, %p69
      %p72 = scmp.ne.s32.totalorder %s57, %s71
      %p73 = scmp.eq.s32.totalorder %s26, 0
      %p74 = por %p72, %p73
      %s76 = sadd.s32 %s75, 1
      %p79 = scmp.eq.s32.totalorder %s20, 1
      %p80 = scmp.ne.s32.totalorder %s75, %s77
      %p81 = scmp.eq.s32.totalorder %s20, 0
      %p82 = por %p80, %p81
      %p83 = scmp.ne.s32.totalorder %s75, %s77
      %p84 = scmp.eq.s32.totalorder %s25, 1
      %p85 = por %p83, %p84
      %p86 = scmp.ne.s32.totalorder %s77, %s78
      %p87 = scmp.eq.s32.totalorder %s25, 0
      %p88 = por %p86, %p87
      %p89 = scmp.ne.s32.totalorder %s77, %s78
      %p90 = scmp.eq.s32.totalorder %s26, 1
      %p91 = por %p89, %p90
      %p93 = scmp.ne.s32.totalorder %s78, %s92
      %p94 = scmp.eq.s32.totalorder %s26, 0
      %p95 = por %p93, %p94
      %s97 = sadd.s32 %s96, 1
      %p100 = scmp.eq.s32.totalorder %s20, 1
      %p101 = scmp.ne.s32.totalorder %s96, %s98
      %p102 = scmp.eq.s32.totalorder %s20, 0
      %p103 = por %p101, %p102
      %p104 = scmp.ne.s32.totalorder %s96, %s98
      %p105 = scmp.eq.s32.totalorder %s25, 1
      %p106 = por %p104, %p105
      %p107 = scmp.ne.s32.totalorder %s98, %s99
      %p108 = scmp.eq.s32.totalorder %s25, 0
      %p109 = por %p107, %p108
      %p110 = scmp.ne.s32.totalorder %s98, %s99
      %p111 = scmp.eq.s32.totalorder %s26, 1
      %p112 = por %p110, %p111
      %p114 = scmp.ne.s32.totalorder %s99, %s113
      %p115 = scmp.eq.s32.totalorder %s26, 0
      %p116 = por %p114, %p115
      %s118 = sadd.s32 %s117, 1
      %p121 = scmp.eq.s32.totalorder %s20, 1
      %p122 = scmp.ne.s32.totalorder %s117, %s119
      %p123 = scmp.eq.s32.totalorder %s20, 0
      %p124 = por %p122, %p123
      %p125 = scmp.ne.s32.totalorder %s117, %s119
      %p126 = scmp.eq.s32.totalorder %s25, 1
      %p127 = por %p125, %p126
      %p128 = scmp.ne.s32.totalorder %s119, %s120
      %p129 = scmp.eq.s32.totalorder %s25, 0
      %p130 = por %p128, %p129
      %p131 = scmp.ne.s32.totalorder %s119, %s120
      %p132 = scmp.eq.s32.totalorder %s26, 1
      %p133 = por %p131, %p132
      %p135 = scmp.ne.s32.totalorder %s120, %s134
      %p136 = scmp.eq.s32.totalorder %s26, 0
      %p137 = por %p135, %p136
      %s139 = sadd.s32 %s138, 1
      %p142 = scmp.eq.s32.totalorder %s20, 1
      %p143 = scmp.ne.s32.totalorder %s138, %s140
      %p144 = scmp.eq.s32.totalorder %s20, 0
      %p145 = por %p143, %p144
      %p146 = scmp.ne.s32.totalorder %s138, %s140
      %p147 = scmp.eq.s32.totalorder %s25, 1
      %p148 = por %p146, %p147
      %p149 = scmp.ne.s32.totalorder %s140, %s141
      %p150 = scmp.eq.s32.totalorder %s25, 0
      %p151 = por %p149, %p150
      %p152 = scmp.ne.s32.totalorder %s140, %s141
      %p153 = scmp.eq.s32.totalorder %s26, 1
      %p154 = por %p152, %p153
      %p156 = scmp.ne.s32.totalorder %s141, %s155
      %p157 = scmp.eq.s32.totalorder %s26, 0
      %p158 = por %p156, %p157
      %s160 = sadd.s32 %s159, 1
      %p163 = scmp.eq.s32.totalorder %s20, 1
      %p164 = scmp.ne.s32.totalorder %s159, %s161
      %p165 = scmp.eq.s32.totalorder %s20, 0
      %p166 = por %p164, %p165
      %p167 = scmp.ne.s32.totalorder %s159, %s161
      %p168 = scmp.eq.s32.totalorder %s25, 1
      %p169 = por %p167, %p168
      %p170 = scmp.ne.s32.totalorder %s161, %s162
      %p171 = scmp.eq.s32.totalorder %s25, 0
      %p172 = por %p170, %p171
      %p173 = scmp.ne.s32.totalorder %s161, %s162
      %p174 = scmp.eq.s32.totalorder %s26, 1
      %p175 = por %p173, %p174
      %p177 = scmp.ne.s32.totalorder %s162, %s176
      %p178 = scmp.eq.s32.totalorder %s26, 0
      %p179 = por %p177, %p178
      %s181 = sadd.s32 %s180, 1
      %p184 = scmp.eq.s32.totalorder %s20, 1
      %p185 = scmp.ne.s32.totalorder %s180, %s182
      %p186 = scmp.eq.s32.totalorder %s20, 0
      %p187 = por %p185, %p186
      %p188 = scmp.ne.s32.totalorder %s180, %s182
      %p189 = scmp.eq.s32.totalorder %s25, 1
      %p190 = por %p188, %p189
      %p191 = scmp.ne.s32.totalorder %s182, %s183
      %p192 = scmp.eq.s32.totalorder %s25, 0
      %p193 = por %p191, %p192
      %p194 = scmp.ne.s32.totalorder %s182, %s183
      %p195 = scmp.eq.s32.totalorder %s26, 1
      %p196 = por %p194, %p195
      %p198 = scmp.ne.s32.totalorder %s183, %s197
      %p199 = scmp.eq.s32.totalorder %s26, 0
      %p200 = por %p198, %p199
      %s202 = sadd.s32 %s201, 1
      %p205 = scmp.eq.s32.totalorder %s20, 1
      %p206 = scmp.ne.s32.totalorder %s201, %s203
      %p207 = scmp.eq.s32.totalorder %s20, 0
      %p208 = por %p206, %p207
      %p209 = scmp.ne.s32.totalorder %s201, %s203
      %p210 = scmp.eq.s32.totalorder %s25, 1
      %p211 = por %p209, %p210
      %p212 = scmp.ne.s32.totalorder %s203, %s204
      %p213 = scmp.eq.s32.totalorder %s25, 0
      %p214 = por %p212, %p213
      %p215 = scmp.ne.s32.totalorder %s203, %s204
      %p216 = scmp.eq.s32.totalorder %s26, 1
      %p217 = por %p215, %p216
      %p219 = scmp.ne.s32.totalorder %s204, %s218
      %p220 = scmp.eq.s32.totalorder %s26, 0
      %p221 = por %p219, %p220
      %s223 = sadd.s32 %s222, 1
      %p226 = scmp.eq.s32.totalorder %s20, 1
      %p227 = scmp.ne.s32.totalorder %s222, %s224
      %p228 = scmp.eq.s32.totalorder %s20, 0
      %p229 = por %p227, %p228
      %p230 = scmp.ne.s32.totalorder %s222, %s224
      %p231 = scmp.eq.s32.totalorder %s25, 1
      %p232 = por %p230, %p231
      %p233 = scmp.ne.s32.totalorder %s224, %s225
      %p234 = scmp.eq.s32.totalorder %s25, 0
      %p235 = por %p233, %p234
      %p236 = scmp.ne.s32.totalorder %s224, %s225
      %p237 = scmp.eq.s32.totalorder %s26, 1
      %p238 = por %p236, %p237
      %p240 = scmp.ne.s32.totalorder %s225, %s239
      %p241 = scmp.eq.s32.totalorder %s26, 0
      %p242 = por %p240, %p241
      %s244 = sadd.s32 %s243, 1
      %p247 = scmp.eq.s32.totalorder %s20, 1
      %p248 = scmp.ne.s32.totalorder %s243, %s245
      %p249 = scmp.eq.s32.totalorder %s20, 0
      %p250 = por %p248, %p249
      %p251 = scmp.ne.s32.totalorder %s243, %s245
      %p252 = scmp.eq.s32.totalorder %s25, 1
      %p253 = por %p251, %p252
      %p254 = scmp.ne.s32.totalorder %s245, %s246
      %p255 = scmp.eq.s32.totalorder %s25, 0
      %p256 = por %p254, %p255
      %p257 = scmp.ne.s32.totalorder %s245, %s246
      %p258 = scmp.eq.s32.totalorder %s26, 1
      %p259 = por %p257, %p258
      %p261 = scmp.ne.s32.totalorder %s246, %s260
      %p262 = scmp.eq.s32.totalorder %s26, 0
      %p263 = por %p261, %p262
      %s264 = ssub.s32 %s20, %s27
      %p265 = scmp.eq.s32.totalorder %s264, 0
      %s267 = sadd.s32 %s266, 1
      %s268 = scalar_select %p265, %s266, %s267
      %p271 = pneg %p265
      %p272 = scmp.eq.s32.totalorder %s20, 1
      %p273 = por %p271, %p272
      %p274 = scmp.ne.s32.totalorder %s266, %s269
      %p275 = scmp.eq.s32.totalorder %s20, 0
      %p276 = por %p274, %p275
      %p277 = scmp.ne.s32.totalorder %s266, %s269
      %p278 = scmp.eq.s32.totalorder %s25, 1
      %p279 = por %p277, %p278
      %p280 = scmp.ne.s32.totalorder %s269, %s270
      %p281 = scmp.eq.s32.totalorder %s25, 0
      %p282 = por %p280, %p281
      %p283 = scmp.ne.s32.totalorder %s269, %s270
      %p284 = scmp.eq.s32.totalorder %s26, 1
      %p285 = por %p283, %p284
      %p287 = scmp.ne.s32.totalorder %s270, %s286
      %p288 = scmp.eq.s32.totalorder %s26, 0
      %p289 = por %p287, %p288
      %p290 = scmp.le.s32.totalorder 1, %s20
      %p291 = scmp.lt.s32.totalorder %s20, 3
      %p292 = pnand %p290, %p291
      %p293 = pneg %p292
      // Predicated region
      $region9: #{tpu_custom_call.1} parent=5 // pred_check
        _
      $region10: #{tpu_custom_call.1} parent=5 // pred_check_branch
        %295 = sbr.rel (%p292) target = $region12
      $region11: #{tpu_custom_call.1} parent=5 // pred_region
        %s296 = ssub.s32 %s20, 1
        // Predicated region
        $region13: #{tpu_custom_call.1} parent=11 // pred_check
          %p297 = pneg %p67
        $region14: #{tpu_custom_call.1} parent=11 // pred_check_branch
          %299 = sbr.rel (%p297) target = $region16
        $region15: #{tpu_custom_call.1} parent=11 // pred_region
          _
        $region16: #{tpu_custom_call.1} parent=11 // pred_fallthru
          _
        // Predicated region
        $region17: #{tpu_custom_call.1} parent=11 // pred_check
          %p300 = pneg %p88
        $region18: #{tpu_custom_call.1} parent=11 // pred_check_branch
          %302 = sbr.rel (%p300) target = $region20
        $region19: #{tpu_custom_call.1} parent=11 // pred_region
          _
        $region20: #{tpu_custom_call.1} parent=11 // pred_fallthru
          _
        // Predicated region
        $region21: #{tpu_custom_call.1} parent=11 // pred_check
          %p303 = pneg %p109
        $region22: #{tpu_custom_call.1} parent=11 // pred_check_branch
          %305 = sbr.rel (%p303) target = $region24
        $region23: #{tpu_custom_call.1} parent=11 // pred_region
          _
        $region24: #{tpu_custom_call.1} parent=11 // pred_fallthru
          _
        // Predicated region
        $region25: #{tpu_custom_call.1} parent=11 // pred_check
          %p306 = pneg %p130
        $region26: #{tpu_custom_call.1} parent=11 // pred_check_branch
          %308 = sbr.rel (%p306) target = $region28
        $region27: #{tpu_custom_call.1} parent=11 // pred_region
          _
        $region28: #{tpu_custom_call.1} parent=11 // pred_fallthru
          _
        // Predicated region
        $region29: #{tpu_custom_call.1} parent=11 // pred_check
          %p309 = pneg %p151
        $region30: #{tpu_custom_call.1} parent=11 // pred_check_branch
          %311 = sbr.rel (%p309) target = $region32
        $region31: #{tpu_custom_call.1} parent=11 // pred_region
          _
        $region32: #{tpu_custom_call.1} parent=11 // pred_fallthru
          _
        // Predicated region
        $region33: #{tpu_custom_call.1} parent=11 // pred_check
          %p312 = pneg %p172
        $region34: #{tpu_custom_call.1} parent=11 // pred_check_branch
          %314 = sbr.rel (%p312) target = $region36
        $region35: #{tpu_custom_call.1} parent=11 // pred_region
          _
        $region36: #{tpu_custom_call.1} parent=11 // pred_fallthru
          _
        // Predicated region
        $region37: #{tpu_custom_call.1} parent=11 // pred_check
          %p315 = pneg %p193
        $region38: #{tpu_custom_call.1} parent=11 // pred_check_branch
          %317 = sbr.rel (%p315) target = $region40
        $region39: #{tpu_custom_call.1} parent=11 // pred_region
          _
        $region40: #{tpu_custom_call.1} parent=11 // pred_fallthru
          _
        // Predicated region
        $region41: #{tpu_custom_call.1} parent=11 // pred_check
          %p318 = pneg %p214
        $region42: #{tpu_custom_call.1} parent=11 // pred_check_branch
          %320 = sbr.rel (%p318) target = $region44
        $region43: #{tpu_custom_call.1} parent=11 // pred_region
          _
        $region44: #{tpu_custom_call.1} parent=11 // pred_fallthru
          _
        // Predicated region
        $region45: #{tpu_custom_call.1} parent=11 // pred_check
          %p321 = pneg %p235
        $region46: #{tpu_custom_call.1} parent=11 // pred_check_branch
          %323 = sbr.rel (%p321) target = $region48
        $region47: #{tpu_custom_call.1} parent=11 // pred_region
          _
        $region48: #{tpu_custom_call.1} parent=11 // pred_fallthru
          _
        // Predicated region
        $region49: #{tpu_custom_call.1} parent=11 // pred_check
          %p324 = pneg %p256
        $region50: #{tpu_custom_call.1} parent=11 // pred_check_branch
          %326 = sbr.rel (%p324) target = $region52
        $region51: #{tpu_custom_call.1} parent=11 // pred_region
          _
        $region52: #{tpu_custom_call.1} parent=11 // pred_fallthru
          _
      $region12: #{tpu_custom_call.1} parent=5 // pred_fallthru
        _
      %p327 = scmp.lt.s32.totalorder %s20, 2
      // Predicated region
      $region53: #{tpu_custom_call.1} parent=5 // pred_check
        %p328 = pneg %p327
      $region54: #{tpu_custom_call.1} parent=5 // pred_check_branch
        %330 = sbr.rel (%p328) target = $region56
      $region55: #{tpu_custom_call.1} parent=5 // pred_region
        // Predicated region
        $region57: #{tpu_custom_call.1} parent=55 // pred_check
          %p331 = pneg %p40
        $region58: #{tpu_custom_call.1} parent=55 // pred_check_branch
          %333 = sbr.rel (%p331) target = $region60
        $region59: #{tpu_custom_call.1} parent=55 // pred_region
          %p334 = scmp.lt.s32.totalorder %s20, 1
          %s335 = scalar_select %p334, %s20, 1
          %s336 = smul.addr %s335, 4
          %s337 = smul.addr %s336, 8
          %s338 = scalar_lea.vmem %s0, %s337
        $region60: #{tpu_custom_call.1} parent=55 // pred_fallthru
          _
      $region56: #{tpu_custom_call.1} parent=5 // pred_fallthru
        _
      %p339 = scmp.le.s32.totalorder 1, %s20
      %p340 = scmp.lt.s32.totalorder %s20, 3
      %p341 = pnand %p339, %p340
      %p342 = pneg %p341
      // Predicated region
      $region61: #{tpu_custom_call.1} parent=5 // pred_check
        _
      $region62: #{tpu_custom_call.1} parent=5 // pred_check_branch
        %344 = sbr.rel (%p341) target = $region64
      $region63: #{tpu_custom_call.1} parent=5 // pred_region
        %s345 = ssub.s32 %s20, 1
        %p346 = scmp.lt.s32.totalorder %s25, 1
        %s347 = scalar_select %p346, %s25, 1
        %s348 = smul.addr %s347, 4
        %s349 = smul.addr %s348, 8
        %s350 = scalar_lea.vmem %s0, %s349
        %p351 = pneg %p46
        %p352 = pneg %p43
        %p353 = pneg %p67
        %p354 = pneg %p64
        %p355 = pneg %p88
        %p356 = pneg %p85
        %p357 = pneg %p109
        %p358 = pneg %p106
        %p359 = pneg %p130
        %p360 = pneg %p127
        %p361 = pneg %p151
        %p362 = pneg %p148
        %p363 = pneg %p172
        %p364 = pneg %p169
        %p365 = pneg %p193
        %p366 = pneg %p190
        %p367 = pneg %p214
        %p368 = pneg %p211
        %p369 = pneg %p235
        %p370 = pneg %p232
        %p371 = pneg %p256
        %p372 = pneg %p253
        %p373 = pneg %p282
        %p374 = pneg %p279
        %s375 = sand.u32 %s269, 1
        %s376 = scalar_lea.sflag [#allocation3], %s375
        %s377 = sand.u32 %s269, 1
        %s378 = smul.addr %s377, 32
        %s379 = scalar_lea.vmem [#allocation2], %s378
        %p380 = scmp.lt.s32.totalorder %s25, 1
        %s381 = scalar_select %p380, %s25, 1
        %s382 = smul.addr %s381, 4
        %s383 = smul.addr %s382, 8
        %s384 = scalar_lea.vmem %s0, %s383
        %v385 = vld [vmem:[%s384] sm:$0xff]
        %v386 = vld [vmem:[%s384 + $0x8] sm:$0xff]
        %v387 = vld [vmem:[%s384 + $0x10] sm:$0xff]
        %v388 = vld [vmem:[%s384 + $0x18] sm:$0xff]
        %v393 = vcombine.high %v385, %v385
        %v395 = vunpack.c.l.s4 1966171168
        %v396 = vunpack.c.0.s8 %v395
        %v397 = vlaneseq
        %v398 = vshrl.u32 %v397, 7
        %v399 = vsub.s32 %v396, %v398
        %v400 = vrot.slane %v385, %v399
        %v402 = vunpack.c.l.s4 1966171168
        %v403 = vunpack.c.0.s8 %v402
        %v404 = vlaneseq
        %v405 = vshrl.u32 %v404, 7
        %v406 = vsub.s32 %v403, %v405
        %v407 = vrot.slane %v393, %v406
        %v408 = vcombine.high %v400, %v400
        %v409 = vcombine.high %v407, %v407
        %v411 = vunpack.c.l.s4 1966171168
        %v412 = vunpack.c.0.s8 %v411
        %v413 = vlaneseq
        %v414 = vshrl.u32 %v413, 7
        %v415 = vsub.s32 %v412, %v414
        %v416 = vrot.slane %v400, %v415
        %v418 = vunpack.c.l.s4 1966171168
        %v419 = vunpack.c.0.s8 %v418
        %v420 = vlaneseq
        %v421 = vshrl.u32 %v420, 7
        %v422 = vsub.s32 %v419, %v421
        %v423 = vrot.slane %v407, %v422
        %v425 = vunpack.c.l.s4 1966171168
        %v426 = vunpack.c.0.s8 %v425
        %v427 = vlaneseq
        %v428 = vshrl.u32 %v427, 7
        %v429 = vsub.s32 %v426, %v428
        %v430 = vrot.slane %v408, %v429
        %v432 = vunpack.c.l.s4 1966171168
        %v433 = vunpack.c.0.s8 %v432
        %v434 = vlaneseq
        %v435 = vshrl.u32 %v434, 7
        %v436 = vsub.s32 %v433, %v435
        %v437 = vrot.slane %v409, %v436
        %v438 = vcombine.high %v416, %v416
        %v439 = vcombine.high %v423, %v423
        %v440 = vcombine.high %v430, %v430
        %v441 = vcombine.high %v437, %v437
        %v442 = vcombine.high %v386, %v386
        %v444 = vunpack.c.l.s4 1966171168
        %v445 = vunpack.c.0.s8 %v444
        %v446 = vlaneseq
        %v447 = vshrl.u32 %v446, 7
        %v448 = vsub.s32 %v445, %v447
        %v449 = vrot.slane %v386, %v448
        %v451 = vunpack.c.l.s4 1966171168
        %v452 = vunpack.c.0.s8 %v451
        %v453 = vlaneseq
        %v454 = vshrl.u32 %v453, 7
        %v455 = vsub.s32 %v452, %v454
        %v456 = vrot.slane %v442, %v455
        %v457 = vcombine.high %v449, %v449
        %v458 = vcombine.high %v456, %v456
        %v460 = vunpack.c.l.s4 1966171168
        %v461 = vunpack.c.0.s8 %v460
        %v462 = vlaneseq
        %v463 = vshrl.u32 %v462, 7
        %v464 = vsub.s32 %v461, %v463
        %v465 = vrot.slane %v449, %v464
        %v467 = vunpack.c.l.s4 1966171168
        %v468 = vunpack.c.0.s8 %v467
        %v469 = vlaneseq
        %v470 = vshrl.u32 %v469, 7
        %v471 = vsub.s32 %v468, %v470
        %v472 = vrot.slane %v456, %v471
        %v474 = vunpack.c.l.s4 1966171168
        %v475 = vunpack.c.0.s8 %v474
        %v476 = vlaneseq
        %v477 = vshrl.u32 %v476, 7
        %v478 = vsub.s32 %v475, %v477
        %v479 = vrot.slane %v457, %v478
        %v481 = vunpack.c.l.s4 1966171168
        %v482 = vunpack.c.0.s8 %v481
        %v483 = vlaneseq
        %v484 = vshrl.u32 %v483, 7
        %v485 = vsub.s32 %v482, %v484
        %v486 = vrot.slane %v458, %v485
        %v487 = vcombine.high %v465, %v465
        %v488 = vcombine.high %v472, %v472
        %v489 = vcombine.high %v479, %v479
        %v490 = vcombine.high %v486, %v486
        %v491 = vcombine.high %v387, %v387
        %v493 = vunpack.c.l.s4 1966171168
        %v494 = vunpack.c.0.s8 %v493
        %v495 = vlaneseq
        %v496 = vshrl.u32 %v495, 7
        %v497 = vsub.s32 %v494, %v496
        %v498 = vrot.slane %v387, %v497
        %v500 = vunpack.c.l.s4 1966171168
        %v501 = vunpack.c.0.s8 %v500
        %v502 = vlaneseq
        %v503 = vshrl.u32 %v502, 7
        %v504 = vsub.s32 %v501, %v503
        %v505 = vrot.slane %v491, %v504
        %v506 = vcombine.high %v498, %v498
        %v507 = vcombine.high %v505, %v505
        %v509 = vunpack.c.l.s4 1966171168
        %v510 = vunpack.c.0.s8 %v509
        %v511 = vlaneseq
        %v512 = vshrl.u32 %v511, 7
        %v513 = vsub.s32 %v510, %v512
        %v514 = vrot.slane %v498, %v513
        %v516 = vunpack.c.l.s4 1966171168
        %v517 = vunpack.c.0.s8 %v516
        %v518 = vlaneseq
        %v519 = vshrl.u32 %v518, 7
        %v520 = vsub.s32 %v517, %v519
        %v521 = vrot.slane %v505, %v520
        %v523 = vunpack.c.l.s4 1966171168
        %v524 = vunpack.c.0.s8 %v523
        %v525 = vlaneseq
        %v526 = vshrl.u32 %v525, 7
        %v527 = vsub.s32 %v524, %v526
        %v528 = vrot.slane %v506, %v527
        %v530 = vunpack.c.l.s4 1966171168
        %v531 = vunpack.c.0.s8 %v530
        %v532 = vlaneseq
        %v533 = vshrl.u32 %v532, 7
        %v534 = vsub.s32 %v531, %v533
        %v535 = vrot.slane %v507, %v534
        %v536 = vcombine.high %v514, %v514
        %v537 = vcombine.high %v521, %v521
        %v538 = vcombine.high %v528, %v528
        %v539 = vcombine.high %v535, %v535
        %v540 = vcombine.high %v388, %v388
        %v542 = vunpack.c.l.s4 1966171168
        %v543 = vunpack.c.0.s8 %v542
        %v544 = vlaneseq
        %v545 = vshrl.u32 %v544, 7
        %v546 = vsub.s32 %v543, %v545
        %v547 = vrot.slane %v388, %v546
        %v549 = vunpack.c.l.s4 1966171168
        %v550 = vunpack.c.0.s8 %v549
        %v551 = vlaneseq
        %v552 = vshrl.u32 %v551, 7
        %v553 = vsub.s32 %v550, %v552
        %v554 = vrot.slane %v540, %v553
        %v555 = vcombine.high %v547, %v547
        %v556 = vcombine.high %v554, %v554
        %v558 = vunpack.c.l.s4 1966171168
        %v559 = vunpack.c.0.s8 %v558
        %v560 = vlaneseq
        %v561 = vshrl.u32 %v560, 7
        %v562 = vsub.s32 %v559, %v561
        %v563 = vrot.slane %v547, %v562
        %v565 = vunpack.c.l.s4 1966171168
        %v566 = vunpack.c.0.s8 %v565
        %v567 = vlaneseq
        %v568 = vshrl.u32 %v567, 7
        %v569 = vsub.s32 %v566, %v568
        %v570 = vrot.slane %v554, %v569
        %v572 = vunpack.c.l.s4 1966171168
        %v573 = vunpack.c.0.s8 %v572
        %v574 = vlaneseq
        %v575 = vshrl.u32 %v574, 7
        %v576 = vsub.s32 %v573, %v575
        %v577 = vrot.slane %v555, %v576
        %v579 = vunpack.c.l.s4 1966171168
        %v580 = vunpack.c.0.s8 %v579
        %v581 = vlaneseq
        %v582 = vshrl.u32 %v581, 7
        %v583 = vsub.s32 %v580, %v582
        %v584 = vrot.slane %v556, %v583
        %v585 = vcombine.high %v563, %v563
        %v586 = vcombine.high %v570, %v570
        %v587 = vcombine.high %v577, %v577
        %v588 = vcombine.high %v584, %v584
        %vm621 = vcmask 1040384
        %v622 = vsel %vm621, %v416, 0.0
        %623 = vadd.xlane.f32.xlu0 %v622
        %v624 = vpop.xlane.xlu0 %623
        %v625 = vsel %vm621, %v430, 0.0
        %626 = vadd.xlane.f32.xlu0 %v625
        %v627 = vpop.xlane.xlu0 %626
        %v628 = vsel %vm621, %v438, 0.0
        %629 = vadd.xlane.f32.xlu0 %v628
        %v630 = vpop.xlane.xlu0 %629
        %v631 = vsel %vm621, %v440, 0.0
        %632 = vadd.xlane.f32.xlu0 %v631
        %v633 = vpop.xlane.xlu0 %632
        %v634 = vsel %vm621, %v423, 0.0
        %635 = vadd.xlane.f32.xlu0 %v634
        %v636 = vpop.xlane.xlu0 %635
        %v637 = vsel %vm621, %v437, 0.0
        %638 = vadd.xlane.f32.xlu0 %v637
        %v639 = vpop.xlane.xlu0 %638
        %v640 = vsel %vm621, %v439, 0.0
        %641 = vadd.xlane.f32.xlu0 %v640
        %v642 = vpop.xlane.xlu0 %641
        %v643 = vsel %vm621, %v441, 0.0
        %644 = vadd.xlane.f32.xlu0 %v643
        %v645 = vpop.xlane.xlu0 %644
        %v646 = vsel %vm621, %v465, 0.0
        %647 = vadd.xlane.f32.xlu0 %v646
        %v648 = vpop.xlane.xlu0 %647
        %v649 = vsel %vm621, %v479, 0.0
        %650 = vadd.xlane.f32.xlu0 %v649
        %v651 = vpop.xlane.xlu0 %650
        %v652 = vsel %vm621, %v487, 0.0
        %653 = vadd.xlane.f32.xlu0 %v652
        %v654 = vpop.xlane.xlu0 %653
        %v655 = vsel %vm621, %v489, 0.0
        %656 = vadd.xlane.f32.xlu0 %v655
        %v657 = vpop.xlane.xlu0 %656
        %v658 = vsel %vm621, %v472, 0.0
        %659 = vadd.xlane.f32.xlu0 %v658
        %v660 = vpop.xlane.xlu0 %659
        %v661 = vsel %vm621, %v486, 0.0
        %662 = vadd.xlane.f32.xlu0 %v661
        %v663 = vpop.xlane.xlu0 %662
        %v664 = vsel %vm621, %v488, 0.0
        %665 = vadd.xlane.f32.xlu0 %v664
        %v666 = vpop.xlane.xlu0 %665
        %v667 = vsel %vm621, %v490, 0.0
        %668 = vadd.xlane.f32.xlu0 %v667
        %v669 = vpop.xlane.xlu0 %668
        %v670 = vsel %vm621, %v514, 0.0
        %671 = vadd.xlane.f32.xlu0 %v670
        %v672 = vpop.xlane.xlu0 %671
        %v673 = vsel %vm621, %v528, 0.0
        %674 = vadd.xlane.f32.xlu0 %v673
        %v675 = vpop.xlane.xlu0 %674
        %v676 = vsel %vm621, %v536, 0.0
        %677 = vadd.xlane.f32.xlu0 %v676
        %v678 = vpop.xlane.xlu0 %677
        %v679 = vsel %vm621, %v538, 0.0
        %680 = vadd.xlane.f32.xlu0 %v679
        %v681 = vpop.xlane.xlu0 %680
        %v682 = vsel %vm621, %v521, 0.0
        %683 = vadd.xlane.f32.xlu0 %v682
        %v684 = vpop.xlane.xlu0 %683
        %v685 = vsel %vm621, %v535, 0.0
        %686 = vadd.xlane.f32.xlu0 %v685
        %v687 = vpop.xlane.xlu0 %686
        %v688 = vsel %vm621, %v537, 0.0
        %689 = vadd.xlane.f32.xlu0 %v688
        %v690 = vpop.xlane.xlu0 %689
        %v691 = vsel %vm621, %v539, 0.0
        %692 = vadd.xlane.f32.xlu0 %v691
        %v693 = vpop.xlane.xlu0 %692
        %v694 = vsel %vm621, %v563, 0.0
        %695 = vadd.xlane.f32.xlu0 %v694
        %v696 = vpop.xlane.xlu0 %695
        %v697 = vsel %vm621, %v577, 0.0
        %698 = vadd.xlane.f32.xlu0 %v697
        %v699 = vpop.xlane.xlu0 %698
        %v700 = vsel %vm621, %v585, 0.0
        %701 = vadd.xlane.f32.xlu0 %v700
        %v702 = vpop.xlane.xlu0 %701
        %v703 = vsel %vm621, %v587, 0.0
        %704 = vadd.xlane.f32.xlu0 %v703
        %v705 = vpop.xlane.xlu0 %704
        %v706 = vsel %vm621, %v570, 0.0
        %707 = vadd.xlane.f32.xlu0 %v706
        %v708 = vpop.xlane.xlu0 %707
        %v709 = vsel %vm621, %v584, 0.0
        %710 = vadd.xlane.f32.xlu0 %v709
        %v711 = vpop.xlane.xlu0 %710
        %v712 = vsel %vm621, %v586, 0.0
        %713 = vadd.xlane.f32.xlu0 %v712
        %v714 = vpop.xlane.xlu0 %713
        %v715 = vsel %vm621, %v588, 0.0
        %716 = vadd.xlane.f32.xlu0 %v715
        %v717 = vpop.xlane.xlu0 %716
        %v718 = vadd.f32 %v624, 0.0
        %v719 = vadd.f32 %v627, 0.0
        %v720 = vadd.f32 %v630, 0.0
        %v721 = vadd.f32 %v633, 0.0
        %v722 = vadd.f32 %v636, 0.0
        %v723 = vadd.f32 %v639, 0.0
        %v724 = vadd.f32 %v642, 0.0
        %v725 = vadd.f32 %v645, 0.0
        %v726 = vadd.f32 %v648, 0.0
        %v727 = vadd.f32 %v651, 0.0
        %v728 = vadd.f32 %v654, 0.0
        %v729 = vadd.f32 %v657, 0.0
        %v730 = vadd.f32 %v660, 0.0
        %v731 = vadd.f32 %v663, 0.0
        %v732 = vadd.f32 %v666, 0.0
        %v733 = vadd.f32 %v669, 0.0
        %v734 = vadd.f32 %v672, 0.0
        %v735 = vadd.f32 %v675, 0.0
        %v736 = vadd.f32 %v678, 0.0
        %v737 = vadd.f32 %v681, 0.0
        %v738 = vadd.f32 %v684, 0.0
        %v739 = vadd.f32 %v687, 0.0
        %v740 = vadd.f32 %v690, 0.0
        %v741 = vadd.f32 %v693, 0.0
        %v742 = vadd.f32 %v696, 0.0
        %v743 = vadd.f32 %v699, 0.0
        %v744 = vadd.f32 %v702, 0.0
        %v745 = vadd.f32 %v705, 0.0
        %v746 = vadd.f32 %v708, 0.0
        %v747 = vadd.f32 %v711, 0.0
        %v748 = vadd.f32 %v714, 0.0
        %v749 = vadd.f32 %v717, 0.0
        %v750 = vmul.f32 %v416, %v416
        %v751 = vmul.f32 %v430, %v430
        %v752 = vmul.f32 %v438, %v438
        %v753 = vmul.f32 %v440, %v440
        %v754 = vmul.f32 %v423, %v423
        %v755 = vmul.f32 %v437, %v437
        %v756 = vmul.f32 %v439, %v439
        %v757 = vmul.f32 %v441, %v441
        %v758 = vmul.f32 %v465, %v465
        %v759 = vmul.f32 %v479, %v479
        %v760 = vmul.f32 %v487, %v487
        %v761 = vmul.f32 %v489, %v489
        %v762 = vmul.f32 %v472, %v472
        %v763 = vmul.f32 %v486, %v486
        %v764 = vmul.f32 %v488, %v488
        %v765 = vmul.f32 %v490, %v490
        %v766 = vmul.f32 %v514, %v514
        %v767 = vmul.f32 %v528, %v528
        %v768 = vmul.f32 %v536, %v536
        %v769 = vmul.f32 %v538, %v538
        %v770 = vmul.f32 %v521, %v521
        %v771 = vmul.f32 %v535, %v535
        %v772 = vmul.f32 %v537, %v537
        %v773 = vmul.f32 %v539, %v539
        %v774 = vmul.f32 %v563, %v563
        %v775 = vmul.f32 %v577, %v577
        %v776 = vmul.f32 %v585, %v585
        %v777 = vmul.f32 %v587, %v587
        %v778 = vmul.f32 %v570, %v570
        %v779 = vmul.f32 %v584, %v584
        %v780 = vmul.f32 %v586, %v586
        %v781 = vmul.f32 %v588, %v588
        %v782 = vsel %vm621, %v750, 0.0
        %783 = vadd.xlane.f32.xlu0 %v782
        %v784 = vpop.xlane.xlu0 %783
        %v785 = vsel %vm621, %v751, 0.0
        %786 = vadd.xlane.f32.xlu0 %v785
        %v787 = vpop.xlane.xlu0 %786
        %v788 = vsel %vm621, %v752, 0.0
        %789 = vadd.xlane.f32.xlu0 %v788
        %v790 = vpop.xlane.xlu0 %789
        %v791 = vsel %vm621, %v753, 0.0
        %792 = vadd.xlane.f32.xlu0 %v791
        %v793 = vpop.xlane.xlu0 %792
        %v794 = vsel %vm621, %v754, 0.0
        %795 = vadd.xlane.f32.xlu0 %v794
        %v796 = vpop.xlane.xlu0 %795
        %v797 = vsel %vm621, %v755, 0.0
        %798 = vadd.xlane.f32.xlu0 %v797
        %v799 = vpop.xlane.xlu0 %798
        %v800 = vsel %vm621, %v756, 0.0
        %801 = vadd.xlane.f32.xlu0 %v800
        %v802 = vpop.xlane.xlu0 %801
        %v803 = vsel %vm621, %v757, 0.0
        %804 = vadd.xlane.f32.xlu0 %v803
        %v805 = vpop.xlane.xlu0 %804
        %v806 = vsel %vm621, %v758, 0.0
        %807 = vadd.xlane.f32.xlu0 %v806
        %v808 = vpop.xlane.xlu0 %807
        %v809 = vsel %vm621, %v759, 0.0
        %810 = vadd.xlane.f32.xlu0 %v809
        %v811 = vpop.xlane.xlu0 %810
        %v812 = vsel %vm621, %v760, 0.0
        %813 = vadd.xlane.f32.xlu0 %v812
        %v814 = vpop.xlane.xlu0 %813
        %v815 = vsel %vm621, %v761, 0.0
        %816 = vadd.xlane.f32.xlu0 %v815
        %v817 = vpop.xlane.xlu0 %816
        %v818 = vsel %vm621, %v762, 0.0
        %819 = vadd.xlane.f32.xlu0 %v818
        %v820 = vpop.xlane.xlu0 %819
        %v821 = vsel %vm621, %v763, 0.0
        %822 = vadd.xlane.f32.xlu0 %v821
        %v823 = vpop.xlane.xlu0 %822
        %v824 = vsel %vm621, %v764, 0.0
        %825 = vadd.xlane.f32.xlu0 %v824
        %v826 = vpop.xlane.xlu0 %825
        %v827 = vsel %vm621, %v765, 0.0
        %828 = vadd.xlane.f32.xlu0 %v827
        %v829 = vpop.xlane.xlu0 %828
        %v830 = vsel %vm621, %v766, 0.0
        %831 = vadd.xlane.f32.xlu0 %v830
        %v832 = vpop.xlane.xlu0 %831
        %v833 = vsel %vm621, %v767, 0.0
        %834 = vadd.xlane.f32.xlu0 %v833
        %v835 = vpop.xlane.xlu0 %834
        %v836 = vsel %vm621, %v768, 0.0
        %837 = vadd.xlane.f32.xlu0 %v836
        %v838 = vpop.xlane.xlu0 %837
        %v839 = vsel %vm621, %v769, 0.0
        %840 = vadd.xlane.f32.xlu0 %v839
        %v841 = vpop.xlane.xlu0 %840
        %v842 = vsel %vm621, %v770, 0.0
        %843 = vadd.xlane.f32.xlu0 %v842
        %v844 = vpop.xlane.xlu0 %843
        %v845 = vsel %vm621, %v771, 0.0
        %846 = vadd.xlane.f32.xlu0 %v845
        %v847 = vpop.xlane.xlu0 %846
        %v848 = vsel %vm621, %v772, 0.0
        %849 = vadd.xlane.f32.xlu0 %v848
        %v850 = vpop.xlane.xlu0 %849
        %v851 = vsel %vm621, %v773, 0.0
        %852 = vadd.xlane.f32.xlu0 %v851
        %v853 = vpop.xlane.xlu0 %852
        %v854 = vsel %vm621, %v774, 0.0
        %855 = vadd.xlane.f32.xlu0 %v854
        %v856 = vpop.xlane.xlu0 %855
        %v857 = vsel %vm621, %v775, 0.0
        %858 = vadd.xlane.f32.xlu0 %v857
        %v859 = vpop.xlane.xlu0 %858
        %v860 = vsel %vm621, %v776, 0.0
        %861 = vadd.xlane.f32.xlu0 %v860
        %v862 = vpop.xlane.xlu0 %861
        %v863 = vsel %vm621, %v777, 0.0
        %864 = vadd.xlane.f32.xlu0 %v863
        %v865 = vpop.xlane.xlu0 %864
        %v866 = vsel %vm621, %v778, 0.0
        %867 = vadd.xlane.f32.xlu0 %v866
        %v868 = vpop.xlane.xlu0 %867
        %v869 = vsel %vm621, %v779, 0.0
        %870 = vadd.xlane.f32.xlu0 %v869
        %v871 = vpop.xlane.xlu0 %870
        %v872 = vsel %vm621, %v780, 0.0
        %873 = vadd.xlane.f32.xlu0 %v872
        %v874 = vpop.xlane.xlu0 %873
        %v875 = vsel %vm621, %v781, 0.0
        %876 = vadd.xlane.f32.xlu0 %v875
        %v877 = vpop.xlane.xlu0 %876
        %v878 = vadd.f32 %v784, 0.0
        %v879 = vadd.f32 %v787, 0.0
        %v880 = vadd.f32 %v790, 0.0
        %v881 = vadd.f32 %v793, 0.0
        %v882 = vadd.f32 %v796, 0.0
        %v883 = vadd.f32 %v799, 0.0
        %v884 = vadd.f32 %v802, 0.0
        %v885 = vadd.f32 %v805, 0.0
        %v886 = vadd.f32 %v808, 0.0
        %v887 = vadd.f32 %v811, 0.0
        %v888 = vadd.f32 %v814, 0.0
        %v889 = vadd.f32 %v817, 0.0
        %v890 = vadd.f32 %v820, 0.0
        %v891 = vadd.f32 %v823, 0.0
        %v892 = vadd.f32 %v826, 0.0
        %v893 = vadd.f32 %v829, 0.0
        %v894 = vadd.f32 %v832, 0.0
        %v895 = vadd.f32 %v835, 0.0
        %v896 = vadd.f32 %v838, 0.0
        %v897 = vadd.f32 %v841, 0.0
        %v898 = vadd.f32 %v844, 0.0
        %v899 = vadd.f32 %v847, 0.0
        %v900 = vadd.f32 %v850, 0.0
        %v901 = vadd.f32 %v853, 0.0
        %v902 = vadd.f32 %v856, 0.0
        %v903 = vadd.f32 %v859, 0.0
        %v904 = vadd.f32 %v862, 0.0
        %v905 = vadd.f32 %v865, 0.0
        %v906 = vadd.f32 %v868, 0.0
        %v907 = vadd.f32 %v871, 0.0
        %v908 = vadd.f32 %v874, 0.0
        %v909 = vadd.f32 %v877, 0.0
        %v910 = vrcp.pop 128.0
        %v911 = vmul.f32 %v718, %v910
        %v912 = vmul.f32 %v719, %v910
        %v913 = vmul.f32 %v720, %v910
        %v914 = vmul.f32 %v721, %v910
        %v915 = vmul.f32 %v722, %v910
        %v916 = vmul.f32 %v723, %v910
        %v917 = vmul.f32 %v724, %v910
        %v918 = vmul.f32 %v725, %v910
        %v919 = vmul.f32 %v726, %v910
        %v920 = vmul.f32 %v727, %v910
        %v921 = vmul.f32 %v728, %v910
        %v922 = vmul.f32 %v729, %v910
        %v923 = vmul.f32 %v730, %v910
        %v924 = vmul.f32 %v731, %v910
        %v925 = vmul.f32 %v732, %v910
        %v926 = vmul.f32 %v733, %v910
        %v927 = vmul.f32 %v734, %v910
        %v928 = vmul.f32 %v735, %v910
        %v929 = vmul.f32 %v736, %v910
        %v930 = vmul.f32 %v737, %v910
        %v931 = vmul.f32 %v738, %v910
        %v932 = vmul.f32 %v739, %v910
        %v933 = vmul.f32 %v740, %v910
        %v934 = vmul.f32 %v741, %v910
        %v935 = vmul.f32 %v742, %v910
        %v936 = vmul.f32 %v743, %v910
        %v937 = vmul.f32 %v744, %v910
        %v938 = vmul.f32 %v745, %v910
        %v939 = vmul.f32 %v746, %v910
        %v940 = vmul.f32 %v747, %v910
        %v941 = vmul.f32 %v748, %v910
        %v942 = vmul.f32 %v749, %v910
        %v943 = vmul.f32 %v878, %v910
        %v944 = vmul.f32 %v879, %v910
        %v945 = vmul.f32 %v880, %v910
        %v946 = vmul.f32 %v881, %v910
        %v947 = vmul.f32 %v882, %v910
        %v948 = vmul.f32 %v883, %v910
        %v949 = vmul.f32 %v884, %v910
        %v950 = vmul.f32 %v885, %v910
        %v951 = vmul.f32 %v886, %v910
        %v952 = vmul.f32 %v887, %v910
        %v953 = vmul.f32 %v888, %v910
        %v954 = vmul.f32 %v889, %v910
        %v955 = vmul.f32 %v890, %v910
        %v956 = vmul.f32 %v891, %v910
        %v957 = vmul.f32 %v892, %v910
        %v958 = vmul.f32 %v893, %v910
        %v959 = vmul.f32 %v894, %v910
        %v960 = vmul.f32 %v895, %v910
        %v961 = vmul.f32 %v896, %v910
        %v962 = vmul.f32 %v897, %v910
        %v963 = vmul.f32 %v898, %v910
        %v964 = vmul.f32 %v899, %v910
        %v965 = vmul.f32 %v900, %v910
        %v966 = vmul.f32 %v901, %v910
        %v967 = vmul.f32 %v902, %v910
        %v968 = vmul.f32 %v903, %v910
        %v969 = vmul.f32 %v904, %v910
        %v970 = vmul.f32 %v905, %v910
        %v971 = vmul.f32 %v906, %v910
        %v972 = vmul.f32 %v907, %v910
        %v973 = vmul.f32 %v908, %v910
        %v974 = vmul.f32 %v909, %v910
        %v975 = vmul.f32 %v911, %v911
        %v976 = vmul.f32 %v912, %v912
        %v977 = vmul.f32 %v913, %v913
        %v978 = vmul.f32 %v914, %v914
        %v979 = vmul.f32 %v915, %v915
        %v980 = vmul.f32 %v916, %v916
        %v981 = vmul.f32 %v917, %v917
        %v982 = vmul.f32 %v918, %v918
        %v983 = vmul.f32 %v919, %v919
        %v984 = vmul.f32 %v920, %v920
        %v985 = vmul.f32 %v921, %v921
        %v986 = vmul.f32 %v922, %v922
        %v987 = vmul.f32 %v923, %v923
        %v988 = vmul.f32 %v924, %v924
        %v989 = vmul.f32 %v925, %v925
        %v990 = vmul.f32 %v926, %v926
        %v991 = vmul.f32 %v927, %v927
        %v992 = vmul.f32 %v928, %v928
        %v993 = vmul.f32 %v929, %v929
        %v994 = vmul.f32 %v930, %v930
        %v995 = vmul.f32 %v931, %v931
        %v996 = vmul.f32 %v932, %v932
        %v997 = vmul.f32 %v933, %v933
        %v998 = vmul.f32 %v934, %v934
        %v999 = vmul.f32 %v935, %v935
        %v1000 = vmul.f32 %v936, %v936
        %v1001 = vmul.f32 %v937, %v937
        %v1002 = vmul.f32 %v938, %v938
        %v1003 = vmul.f32 %v939, %v939
        %v1004 = vmul.f32 %v940, %v940
        %v1005 = vmul.f32 %v941, %v941
        %v1006 = vmul.f32 %v942, %v942
        %v1007 = vsub.f32 %v943, %v975
        %v1008 = vsub.f32 %v944, %v976
        %v1009 = vsub.f32 %v945, %v977
        %v1010 = vsub.f32 %v946, %v978
        %v1011 = vsub.f32 %v947, %v979
        %v1012 = vsub.f32 %v948, %v980
        %v1013 = vsub.f32 %v949, %v981
        %v1014 = vsub.f32 %v950, %v982
        %v1015 = vsub.f32 %v951, %v983
        %v1016 = vsub.f32 %v952, %v984
        %v1017 = vsub.f32 %v953, %v985
        %v1018 = vsub.f32 %v954, %v986
        %v1019 = vsub.f32 %v955, %v987
        %v1020 = vsub.f32 %v956, %v988
        %v1021 = vsub.f32 %v957, %v989
        %v1022 = vsub.f32 %v958, %v990
        %v1023 = vsub.f32 %v959, %v991
        %v1024 = vsub.f32 %v960, %v992
        %v1025 = vsub.f32 %v961, %v993
        %v1026 = vsub.f32 %v962, %v994
        %v1027 = vsub.f32 %v963, %v995
        %v1028 = vsub.f32 %v964, %v996
        %v1029 = vsub.f32 %v965, %v997
        %v1030 = vsub.f32 %v966, %v998
        %v1031 = vsub.f32 %v967, %v999
        %v1032 = vsub.f32 %v968, %v1000
        %v1033 = vsub.f32 %v969, %v1001
        %v1034 = vsub.f32 %v970, %v1002
        %v1035 = vsub.f32 %v971, %v1003
        %v1036 = vsub.f32 %v972, %v1004
        %v1037 = vsub.f32 %v973, %v1005
        %v1038 = vsub.f32 %v974, %v1006
        %v1039 = vmax.f32 %v1007, 0.0
        %v1040 = vmax.f32 %v1008, 0.0
        %v1041 = vmax.f32 %v1009, 0.0
        %v1042 = vmax.f32 %v1010, 0.0
        %v1043 = vmax.f32 %v1011, 0.0
        %v1044 = vmax.f32 %v1012, 0.0
        %v1045 = vmax.f32 %v1013, 0.0
        %v1046 = vmax.f32 %v1014, 0.0
        %v1047 = vmax.f32 %v1015, 0.0
        %v1048 = vmax.f32 %v1016, 0.0
        %v1049 = vmax.f32 %v1017, 0.0
        %v1050 = vmax.f32 %v1018, 0.0
        %v1051 = vmax.f32 %v1019, 0.0
        %v1052 = vmax.f32 %v1020, 0.0
        %v1053 = vmax.f32 %v1021, 0.0
        %v1054 = vmax.f32 %v1022, 0.0
        %v1055 = vmax.f32 %v1023, 0.0
        %v1056 = vmax.f32 %v1024, 0.0
        %v1057 = vmax.f32 %v1025, 0.0
        %v1058 = vmax.f32 %v1026, 0.0
        %v1059 = vmax.f32 %v1027, 0.0
        %v1060 = vmax.f32 %v1028, 0.0
        %v1061 = vmax.f32 %v1029, 0.0
        %v1062 = vmax.f32 %v1030, 0.0
        %v1063 = vmax.f32 %v1031, 0.0
        %v1064 = vmax.f32 %v1032, 0.0
        %v1065 = vmax.f32 %v1033, 0.0
        %v1066 = vmax.f32 %v1034, 0.0
        %v1067 = vmax.f32 %v1035, 0.0
        %v1068 = vmax.f32 %v1036, 0.0
        %v1069 = vmax.f32 %v1037, 0.0
        %v1070 = vmax.f32 %v1038, 0.0
        %v1071 = vsub.f32 %v416, %v911
        %v1072 = vsub.f32 %v430, %v912
        %v1073 = vsub.f32 %v438, %v913
        %v1074 = vsub.f32 %v440, %v914
        %v1075 = vsub.f32 %v423, %v915
        %v1076 = vsub.f32 %v437, %v916
        %v1077 = vsub.f32 %v439, %v917
        %v1078 = vsub.f32 %v441, %v918
        %v1079 = vsub.f32 %v465, %v919
        %v1080 = vsub.f32 %v479, %v920
        %v1081 = vsub.f32 %v487, %v921
        %v1082 = vsub.f32 %v489, %v922
        %v1083 = vsub.f32 %v472, %v923
        %v1084 = vsub.f32 %v486, %v924
        %v1085 = vsub.f32 %v488, %v925
        %v1086 = vsub.f32 %v490, %v926
        %v1087 = vsub.f32 %v514, %v927
        %v1088 = vsub.f32 %v528, %v928
        %v1089 = vsub.f32 %v536, %v929
        %v1090 = vsub.f32 %v538, %v930
        %v1091 = vsub.f32 %v521, %v931
        %v1092 = vsub.f32 %v535, %v932
        %v1093 = vsub.f32 %v537, %v933
        %v1094 = vsub.f32 %v539, %v934
        %v1095 = vsub.f32 %v563, %v935
        %v1096 = vsub.f32 %v577, %v936
        %v1097 = vsub.f32 %v585, %v937
        %v1098 = vsub.f32 %v587, %v938
        %v1099 = vsub.f32 %v570, %v939
        %v1100 = vsub.f32 %v584, %v940
        %v1101 = vsub.f32 %v586, %v941
        %v1102 = vsub.f32 %v588, %v942
        %v1103 = vadd.f32 %v1039, 1e-05
        %v1104 = vadd.f32 %v1040, 1e-05
        %v1105 = vadd.f32 %v1041, 1e-05
        %v1106 = vadd.f32 %v1042, 1e-05
        %v1107 = vadd.f32 %v1043, 1e-05
        %v1108 = vadd.f32 %v1044, 1e-05
        %v1109 = vadd.f32 %v1045, 1e-05
        %v1110 = vadd.f32 %v1046, 1e-05
        %v1111 = vadd.f32 %v1047, 1e-05
        %v1112 = vadd.f32 %v1048, 1e-05
        %v1113 = vadd.f32 %v1049, 1e-05
        %v1114 = vadd.f32 %v1050, 1e-05
        %v1115 = vadd.f32 %v1051, 1e-05
        %v1116 = vadd.f32 %v1052, 1e-05
        %v1117 = vadd.f32 %v1053, 1e-05
        %v1118 = vadd.f32 %v1054, 1e-05
        %v1119 = vadd.f32 %v1055, 1e-05
        %v1120 = vadd.f32 %v1056, 1e-05
        %v1121 = vadd.f32 %v1057, 1e-05
        %v1122 = vadd.f32 %v1058, 1e-05
        %v1123 = vadd.f32 %v1059, 1e-05
        %v1124 = vadd.f32 %v1060, 1e-05
        %v1125 = vadd.f32 %v1061, 1e-05
        %v1126 = vadd.f32 %v1062, 1e-05
        %v1127 = vadd.f32 %v1063, 1e-05
        %v1128 = vadd.f32 %v1064, 1e-05
        %v1129 = vadd.f32 %v1065, 1e-05
        %v1130 = vadd.f32 %v1066, 1e-05
        %v1131 = vadd.f32 %v1067, 1e-05
        %v1132 = vadd.f32 %v1068, 1e-05
        %v1133 = vadd.f32 %v1069, 1e-05
        %v1134 = vadd.f32 %v1070, 1e-05
        %v1135 = vrsqrt.pop %v1103
        %v1136 = vrsqrt.pop %v1104
        %v1137 = vrsqrt.pop %v1105
        %v1138 = vrsqrt.pop %v1106
        %v1139 = vrsqrt.pop %v1107
        %v1140 = vrsqrt.pop %v1108
        %v1141 = vrsqrt.pop %v1109
        %v1142 = vrsqrt.pop %v1110
        %v1143 = vrsqrt.pop %v1111
        %v1144 = vrsqrt.pop %v1112
        %v1145 = vrsqrt.pop %v1113
        %v1146 = vrsqrt.pop %v1114
        %v1147 = vrsqrt.pop %v1115
        %v1148 = vrsqrt.pop %v1116
        %v1149 = vrsqrt.pop %v1117
        %v1150 = vrsqrt.pop %v1118
        %v1151 = vrsqrt.pop %v1119
        %v1152 = vrsqrt.pop %v1120
        %v1153 = vrsqrt.pop %v1121
        %v1154 = vrsqrt.pop %v1122
        %v1155 = vrsqrt.pop %v1123
        %v1156 = vrsqrt.pop %v1124
        %v1157 = vrsqrt.pop %v1125
        %v1158 = vrsqrt.pop %v1126
        %v1159 = vrsqrt.pop %v1127
        %v1160 = vrsqrt.pop %v1128
        %v1161 = vrsqrt.pop %v1129
        %v1162 = vrsqrt.pop %v1130
        %v1163 = vrsqrt.pop %v1131
        %v1164 = vrsqrt.pop %v1132
        %v1165 = vrsqrt.pop %v1133
        %v1166 = vrsqrt.pop %v1134
        %v1167 = vmul.f32 %v1071, %v1135
        %v1168 = vmul.f32 %v1072, %v1136
        %v1169 = vmul.f32 %v1073, %v1137
        %v1170 = vmul.f32 %v1074, %v1138
        %v1171 = vmul.f32 %v1075, %v1139
        %v1172 = vmul.f32 %v1076, %v1140
        %v1173 = vmul.f32 %v1077, %v1141
        %v1174 = vmul.f32 %v1078, %v1142
        %v1175 = vmul.f32 %v1079, %v1143
        %v1176 = vmul.f32 %v1080, %v1144
        %v1177 = vmul.f32 %v1081, %v1145
        %v1178 = vmul.f32 %v1082, %v1146
        %v1179 = vmul.f32 %v1083, %v1147
        %v1180 = vmul.f32 %v1084, %v1148
        %v1181 = vmul.f32 %v1085, %v1149
        %v1182 = vmul.f32 %v1086, %v1150
        %v1183 = vmul.f32 %v1087, %v1151
        %v1184 = vmul.f32 %v1088, %v1152
        %v1185 = vmul.f32 %v1089, %v1153
        %v1186 = vmul.f32 %v1090, %v1154
        %v1187 = vmul.f32 %v1091, %v1155
        %v1188 = vmul.f32 %v1092, %v1156
        %v1189 = vmul.f32 %v1093, %v1157
        %v1190 = vmul.f32 %v1094, %v1158
        %v1191 = vmul.f32 %v1095, %v1159
        %v1192 = vmul.f32 %v1096, %v1160
        %v1193 = vmul.f32 %v1097, %v1161
        %v1194 = vmul.f32 %v1098, %v1162
        %v1195 = vmul.f32 %v1099, %v1163
        %v1196 = vmul.f32 %v1100, %v1164
        %v1197 = vmul.f32 %v1101, %v1165
        %v1198 = vmul.f32 %v1102, %v1166
        %v1199 = vld [vmem:[%s1] sm:$0xff]
        %v1200 = vld [vmem:[%s1 + $0x8] sm:$0xff]
        %v1201 = vld [vmem:[%s1 + $0x10] sm:$0xff]
        %v1202 = vld [vmem:[%s1 + $0x18] sm:$0xff]
        %1204 = vset.pattern.permute.xlu0 0
        %1205 = vperm.xlu0 %1204, %v1199
        %v1206 = vpop.permute.xlu0 %1205
        %1208 = vset.pattern.permute.xlu0 0
        %1209 = vperm.xlu0 %1208, %v1200
        %v1210 = vpop.permute.xlu0 %1209
        %1212 = vset.pattern.permute.xlu0 0
        %1213 = vperm.xlu0 %1212, %v1201
        %v1214 = vpop.permute.xlu0 %1213
        %1216 = vset.pattern.permute.xlu0 0
        %1217 = vperm.xlu0 %1216, %v1202
        %v1218 = vpop.permute.xlu0 %1217
        %v1219 = vlaneseq
        %v1220 = vshrl.u32 %v1219, 7
        %v1221 = vsub.s32 0, %v1220
        %v1222 = vrot.slane %v1206, %v1221
        %v1223 = vlaneseq
        %v1224 = vshrl.u32 %v1223, 7
        %v1225 = vsub.s32 1, %v1224
        %v1226 = vrot.slane %v1206, %v1225
        %v1227 = vlaneseq
        %v1228 = vshrl.u32 %v1227, 7
        %v1229 = vsub.s32 2, %v1228
        %v1230 = vrot.slane %v1206, %v1229
        %v1231 = vlaneseq
        %v1232 = vshrl.u32 %v1231, 7
        %v1233 = vsub.s32 3, %v1232
        %v1234 = vrot.slane %v1206, %v1233
        %v1235 = vlaneseq
        %v1236 = vshrl.u32 %v1235, 7
        %v1237 = vsub.s32 4, %v1236
        %v1238 = vrot.slane %v1206, %v1237
        %v1239 = vlaneseq
        %v1240 = vshrl.u32 %v1239, 7
        %v1241 = vsub.s32 5, %v1240
        %v1242 = vrot.slane %v1206, %v1241
        %v1243 = vlaneseq
        %v1244 = vshrl.u32 %v1243, 7
        %v1245 = vsub.s32 6, %v1244
        %v1246 = vrot.slane %v1206, %v1245
        %v1247 = vlaneseq
        %v1248 = vshrl.u32 %v1247, 7
        %v1249 = vsub.s32 7, %v1248
        %v1250 = vrot.slane %v1206, %v1249
        %v1251 = vlaneseq
        %v1252 = vshrl.u32 %v1251, 7
        %v1253 = vsub.s32 0, %v1252
        %v1254 = vrot.slane %v1210, %v1253
        %v1255 = vlaneseq
        %v1256 = vshrl.u32 %v1255, 7
        %v1257 = vsub.s32 1, %v1256
        %v1258 = vrot.slane %v1210, %v1257
        %v1259 = vlaneseq
        %v1260 = vshrl.u32 %v1259, 7
        %v1261 = vsub.s32 2, %v1260
        %v1262 = vrot.slane %v1210, %v1261
        %v1263 = vlaneseq
        %v1264 = vshrl.u32 %v1263, 7
        %v1265 = vsub.s32 3, %v1264
        %v1266 = vrot.slane %v1210, %v1265
        %v1267 = vlaneseq
        %v1268 = vshrl.u32 %v1267, 7
        %v1269 = vsub.s32 4, %v1268
        %v1270 = vrot.slane %v1210, %v1269
        %v1271 = vlaneseq
        %v1272 = vshrl.u32 %v1271, 7
        %v1273 = vsub.s32 5, %v1272
        %v1274 = vrot.slane %v1210, %v1273
        %v1275 = vlaneseq
        %v1276 = vshrl.u32 %v1275, 7
        %v1277 = vsub.s32 6, %v1276
        %v1278 = vrot.slane %v1210, %v1277
        %v1279 = vlaneseq
        %v1280 = vshrl.u32 %v1279, 7
        %v1281 = vsub.s32 7, %v1280
        %v1282 = vrot.slane %v1210, %v1281
        %v1283 = vlaneseq
        %v1284 = vshrl.u32 %v1283, 7
        %v1285 = vsub.s32 0, %v1284
        %v1286 = vrot.slane %v1214, %v1285
        %v1287 = vlaneseq
        %v1288 = vshrl.u32 %v1287, 7
        %v1289 = vsub.s32 1, %v1288
        %v1290 = vrot.slane %v1214, %v1289
        %v1291 = vlaneseq
        %v1292 = vshrl.u32 %v1291, 7
        %v1293 = vsub.s32 2, %v1292
        %v1294 = vrot.slane %v1214, %v1293
        %v1295 = vlaneseq
        %v1296 = vshrl.u32 %v1295, 7
        %v1297 = vsub.s32 3, %v1296
        %v1298 = vrot.slane %v1214, %v1297
        %v1299 = vlaneseq
        %v1300 = vshrl.u32 %v1299, 7
        %v1301 = vsub.s32 4, %v1300
        %v1302 = vrot.slane %v1214, %v1301
        %v1303 = vlaneseq
        %v1304 = vshrl.u32 %v1303, 7
        %v1305 = vsub.s32 5, %v1304
        %v1306 = vrot.slane %v1214, %v1305
        %v1307 = vlaneseq
        %v1308 = vshrl.u32 %v1307, 7
        %v1309 = vsub.s32 6, %v1308
        %v1310 = vrot.slane %v1214, %v1309
        %v1311 = vlaneseq
        %v1312 = vshrl.u32 %v1311, 7
        %v1313 = vsub.s32 7, %v1312
        %v1314 = vrot.slane %v1214, %v1313
        %v1315 = vlaneseq
        %v1316 = vshrl.u32 %v1315, 7
        %v1317 = vsub.s32 0, %v1316
        %v1318 = vrot.slane %v1218, %v1317
        %v1319 = vlaneseq
        %v1320 = vshrl.u32 %v1319, 7
        %v1321 = vsub.s32 1, %v1320
        %v1322 = vrot.slane %v1218, %v1321
        %v1323 = vlaneseq
        %v1324 = vshrl.u32 %v1323, 7
        %v1325 = vsub.s32 2, %v1324
        %v1326 = vrot.slane %v1218, %v1325
        %v1327 = vlaneseq
        %v1328 = vshrl.u32 %v1327, 7
        %v1329 = vsub.s32 3, %v1328
        %v1330 = vrot.slane %v1218, %v1329
        %v1331 = vlaneseq
        %v1332 = vshrl.u32 %v1331, 7
        %v1333 = vsub.s32 4, %v1332
        %v1334 = vrot.slane %v1218, %v1333
        %v1335 = vlaneseq
        %v1336 = vshrl.u32 %v1335, 7
        %v1337 = vsub.s32 5, %v1336
        %v1338 = vrot.slane %v1218, %v1337
        %v1339 = vlaneseq
        %v1340 = vshrl.u32 %v1339, 7
        %v1341 = vsub.s32 6, %v1340
        %v1342 = vrot.slane %v1218, %v1341
        %v1343 = vlaneseq
        %v1344 = vshrl.u32 %v1343, 7
        %v1345 = vsub.s32 7, %v1344
        %v1346 = vrot.slane %v1218, %v1345
        %v1379 = vmul.f32 %v1167, %v1222
        %v1380 = vmul.f32 %v1168, %v1226
        %v1381 = vmul.f32 %v1169, %v1230
        %v1382 = vmul.f32 %v1170, %v1234
        %v1383 = vmul.f32 %v1171, %v1238
        %v1384 = vmul.f32 %v1172, %v1242
        %v1385 = vmul.f32 %v1173, %v1246
        %v1386 = vmul.f32 %v1174, %v1250
        %v1387 = vmul.f32 %v1175, %v1254
        %v1388 = vmul.f32 %v1176, %v1258
        %v1389 = vmul.f32 %v1177, %v1262
        %v1390 = vmul.f32 %v1178, %v1266
        %v1391 = vmul.f32 %v1179, %v1270
        %v1392 = vmul.f32 %v1180, %v1274
        %v1393 = vmul.f32 %v1181, %v1278
        %v1394 = vmul.f32 %v1182, %v1282
        %v1395 = vmul.f32 %v1183, %v1286
        %v1396 = vmul.f32 %v1184, %v1290
        %v1397 = vmul.f32 %v1185, %v1294
        %v1398 = vmul.f32 %v1186, %v1298
        %v1399 = vmul.f32 %v1187, %v1302
        %v1400 = vmul.f32 %v1188, %v1306
        %v1401 = vmul.f32 %v1189, %v1310
        %v1402 = vmul.f32 %v1190, %v1314
        %v1403 = vmul.f32 %v1191, %v1318
        %v1404 = vmul.f32 %v1192, %v1322
        %v1405 = vmul.f32 %v1193, %v1326
        %v1406 = vmul.f32 %v1194, %v1330
        %v1407 = vmul.f32 %v1195, %v1334
        %v1408 = vmul.f32 %v1196, %v1338
        %v1409 = vmul.f32 %v1197, %v1342
        %v1410 = vmul.f32 %v1198, %v1346
        %v1411 = vld [vmem:[%s2] sm:$0xff]
        %v1412 = vld [vmem:[%s2 + $0x8] sm:$0xff]
        %v1413 = vld [vmem:[%s2 + $0x10] sm:$0xff]
        %v1414 = vld [vmem:[%s2 + $0x18] sm:$0xff]
        %1416 = vset.pattern.permute.xlu0 0
        %1417 = vperm.xlu0 %1416, %v1411
        %v1418 = vpop.permute.xlu0 %1417
        %1420 = vset.pattern.permute.xlu0 0
        %1421 = vperm.xlu0 %1420, %v1412
        %v1422 = vpop.permute.xlu0 %1421
        %1424 = vset.pattern.permute.xlu0 0
        %1425 = vperm.xlu0 %1424, %v1413
        %v1426 = vpop.permute.xlu0 %1425
        %1428 = vset.pattern.permute.xlu0 0
        %1429 = vperm.xlu0 %1428, %v1414
        %v1430 = vpop.permute.xlu0 %1429
        %v1431 = vlaneseq
        %v1432 = vshrl.u32 %v1431, 7
        %v1433 = vsub.s32 0, %v1432
        %v1434 = vrot.slane %v1418, %v1433
        %v1435 = vlaneseq
        %v1436 = vshrl.u32 %v1435, 7
        %v1437 = vsub.s32 1, %v1436
        %v1438 = vrot.slane %v1418, %v1437
        %v1439 = vlaneseq
        %v1440 = vshrl.u32 %v1439, 7
        %v1441 = vsub.s32 2, %v1440
        %v1442 = vrot.slane %v1418, %v1441
        %v1443 = vlaneseq
        %v1444 = vshrl.u32 %v1443, 7
        %v1445 = vsub.s32 3, %v1444
        %v1446 = vrot.slane %v1418, %v1445
        %v1447 = vlaneseq
        %v1448 = vshrl.u32 %v1447, 7
        %v1449 = vsub.s32 4, %v1448
        %v1450 = vrot.slane %v1418, %v1449
        %v1451 = vlaneseq
        %v1452 = vshrl.u32 %v1451, 7
        %v1453 = vsub.s32 5, %v1452
        %v1454 = vrot.slane %v1418, %v1453
        %v1455 = vlaneseq
        %v1456 = vshrl.u32 %v1455, 7
        %v1457 = vsub.s32 6, %v1456
        %v1458 = vrot.slane %v1418, %v1457
        %v1459 = vlaneseq
        %v1460 = vshrl.u32 %v1459, 7
        %v1461 = vsub.s32 7, %v1460
        %v1462 = vrot.slane %v1418, %v1461
        %v1463 = vlaneseq
        %v1464 = vshrl.u32 %v1463, 7
        %v1465 = vsub.s32 0, %v1464
        %v1466 = vrot.slane %v1422, %v1465
        %v1467 = vlaneseq
        %v1468 = vshrl.u32 %v1467, 7
        %v1469 = vsub.s32 1, %v1468
        %v1470 = vrot.slane %v1422, %v1469
        %v1471 = vlaneseq
        %v1472 = vshrl.u32 %v1471, 7
        %v1473 = vsub.s32 2, %v1472
        %v1474 = vrot.slane %v1422, %v1473
        %v1475 = vlaneseq
        %v1476 = vshrl.u32 %v1475, 7
        %v1477 = vsub.s32 3, %v1476
        %v1478 = vrot.slane %v1422, %v1477
        %v1479 = vlaneseq
        %v1480 = vshrl.u32 %v1479, 7
        %v1481 = vsub.s32 4, %v1480
        %v1482 = vrot.slane %v1422, %v1481
        %v1483 = vlaneseq
        %v1484 = vshrl.u32 %v1483, 7
        %v1485 = vsub.s32 5, %v1484
        %v1486 = vrot.slane %v1422, %v1485
        %v1487 = vlaneseq
        %v1488 = vshrl.u32 %v1487, 7
        %v1489 = vsub.s32 6, %v1488
        %v1490 = vrot.slane %v1422, %v1489
        %v1491 = vlaneseq
        %v1492 = vshrl.u32 %v1491, 7
        %v1493 = vsub.s32 7, %v1492
        %v1494 = vrot.slane %v1422, %v1493
        %v1495 = vlaneseq
        %v1496 = vshrl.u32 %v1495, 7
        %v1497 = vsub.s32 0, %v1496
        %v1498 = vrot.slane %v1426, %v1497
        %v1499 = vlaneseq
        %v1500 = vshrl.u32 %v1499, 7
        %v1501 = vsub.s32 1, %v1500
        %v1502 = vrot.slane %v1426, %v1501
        %v1503 = vlaneseq
        %v1504 = vshrl.u32 %v1503, 7
        %v1505 = vsub.s32 2, %v1504
        %v1506 = vrot.slane %v1426, %v1505
        %v1507 = vlaneseq
        %v1508 = vshrl.u32 %v1507, 7
        %v1509 = vsub.s32 3, %v1508
        %v1510 = vrot.slane %v1426, %v1509
        %v1511 = vlaneseq
        %v1512 = vshrl.u32 %v1511, 7
        %v1513 = vsub.s32 4, %v1512
        %v1514 = vrot.slane %v1426, %v1513
        %v1515 = vlaneseq
        %v1516 = vshrl.u32 %v1515, 7
        %v1517 = vsub.s32 5, %v1516
        %v1518 = vrot.slane %v1426, %v1517
        %v1519 = vlaneseq
        %v1520 = vshrl.u32 %v1519, 7
        %v1521 = vsub.s32 6, %v1520
        %v1522 = vrot.slane %v1426, %v1521
        %v1523 = vlaneseq
        %v1524 = vshrl.u32 %v1523, 7
        %v1525 = vsub.s32 7, %v1524
        %v1526 = vrot.slane %v1426, %v1525
        %v1527 = vlaneseq
        %v1528 = vshrl.u32 %v1527, 7
        %v1529 = vsub.s32 0, %v1528
        %v1530 = vrot.slane %v1430, %v1529
        %v1531 = vlaneseq
        %v1532 = vshrl.u32 %v1531, 7
        %v1533 = vsub.s32 1, %v1532
        %v1534 = vrot.slane %v1430, %v1533
        %v1535 = vlaneseq
        %v1536 = vshrl.u32 %v1535, 7
        %v1537 = vsub.s32 2, %v1536
        %v1538 = vrot.slane %v1430, %v1537
        %v1539 = vlaneseq
        %v1540 = vshrl.u32 %v1539, 7
        %v1541 = vsub.s32 3, %v1540
        %v1542 = vrot.slane %v1430, %v1541
        %v1543 = vlaneseq
        %v1544 = vshrl.u32 %v1543, 7
        %v1545 = vsub.s32 4, %v1544
        %v1546 = vrot.slane %v1430, %v1545
        %v1547 = vlaneseq
        %v1548 = vshrl.u32 %v1547, 7
        %v1549 = vsub.s32 5, %v1548
        %v1550 = vrot.slane %v1430, %v1549
        %v1551 = vlaneseq
        %v1552 = vshrl.u32 %v1551, 7
        %v1553 = vsub.s32 6, %v1552
        %v1554 = vrot.slane %v1430, %v1553
        %v1555 = vlaneseq
        %v1556 = vshrl.u32 %v1555, 7
        %v1557 = vsub.s32 7, %v1556
        %v1558 = vrot.slane %v1430, %v1557
        %v1591 = vadd.f32 %v1379, %v1434
        %v1592 = vadd.f32 %v1380, %v1438
        %v1593 = vadd.f32 %v1381, %v1442
        %v1594 = vadd.f32 %v1382, %v1446
        %v1595 = vadd.f32 %v1383, %v1450
        %v1596 = vadd.f32 %v1384, %v1454
        %v1597 = vadd.f32 %v1385, %v1458
        %v1598 = vadd.f32 %v1386, %v1462
        %v1599 = vadd.f32 %v1387, %v1466
        %v1600 = vadd.f32 %v1388, %v1470
        %v1601 = vadd.f32 %v1389, %v1474
        %v1602 = vadd.f32 %v1390, %v1478
        %v1603 = vadd.f32 %v1391, %v1482
        %v1604 = vadd.f32 %v1392, %v1486
        %v1605 = vadd.f32 %v1393, %v1490
        %v1606 = vadd.f32 %v1394, %v1494
        %v1607 = vadd.f32 %v1395, %v1498
        %v1608 = vadd.f32 %v1396, %v1502
        %v1609 = vadd.f32 %v1397, %v1506
        %v1610 = vadd.f32 %v1398, %v1510
        %v1611 = vadd.f32 %v1399, %v1514
        %v1612 = vadd.f32 %v1400, %v1518
        %v1613 = vadd.f32 %v1401, %v1522
        %v1614 = vadd.f32 %v1402, %v1526
        %v1615 = vadd.f32 %v1403, %v1530
        %v1616 = vadd.f32 %v1404, %v1534
        %v1617 = vadd.f32 %v1405, %v1538
        %v1618 = vadd.f32 %v1406, %v1542
        %v1619 = vadd.f32 %v1407, %v1546
        %v1620 = vadd.f32 %v1408, %v1550
        %v1621 = vadd.f32 %v1409, %v1554
        %v1622 = vadd.f32 %v1410, %v1558
        %v1623 = vld [vmem:[%s3] sm:$0xff]
        %v1624 = vld [vmem:[%s3 + $0x8] sm:$0xff]
        %v1625 = vld [vmem:[%s3 + $0x10] sm:$0xff]
        %v1626 = vld [vmem:[%s3 + $0x18] sm:$0xff]
        %v1627 = vld [vmem:[%s6] sm:$0xff]
        %v1628 = vld [vmem:[%s6 + $0x8] sm:$0xff]
        %v1629 = vld [vmem:[%s6 + $0x10] sm:$0xff]
        %v1630 = vld [vmem:[%s6 + $0x18] sm:$0xff]
        %1632 = vset.pattern.permute.xlu0 0
        %1633 = vperm.xlu0 %1632, %v1627
        %v1634 = vpop.permute.xlu0 %1633
        %1637 = vset.pattern.permute.xlu0 0
        %1638 = vperm.xlu0 %1637, %v1628
        %v1639 = vpop.permute.xlu0 %1638
        %1642 = vset.pattern.permute.xlu0 0
        %1643 = vperm.xlu0 %1642, %v1629
        %v1644 = vpop.permute.xlu0 %1643
        %1647 = vset.pattern.permute.xlu0 0
        %1648 = vperm.xlu0 %1647, %v1630
        %v1649 = vpop.permute.xlu0 %1648
        %v1683 = vcombine.low %v1591, %v1592
        %v1684 = vcombine.low %v1593, %v1594
        %v1685 = vcombine.low %v1595, %v1596
        %v1686 = vcombine.low %v1597, %v1598
        %v1688 = vunpack.c.l.s4 1966171168
        %v1689 = vunpack.c.0.s8 %v1688
        %v1690 = vlaneseq
        %v1691 = vshrl.u32 %v1690, 7
        %v1692 = vsub.s32 %v1689, %v1691
        %v1693 = vrot.slane %v1683, %v1692
        %v1695 = vunpack.c.l.s4 1966171168
        %v1696 = vunpack.c.0.s8 %v1695
        %v1697 = vlaneseq
        %v1698 = vshrl.u32 %v1697, 7
        %v1699 = vsub.s32 %v1696, %v1698
        %v1700 = vrot.slane %v1684, %v1699
        %v1702 = vunpack.c.l.s4 1966171168
        %v1703 = vunpack.c.0.s8 %v1702
        %v1704 = vlaneseq
        %v1705 = vshrl.u32 %v1704, 7
        %v1706 = vsub.s32 %v1703, %v1705
        %v1707 = vrot.slane %v1685, %v1706
        %v1709 = vunpack.c.l.s4 1966171168
        %v1710 = vunpack.c.0.s8 %v1709
        %v1711 = vlaneseq
        %v1712 = vshrl.u32 %v1711, 7
        %v1713 = vsub.s32 %v1710, %v1712
        %v1714 = vrot.slane %v1686, %v1713
        %v1715 = vcombine.low %v1693, %v1700
        %v1716 = vcombine.low %v1707, %v1714
        %v1718 = vunpack.c.l.s4 1966171168
        %v1719 = vunpack.c.0.s8 %v1718
        %v1720 = vlaneseq
        %v1721 = vshrl.u32 %v1720, 7
        %v1722 = vsub.s32 %v1719, %v1721
        %v1723 = vrot.slane %v1715, %v1722
        %v1725 = vunpack.c.l.s4 1966171168
        %v1726 = vunpack.c.0.s8 %v1725
        %v1727 = vlaneseq
        %v1728 = vshrl.u32 %v1727, 7
        %v1729 = vsub.s32 %v1726, %v1728
        %v1730 = vrot.slane %v1716, %v1729
        %v1731 = vcombine.low %v1723, %v1730
        %v1732 = vcombine.low %v1599, %v1600
        %v1733 = vcombine.low %v1601, %v1602
        %v1734 = vcombine.low %v1603, %v1604
        %v1735 = vcombine.low %v1605, %v1606
        %v1737 = vunpack.c.l.s4 1966171168
        %v1738 = vunpack.c.0.s8 %v1737
        %v1739 = vlaneseq
        %v1740 = vshrl.u32 %v1739, 7
        %v1741 = vsub.s32 %v1738, %v1740
        %v1742 = vrot.slane %v1732, %v1741
        %v1744 = vunpack.c.l.s4 1966171168
        %v1745 = vunpack.c.0.s8 %v1744
        %v1746 = vlaneseq
        %v1747 = vshrl.u32 %v1746, 7
        %v1748 = vsub.s32 %v1745, %v1747
        %v1749 = vrot.slane %v1733, %v1748
        %v1751 = vunpack.c.l.s4 1966171168
        %v1752 = vunpack.c.0.s8 %v1751
        %v1753 = vlaneseq
        %v1754 = vshrl.u32 %v1753, 7
        %v1755 = vsub.s32 %v1752, %v1754
        %v1756 = vrot.slane %v1734, %v1755
        %v1758 = vunpack.c.l.s4 1966171168
        %v1759 = vunpack.c.0.s8 %v1758
        %v1760 = vlaneseq
        %v1761 = vshrl.u32 %v1760, 7
        %v1762 = vsub.s32 %v1759, %v1761
        %v1763 = vrot.slane %v1735, %v1762
        %v1764 = vcombine.low %v1742, %v1749
        %v1765 = vcombine.low %v1756, %v1763
        %v1767 = vunpack.c.l.s4 1966171168
        %v1768 = vunpack.c.0.s8 %v1767
        %v1769 = vlaneseq
        %v1770 = vshrl.u32 %v1769, 7
        %v1771 = vsub.s32 %v1768, %v1770
        %v1772 = vrot.slane %v1764, %v1771
        %v1774 = vunpack.c.l.s4 1966171168
        %v1775 = vunpack.c.0.s8 %v1774
        %v1776 = vlaneseq
        %v1777 = vshrl.u32 %v1776, 7
        %v1778 = vsub.s32 %v1775, %v1777
        %v1779 = vrot.slane %v1765, %v1778
        %v1780 = vcombine.low %v1772, %v1779
        %v1781 = vcombine.low %v1607, %v1608
        %v1782 = vcombine.low %v1609, %v1610
        %v1783 = vcombine.low %v1611, %v1612
        %v1784 = vcombine.low %v1613, %v1614
        %v1786 = vunpack.c.l.s4 1966171168
        %v1787 = vunpack.c.0.s8 %v1786
        %v1788 = vlaneseq
        %v1789 = vshrl.u32 %v1788, 7
        %v1790 = vsub.s32 %v1787, %v1789
        %v1791 = vrot.slane %v1781, %v1790
        %v1793 = vunpack.c.l.s4 1966171168
        %v1794 = vunpack.c.0.s8 %v1793
        %v1795 = vlaneseq
        %v1796 = vshrl.u32 %v1795, 7
        %v1797 = vsub.s32 %v1794, %v1796
        %v1798 = vrot.slane %v1782, %v1797
        %v1800 = vunpack.c.l.s4 1966171168
        %v1801 = vunpack.c.0.s8 %v1800
        %v1802 = vlaneseq
        %v1803 = vshrl.u32 %v1802, 7
        %v1804 = vsub.s32 %v1801, %v1803
        %v1805 = vrot.slane %v1783, %v1804
        %v1807 = vunpack.c.l.s4 1966171168
        %v1808 = vunpack.c.0.s8 %v1807
        %v1809 = vlaneseq
        %v1810 = vshrl.u32 %v1809, 7
        %v1811 = vsub.s32 %v1808, %v1810
        %v1812 = vrot.slane %v1784, %v1811
        %v1813 = vcombine.low %v1791, %v1798
        %v1814 = vcombine.low %v1805, %v1812
        %v1816 = vunpack.c.l.s4 1966171168
        %v1817 = vunpack.c.0.s8 %v1816
        %v1818 = vlaneseq
        %v1819 = vshrl.u32 %v1818, 7
        %v1820 = vsub.s32 %v1817, %v1819
        %v1821 = vrot.slane %v1813, %v1820
        %v1823 = vunpack.c.l.s4 1966171168
        %v1824 = vunpack.c.0.s8 %v1823
        %v1825 = vlaneseq
        %v1826 = vshrl.u32 %v1825, 7
        %v1827 = vsub.s32 %v1824, %v1826
        %v1828 = vrot.slane %v1814, %v1827
        %v1829 = vcombine.low %v1821, %v1828
        %v1830 = vcombine.low %v1615, %v1616
        %v1831 = vcombine.low %v1617, %v1618
        %v1832 = vcombine.low %v1619, %v1620
        %v1833 = vcombine.low %v1621, %v1622
        %v1835 = vunpack.c.l.s4 1966171168
        %v1836 = vunpack.c.0.s8 %v1835
        %v1837 = vlaneseq
        %v1838 = vshrl.u32 %v1837, 7
        %v1839 = vsub.s32 %v1836, %v1838
        %v1840 = vrot.slane %v1830, %v1839
        %v1842 = vunpack.c.l.s4 1966171168
        %v1843 = vunpack.c.0.s8 %v1842
        %v1844 = vlaneseq
        %v1845 = vshrl.u32 %v1844, 7
        %v1846 = vsub.s32 %v1843, %v1845
        %v1847 = vrot.slane %v1831, %v1846
        %v1849 = vunpack.c.l.s4 1966171168
        %v1850 = vunpack.c.0.s8 %v1849
        %v1851 = vlaneseq
        %v1852 = vshrl.u32 %v1851, 7
        %v1853 = vsub.s32 %v1850, %v1852
        %v1854 = vrot.slane %v1832, %v1853
        %v1856 = vunpack.c.l.s4 1966171168
        %v1857 = vunpack.c.0.s8 %v1856
        %v1858 = vlaneseq
        %v1859 = vshrl.u32 %v1858, 7
        %v1860 = vsub.s32 %v1857, %v1859
        %v1861 = vrot.slane %v1833, %v1860
        %v1862 = vcombine.low %v1840, %v1847
        %v1863 = vcombine.low %v1854, %v1861
        %v1865 = vunpack.c.l.s4 1966171168
        %v1866 = vunpack.c.0.s8 %v1865
        %v1867 = vlaneseq
        %v1868 = vshrl.u32 %v1867, 7
        %v1869 = vsub.s32 %v1866, %v1868
        %v1870 = vrot.slane %v1862, %v1869
        %v1872 = vunpack.c.l.s4 1966171168
        %v1873 = vunpack.c.0.s8 %v1872
        %v1874 = vlaneseq
        %v1875 = vshrl.u32 %v1874, 7
        %v1876 = vsub.s32 %v1873, %v1875
        %v1877 = vrot.slane %v1863, %v1876
        %v1878 = vcombine.low %v1870, %v1877
        %vm1883 = vcmask 261120
        %v1885 = vsel %vm1883, %v1623, 0
        %v1888 = vsel %vm1883, %v1624, 0
        %v1891 = vsel %vm1883, %v1625, 0
        %v1894 = vsel %vm1883, %v1626, 0
        %1896 = vmatprep.subr.mxu0 0.0
        %1897 = vmatpush1.msra.mxu0 %v1731
        %1898 = vmatprep.subr.mxu0 0.0
        %1899 = vmatpush1.msra.mxu0 %v1780
        %1900 = vmatprep.subr.mxu0 0.0
        %1901 = vmatpush1.msra.mxu0 %v1829
        %1902 = vmatprep.subr.mxu0 0.0
        %1903 = vmatpush1.msra.mxu0 %v1878
        %1904 = vmatprep.subr.mxu0 0.0
        %1905 = vmatpush1.msra.mxu0 0.0
        %1906 = vmatprep.subr.mxu0 0.0
        %1907 = vmatpush1.msra.mxu0 0.0
        %1908 = vmatprep.subr.mxu0 0.0
        %1909 = vmatpush1.msra.mxu0 0.0
        %1910 = vmatprep.subr.mxu0 0.0
        %1911 = vmatpush1.msra.mxu0 0.0
        %1912 = vmatprep.subr.mxu0 0.0
        %1913 = vmatpush1.msra.mxu0 0.0
        %1914 = vmatprep.subr.mxu0 0.0
        %1915 = vmatpush1.msra.mxu0 0.0
        %1916 = vmatprep.subr.mxu0 0.0
        %1917 = vmatpush1.msra.mxu0 0.0
        %1918 = vmatprep.subr.mxu0 0.0
        %1919 = vmatpush1.msra.mxu0 0.0
        %1920 = vmatprep.subr.mxu0 0.0
        %1921 = vmatpush1.msra.mxu0 0.0
        %1922 = vmatprep.subr.mxu0 0.0
        %1923 = vmatpush1.msra.mxu0 0.0
        %1924 = vmatprep.subr.mxu0 0.0
        %1925 = vmatpush1.msra.mxu0 0.0
        %1926 = vmatprep.subr.mxu0 0.0
        %1927 = vmatpush1.msra.mxu0 0.0
        %1928 = vmatprep.subr.mxu0 0.0
        %1929 = vmatpush1.msra.mxu0 0.0
        %1930 = vmatprep.subr.mxu0 0.0
        %1931 = vmatpush1.msra.mxu0 0.0
        %1932 = vmatprep.subr.mxu0 0.0
        %1933 = vmatpush1.msra.mxu0 0.0
        %1934 = vmatprep.subr.mxu0 0.0
        %1935 = vmatpush1.msra.mxu0 0.0
        %1936 = vmatprep.subr.mxu0 0.0
        %1937 = vmatpush1.msra.mxu0 0.0
        %1938 = vmatprep.subr.mxu0 0.0
        %1939 = vmatpush1.msra.mxu0 0.0
        %1940 = vmatprep.subr.mxu0 0.0
        %1941 = vmatpush1.msra.mxu0 0.0
        %1942 = vmatprep.subr.mxu0 0.0
        %1943 = vmatpush1.msra.mxu0 0.0
        %1944 = vmatprep.subr.mxu0 0.0
        %1945 = vmatpush1.msra.mxu0 0.0
        %1946 = vmatprep.subr.mxu0 0.0
        %1947 = vmatpush1.msra.mxu0 0.0
        %1948 = vmatprep.subr.mxu0 0.0
        %1949 = vmatpush1.msra.mxu0 0.0
        %1950 = vmatprep.subr.mxu0 0.0
        %1951 = vmatpush1.msra.mxu0 0.0
        %1952 = vmatprep.subr.mxu0 0.0
        %1953 = vmatpush1.msra.mxu0 0.0
        %1954 = vmatprep.subr.mxu0 0.0
        %1955 = vmatpush1.msra.mxu0 0.0
        %1956 = vmatprep.subr.mxu0 0.0
        %1957 = vmatpush1.msra.mxu0 0.0
        %1958 = vmatprep.subr.mxu0 0.0
        %1959 = vmatpush1.msra.mxu0 0.0
        %1960 = vmatprep.mubr.f32.mxu0 0.0
        %1961 = vmatmul.mubr.f32.gmra.mrb[0].mxu0 %v1885
        %v1962 = vpop.f32.mrb[0].mxu0
        %v1963 = vadd.f32 %v1634, %v1962
        %v1964 = vpop.f32.mrb[0].mxu0
        %1965 = vmatprep.mubr.f32.mxu0 0.0
        %1966 = vmatmul.mubr.f32.gmra.mrb[0].mxu0 %v1888
        %v1967 = vpop.f32.mrb[0].mxu0
        %v1968 = vadd.f32 %v1639, %v1967
        %v1969 = vpop.f32.mrb[0].mxu0
        %1970 = vmatprep.mubr.f32.mxu0 0.0
        %1971 = vmatmul.mubr.f32.gmra.mrb[0].mxu0 %v1891
        %v1972 = vpop.f32.mrb[0].mxu0
        %v1973 = vadd.f32 %v1644, %v1972
        %v1974 = vpop.f32.mrb[0].mxu0
        %1975 = vmatprep.mubr.f32.mxu0 0.0
        %1976 = vmatmul.mubr.f32.gmra.mrb[0].mxu0 %v1894
        %v1977 = vpop.f32.mrb[0].mxu0
        %v1978 = vadd.f32 %v1649, %v1977
        %v1979 = vpop.f32.mrb[0].mxu0
        %1980 = vdwg.mxu0
        %v1981 = vld [vmem:[%s4] sm:$0xff]
        %v1982 = vld [vmem:[%s4 + $0x8] sm:$0xff]
        %v1983 = vld [vmem:[%s4 + $0x10] sm:$0xff]
        %v1984 = vld [vmem:[%s4 + $0x18] sm:$0xff]
        %v1985 = vld [vmem:[%s7] sm:$0xff]
        %v1986 = vld [vmem:[%s7 + $0x8] sm:$0xff]
        %v1987 = vld [vmem:[%s7 + $0x10] sm:$0xff]
        %v1988 = vld [vmem:[%s7 + $0x18] sm:$0xff]
        %1990 = vset.pattern.permute.xlu0 0
        %1991 = vperm.xlu0 %1990, %v1985
        %v1992 = vpop.permute.xlu0 %1991
        %1995 = vset.pattern.permute.xlu0 0
        %1996 = vperm.xlu0 %1995, %v1986
        %v1997 = vpop.permute.xlu0 %1996
        %2000 = vset.pattern.permute.xlu0 0
        %2001 = vperm.xlu0 %2000, %v1987
        %v2002 = vpop.permute.xlu0 %2001
        %2005 = vset.pattern.permute.xlu0 0
        %2006 = vperm.xlu0 %2005, %v1988
        %v2007 = vpop.permute.xlu0 %2006
        %v2010 = vsel %vm1883, %v1981, 0
        %v2013 = vsel %vm1883, %v1982, 0
        %v2016 = vsel %vm1883, %v1983, 0
        %v2019 = vsel %vm1883, %v1984, 0
        %2021 = vmatprep.subr.mxu0 0.0
        %2022 = vmatpush1.msra.mxu0 %v1731
        %2023 = vmatprep.subr.mxu0 0.0
        %2024 = vmatpush1.msra.mxu0 %v1780
        %2025 = vmatprep.subr.mxu0 0.0
        %2026 = vmatpush1.msra.mxu0 %v1829
        %2027 = vmatprep.subr.mxu0 0.0
        %2028 = vmatpush1.msra.mxu0 %v1878
        %2029 = vmatprep.subr.mxu0 0.0
        %2030 = vmatpush1.msra.mxu0 0.0
        %2031 = vmatprep.subr.mxu0 0.0
        %2032 = vmatpush1.msra.mxu0 0.0
        %2033 = vmatprep.subr.mxu0 0.0
        %2034 = vmatpush1.msra.mxu0 0.0
        %2035 = vmatprep.subr.mxu0 0.0
        %2036 = vmatpush1.msra.mxu0 0.0
        %2037 = vmatprep.subr.mxu0 0.0
        %2038 = vmatpush1.msra.mxu0 0.0
        %2039 = vmatprep.subr.mxu0 0.0
        %2040 = vmatpush1.msra.mxu0 0.0
        %2041 = vmatprep.subr.mxu0 0.0
        %2042 = vmatpush1.msra.mxu0 0.0
        %2043 = vmatprep.subr.mxu0 0.0
        %2044 = vmatpush1.msra.mxu0 0.0
        %2045 = vmatprep.subr.mxu0 0.0
        %2046 = vmatpush1.msra.mxu0 0.0
        %2047 = vmatprep.subr.mxu0 0.0
        %2048 = vmatpush1.msra.mxu0 0.0
        %2049 = vmatprep.subr.mxu0 0.0
        %2050 = vmatpush1.msra.mxu0 0.0
        %2051 = vmatprep.subr.mxu0 0.0
        %2052 = vmatpush1.msra.mxu0 0.0
        %2053 = vmatprep.subr.mxu0 0.0
        %2054 = vmatpush1.msra.mxu0 0.0
        %2055 = vmatprep.subr.mxu0 0.0
        %2056 = vmatpush1.msra.mxu0 0.0
        %2057 = vmatprep.subr.mxu0 0.0
        %2058 = vmatpush1.msra.mxu0 0.0
        %2059 = vmatprep.subr.mxu0 0.0
        %2060 = vmatpush1.msra.mxu0 0.0
        %2061 = vmatprep.subr.mxu0 0.0
        %2062 = vmatpush1.msra.mxu0 0.0
        %2063 = vmatprep.subr.mxu0 0.0
        %2064 = vmatpush1.msra.mxu0 0.0
        %2065 = vmatprep.subr.mxu0 0.0
        %2066 = vmatpush1.msra.mxu0 0.0
        %2067 = vmatprep.subr.mxu0 0.0
        %2068 = vmatpush1.msra.mxu0 0.0
        %2069 = vmatprep.subr.mxu0 0.0
        %2070 = vmatpush1.msra.mxu0 0.0
        %2071 = vmatprep.subr.mxu0 0.0
        %2072 = vmatpush1.msra.mxu0 0.0
        %2073 = vmatprep.subr.mxu0 0.0
        %2074 = vmatpush1.msra.mxu0 0.0
        %2075 = vmatprep.subr.mxu0 0.0
        %2076 = vmatpush1.msra.mxu0 0.0
        %2077 = vmatprep.subr.mxu0 0.0
        %2078 = vmatpush1.msra.mxu0 0.0
        %2079 = vmatprep.subr.mxu0 0.0
        %2080 = vmatpush1.msra.mxu0 0.0
        %2081 = vmatprep.subr.mxu0 0.0
        %2082 = vmatpush1.msra.mxu0 0.0
        %2083 = vmatprep.subr.mxu0 0.0
        %2084 = vmatpush1.msra.mxu0 0.0
        %2085 = vmatprep.mubr.f32.mxu0 0.0
        %2086 = vmatmul.mubr.f32.gmra.mrb[0].mxu0 %v2010
        %v2087 = vpop.f32.mrb[0].mxu0
        %v2088 = vadd.f32 %v1992, %v2087
        %v2089 = vpop.f32.mrb[0].mxu0
        %2090 = vmatprep.mubr.f32.mxu0 0.0
        %2091 = vmatmul.mubr.f32.gmra.mrb[0].mxu0 %v2013
        %v2092 = vpop.f32.mrb[0].mxu0
        %v2093 = vadd.f32 %v1997, %v2092
        %v2094 = vpop.f32.mrb[0].mxu0
        %2095 = vmatprep.mubr.f32.mxu0 0.0
        %2096 = vmatmul.mubr.f32.gmra.mrb[0].mxu0 %v2016
        %v2097 = vpop.f32.mrb[0].mxu0
        %v2098 = vadd.f32 %v2002, %v2097
        %v2099 = vpop.f32.mrb[0].mxu0
        %2100 = vmatprep.mubr.f32.mxu0 0.0
        %2101 = vmatmul.mubr.f32.gmra.mrb[0].mxu0 %v2019
        %v2102 = vpop.f32.mrb[0].mxu0
        %v2103 = vadd.f32 %v2007, %v2102
        %v2104 = vpop.f32.mrb[0].mxu0
        %2105 = vdwg.mxu0
        %v2106 = vld [vmem:[%s5] sm:$0xff]
        %v2107 = vld [vmem:[%s5 + $0x8] sm:$0xff]
        %v2108 = vld [vmem:[%s5 + $0x10] sm:$0xff]
        %v2109 = vld [vmem:[%s5 + $0x18] sm:$0xff]
        %v2110 = vld [vmem:[%s8] sm:$0xff]
        %v2111 = vld [vmem:[%s8 + $0x8] sm:$0xff]
        %v2112 = vld [vmem:[%s8 + $0x10] sm:$0xff]
        %v2113 = vld [vmem:[%s8 + $0x18] sm:$0xff]
        %2115 = vset.pattern.permute.xlu0 0
        %2116 = vperm.xlu0 %2115, %v2110
        %v2117 = vpop.permute.xlu0 %2116
        %2120 = vset.pattern.permute.xlu0 0
        %2121 = vperm.xlu0 %2120, %v2111
        %v2122 = vpop.permute.xlu0 %2121
        %2125 = vset.pattern.permute.xlu0 0
        %2126 = vperm.xlu0 %2125, %v2112
        %v2127 = vpop.permute.xlu0 %2126
        %2130 = vset.pattern.permute.xlu0 0
        %2131 = vperm.xlu0 %2130, %v2113
        %v2132 = vpop.permute.xlu0 %2131
        %v2135 = vsel %vm1883, %v2106, 0
        %v2138 = vsel %vm1883, %v2107, 0
        %v2141 = vsel %vm1883, %v2108, 0
        %v2144 = vsel %vm1883, %v2109, 0
        %2146 = vmatprep.subr.mxu0 0.0
        %2147 = vmatpush1.msra.mxu0 %v1731
        %2148 = vmatprep.subr.mxu0 0.0
        %2149 = vmatpush1.msra.mxu0 %v1780
        %2150 = vmatprep.subr.mxu0 0.0
        %2151 = vmatpush1.msra.mxu0 %v1829
        %2152 = vmatprep.subr.mxu0 0.0
        %2153 = vmatpush1.msra.mxu0 %v1878
        %2154 = vmatprep.subr.mxu0 0.0
        %2155 = vmatpush1.msra.mxu0 0.0
        %2156 = vmatprep.subr.mxu0 0.0
        %2157 = vmatpush1.msra.mxu0 0.0
        %2158 = vmatprep.subr.mxu0 0.0
        %2159 = vmatpush1.msra.mxu0 0.0
        %2160 = vmatprep.subr.mxu0 0.0
        %2161 = vmatpush1.msra.mxu0 0.0
        %2162 = vmatprep.subr.mxu0 0.0
        %2163 = vmatpush1.msra.mxu0 0.0
        %2164 = vmatprep.subr.mxu0 0.0
        %2165 = vmatpush1.msra.mxu0 0.0
        %2166 = vmatprep.subr.mxu0 0.0
        %2167 = vmatpush1.msra.mxu0 0.0
        %2168 = vmatprep.subr.mxu0 0.0
        %2169 = vmatpush1.msra.mxu0 0.0
        %2170 = vmatprep.subr.mxu0 0.0
        %2171 = vmatpush1.msra.mxu0 0.0
        %2172 = vmatprep.subr.mxu0 0.0
        %2173 = vmatpush1.msra.mxu0 0.0
        %2174 = vmatprep.subr.mxu0 0.0
        %2175 = vmatpush1.msra.mxu0 0.0
        %2176 = vmatprep.subr.mxu0 0.0
        %2177 = vmatpush1.msra.mxu0 0.0
        %2178 = vmatprep.subr.mxu0 0.0
        %2179 = vmatpush1.msra.mxu0 0.0
        %2180 = vmatprep.subr.mxu0 0.0
        %2181 = vmatpush1.msra.mxu0 0.0
        %2182 = vmatprep.subr.mxu0 0.0
        %2183 = vmatpush1.msra.mxu0 0.0
        %2184 = vmatprep.subr.mxu0 0.0
        %2185 = vmatpush1.msra.mxu0 0.0
        %2186 = vmatprep.subr.mxu0 0.0
        %2187 = vmatpush1.msra.mxu0 0.0
        %2188 = vmatprep.subr.mxu0 0.0
        %2189 = vmatpush1.msra.mxu0 0.0
        %2190 = vmatprep.subr.mxu0 0.0
        %2191 = vmatpush1.msra.mxu0 0.0
        %2192 = vmatprep.subr.mxu0 0.0
        %2193 = vmatpush1.msra.mxu0 0.0
        %2194 = vmatprep.subr.mxu0 0.0
        %2195 = vmatpush1.msra.mxu0 0.0
        %2196 = vmatprep.subr.mxu0 0.0
        %2197 = vmatpush1.msra.mxu0 0.0
        %2198 = vmatprep.subr.mxu0 0.0
        %2199 = vmatpush1.msra.mxu0 0.0
        %2200 = vmatprep.subr.mxu0 0.0
        %2201 = vmatpush1.msra.mxu0 0.0
        %2202 = vmatprep.subr.mxu0 0.0
        %2203 = vmatpush1.msra.mxu0 0.0
        %2204 = vmatprep.subr.mxu0 0.0
        %2205 = vmatpush1.msra.mxu0 0.0
        %2206 = vmatprep.subr.mxu0 0.0
        %2207 = vmatpush1.msra.mxu0 0.0
        %2208 = vmatprep.subr.mxu0 0.0
        %2209 = vmatpush1.msra.mxu0 0.0
        %2210 = vmatprep.mubr.f32.mxu0 0.0
        %2211 = vmatmul.mubr.f32.gmra.mrb[0].mxu0 %v2135
        %v2212 = vpop.f32.mrb[0].mxu0
        %v2213 = vadd.f32 %v2117, %v2212
        %v2214 = vpop.f32.mrb[0].mxu0
        %2215 = vmatprep.mubr.f32.mxu0 0.0
        %2216 = vmatmul.mubr.f32.gmra.mrb[0].mxu0 %v2138
        %v2217 = vpop.f32.mrb[0].mxu0
        %v2218 = vadd.f32 %v2122, %v2217
        %v2219 = vpop.f32.mrb[0].mxu0
        %2220 = vmatprep.mubr.f32.mxu0 0.0
        %2221 = vmatmul.mubr.f32.gmra.mrb[0].mxu0 %v2141
        %v2222 = vpop.f32.mrb[0].mxu0
        %v2223 = vadd.f32 %v2127, %v2222
        %v2224 = vpop.f32.mrb[0].mxu0
        %2225 = vmatprep.mubr.f32.mxu0 0.0
        %2226 = vmatmul.mubr.f32.gmra.mrb[0].mxu0 %v2144
        %v2227 = vpop.f32.mrb[0].mxu0
        %v2228 = vadd.f32 %v2132, %v2227
        %v2229 = vpop.f32.mrb[0].mxu0
        %2230 = vdwg.mxu0
        %v2231 = vld [vmem:[%s9] sm:$0xff]
        %v2232 = vld [vmem:[%s9 + $0x8] sm:$0xff]
        %v2233 = vld [vmem:[%s9 + $0x10] sm:$0xff]
        %v2234 = vld [vmem:[%s9 + $0x18] sm:$0xff]
        %v2235 = vld [vmem:[%s10] sm:$0xff]
        %v2236 = vld [vmem:[%s10 + $0x8] sm:$0xff]
        %v2237 = vld [vmem:[%s10 + $0x10] sm:$0xff]
        %v2238 = vld [vmem:[%s10 + $0x18] sm:$0xff]
        %2239 = vxpose.xlu0.b32.start [1/16] %v1963, 128
        %2240 = vxpose.xlu0.b32.cont [2/16] 0.0, 128
        %2241 = vxpose.xlu0.b32.cont [3/16] 0.0, 128
        %2242 = vxpose.xlu0.b32.cont [4/16] 0.0, 128
        %2243 = vxpose.xlu0.b32.cont [5/16] 0.0, 128
        %2244 = vxpose.xlu0.b32.cont [6/16] 0.0, 128
        %2245 = vxpose.xlu0.b32.cont [7/16] 0.0, 128
        %2246 = vxpose.xlu0.b32.cont [8/16] 0.0, 128
        %2247 = vxpose.xlu0.b32.cont [9/16] 0.0, 128
        %2248 = vxpose.xlu0.b32.cont [10/16] 0.0, 128
        %2249 = vxpose.xlu0.b32.cont [11/16] 0.0, 128
        %2250 = vxpose.xlu0.b32.cont [12/16] 0.0, 128
        %2251 = vxpose.xlu0.b32.cont [13/16] 0.0, 128
        %2252 = vxpose.xlu0.b32.cont [14/16] 0.0, 128
        %2253 = vxpose.xlu0.b32.cont [15/16] 0.0, 128
        %2254 = vxpose.xlu0.b32.end [16/16] 0.0, 128
        %v2255 = vpop.trf.xlu0
        %v2256 = vpop.trf.xlu0
        %v2257 = vpop.trf.xlu0
        %v2258 = vpop.trf.xlu0
        %v2259 = vpop.trf.xlu0
        %v2260 = vpop.trf.xlu0
        %v2261 = vpop.trf.xlu0
        %v2262 = vpop.trf.xlu0
        %v2263 = vpop.trf.xlu0
        %v2264 = vpop.trf.xlu0
        %v2265 = vpop.trf.xlu0
        %v2266 = vpop.trf.xlu0
        %v2267 = vpop.trf.xlu0
        %v2268 = vpop.trf.xlu0
        %v2269 = vpop.trf.xlu0
        %v2270 = vpop.trf.xlu0
        %vm2271 = vcmask 64512
        %v2273 = vsel %vm2271, %v2255, 0
        %v2276 = vsel %vm2271, %v2256, 0
        %v2279 = vsel %vm2271, %v2257, 0
        %v2282 = vsel %vm2271, %v2258, 0
        %v2285 = vsel %vm2271, %v2259, 0
        %v2288 = vsel %vm2271, %v2260, 0
        %v2291 = vsel %vm2271, %v2261, 0
        %v2294 = vsel %vm2271, %v2262, 0
        %v2297 = vsel %vm2271, %v2263, 0
        %v2300 = vsel %vm2271, %v2264, 0
        %v2303 = vsel %vm2271, %v2265, 0
        %v2306 = vsel %vm2271, %v2266, 0
        %v2309 = vsel %vm2271, %v2267, 0
        %v2312 = vsel %vm2271, %v2268, 0
        %v2315 = vsel %vm2271, %v2269, 0
        %v2318 = vsel %vm2271, %v2270, 0
        %2320 = vmatprep.subr.mxu0 0.0
        %2321 = vmatpush1.msra.mxu0 %v2088
        %2322 = vmatprep.subr.mxu0 0.0
        %2323 = vmatpush1.msra.mxu0 0.0
        %2324 = vmatprep.subr.mxu0 0.0
        %2325 = vmatpush1.msra.mxu0 0.0
        %2326 = vmatprep.subr.mxu0 0.0
        %2327 = vmatpush1.msra.mxu0 0.0
        %2328 = vmatprep.subr.mxu0 0.0
        %2329 = vmatpush1.msra.mxu0 0.0
        %2330 = vmatprep.subr.mxu0 0.0
        %2331 = vmatpush1.msra.mxu0 0.0
        %2332 = vmatprep.subr.mxu0 0.0
        %2333 = vmatpush1.msra.mxu0 0.0
        %2334 = vmatprep.subr.mxu0 0.0
        %2335 = vmatpush1.msra.mxu0 0.0
        %2336 = vmatprep.subr.mxu0 0.0
        %2337 = vmatpush1.msra.mxu0 0.0
        %2338 = vmatprep.subr.mxu0 0.0
        %2339 = vmatpush1.msra.mxu0 0.0
        %2340 = vmatprep.subr.mxu0 0.0
        %2341 = vmatpush1.msra.mxu0 0.0
        %2342 = vmatprep.subr.mxu0 0.0
        %2343 = vmatpush1.msra.mxu0 0.0
        %2344 = vmatprep.subr.mxu0 0.0
        %2345 = vmatpush1.msra.mxu0 0.0
        %2346 = vmatprep.subr.mxu0 0.0
        %2347 = vmatpush1.msra.mxu0 0.0
        %2348 = vmatprep.subr.mxu0 0.0
        %2349 = vmatpush1.msra.mxu0 0.0
        %2350 = vmatprep.subr.mxu0 0.0
        %2351 = vmatpush1.msra.mxu0 0.0
        %2352 = vmatprep.subr.mxu0 0.0
        %2353 = vmatpush1.msra.mxu0 0.0
        %2354 = vmatprep.subr.mxu0 0.0
        %2355 = vmatpush1.msra.mxu0 0.0
        %2356 = vmatprep.subr.mxu0 0.0
        %2357 = vmatpush1.msra.mxu0 0.0
        %2358 = vmatprep.subr.mxu0 0.0
        %2359 = vmatpush1.msra.mxu0 0.0
        %2360 = vmatprep.subr.mxu0 0.0
        %2361 = vmatpush1.msra.mxu0 0.0
        %2362 = vmatprep.subr.mxu0 0.0
        %2363 = vmatpush1.msra.mxu0 0.0
        %2364 = vmatprep.subr.mxu0 0.0
        %2365 = vmatpush1.msra.mxu0 0.0
        %2366 = vmatprep.subr.mxu0 0.0
        %2367 = vmatpush1.msra.mxu0 0.0
        %2368 = vmatprep.subr.mxu0 0.0
        %2369 = vmatpush1.msra.mxu0 0.0
        %2370 = vmatprep.subr.mxu0 0.0
        %2371 = vmatpush1.msra.mxu0 0.0
        %2372 = vmatprep.subr.mxu0 0.0
        %2373 = vmatpush1.msra.mxu0 0.0
        %2374 = vmatprep.subr.mxu0 0.0
        %2375 = vmatpush1.msra.mxu0 0.0
        %2376 = vmatprep.subr.mxu0 0.0
        %2377 = vmatpush1.msra.mxu0 0.0
        %2378 = vmatprep.subr.mxu0 0.0
        %2379 = vmatpush1.msra.mxu0 0.0
        %2380 = vmatprep.subr.mxu0 0.0
        %2381 = vmatpush1.msra.mxu0 0.0
        %2382 = vmatprep.subr.mxu0 0.0
        %2383 = vmatpush1.msra.mxu0 0.0
        %2384 = vmatprep.mubr.f32.mxu0 0.0
        %2385 = vmatmul.mubr.f32.gmra.mrb[0].mxu0 %v2273
        %v2386 = vpop.f32.mrb[0].mxu0
        %v2387 = vadd.f32 0.0, %v2386
        %v2388 = vpop.f32.mrb[0].mxu0
        %2389 = vmatprep.mubr.f32.mxu0 0.0
        %2390 = vmatmul.mubr.f32.gmra.mrb[0].mxu0 %v2276
        %v2391 = vpop.f32.mrb[0].mxu0
        %v2392 = vadd.f32 0.0, %v2391
        %v2393 = vpop.f32.mrb[0].mxu0
        %2394 = vmatprep.mubr.f32.mxu0 0.0
        %2395 = vmatmul.mubr.f32.gmra.mrb[0].mxu0 %v2279
        %v2396 = vpop.f32.mrb[0].mxu0
        %v2397 = vadd.f32 0.0, %v2396
        %v2398 = vpop.f32.mrb[0].mxu0
        %2399 = vmatprep.mubr.f32.mxu0 0.0
        %2400 = vmatmul.mubr.f32.gmra.mrb[0].mxu0 %v2282
        %v2401 = vpop.f32.mrb[0].mxu0
        %v2402 = vadd.f32 0.0, %v2401
        %v2403 = vpop.f32.mrb[0].mxu0
        %2404 = vmatprep.mubr.f32.mxu0 0.0
        %2405 = vmatmul.mubr.f32.gmra.mrb[0].mxu0 %v2285
        %v2406 = vpop.f32.mrb[0].mxu0
        %v2407 = vadd.f32 0.0, %v2406
        %v2408 = vpop.f32.mrb[0].mxu0
        %2409 = vmatprep.mubr.f32.mxu0 0.0
        %2410 = vmatmul.mubr.f32.gmra.mrb[0].mxu0 %v2288
        %v2411 = vpop.f32.mrb[0].mxu0
        %v2412 = vadd.f32 0.0, %v2411
        %v2413 = vpop.f32.mrb[0].mxu0
        %2414 = vmatprep.mubr.f32.mxu0 0.0
        %2415 = vmatmul.mubr.f32.gmra.mrb[0].mxu0 %v2291
        %v2416 = vpop.f32.mrb[0].mxu0
        %v2417 = vadd.f32 0.0, %v2416
        %v2418 = vpop.f32.mrb[0].mxu0
        %2419 = vmatprep.mubr.f32.mxu0 0.0
        %2420 = vmatmul.mubr.f32.gmra.mrb[0].mxu0 %v2294
        %v2421 = vpop.f32.mrb[0].mxu0
        %v2422 = vadd.f32 0.0, %v2421
        %v2423 = vpop.f32.mrb[0].mxu0
        %2424 = vmatprep.mubr.f32.mxu0 0.0
        %2425 = vmatmul.mubr.f32.gmra.mrb[0].mxu0 %v2297
        %v2426 = vpop.f32.mrb[0].mxu0
        %v2427 = vadd.f32 0.0, %v2426
        %v2428 = vpop.f32.mrb[0].mxu0
        %2429 = vmatprep.mubr.f32.mxu0 0.0
        %2430 = vmatmul.mubr.f32.gmra.mrb[0].mxu0 %v2300
        %v2431 = vpop.f32.mrb[0].mxu0
        %v2432 = vadd.f32 0.0, %v2431
        %v2433 = vpop.f32.mrb[0].mxu0
        %2434 = vmatprep.mubr.f32.mxu0 0.0
        %2435 = vmatmul.mubr.f32.gmra.mrb[0].mxu0 %v2303
        %v2436 = vpop.f32.mrb[0].mxu0
        %v2437 = vadd.f32 0.0, %v2436
        %v2438 = vpop.f32.mrb[0].mxu0
        %2439 = vmatprep.mubr.f32.mxu0 0.0
        %2440 = vmatmul.mubr.f32.gmra.mrb[0].mxu0 %v2306
        %v2441 = vpop.f32.mrb[0].mxu0
        %v2442 = vadd.f32 0.0, %v2441
        %v2443 = vpop.f32.mrb[0].mxu0
        %2444 = vmatprep.mubr.f32.mxu0 0.0
        %2445 = vmatmul.mubr.f32.gmra.mrb[0].mxu0 %v2309
        %v2446 = vpop.f32.mrb[0].mxu0
        %v2447 = vadd.f32 0.0, %v2446
        %v2448 = vpop.f32.mrb[0].mxu0
        %2449 = vmatprep.mubr.f32.mxu0 0.0
        %2450 = vmatmul.mubr.f32.gmra.mrb[0].mxu0 %v2312
        %v2451 = vpop.f32.mrb[0].mxu0
        %v2452 = vadd.f32 0.0, %v2451
        %v2453 = vpop.f32.mrb[0].mxu0
        %2454 = vmatprep.mubr.f32.mxu0 0.0
        %2455 = vmatmul.mubr.f32.gmra.mrb[0].mxu0 %v2315
        %v2456 = vpop.f32.mrb[0].mxu0
        %v2457 = vadd.f32 0.0, %v2456
        %v2458 = vpop.f32.mrb[0].mxu0
        %2459 = vmatprep.mubr.f32.mxu0 0.0
        %2460 = vmatmul.mubr.f32.gmra.mrb[0].mxu0 %v2318
        %v2461 = vpop.f32.mrb[0].mxu0
        %v2462 = vadd.f32 0.0, %v2461
        %v2463 = vpop.f32.mrb[0].mxu0
        %2464 = vdwg.mxu0
        %2465 = vxpose.xlu0.b32.start [1/16] %v1968, 128
        %2466 = vxpose.xlu0.b32.cont [2/16] 0.0, 128
        %2467 = vxpose.xlu0.b32.cont [3/16] 0.0, 128
        %2468 = vxpose.xlu0.b32.cont [4/16] 0.0, 128
        %2469 = vxpose.xlu0.b32.cont [5/16] 0.0, 128
        %2470 = vxpose.xlu0.b32.cont [6/16] 0.0, 128
        %2471 = vxpose.xlu0.b32.cont [7/16] 0.0, 128
        %2472 = vxpose.xlu0.b32.cont [8/16] 0.0, 128
        %2473 = vxpose.xlu0.b32.cont [9/16] 0.0, 128
        %2474 = vxpose.xlu0.b32.cont [10/16] 0.0, 128
        %2475 = vxpose.xlu0.b32.cont [11/16] 0.0, 128
        %2476 = vxpose.xlu0.b32.cont [12/16] 0.0, 128
        %2477 = vxpose.xlu0.b32.cont [13/16] 0.0, 128
        %2478 = vxpose.xlu0.b32.cont [14/16] 0.0, 128
        %2479 = vxpose.xlu0.b32.cont [15/16] 0.0, 128
        %2480 = vxpose.xlu0.b32.end [16/16] 0.0, 128
        %v2481 = vpop.trf.xlu0
        %v2482 = vpop.trf.xlu0
        %v2483 = vpop.trf.xlu0
        %v2484 = vpop.trf.xlu0
        %v2485 = vpop.trf.xlu0
        %v2486 = vpop.trf.xlu0
        %v2487 = vpop.trf.xlu0
        %v2488 = vpop.trf.xlu0
        %v2489 = vpop.trf.xlu0
        %v2490 = vpop.trf.xlu0
        %v2491 = vpop.trf.xlu0
        %v2492 = vpop.trf.xlu0
        %v2493 = vpop.trf.xlu0
        %v2494 = vpop.trf.xlu0
        %v2495 = vpop.trf.xlu0
        %v2496 = vpop.trf.xlu0
        %v2498 = vsel %vm2271, %v2481, 0
        %v2501 = vsel %vm2271, %v2482, 0
        %v2504 = vsel %vm2271, %v2483, 0
        %v2507 = vsel %vm2271, %v2484, 0
        %v2510 = vsel %vm2271, %v2485, 0
        %v2513 = vsel %vm2271, %v2486, 0
        %v2516 = vsel %vm2271, %v2487, 0
        %v2519 = vsel %vm2271, %v2488, 0
        %v2522 = vsel %vm2271, %v2489, 0
        %v2525 = vsel %vm2271, %v2490, 0
        %v2528 = vsel %vm2271, %v2491, 0
        %v2531 = vsel %vm2271, %v2492, 0
        %v2534 = vsel %vm2271, %v2493, 0
        %v2537 = vsel %vm2271, %v2494, 0
        %v2540 = vsel %vm2271, %v2495, 0
        %v2543 = vsel %vm2271, %v2496, 0
        %2545 = vmatprep.subr.mxu0 0.0
        %2546 = vmatpush1.msra.mxu0 %v2093
        %2547 = vmatprep.subr.mxu0 0.0
        %2548 = vmatpush1.msra.mxu0 0.0
        %2549 = vmatprep.subr.mxu0 0.0
        %2550 = vmatpush1.msra.mxu0 0.0
        %2551 = vmatprep.subr.mxu0 0.0
        %2552 = vmatpush1.msra.mxu0 0.0
        %2553 = vmatprep.subr.mxu0 0.0
        %2554 = vmatpush1.msra.mxu0 0.0
        %2555 = vmatprep.subr.mxu0 0.0
        %2556 = vmatpush1.msra.mxu0 0.0
        %2557 = vmatprep.subr.mxu0 0.0
        %2558 = vmatpush1.msra.mxu0 0.0
        %2559 = vmatprep.subr.mxu0 0.0
        %2560 = vmatpush1.msra.mxu0 0.0
        %2561 = vmatprep.subr.mxu0 0.0
        %2562 = vmatpush1.msra.mxu0 0.0
        %2563 = vmatprep.subr.mxu0 0.0
        %2564 = vmatpush1.msra.mxu0 0.0
        %2565 = vmatprep.subr.mxu0 0.0
        %2566 = vmatpush1.msra.mxu0 0.0
        %2567 = vmatprep.subr.mxu0 0.0
        %2568 = vmatpush1.msra.mxu0 0.0
        %2569 = vmatprep.subr.mxu0 0.0
        %2570 = vmatpush1.msra.mxu0 0.0
        %2571 = vmatprep.subr.mxu0 0.0
        %2572 = vmatpush1.msra.mxu0 0.0
        %2573 = vmatprep.subr.mxu0 0.0
        %2574 = vmatpush1.msra.mxu0 0.0
        %2575 = vmatprep.subr.mxu0 0.0
        %2576 = vmatpush1.msra.mxu0 0.0
        %2577 = vmatprep.subr.mxu0 0.0
        %2578 = vmatpush1.msra.mxu0 0.0
        %2579 = vmatprep.subr.mxu0 0.0
        %2580 = vmatpush1.msra.mxu0 0.0
        %2581 = vmatprep.subr.mxu0 0.0
        %2582 = vmatpush1.msra.mxu0 0.0
        %2583 = vmatprep.subr.mxu0 0.0
        %2584 = vmatpush1.msra.mxu0 0.0
        %2585 = vmatprep.subr.mxu0 0.0
        %2586 = vmatpush1.msra.mxu0 0.0
        %2587 = vmatprep.subr.mxu0 0.0
        %2588 = vmatpush1.msra.mxu0 0.0
        %2589 = vmatprep.subr.mxu0 0.0
        %2590 = vmatpush1.msra.mxu0 0.0
        %2591 = vmatprep.subr.mxu0 0.0
        %2592 = vmatpush1.msra.mxu0 0.0
        %2593 = vmatprep.subr.mxu0 0.0
        %2594 = vmatpush1.msra.mxu0 0.0
        %2595 = vmatprep.subr.mxu0 0.0
        %2596 = vmatpush1.msra.mxu0 0.0
        %2597 = vmatprep.subr.mxu0 0.0
        %2598 = vmatpush1.msra.mxu0 0.0
        %2599 = vmatprep.subr.mxu0 0.0
        %2600 = vmatpush1.msra.mxu0 0.0
        %2601 = vmatprep.subr.mxu0 0.0
        %2602 = vmatpush1.msra.mxu0 0.0
        %2603 = vmatprep.subr.mxu0 0.0
        %2604 = vmatpush1.msra.mxu0 0.0
        %2605 = vmatprep.subr.mxu0 0.0
        %2606 = vmatpush1.msra.mxu0 0.0
        %2607 = vmatprep.subr.mxu0 0.0
        %2608 = vmatpush1.msra.mxu0 0.0
        %2609 = vmatprep.mubr.f32.mxu0 0.0
        %2610 = vmatmul.mubr.f32.gmra.mrb[0].mxu0 %v2498
        %v2611 = vpop.f32.mrb[0].mxu0
        %v2612 = vadd.f32 0.0, %v2611
        %v2613 = vpop.f32.mrb[0].mxu0
        %2614 = vmatprep.mubr.f32.mxu0 0.0
        %2615 = vmatmul.mubr.f32.gmra.mrb[0].mxu0 %v2501
        %v2616 = vpop.f32.mrb[0].mxu0
        %v2617 = vadd.f32 0.0, %v2616
        %v2618 = vpop.f32.mrb[0].mxu0
        %2619 = vmatprep.mubr.f32.mxu0 0.0
        %2620 = vmatmul.mubr.f32.gmra.mrb[0].mxu0 %v2504
        %v2621 = vpop.f32.mrb[0].mxu0
        %v2622 = vadd.f32 0.0, %v2621
        %v2623 = vpop.f32.mrb[0].mxu0
        %2624 = vmatprep.mubr.f32.mxu0 0.0
        %2625 = vmatmul.mubr.f32.gmra.mrb[0].mxu0 %v2507
        %v2626 = vpop.f32.mrb[0].mxu0
        %v2627 = vadd.f32 0.0, %v2626
        %v2628 = vpop.f32.mrb[0].mxu0
        %2629 = vmatprep.mubr.f32.mxu0 0.0
        %2630 = vmatmul.mubr.f32.gmra.mrb[0].mxu0 %v2510
        %v2631 = vpop.f32.mrb[0].mxu0
        %v2632 = vadd.f32 0.0, %v2631
        %v2633 = vpop.f32.mrb[0].mxu0
        %2634 = vmatprep.mubr.f32.mxu0 0.0
        %2635 = vmatmul.mubr.f32.gmra.mrb[0].mxu0 %v2513
        %v2636 = vpop.f32.mrb[0].mxu0
        %v2637 = vadd.f32 0.0, %v2636
        %v2638 = vpop.f32.mrb[0].mxu0
        %2639 = vmatprep.mubr.f32.mxu0 0.0
        %2640 = vmatmul.mubr.f32.gmra.mrb[0].mxu0 %v2516
        %v2641 = vpop.f32.mrb[0].mxu0
        %v2642 = vadd.f32 0.0, %v2641
        %v2643 = vpop.f32.mrb[0].mxu0
        %2644 = vmatprep.mubr.f32.mxu0 0.0
        %2645 = vmatmul.mubr.f32.gmra.mrb[0].mxu0 %v2519
        %v2646 = vpop.f32.mrb[0].mxu0
        %v2647 = vadd.f32 0.0, %v2646
        %v2648 = vpop.f32.mrb[0].mxu0
        %2649 = vmatprep.mubr.f32.mxu0 0.0
        %2650 = vmatmul.mubr.f32.gmra.mrb[0].mxu0 %v2522
        %v2651 = vpop.f32.mrb[0].mxu0
        %v2652 = vadd.f32 0.0, %v2651
        %v2653 = vpop.f32.mrb[0].mxu0
        %2654 = vmatprep.mubr.f32.mxu0 0.0
        %2655 = vmatmul.mubr.f32.gmra.mrb[0].mxu0 %v2525
        %v2656 = vpop.f32.mrb[0].mxu0
        %v2657 = vadd.f32 0.0, %v2656
        %v2658 = vpop.f32.mrb[0].mxu0
        %2659 = vmatprep.mubr.f32.mxu0 0.0
        %2660 = vmatmul.mubr.f32.gmra.mrb[0].mxu0 %v2528
        %v2661 = vpop.f32.mrb[0].mxu0
        %v2662 = vadd.f32 0.0, %v2661
        %v2663 = vpop.f32.mrb[0].mxu0
        %2664 = vmatprep.mubr.f32.mxu0 0.0
        %2665 = vmatmul.mubr.f32.gmra.mrb[0].mxu0 %v2531
        %v2666 = vpop.f32.mrb[0].mxu0
        %v2667 = vadd.f32 0.0, %v2666
        %v2668 = vpop.f32.mrb[0].mxu0
        %2669 = vmatprep.mubr.f32.mxu0 0.0
        %2670 = vmatmul.mubr.f32.gmra.mrb[0].mxu0 %v2534
        %v2671 = vpop.f32.mrb[0].mxu0
        %v2672 = vadd.f32 0.0, %v2671
        %v2673 = vpop.f32.mrb[0].mxu0
        %2674 = vmatprep.mubr.f32.mxu0 0.0
        %2675 = vmatmul.mubr.f32.gmra.mrb[0].mxu0 %v2537
        %v2676 = vpop.f32.mrb[0].mxu0
        %v2677 = vadd.f32 0.0, %v2676
        %v2678 = vpop.f32.mrb[0].mxu0
        %2679 = vmatprep.mubr.f32.mxu0 0.0
        %2680 = vmatmul.mubr.f32.gmra.mrb[0].mxu0 %v2540
        %v2681 = vpop.f32.mrb[0].mxu0
        %v2682 = vadd.f32 0.0, %v2681
        %v2683 = vpop.f32.mrb[0].mxu0
        %2684 = vmatprep.mubr.f32.mxu0 0.0
        %2685 = vmatmul.mubr.f32.gmra.mrb[0].mxu0 %v2543
        %v2686 = vpop.f32.mrb[0].mxu0
        %v2687 = vadd.f32 0.0, %v2686
        %v2688 = vpop.f32.mrb[0].mxu0
        %2689 = vdwg.mxu0
        %2690 = vxpose.xlu0.b32.start [1/16] %v1973, 128
        %2691 = vxpose.xlu0.b32.cont [2/16] 0.0, 128
        %2692 = vxpose.xlu0.b32.cont [3/16] 0.0, 128
        %2693 = vxpose.xlu0.b32.cont [4/16] 0.0, 128
        %2694 = vxpose.xlu0.b32.cont [5/16] 0.0, 128
        %2695 = vxpose.xlu0.b32.cont [6/16] 0.0, 128
        %2696 = vxpose.xlu0.b32.cont [7/16] 0.0, 128
        %2697 = vxpose.xlu0.b32.cont [8/16] 0.0, 128
        %2698 = vxpose.xlu0.b32.cont [9/16] 0.0, 128
        %2699 = vxpose.xlu0.b32.cont [10/16] 0.0, 128
        %2700 = vxpose.xlu0.b32.cont [11/16] 0.0, 128
        %2701 = vxpose.xlu0.b32.cont [12/16] 0.0, 128
        %2702 = vxpose.xlu0.b32.cont [13/16] 0.0, 128
        %2703 = vxpose.xlu0.b32.cont [14/16] 0.0, 128
        %2704 = vxpose.xlu0.b32.cont [15/16] 0.0, 128
        %2705 = vxpose.xlu0.b32.end [16/16] 0.0, 128
        %v2706 = vpop.trf.xlu0
        %v2707 = vpop.trf.xlu0
        %v2708 = vpop.trf.xlu0
        %v2709 = vpop.trf.xlu0
        %v2710 = vpop.trf.xlu0
        %v2711 = vpop.trf.xlu0
        %v2712 = vpop.trf.xlu0
        %v2713 = vpop.trf.xlu0
        %v2714 = vpop.trf.xlu0
        %v2715 = vpop.trf.xlu0
        %v2716 = vpop.trf.xlu0
        %v2717 = vpop.trf.xlu0
        %v2718 = vpop.trf.xlu0
        %v2719 = vpop.trf.xlu0
        %v2720 = vpop.trf.xlu0
        %v2721 = vpop.trf.xlu0
        %v2723 = vsel %vm2271, %v2706, 0
        %v2726 = vsel %vm2271, %v2707, 0
        %v2729 = vsel %vm2271, %v2708, 0
        %v2732 = vsel %vm2271, %v2709, 0
        %v2735 = vsel %vm2271, %v2710, 0
        %v2738 = vsel %vm2271, %v2711, 0
        %v2741 = vsel %vm2271, %v2712, 0
        %v2744 = vsel %vm2271, %v2713, 0
        %v2747 = vsel %vm2271, %v2714, 0
        %v2750 = vsel %vm2271, %v2715, 0
        %v2753 = vsel %vm2271, %v2716, 0
        %v2756 = vsel %vm2271, %v2717, 0
        %v2759 = vsel %vm2271, %v2718, 0
        %v2762 = vsel %vm2271, %v2719, 0
        %v2765 = vsel %vm2271, %v2720, 0
        %v2768 = vsel %vm2271, %v2721, 0
        %2770 = vmatprep.subr.mxu0 0.0
        %2771 = vmatpush1.msra.mxu0 %v2098
        %2772 = vmatprep.subr.mxu0 0.0
        %2773 = vmatpush1.msra.mxu0 0.0
        %2774 = vmatprep.subr.mxu0 0.0
        %2775 = vmatpush1.msra.mxu0 0.0
        %2776 = vmatprep.subr.mxu0 0.0
        %2777 = vmatpush1.msra.mxu0 0.0
        %2778 = vmatprep.subr.mxu0 0.0
        %2779 = vmatpush1.msra.mxu0 0.0
        %2780 = vmatprep.subr.mxu0 0.0
        %2781 = vmatpush1.msra.mxu0 0.0
        %2782 = vmatprep.subr.mxu0 0.0
        %2783 = vmatpush1.msra.mxu0 0.0
        %2784 = vmatprep.subr.mxu0 0.0
        %2785 = vmatpush1.msra.mxu0 0.0
        %2786 = vmatprep.subr.mxu0 0.0
        %2787 = vmatpush1.msra.mxu0 0.0
        %2788 = vmatprep.subr.mxu0 0.0
        %2789 = vmatpush1.msra.mxu0 0.0
        %2790 = vmatprep.subr.mxu0 0.0
        %2791 = vmatpush1.msra.mxu0 0.0
        %2792 = vmatprep.subr.mxu0 0.0
        %2793 = vmatpush1.msra.mxu0 0.0
        %2794 = vmatprep.subr.mxu0 0.0
        %2795 = vmatpush1.msra.mxu0 0.0
        %2796 = vmatprep.subr.mxu0 0.0
        %2797 = vmatpush1.msra.mxu0 0.0
        %2798 = vmatprep.subr.mxu0 0.0
        %2799 = vmatpush1.msra.mxu0 0.0
        %2800 = vmatprep.subr.mxu0 0.0
        %2801 = vmatpush1.msra.mxu0 0.0
        %2802 = vmatprep.subr.mxu0 0.0
        %2803 = vmatpush1.msra.mxu0 0.0
        %2804 = vmatprep.subr.mxu0 0.0
        %2805 = vmatpush1.msra.mxu0 0.0
        %2806 = vmatprep.subr.mxu0 0.0
        %2807 = vmatpush1.msra.mxu0 0.0
        %2808 = vmatprep.subr.mxu0 0.0
        %2809 = vmatpush1.msra.mxu0 0.0
        %2810 = vmatprep.subr.mxu0 0.0
        %2811 = vmatpush1.msra.mxu0 0.0
        %2812 = vmatprep.subr.mxu0 0.0
        %2813 = vmatpush1.msra.mxu0 0.0
        %2814 = vmatprep.subr.mxu0 0.0
        %2815 = vmatpush1.msra.mxu0 0.0
        %2816 = vmatprep.subr.mxu0 0.0
        %2817 = vmatpush1.msra.mxu0 0.0
        %2818 = vmatprep.subr.mxu0 0.0
        %2819 = vmatpush1.msra.mxu0 0.0
        %2820 = vmatprep.subr.mxu0 0.0
        %2821 = vmatpush1.msra.mxu0 0.0
        %2822 = vmatprep.subr.mxu0 0.0
        %2823 = vmatpush1.msra.mxu0 0.0
        %2824 = vmatprep.subr.mxu0 0.0
        %2825 = vmatpush1.msra.mxu0 0.0
        %2826 = vmatprep.subr.mxu0 0.0
        %2827 = vmatpush1.msra.mxu0 0.0
        %2828 = vmatprep.subr.mxu0 0.0
        %2829 = vmatpush1.msra.mxu0 0.0
        %2830 = vmatprep.subr.mxu0 0.0
        %2831 = vmatpush1.msra.mxu0 0.0
        %2832 = vmatprep.subr.mxu0 0.0
        %2833 = vmatpush1.msra.mxu0 0.0
        %2834 = vmatprep.mubr.f32.mxu0 0.0
        %2835 = vmatmul.mubr.f32.gmra.mrb[0].mxu0 %v2723
        %v2836 = vpop.f32.mrb[0].mxu0
        %v2837 = vadd.f32 0.0, %v2836
        %v2838 = vpop.f32.mrb[0].mxu0
        %2839 = vmatprep.mubr.f32.mxu0 0.0
        %2840 = vmatmul.mubr.f32.gmra.mrb[0].mxu0 %v2726
        %v2841 = vpop.f32.mrb[0].mxu0
        %v2842 = vadd.f32 0.0, %v2841
        %v2843 = vpop.f32.mrb[0].mxu0
        %2844 = vmatprep.mubr.f32.mxu0 0.0
        %2845 = vmatmul.mubr.f32.gmra.mrb[0].mxu0 %v2729
        %v2846 = vpop.f32.mrb[0].mxu0
        %v2847 = vadd.f32 0.0, %v2846
        %v2848 = vpop.f32.mrb[0].mxu0
        %2849 = vmatprep.mubr.f32.mxu0 0.0
        %2850 = vmatmul.mubr.f32.gmra.mrb[0].mxu0 %v2732
        %v2851 = vpop.f32.mrb[0].mxu0
        %v2852 = vadd.f32 0.0, %v2851
        %v2853 = vpop.f32.mrb[0].mxu0
        %2854 = vmatprep.mubr.f32.mxu0 0.0
        %2855 = vmatmul.mubr.f32.gmra.mrb[0].mxu0 %v2735
        %v2856 = vpop.f32.mrb[0].mxu0
        %v2857 = vadd.f32 0.0, %v2856
        %v2858 = vpop.f32.mrb[0].mxu0
        %2859 = vmatprep.mubr.f32.mxu0 0.0
        %2860 = vmatmul.mubr.f32.gmra.mrb[0].mxu0 %v2738
        %v2861 = vpop.f32.mrb[0].mxu0
        %v2862 = vadd.f32 0.0, %v2861
        %v2863 = vpop.f32.mrb[0].mxu0
        %2864 = vmatprep.mubr.f32.mxu0 0.0
        %2865 = vmatmul.mubr.f32.gmra.mrb[0].mxu0 %v2741
        %v2866 = vpop.f32.mrb[0].mxu0
        %v2867 = vadd.f32 0.0, %v2866
        %v2868 = vpop.f32.mrb[0].mxu0
        %2869 = vmatprep.mubr.f32.mxu0 0.0
        %2870 = vmatmul.mubr.f32.gmra.mrb[0].mxu0 %v2744
        %v2871 = vpop.f32.mrb[0].mxu0
        %v2872 = vadd.f32 0.0, %v2871
        %v2873 = vpop.f32.mrb[0].mxu0
        %2874 = vmatprep.mubr.f32.mxu0 0.0
        %2875 = vmatmul.mubr.f32.gmra.mrb[0].mxu0 %v2747
        %v2876 = vpop.f32.mrb[0].mxu0
        %v2877 = vadd.f32 0.0, %v2876
        %v2878 = vpop.f32.mrb[0].mxu0
        %2879 = vmatprep.mubr.f32.mxu0 0.0
        %2880 = vmatmul.mubr.f32.gmra.mrb[0].mxu0 %v2750
        %v2881 = vpop.f32.mrb[0].mxu0
        %v2882 = vadd.f32 0.0, %v2881
        %v2883 = vpop.f32.mrb[0].mxu0
        %2884 = vmatprep.mubr.f32.mxu0 0.0
        %2885 = vmatmul.mubr.f32.gmra.mrb[0].mxu0 %v2753
        %v2886 = vpop.f32.mrb[0].mxu0
        %v2887 = vadd.f32 0.0, %v2886
        %v2888 = vpop.f32.mrb[0].mxu0
        %2889 = vmatprep.mubr.f32.mxu0 0.0
        %2890 = vmatmul.mubr.f32.gmra.mrb[0].mxu0 %v2756
        %v2891 = vpop.f32.mrb[0].mxu0
        %v2892 = vadd.f32 0.0, %v2891
        %v2893 = vpop.f32.mrb[0].mxu0
        %2894 = vmatprep.mubr.f32.mxu0 0.0
        %2895 = vmatmul.mubr.f32.gmra.mrb[0].mxu0 %v2759
        %v2896 = vpop.f32.mrb[0].mxu0
        %v2897 = vadd.f32 0.0, %v2896
        %v2898 = vpop.f32.mrb[0].mxu0
        %2899 = vmatprep.mubr.f32.mxu0 0.0
        %2900 = vmatmul.mubr.f32.gmra.mrb[0].mxu0 %v2762
        %v2901 = vpop.f32.mrb[0].mxu0
        %v2902 = vadd.f32 0.0, %v2901
        %v2903 = vpop.f32.mrb[0].mxu0
        %2904 = vmatprep.mubr.f32.mxu0 0.0
        %2905 = vmatmul.mubr.f32.gmra.mrb[0].mxu0 %v2765
        %v2906 = vpop.f32.mrb[0].mxu0
        %v2907 = vadd.f32 0.0, %v2906
        %v2908 = vpop.f32.mrb[0].mxu0
        %2909 = vmatprep.mubr.f32.mxu0 0.0
        %2910 = vmatmul.mubr.f32.gmra.mrb[0].mxu0 %v2768
        %v2911 = vpop.f32.mrb[0].mxu0
        %v2912 = vadd.f32 0.0, %v2911
        %v2913 = vpop.f32.mrb[0].mxu0
        %2914 = vdwg.mxu0
        %2915 = vxpose.xlu0.b32.start [1/16] %v1978, 128
        %2916 = vxpose.xlu0.b32.cont [2/16] 0.0, 128
        %2917 = vxpose.xlu0.b32.cont [3/16] 0.0, 128
        %2918 = vxpose.xlu0.b32.cont [4/16] 0.0, 128
        %2919 = vxpose.xlu0.b32.cont [5/16] 0.0, 128
        %2920 = vxpose.xlu0.b32.cont [6/16] 0.0, 128
        %2921 = vxpose.xlu0.b32.cont [7/16] 0.0, 128
        %2922 = vxpose.xlu0.b32.cont [8/16] 0.0, 128
        %2923 = vxpose.xlu0.b32.cont [9/16] 0.0, 128
        %2924 = vxpose.xlu0.b32.cont [10/16] 0.0, 128
        %2925 = vxpose.xlu0.b32.cont [11/16] 0.0, 128
        %2926 = vxpose.xlu0.b32.cont [12/16] 0.0, 128
        %2927 = vxpose.xlu0.b32.cont [13/16] 0.0, 128
        %2928 = vxpose.xlu0.b32.cont [14/16] 0.0, 128
        %2929 = vxpose.xlu0.b32.cont [15/16] 0.0, 128
        %2930 = vxpose.xlu0.b32.end [16/16] 0.0, 128
        %v2931 = vpop.trf.xlu0
        %v2932 = vpop.trf.xlu0
        %v2933 = vpop.trf.xlu0
        %v2934 = vpop.trf.xlu0
        %v2935 = vpop.trf.xlu0
        %v2936 = vpop.trf.xlu0
        %v2937 = vpop.trf.xlu0
        %v2938 = vpop.trf.xlu0
        %v2939 = vpop.trf.xlu0
        %v2940 = vpop.trf.xlu0
        %v2941 = vpop.trf.xlu0
        %v2942 = vpop.trf.xlu0
        %v2943 = vpop.trf.xlu0
        %v2944 = vpop.trf.xlu0
        %v2945 = vpop.trf.xlu0
        %v2946 = vpop.trf.xlu0
        %v2948 = vsel %vm2271, %v2931, 0
        %v2951 = vsel %vm2271, %v2932, 0
        %v2954 = vsel %vm2271, %v2933, 0
        %v2957 = vsel %vm2271, %v2934, 0
        %v2960 = vsel %vm2271, %v2935, 0
        %v2963 = vsel %vm2271, %v2936, 0
        %v2966 = vsel %vm2271, %v2937, 0
        %v2969 = vsel %vm2271, %v2938, 0
        %v2972 = vsel %vm2271, %v2939, 0
        %v2975 = vsel %vm2271, %v2940, 0
        %v2978 = vsel %vm2271, %v2941, 0
        %v2981 = vsel %vm2271, %v2942, 0
        %v2984 = vsel %vm2271, %v2943, 0
        %v2987 = vsel %vm2271, %v2944, 0
        %v2990 = vsel %vm2271, %v2945, 0
        %v2993 = vsel %vm2271, %v2946, 0
        %2995 = vmatprep.subr.mxu0 0.0
        %2996 = vmatpush1.msra.mxu0 %v2103
        %2997 = vmatprep.subr.mxu0 0.0
        %2998 = vmatpush1.msra.mxu0 0.0
        %2999 = vmatprep.subr.mxu0 0.0
        %3000 = vmatpush1.msra.mxu0 0.0
        %3001 = vmatprep.subr.mxu0 0.0
        %3002 = vmatpush1.msra.mxu0 0.0
        %3003 = vmatprep.subr.mxu0 0.0
        %3004 = vmatpush1.msra.mxu0 0.0
        %3005 = vmatprep.subr.mxu0 0.0
        %3006 = vmatpush1.msra.mxu0 0.0
        %3007 = vmatprep.subr.mxu0 0.0
        %3008 = vmatpush1.msra.mxu0 0.0
        %3009 = vmatprep.subr.mxu0 0.0
        %3010 = vmatpush1.msra.mxu0 0.0
        %3011 = vmatprep.subr.mxu0 0.0
        %3012 = vmatpush1.msra.mxu0 0.0
        %3013 = vmatprep.subr.mxu0 0.0
        %3014 = vmatpush1.msra.mxu0 0.0
        %3015 = vmatprep.subr.mxu0 0.0
        %3016 = vmatpush1.msra.mxu0 0.0
        %3017 = vmatprep.subr.mxu0 0.0
        %3018 = vmatpush1.msra.mxu0 0.0
        %3019 = vmatprep.subr.mxu0 0.0
        %3020 = vmatpush1.msra.mxu0 0.0
        %3021 = vmatprep.subr.mxu0 0.0
        %3022 = vmatpush1.msra.mxu0 0.0
        %3023 = vmatprep.subr.mxu0 0.0
        %3024 = vmatpush1.msra.mxu0 0.0
        %3025 = vmatprep.subr.mxu0 0.0
        %3026 = vmatpush1.msra.mxu0 0.0
        %3027 = vmatprep.subr.mxu0 0.0
        %3028 = vmatpush1.msra.mxu0 0.0
        %3029 = vmatprep.subr.mxu0 0.0
        %3030 = vmatpush1.msra.mxu0 0.0
        %3031 = vmatprep.subr.mxu0 0.0
        %3032 = vmatpush1.msra.mxu0 0.0
        %3033 = vmatprep.subr.mxu0 0.0
        %3034 = vmatpush1.msra.mxu0 0.0
        %3035 = vmatprep.subr.mxu0 0.0
        %3036 = vmatpush1.msra.mxu0 0.0
        %3037 = vmatprep.subr.mxu0 0.0
        %3038 = vmatpush1.msra.mxu0 0.0
        %3039 = vmatprep.subr.mxu0 0.0
        %3040 = vmatpush1.msra.mxu0 0.0
        %3041 = vmatprep.subr.mxu0 0.0
        %3042 = vmatpush1.msra.mxu0 0.0
        %3043 = vmatprep.subr.mxu0 0.0
        %3044 = vmatpush1.msra.mxu0 0.0
        %3045 = vmatprep.subr.mxu0 0.0
        %3046 = vmatpush1.msra.mxu0 0.0
        %3047 = vmatprep.subr.mxu0 0.0
        %3048 = vmatpush1.msra.mxu0 0.0
        %3049 = vmatprep.subr.mxu0 0.0
        %3050 = vmatpush1.msra.mxu0 0.0
        %3051 = vmatprep.subr.mxu0 0.0
        %3052 = vmatpush1.msra.mxu0 0.0
        %3053 = vmatprep.subr.mxu0 0.0
        %3054 = vmatpush1.msra.mxu0 0.0
        %3055 = vmatprep.subr.mxu0 0.0
        %3056 = vmatpush1.msra.mxu0 0.0
        %3057 = vmatprep.subr.mxu0 0.0
        %3058 = vmatpush1.msra.mxu0 0.0
        %3059 = vmatprep.mubr.f32.mxu0 0.0
        %3060 = vmatmul.mubr.f32.gmra.mrb[0].mxu0 %v2948
        %v3061 = vpop.f32.mrb[0].mxu0
        %v3062 = vadd.f32 0.0, %v3061
        %v3063 = vpop.f32.mrb[0].mxu0
        %3064 = vmatprep.mubr.f32.mxu0 0.0
        %3065 = vmatmul.mubr.f32.gmra.mrb[0].mxu0 %v2951
        %v3066 = vpop.f32.mrb[0].mxu0
        %v3067 = vadd.f32 0.0, %v3066
        %v3068 = vpop.f32.mrb[0].mxu0
        %3069 = vmatprep.mubr.f32.mxu0 0.0
        %3070 = vmatmul.mubr.f32.gmra.mrb[0].mxu0 %v2954
        %v3071 = vpop.f32.mrb[0].mxu0
        %v3072 = vadd.f32 0.0, %v3071
        %v3073 = vpop.f32.mrb[0].mxu0
        %3074 = vmatprep.mubr.f32.mxu0 0.0
        %3075 = vmatmul.mubr.f32.gmra.mrb[0].mxu0 %v2957
        %v3076 = vpop.f32.mrb[0].mxu0
        %v3077 = vadd.f32 0.0, %v3076
        %v3078 = vpop.f32.mrb[0].mxu0
        %3079 = vmatprep.mubr.f32.mxu0 0.0
        %3080 = vmatmul.mubr.f32.gmra.mrb[0].mxu0 %v2960
        %v3081 = vpop.f32.mrb[0].mxu0
        %v3082 = vadd.f32 0.0, %v3081
        %v3083 = vpop.f32.mrb[0].mxu0
        %3084 = vmatprep.mubr.f32.mxu0 0.0
        %3085 = vmatmul.mubr.f32.gmra.mrb[0].mxu0 %v2963
        %v3086 = vpop.f32.mrb[0].mxu0
        %v3087 = vadd.f32 0.0, %v3086
        %v3088 = vpop.f32.mrb[0].mxu0
        %3089 = vmatprep.mubr.f32.mxu0 0.0
        %3090 = vmatmul.mubr.f32.gmra.mrb[0].mxu0 %v2966
        %v3091 = vpop.f32.mrb[0].mxu0
        %v3092 = vadd.f32 0.0, %v3091
        %v3093 = vpop.f32.mrb[0].mxu0
        %3094 = vmatprep.mubr.f32.mxu0 0.0
        %3095 = vmatmul.mubr.f32.gmra.mrb[0].mxu0 %v2969
        %v3096 = vpop.f32.mrb[0].mxu0
        %v3097 = vadd.f32 0.0, %v3096
        %v3098 = vpop.f32.mrb[0].mxu0
        %3099 = vmatprep.mubr.f32.mxu0 0.0
        %3100 = vmatmul.mubr.f32.gmra.mrb[0].mxu0 %v2972
        %v3101 = vpop.f32.mrb[0].mxu0
        %v3102 = vadd.f32 0.0, %v3101
        %v3103 = vpop.f32.mrb[0].mxu0
        %3104 = vmatprep.mubr.f32.mxu0 0.0
        %3105 = vmatmul.mubr.f32.gmra.mrb[0].mxu0 %v2975
        %v3106 = vpop.f32.mrb[0].mxu0
        %v3107 = vadd.f32 0.0, %v3106
        %v3108 = vpop.f32.mrb[0].mxu0
        %3109 = vmatprep.mubr.f32.mxu0 0.0
        %3110 = vmatmul.mubr.f32.gmra.mrb[0].mxu0 %v2978
        %v3111 = vpop.f32.mrb[0].mxu0
        %v3112 = vadd.f32 0.0, %v3111
        %v3113 = vpop.f32.mrb[0].mxu0
        %3114 = vmatprep.mubr.f32.mxu0 0.0
        %3115 = vmatmul.mubr.f32.gmra.mrb[0].mxu0 %v2981
        %v3116 = vpop.f32.mrb[0].mxu0
        %v3117 = vadd.f32 0.0, %v3116
        %v3118 = vpop.f32.mrb[0].mxu0
        %3119 = vmatprep.mubr.f32.mxu0 0.0
        %3120 = vmatmul.mubr.f32.gmra.mrb[0].mxu0 %v2984
        %v3121 = vpop.f32.mrb[0].mxu0
        %v3122 = vadd.f32 0.0, %v3121
        %v3123 = vpop.f32.mrb[0].mxu0
        %3124 = vmatprep.mubr.f32.mxu0 0.0
        %3125 = vmatmul.mubr.f32.gmra.mrb[0].mxu0 %v2987
        %v3126 = vpop.f32.mrb[0].mxu0
        %v3127 = vadd.f32 0.0, %v3126
        %v3128 = vpop.f32.mrb[0].mxu0
        %3129 = vmatprep.mubr.f32.mxu0 0.0
        %3130 = vmatmul.mubr.f32.gmra.mrb[0].mxu0 %v2990
        %v3131 = vpop.f32.mrb[0].mxu0
        %v3132 = vadd.f32 0.0, %v3131
        %v3133 = vpop.f32.mrb[0].mxu0
        %3134 = vmatprep.mubr.f32.mxu0 0.0
        %3135 = vmatmul.mubr.f32.gmra.mrb[0].mxu0 %v2993
        %v3136 = vpop.f32.mrb[0].mxu0
        %v3137 = vadd.f32 0.0, %v3136
        %v3138 = vpop.f32.mrb[0].mxu0
        %3139 = vdwg.mxu0
        %3140 = vmax.xlane.f32.xlu0 %v2387
        %v3141 = vpop.xlane.xlu0 %3140
        %3142 = vmax.xlane.f32.xlu0 %v2392
        %v3143 = vpop.xlane.xlu0 %3142
        %3144 = vmax.xlane.f32.xlu0 %v2397
        %v3145 = vpop.xlane.xlu0 %3144
        %3146 = vmax.xlane.f32.xlu0 %v2402
        %v3147 = vpop.xlane.xlu0 %3146
        %3148 = vmax.xlane.f32.xlu0 %v2407
        %v3149 = vpop.xlane.xlu0 %3148
        %3150 = vmax.xlane.f32.xlu0 %v2412
        %v3151 = vpop.xlane.xlu0 %3150
        %3152 = vmax.xlane.f32.xlu0 %v2417
        %v3153 = vpop.xlane.xlu0 %3152
        %3154 = vmax.xlane.f32.xlu0 %v2422
        %v3155 = vpop.xlane.xlu0 %3154
        %3156 = vmax.xlane.f32.xlu0 %v2427
        %v3157 = vpop.xlane.xlu0 %3156
        %3158 = vmax.xlane.f32.xlu0 %v2432
        %v3159 = vpop.xlane.xlu0 %3158
        %3160 = vmax.xlane.f32.xlu0 %v2437
        %v3161 = vpop.xlane.xlu0 %3160
        %3162 = vmax.xlane.f32.xlu0 %v2442
        %v3163 = vpop.xlane.xlu0 %3162
        %3164 = vmax.xlane.f32.xlu0 %v2447
        %v3165 = vpop.xlane.xlu0 %3164
        %3166 = vmax.xlane.f32.xlu0 %v2452
        %v3167 = vpop.xlane.xlu0 %3166
        %3168 = vmax.xlane.f32.xlu0 %v2457
        %v3169 = vpop.xlane.xlu0 %3168
        %3170 = vmax.xlane.f32.xlu0 %v2462
        %v3171 = vpop.xlane.xlu0 %3170
        %3172 = vmax.xlane.f32.xlu0 %v2612
        %v3173 = vpop.xlane.xlu0 %3172
        %3174 = vmax.xlane.f32.xlu0 %v2617
        %v3175 = vpop.xlane.xlu0 %3174
        %3176 = vmax.xlane.f32.xlu0 %v2622
        %v3177 = vpop.xlane.xlu0 %3176
        %3178 = vmax.xlane.f32.xlu0 %v2627
        %v3179 = vpop.xlane.xlu0 %3178
        %3180 = vmax.xlane.f32.xlu0 %v2632
        %v3181 = vpop.xlane.xlu0 %3180
        %3182 = vmax.xlane.f32.xlu0 %v2637
        %v3183 = vpop.xlane.xlu0 %3182
        %3184 = vmax.xlane.f32.xlu0 %v2642
        %v3185 = vpop.xlane.xlu0 %3184
        %3186 = vmax.xlane.f32.xlu0 %v2647
        %v3187 = vpop.xlane.xlu0 %3186
        %3188 = vmax.xlane.f32.xlu0 %v2652
        %v3189 = vpop.xlane.xlu0 %3188
        %3190 = vmax.xlane.f32.xlu0 %v2657
        %v3191 = vpop.xlane.xlu0 %3190
        %3192 = vmax.xlane.f32.xlu0 %v2662
        %v3193 = vpop.xlane.xlu0 %3192
        %3194 = vmax.xlane.f32.xlu0 %v2667
        %v3195 = vpop.xlane.xlu0 %3194
        %3196 = vmax.xlane.f32.xlu0 %v2672
        %v3197 = vpop.xlane.xlu0 %3196
        %3198 = vmax.xlane.f32.xlu0 %v2677
        %v3199 = vpop.xlane.xlu0 %3198
        %3200 = vmax.xlane.f32.xlu0 %v2682
        %v3201 = vpop.xlane.xlu0 %3200
        %3202 = vmax.xlane.f32.xlu0 %v2687
        %v3203 = vpop.xlane.xlu0 %3202
        %3204 = vmax.xlane.f32.xlu0 %v2837
        %v3205 = vpop.xlane.xlu0 %3204
        %3206 = vmax.xlane.f32.xlu0 %v2842
        %v3207 = vpop.xlane.xlu0 %3206
        %3208 = vmax.xlane.f32.xlu0 %v2847
        %v3209 = vpop.xlane.xlu0 %3208
        %3210 = vmax.xlane.f32.xlu0 %v2852
        %v3211 = vpop.xlane.xlu0 %3210
        %3212 = vmax.xlane.f32.xlu0 %v2857
        %v3213 = vpop.xlane.xlu0 %3212
        %3214 = vmax.xlane.f32.xlu0 %v2862
        %v3215 = vpop.xlane.xlu0 %3214
        %3216 = vmax.xlane.f32.xlu0 %v2867
        %v3217 = vpop.xlane.xlu0 %3216
        %3218 = vmax.xlane.f32.xlu0 %v2872
        %v3219 = vpop.xlane.xlu0 %3218
        %3220 = vmax.xlane.f32.xlu0 %v2877
        %v3221 = vpop.xlane.xlu0 %3220
        %3222 = vmax.xlane.f32.xlu0 %v2882
        %v3223 = vpop.xlane.xlu0 %3222
        %3224 = vmax.xlane.f32.xlu0 %v2887
        %v3225 = vpop.xlane.xlu0 %3224
        %3226 = vmax.xlane.f32.xlu0 %v2892
        %v3227 = vpop.xlane.xlu0 %3226
        %3228 = vmax.xlane.f32.xlu0 %v2897
        %v3229 = vpop.xlane.xlu0 %3228
        %3230 = vmax.xlane.f32.xlu0 %v2902
        %v3231 = vpop.xlane.xlu0 %3230
        %3232 = vmax.xlane.f32.xlu0 %v2907
        %v3233 = vpop.xlane.xlu0 %3232
        %3234 = vmax.xlane.f32.xlu0 %v2912
        %v3235 = vpop.xlane.xlu0 %3234
        %3236 = vmax.xlane.f32.xlu0 %v3062
        %v3237 = vpop.xlane.xlu0 %3236
        %3238 = vmax.xlane.f32.xlu0 %v3067
        %v3239 = vpop.xlane.xlu0 %3238
        %3240 = vmax.xlane.f32.xlu0 %v3072
        %v3241 = vpop.xlane.xlu0 %3240
        %3242 = vmax.xlane.f32.xlu0 %v3077
        %v3243 = vpop.xlane.xlu0 %3242
        %3244 = vmax.xlane.f32.xlu0 %v3082
        %v3245 = vpop.xlane.xlu0 %3244
        %3246 = vmax.xlane.f32.xlu0 %v3087
        %v3247 = vpop.xlane.xlu0 %3246
        %3248 = vmax.xlane.f32.xlu0 %v3092
        %v3249 = vpop.xlane.xlu0 %3248
        %3250 = vmax.xlane.f32.xlu0 %v3097
        %v3251 = vpop.xlane.xlu0 %3250
        %3252 = vmax.xlane.f32.xlu0 %v3102
        %v3253 = vpop.xlane.xlu0 %3252
        %3254 = vmax.xlane.f32.xlu0 %v3107
        %v3255 = vpop.xlane.xlu0 %3254
        %3256 = vmax.xlane.f32.xlu0 %v3112
        %v3257 = vpop.xlane.xlu0 %3256
        %3258 = vmax.xlane.f32.xlu0 %v3117
        %v3259 = vpop.xlane.xlu0 %3258
        %3260 = vmax.xlane.f32.xlu0 %v3122
        %v3261 = vpop.xlane.xlu0 %3260
        %3262 = vmax.xlane.f32.xlu0 %v3127
        %v3263 = vpop.xlane.xlu0 %3262
        %3264 = vmax.xlane.f32.xlu0 %v3132
        %v3265 = vpop.xlane.xlu0 %3264
        %3266 = vmax.xlane.f32.xlu0 %v3137
        %v3267 = vpop.xlane.xlu0 %3266
        %v3268 = vsub.f32 %v2387, %v3141
        %v3269 = vsub.f32 %v2392, %v3143
        %v3270 = vsub.f32 %v2397, %v3145
        %v3271 = vsub.f32 %v2402, %v3147
        %v3272 = vsub.f32 %v2407, %v3149
        %v3273 = vsub.f32 %v2412, %v3151
        %v3274 = vsub.f32 %v2417, %v3153
        %v3275 = vsub.f32 %v2422, %v3155
        %v3276 = vsub.f32 %v2427, %v3157
        %v3277 = vsub.f32 %v2432, %v3159
        %v3278 = vsub.f32 %v2437, %v3161
        %v3279 = vsub.f32 %v2442, %v3163
        %v3280 = vsub.f32 %v2447, %v3165
        %v3281 = vsub.f32 %v2452, %v3167
        %v3282 = vsub.f32 %v2457, %v3169
        %v3283 = vsub.f32 %v2462, %v3171
        %v3284 = vsub.f32 %v2612, %v3173
        %v3285 = vsub.f32 %v2617, %v3175
        %v3286 = vsub.f32 %v2622, %v3177
        %v3287 = vsub.f32 %v2627, %v3179
        %v3288 = vsub.f32 %v2632, %v3181
        %v3289 = vsub.f32 %v2637, %v3183
        %v3290 = vsub.f32 %v2642, %v3185
        %v3291 = vsub.f32 %v2647, %v3187
        %v3292 = vsub.f32 %v2652, %v3189
        %v3293 = vsub.f32 %v2657, %v3191
        %v3294 = vsub.f32 %v2662, %v3193
        %v3295 = vsub.f32 %v2667, %v3195
        %v3296 = vsub.f32 %v2672, %v3197
        %v3297 = vsub.f32 %v2677, %v3199
        %v3298 = vsub.f32 %v2682, %v3201
        %v3299 = vsub.f32 %v2687, %v3203
        %v3300 = vsub.f32 %v2837, %v3205
        %v3301 = vsub.f32 %v2842, %v3207
        %v3302 = vsub.f32 %v2847, %v3209
        %v3303 = vsub.f32 %v2852, %v3211
        %v3304 = vsub.f32 %v2857, %v3213
        %v3305 = vsub.f32 %v2862, %v3215
        %v3306 = vsub.f32 %v2867, %v3217
        %v3307 = vsub.f32 %v2872, %v3219
        %v3308 = vsub.f32 %v2877, %v3221
        %v3309 = vsub.f32 %v2882, %v3223
        %v3310 = vsub.f32 %v2887, %v3225
        %v3311 = vsub.f32 %v2892, %v3227
        %v3312 = vsub.f32 %v2897, %v3229
        %v3313 = vsub.f32 %v2902, %v3231
        %v3314 = vsub.f32 %v2907, %v3233
        %v3315 = vsub.f32 %v2912, %v3235
        %v3316 = vsub.f32 %v3062, %v3237
        %v3317 = vsub.f32 %v3067, %v3239
        %v3318 = vsub.f32 %v3072, %v3241
        %v3319 = vsub.f32 %v3077, %v3243
        %v3320 = vsub.f32 %v3082, %v3245
        %v3321 = vsub.f32 %v3087, %v3247
        %v3322 = vsub.f32 %v3092, %v3249
        %v3323 = vsub.f32 %v3097, %v3251
        %v3324 = vsub.f32 %v3102, %v3253
        %v3325 = vsub.f32 %v3107, %v3255
        %v3326 = vsub.f32 %v3112, %v3257
        %v3327 = vsub.f32 %v3117, %v3259
        %v3328 = vsub.f32 %v3122, %v3261
        %v3329 = vsub.f32 %v3127, %v3263
        %v3330 = vsub.f32 %v3132, %v3265
        %v3331 = vsub.f32 %v3137, %v3267
        %v3332 = vmul.f32 %v3268, 1.442695
        %v3333 = vpow.pop %v3332
        %v3334 = vmul.f32 %v3269, 1.442695
        %v3335 = vpow.pop %v3334
        %v3336 = vmul.f32 %v3270, 1.442695
        %v3337 = vpow.pop %v3336
        %v3338 = vmul.f32 %v3271, 1.442695
        %v3339 = vpow.pop %v3338
        %v3340 = vmul.f32 %v3272, 1.442695
        %v3341 = vpow.pop %v3340
        %v3342 = vmul.f32 %v3273, 1.442695
        %v3343 = vpow.pop %v3342
        %v3344 = vmul.f32 %v3274, 1.442695
        %v3345 = vpow.pop %v3344
        %v3346 = vmul.f32 %v3275, 1.442695
        %v3347 = vpow.pop %v3346
        %v3348 = vmul.f32 %v3276, 1.442695
        %v3349 = vpow.pop %v3348
        %v3350 = vmul.f32 %v3277, 1.442695
        %v3351 = vpow.pop %v3350
        %v3352 = vmul.f32 %v3278, 1.442695
        %v3353 = vpow.pop %v3352
        %v3354 = vmul.f32 %v3279, 1.442695
        %v3355 = vpow.pop %v3354
        %v3356 = vmul.f32 %v3280, 1.442695
        %v3357 = vpow.pop %v3356
        %v3358 = vmul.f32 %v3281, 1.442695
        %v3359 = vpow.pop %v3358
        %v3360 = vmul.f32 %v3282, 1.442695
        %v3361 = vpow.pop %v3360
        %v3362 = vmul.f32 %v3283, 1.442695
        %v3363 = vpow.pop %v3362
        %v3364 = vmul.f32 %v3284, 1.442695
        %v3365 = vpow.pop %v3364
        %v3366 = vmul.f32 %v3285, 1.442695
        %v3367 = vpow.pop %v3366
        %v3368 = vmul.f32 %v3286, 1.442695
        %v3369 = vpow.pop %v3368
        %v3370 = vmul.f32 %v3287, 1.442695
        %v3371 = vpow.pop %v3370
        %v3372 = vmul.f32 %v3288, 1.442695
        %v3373 = vpow.pop %v3372
        %v3374 = vmul.f32 %v3289, 1.442695
        %v3375 = vpow.pop %v3374
        %v3376 = vmul.f32 %v3290, 1.442695
        %v3377 = vpow.pop %v3376
        %v3378 = vmul.f32 %v3291, 1.442695
        %v3379 = vpow.pop %v3378
        %v3380 = vmul.f32 %v3292, 1.442695
        %v3381 = vpow.pop %v3380
        %v3382 = vmul.f32 %v3293, 1.442695
        %v3383 = vpow.pop %v3382
        %v3384 = vmul.f32 %v3294, 1.442695
        %v3385 = vpow.pop %v3384
        %v3386 = vmul.f32 %v3295, 1.442695
        %v3387 = vpow.pop %v3386
        %v3388 = vmul.f32 %v3296, 1.442695
        %v3389 = vpow.pop %v3388
        %v3390 = vmul.f32 %v3297, 1.442695
        %v3391 = vpow.pop %v3390
        %v3392 = vmul.f32 %v3298, 1.442695
        %v3393 = vpow.pop %v3392
        %v3394 = vmul.f32 %v3299, 1.442695
        %v3395 = vpow.pop %v3394
        %v3396 = vmul.f32 %v3300, 1.442695
        %v3397 = vpow.pop %v3396
        %v3398 = vmul.f32 %v3301, 1.442695
        %v3399 = vpow.pop %v3398
        %v3400 = vmul.f32 %v3302, 1.442695
        %v3401 = vpow.pop %v3400
        %v3402 = vmul.f32 %v3303, 1.442695
        %v3403 = vpow.pop %v3402
        %v3404 = vmul.f32 %v3304, 1.442695
        %v3405 = vpow.pop %v3404
        %v3406 = vmul.f32 %v3305, 1.442695
        %v3407 = vpow.pop %v3406
        %v3408 = vmul.f32 %v3306, 1.442695
        %v3409 = vpow.pop %v3408
        %v3410 = vmul.f32 %v3307, 1.442695
        %v3411 = vpow.pop %v3410
        %v3412 = vmul.f32 %v3308, 1.442695
        %v3413 = vpow.pop %v3412
        %v3414 = vmul.f32 %v3309, 1.442695
        %v3415 = vpow.pop %v3414
        %v3416 = vmul.f32 %v3310, 1.442695
        %v3417 = vpow.pop %v3416
        %v3418 = vmul.f32 %v3311, 1.442695
        %v3419 = vpow.pop %v3418
        %v3420 = vmul.f32 %v3312, 1.442695
        %v3421 = vpow.pop %v3420
        %v3422 = vmul.f32 %v3313, 1.442695
        %v3423 = vpow.pop %v3422
        %v3424 = vmul.f32 %v3314, 1.442695
        %v3425 = vpow.pop %v3424
        %v3426 = vmul.f32 %v3315, 1.442695
        %v3427 = vpow.pop %v3426
        %v3428 = vmul.f32 %v3316, 1.442695
        %v3429 = vpow.pop %v3428
        %v3430 = vmul.f32 %v3317, 1.442695
        %v3431 = vpow.pop %v3430
        %v3432 = vmul.f32 %v3318, 1.442695
        %v3433 = vpow.pop %v3432
        %v3434 = vmul.f32 %v3319, 1.442695
        %v3435 = vpow.pop %v3434
        %v3436 = vmul.f32 %v3320, 1.442695
        %v3437 = vpow.pop %v3436
        %v3438 = vmul.f32 %v3321, 1.442695
        %v3439 = vpow.pop %v3438
        %v3440 = vmul.f32 %v3322, 1.442695
        %v3441 = vpow.pop %v3440
        %v3442 = vmul.f32 %v3323, 1.442695
        %v3443 = vpow.pop %v3442
        %v3444 = vmul.f32 %v3324, 1.442695
        %v3445 = vpow.pop %v3444
        %v3446 = vmul.f32 %v3325, 1.442695
        %v3447 = vpow.pop %v3446
        %v3448 = vmul.f32 %v3326, 1.442695
        %v3449 = vpow.pop %v3448
        %v3450 = vmul.f32 %v3327, 1.442695
        %v3451 = vpow.pop %v3450
        %v3452 = vmul.f32 %v3328, 1.442695
        %v3453 = vpow.pop %v3452
        %v3454 = vmul.f32 %v3329, 1.442695
        %v3455 = vpow.pop %v3454
        %v3456 = vmul.f32 %v3330, 1.442695
        %v3457 = vpow.pop %v3456
        %v3458 = vmul.f32 %v3331, 1.442695
        %v3459 = vpow.pop %v3458
        %3460 = vadd.xlane.f32.xlu0 %v3333
        %v3461 = vpop.xlane.xlu0 %3460
        %3462 = vadd.xlane.f32.xlu0 %v3335
        %v3463 = vpop.xlane.xlu0 %3462
        %3464 = vadd.xlane.f32.xlu0 %v3337
        %v3465 = vpop.xlane.xlu0 %3464
        %3466 = vadd.xlane.f32.xlu0 %v3339
        %v3467 = vpop.xlane.xlu0 %3466
        %3468 = vadd.xlane.f32.xlu0 %v3341
        %v3469 = vpop.xlane.xlu0 %3468
        %3470 = vadd.xlane.f32.xlu0 %v3343
        %v3471 = vpop.xlane.xlu0 %3470
        %3472 = vadd.xlane.f32.xlu0 %v3345
        %v3473 = vpop.xlane.xlu0 %3472
        %3474 = vadd.xlane.f32.xlu0 %v3347
        %v3475 = vpop.xlane.xlu0 %3474
        %3476 = vadd.xlane.f32.xlu0 %v3349
        %v3477 = vpop.xlane.xlu0 %3476
        %3478 = vadd.xlane.f32.xlu0 %v3351
        %v3479 = vpop.xlane.xlu0 %3478
        %3480 = vadd.xlane.f32.xlu0 %v3353
        %v3481 = vpop.xlane.xlu0 %3480
        %3482 = vadd.xlane.f32.xlu0 %v3355
        %v3483 = vpop.xlane.xlu0 %3482
        %3484 = vadd.xlane.f32.xlu0 %v3357
        %v3485 = vpop.xlane.xlu0 %3484
        %3486 = vadd.xlane.f32.xlu0 %v3359
        %v3487 = vpop.xlane.xlu0 %3486
        %3488 = vadd.xlane.f32.xlu0 %v3361
        %v3489 = vpop.xlane.xlu0 %3488
        %3490 = vadd.xlane.f32.xlu0 %v3363
        %v3491 = vpop.xlane.xlu0 %3490
        %3492 = vadd.xlane.f32.xlu0 %v3365
        %v3493 = vpop.xlane.xlu0 %3492
        %3494 = vadd.xlane.f32.xlu0 %v3367
        %v3495 = vpop.xlane.xlu0 %3494
        %3496 = vadd.xlane.f32.xlu0 %v3369
        %v3497 = vpop.xlane.xlu0 %3496
        %3498 = vadd.xlane.f32.xlu0 %v3371
        %v3499 = vpop.xlane.xlu0 %3498
        %3500 = vadd.xlane.f32.xlu0 %v3373
        %v3501 = vpop.xlane.xlu0 %3500
        %3502 = vadd.xlane.f32.xlu0 %v3375
        %v3503 = vpop.xlane.xlu0 %3502
        %3504 = vadd.xlane.f32.xlu0 %v3377
        %v3505 = vpop.xlane.xlu0 %3504
        %3506 = vadd.xlane.f32.xlu0 %v3379
        %v3507 = vpop.xlane.xlu0 %3506
        %3508 = vadd.xlane.f32.xlu0 %v3381
        %v3509 = vpop.xlane.xlu0 %3508
        %3510 = vadd.xlane.f32.xlu0 %v3383
        %v3511 = vpop.xlane.xlu0 %3510
        %3512 = vadd.xlane.f32.xlu0 %v3385
        %v3513 = vpop.xlane.xlu0 %3512
        %3514 = vadd.xlane.f32.xlu0 %v3387
        %v3515 = vpop.xlane.xlu0 %3514
        %3516 = vadd.xlane.f32.xlu0 %v3389
        %v3517 = vpop.xlane.xlu0 %3516
        %3518 = vadd.xlane.f32.xlu0 %v3391
        %v3519 = vpop.xlane.xlu0 %3518
        %3520 = vadd.xlane.f32.xlu0 %v3393
        %v3521 = vpop.xlane.xlu0 %3520
        %3522 = vadd.xlane.f32.xlu0 %v3395
        %v3523 = vpop.xlane.xlu0 %3522
        %3524 = vadd.xlane.f32.xlu0 %v3397
        %v3525 = vpop.xlane.xlu0 %3524
        %3526 = vadd.xlane.f32.xlu0 %v3399
        %v3527 = vpop.xlane.xlu0 %3526
        %3528 = vadd.xlane.f32.xlu0 %v3401
        %v3529 = vpop.xlane.xlu0 %3528
        %3530 = vadd.xlane.f32.xlu0 %v3403
        %v3531 = vpop.xlane.xlu0 %3530
        %3532 = vadd.xlane.f32.xlu0 %v3405
        %v3533 = vpop.xlane.xlu0 %3532
        %3534 = vadd.xlane.f32.xlu0 %v3407
        %v3535 = vpop.xlane.xlu0 %3534
        %3536 = vadd.xlane.f32.xlu0 %v3409
        %v3537 = vpop.xlane.xlu0 %3536
        %3538 = vadd.xlane.f32.xlu0 %v3411
        %v3539 = vpop.xlane.xlu0 %3538
        %3540 = vadd.xlane.f32.xlu0 %v3413
        %v3541 = vpop.xlane.xlu0 %3540
        %3542 = vadd.xlane.f32.xlu0 %v3415
        %v3543 = vpop.xlane.xlu0 %3542
        %3544 = vadd.xlane.f32.xlu0 %v3417
        %v3545 = vpop.xlane.xlu0 %3544
        %3546 = vadd.xlane.f32.xlu0 %v3419
        %v3547 = vpop.xlane.xlu0 %3546
        %3548 = vadd.xlane.f32.xlu0 %v3421
        %v3549 = vpop.xlane.xlu0 %3548
        %3550 = vadd.xlane.f32.xlu0 %v3423
        %v3551 = vpop.xlane.xlu0 %3550
        %3552 = vadd.xlane.f32.xlu0 %v3425
        %v3553 = vpop.xlane.xlu0 %3552
        %3554 = vadd.xlane.f32.xlu0 %v3427
        %v3555 = vpop.xlane.xlu0 %3554
        %3556 = vadd.xlane.f32.xlu0 %v3429
        %v3557 = vpop.xlane.xlu0 %3556
        %3558 = vadd.xlane.f32.xlu0 %v3431
        %v3559 = vpop.xlane.xlu0 %3558
        %3560 = vadd.xlane.f32.xlu0 %v3433
        %v3561 = vpop.xlane.xlu0 %3560
        %3562 = vadd.xlane.f32.xlu0 %v3435
        %v3563 = vpop.xlane.xlu0 %3562
        %3564 = vadd.xlane.f32.xlu0 %v3437
        %v3565 = vpop.xlane.xlu0 %3564
        %3566 = vadd.xlane.f32.xlu0 %v3439
        %v3567 = vpop.xlane.xlu0 %3566
        %3568 = vadd.xlane.f32.xlu0 %v3441
        %v3569 = vpop.xlane.xlu0 %3568
        %3570 = vadd.xlane.f32.xlu0 %v3443
        %v3571 = vpop.xlane.xlu0 %3570
        %3572 = vadd.xlane.f32.xlu0 %v3445
        %v3573 = vpop.xlane.xlu0 %3572
        %3574 = vadd.xlane.f32.xlu0 %v3447
        %v3575 = vpop.xlane.xlu0 %3574
        %3576 = vadd.xlane.f32.xlu0 %v3449
        %v3577 = vpop.xlane.xlu0 %3576
        %3578 = vadd.xlane.f32.xlu0 %v3451
        %v3579 = vpop.xlane.xlu0 %3578
        %3580 = vadd.xlane.f32.xlu0 %v3453
        %v3581 = vpop.xlane.xlu0 %3580
        %3582 = vadd.xlane.f32.xlu0 %v3455
        %v3583 = vpop.xlane.xlu0 %3582
        %3584 = vadd.xlane.f32.xlu0 %v3457
        %v3585 = vpop.xlane.xlu0 %3584
        %3586 = vadd.xlane.f32.xlu0 %v3459
        %v3587 = vpop.xlane.xlu0 %3586
        %v3588 = vrcp.pop %v3461
        %v3589 = vrcp.pop %v3463
        %v3590 = vrcp.pop %v3465
        %v3591 = vrcp.pop %v3467
        %v3592 = vrcp.pop %v3469
        %v3593 = vrcp.pop %v3471
        %v3594 = vrcp.pop %v3473
        %v3595 = vrcp.pop %v3475
        %v3596 = vrcp.pop %v3477
        %v3597 = vrcp.pop %v3479
        %v3598 = vrcp.pop %v3481
        %v3599 = vrcp.pop %v3483
        %v3600 = vrcp.pop %v3485
        %v3601 = vrcp.pop %v3487
        %v3602 = vrcp.pop %v3489
        %v3603 = vrcp.pop %v3491
        %v3604 = vrcp.pop %v3493
        %v3605 = vrcp.pop %v3495
        %v3606 = vrcp.pop %v3497
        %v3607 = vrcp.pop %v3499
        %v3608 = vrcp.pop %v3501
        %v3609 = vrcp.pop %v3503
        %v3610 = vrcp.pop %v3505
        %v3611 = vrcp.pop %v3507
        %v3612 = vrcp.pop %v3509
        %v3613 = vrcp.pop %v3511
        %v3614 = vrcp.pop %v3513
        %v3615 = vrcp.pop %v3515
        %v3616 = vrcp.pop %v3517
        %v3617 = vrcp.pop %v3519
        %v3618 = vrcp.pop %v3521
        %v3619 = vrcp.pop %v3523
        %v3620 = vrcp.pop %v3525
        %v3621 = vrcp.pop %v3527
        %v3622 = vrcp.pop %v3529
        %v3623 = vrcp.pop %v3531
        %v3624 = vrcp.pop %v3533
        %v3625 = vrcp.pop %v3535
        %v3626 = vrcp.pop %v3537
        %v3627 = vrcp.pop %v3539
        %v3628 = vrcp.pop %v3541
        %v3629 = vrcp.pop %v3543
        %v3630 = vrcp.pop %v3545
        %v3631 = vrcp.pop %v3547
        %v3632 = vrcp.pop %v3549
        %v3633 = vrcp.pop %v3551
        %v3634 = vrcp.pop %v3553
        %v3635 = vrcp.pop %v3555
        %v3636 = vrcp.pop %v3557
        %v3637 = vrcp.pop %v3559
        %v3638 = vrcp.pop %v3561
        %v3639 = vrcp.pop %v3563
        %v3640 = vrcp.pop %v3565
        %v3641 = vrcp.pop %v3567
        %v3642 = vrcp.pop %v3569
        %v3643 = vrcp.pop %v3571
        %v3644 = vrcp.pop %v3573
        %v3645 = vrcp.pop %v3575
        %v3646 = vrcp.pop %v3577
        %v3647 = vrcp.pop %v3579
        %v3648 = vrcp.pop %v3581
        %v3649 = vrcp.pop %v3583
        %v3650 = vrcp.pop %v3585
        %v3651 = vrcp.pop %v3587
        %v3652 = vmul.f32 %v3333, %v3588
        %v3653 = vmul.f32 %v3335, %v3589
        %v3654 = vmul.f32 %v3337, %v3590
        %v3655 = vmul.f32 %v3339, %v3591
        %v3656 = vmul.f32 %v3341, %v3592
        %v3657 = vmul.f32 %v3343, %v3593
        %v3658 = vmul.f32 %v3345, %v3594
        %v3659 = vmul.f32 %v3347, %v3595
        %v3660 = vmul.f32 %v3349, %v3596
        %v3661 = vmul.f32 %v3351, %v3597
        %v3662 = vmul.f32 %v3353, %v3598
        %v3663 = vmul.f32 %v3355, %v3599
        %v3664 = vmul.f32 %v3357, %v3600
        %v3665 = vmul.f32 %v3359, %v3601
        %v3666 = vmul.f32 %v3361, %v3602
        %v3667 = vmul.f32 %v3363, %v3603
        %v3668 = vmul.f32 %v3365, %v3604
        %v3669 = vmul.f32 %v3367, %v3605
        %v3670 = vmul.f32 %v3369, %v3606
        %v3671 = vmul.f32 %v3371, %v3607
        %v3672 = vmul.f32 %v3373, %v3608
        %v3673 = vmul.f32 %v3375, %v3609
        %v3674 = vmul.f32 %v3377, %v3610
        %v3675 = vmul.f32 %v3379, %v3611
        %v3676 = vmul.f32 %v3381, %v3612
        %v3677 = vmul.f32 %v3383, %v3613
        %v3678 = vmul.f32 %v3385, %v3614
        %v3679 = vmul.f32 %v3387, %v3615
        %v3680 = vmul.f32 %v3389, %v3616
        %v3681 = vmul.f32 %v3391, %v3617
        %v3682 = vmul.f32 %v3393, %v3618
        %v3683 = vmul.f32 %v3395, %v3619
        %v3684 = vmul.f32 %v3397, %v3620
        %v3685 = vmul.f32 %v3399, %v3621
        %v3686 = vmul.f32 %v3401, %v3622
        %v3687 = vmul.f32 %v3403, %v3623
        %v3688 = vmul.f32 %v3405, %v3624
        %v3689 = vmul.f32 %v3407, %v3625
        %v3690 = vmul.f32 %v3409, %v3626
        %v3691 = vmul.f32 %v3411, %v3627
        %v3692 = vmul.f32 %v3413, %v3628
        %v3693 = vmul.f32 %v3415, %v3629
        %v3694 = vmul.f32 %v3417, %v3630
        %v3695 = vmul.f32 %v3419, %v3631
        %v3696 = vmul.f32 %v3421, %v3632
        %v3697 = vmul.f32 %v3423, %v3633
        %v3698 = vmul.f32 %v3425, %v3634
        %v3699 = vmul.f32 %v3427, %v3635
        %v3700 = vmul.f32 %v3429, %v3636
        %v3701 = vmul.f32 %v3431, %v3637
        %v3702 = vmul.f32 %v3433, %v3638
        %v3703 = vmul.f32 %v3435, %v3639
        %v3704 = vmul.f32 %v3437, %v3640
        %v3705 = vmul.f32 %v3439, %v3641
        %v3706 = vmul.f32 %v3441, %v3642
        %v3707 = vmul.f32 %v3443, %v3643
        %v3708 = vmul.f32 %v3445, %v3644
        %v3709 = vmul.f32 %v3447, %v3645
        %v3710 = vmul.f32 %v3449, %v3646
        %v3711 = vmul.f32 %v3451, %v3647
        %v3712 = vmul.f32 %v3453, %v3648
        %v3713 = vmul.f32 %v3455, %v3649
        %v3714 = vmul.f32 %v3457, %v3650
        %v3715 = vmul.f32 %v3459, %v3651
        %3716 = vmatprep.subr.mxu0 0.0
        %3717 = vmatpush1.xpose.msra.mxu0 %v3652
        %3718 = vmatprep.subr.mxu0 0.0
        %3719 = vmatpush1.xpose.msra.mxu0 %v3653
        %3720 = vmatprep.subr.mxu0 0.0
        %3721 = vmatpush1.xpose.msra.mxu0 %v3654
        %3722 = vmatprep.subr.mxu0 0.0
        %3723 = vmatpush1.xpose.msra.mxu0 %v3655
        %3724 = vmatprep.subr.mxu0 0.0
        %3725 = vmatpush1.xpose.msra.mxu0 %v3656
        %3726 = vmatprep.subr.mxu0 0.0
        %3727 = vmatpush1.xpose.msra.mxu0 %v3657
        %3728 = vmatprep.subr.mxu0 0.0
        %3729 = vmatpush1.xpose.msra.mxu0 %v3658
        %3730 = vmatprep.subr.mxu0 0.0
        %3731 = vmatpush1.xpose.msra.mxu0 %v3659
        %3732 = vmatprep.subr.mxu0 0.0
        %3733 = vmatpush1.xpose.msra.mxu0 %v3660
        %3734 = vmatprep.subr.mxu0 0.0
        %3735 = vmatpush1.xpose.msra.mxu0 %v3661
        %3736 = vmatprep.subr.mxu0 0.0
        %3737 = vmatpush1.xpose.msra.mxu0 %v3662
        %3738 = vmatprep.subr.mxu0 0.0
        %3739 = vmatpush1.xpose.msra.mxu0 %v3663
        %3740 = vmatprep.subr.mxu0 0.0
        %3741 = vmatpush1.xpose.msra.mxu0 %v3664
        %3742 = vmatprep.subr.mxu0 0.0
        %3743 = vmatpush1.xpose.msra.mxu0 %v3665
        %3744 = vmatprep.subr.mxu0 0.0
        %3745 = vmatpush1.xpose.msra.mxu0 %v3666
        %3746 = vmatprep.subr.mxu0 0.0
        %3747 = vmatpush1.xpose.msra.mxu0 %v3667
        %3748 = vmatprep.subr.mxu0 0.0
        %3749 = vmatpush1.xpose.msra.mxu0 0.0
        %3750 = vmatprep.subr.mxu0 0.0
        %3751 = vmatpush1.xpose.msra.mxu0 0.0
        %3752 = vmatprep.subr.mxu0 0.0
        %3753 = vmatpush1.xpose.msra.mxu0 0.0
        %3754 = vmatprep.subr.mxu0 0.0
        %3755 = vmatpush1.xpose.msra.mxu0 0.0
        %3756 = vmatprep.subr.mxu0 0.0
        %3757 = vmatpush1.xpose.msra.mxu0 0.0
        %3758 = vmatprep.subr.mxu0 0.0
        %3759 = vmatpush1.xpose.msra.mxu0 0.0
        %3760 = vmatprep.subr.mxu0 0.0
        %3761 = vmatpush1.xpose.msra.mxu0 0.0
        %3762 = vmatprep.subr.mxu0 0.0
        %3763 = vmatpush1.xpose.msra.mxu0 0.0
        %3764 = vmatprep.subr.mxu0 0.0
        %3765 = vmatpush1.xpose.msra.mxu0 0.0
        %3766 = vmatprep.subr.mxu0 0.0
        %3767 = vmatpush1.xpose.msra.mxu0 0.0
        %3768 = vmatprep.subr.mxu0 0.0
        %3769 = vmatpush1.xpose.msra.mxu0 0.0
        %3770 = vmatprep.subr.mxu0 0.0
        %3771 = vmatpush1.xpose.msra.mxu0 0.0
        %3772 = vmatprep.subr.mxu0 0.0
        %3773 = vmatpush1.xpose.msra.mxu0 0.0
        %3774 = vmatprep.subr.mxu0 0.0
        %3775 = vmatpush1.xpose.msra.mxu0 0.0
        %3776 = vmatprep.subr.mxu0 0.0
        %3777 = vmatpush1.xpose.msra.mxu0 0.0
        %3778 = vmatprep.subr.mxu0 0.0
        %3779 = vmatpush1.xpose.msra.mxu0 0.0
        %3780 = vmatprep.mubr.f32.mxu0 0.0
        %3781 = vmatmul.mubr.f32.gmra.mrb[0].mxu0 %v2213
        %v3782 = vpop.f32.mrb[0].mxu0
        %v3783 = vadd.f32 0.0, %v3782
        %v3784 = vpop.f32.mrb[0].mxu0
        %3785 = vdwg.mxu0
        %3786 = vmatprep.subr.mxu0 0.0
        %3787 = vmatpush1.xpose.msra.mxu0 %v3668
        %3788 = vmatprep.subr.mxu0 0.0
        %3789 = vmatpush1.xpose.msra.mxu0 %v3669
        %3790 = vmatprep.subr.mxu0 0.0
        %3791 = vmatpush1.xpose.msra.mxu0 %v3670
        %3792 = vmatprep.subr.mxu0 0.0
        %3793 = vmatpush1.xpose.msra.mxu0 %v3671
        %3794 = vmatprep.subr.mxu0 0.0
        %3795 = vmatpush1.xpose.msra.mxu0 %v3672
        %3796 = vmatprep.subr.mxu0 0.0
        %3797 = vmatpush1.xpose.msra.mxu0 %v3673
        %3798 = vmatprep.subr.mxu0 0.0
        %3799 = vmatpush1.xpose.msra.mxu0 %v3674
        %3800 = vmatprep.subr.mxu0 0.0
        %3801 = vmatpush1.xpose.msra.mxu0 %v3675
        %3802 = vmatprep.subr.mxu0 0.0
        %3803 = vmatpush1.xpose.msra.mxu0 %v3676
        %3804 = vmatprep.subr.mxu0 0.0
        %3805 = vmatpush1.xpose.msra.mxu0 %v3677
        %3806 = vmatprep.subr.mxu0 0.0
        %3807 = vmatpush1.xpose.msra.mxu0 %v3678
        %3808 = vmatprep.subr.mxu0 0.0
        %3809 = vmatpush1.xpose.msra.mxu0 %v3679
        %3810 = vmatprep.subr.mxu0 0.0
        %3811 = vmatpush1.xpose.msra.mxu0 %v3680
        %3812 = vmatprep.subr.mxu0 0.0
        %3813 = vmatpush1.xpose.msra.mxu0 %v3681
        %3814 = vmatprep.subr.mxu0 0.0
        %3815 = vmatpush1.xpose.msra.mxu0 %v3682
        %3816 = vmatprep.subr.mxu0 0.0
        %3817 = vmatpush1.xpose.msra.mxu0 %v3683
        %3818 = vmatprep.subr.mxu0 0.0
        %3819 = vmatpush1.xpose.msra.mxu0 0.0
        %3820 = vmatprep.subr.mxu0 0.0
        %3821 = vmatpush1.xpose.msra.mxu0 0.0
        %3822 = vmatprep.subr.mxu0 0.0
        %3823 = vmatpush1.xpose.msra.mxu0 0.0
        %3824 = vmatprep.subr.mxu0 0.0
        %3825 = vmatpush1.xpose.msra.mxu0 0.0
        %3826 = vmatprep.subr.mxu0 0.0
        %3827 = vmatpush1.xpose.msra.mxu0 0.0
        %3828 = vmatprep.subr.mxu0 0.0
        %3829 = vmatpush1.xpose.msra.mxu0 0.0
        %3830 = vmatprep.subr.mxu0 0.0
        %3831 = vmatpush1.xpose.msra.mxu0 0.0
        %3832 = vmatprep.subr.mxu0 0.0
        %3833 = vmatpush1.xpose.msra.mxu0 0.0
        %3834 = vmatprep.subr.mxu0 0.0
        %3835 = vmatpush1.xpose.msra.mxu0 0.0
        %3836 = vmatprep.subr.mxu0 0.0
        %3837 = vmatpush1.xpose.msra.mxu0 0.0
        %3838 = vmatprep.subr.mxu0 0.0
        %3839 = vmatpush1.xpose.msra.mxu0 0.0
        %3840 = vmatprep.subr.mxu0 0.0
        %3841 = vmatpush1.xpose.msra.mxu0 0.0
        %3842 = vmatprep.subr.mxu0 0.0
        %3843 = vmatpush1.xpose.msra.mxu0 0.0
        %3844 = vmatprep.subr.mxu0 0.0
        %3845 = vmatpush1.xpose.msra.mxu0 0.0
        %3846 = vmatprep.subr.mxu0 0.0
        %3847 = vmatpush1.xpose.msra.mxu0 0.0
        %3848 = vmatprep.subr.mxu0 0.0
        %3849 = vmatpush1.xpose.msra.mxu0 0.0
        %3850 = vmatprep.mubr.f32.mxu0 0.0
        %3851 = vmatmul.mubr.f32.gmra.mrb[0].mxu0 %v2218
        %v3852 = vpop.f32.mrb[0].mxu0
        %v3853 = vadd.f32 0.0, %v3852
        %v3854 = vpop.f32.mrb[0].mxu0
        %3855 = vdwg.mxu0
        %3856 = vmatprep.subr.mxu0 0.0
        %3857 = vmatpush1.xpose.msra.mxu0 %v3684
        %3858 = vmatprep.subr.mxu0 0.0
        %3859 = vmatpush1.xpose.msra.mxu0 %v3685
        %3860 = vmatprep.subr.mxu0 0.0
        %3861 = vmatpush1.xpose.msra.mxu0 %v3686
        %3862 = vmatprep.subr.mxu0 0.0
        %3863 = vmatpush1.xpose.msra.mxu0 %v3687
        %3864 = vmatprep.subr.mxu0 0.0
        %3865 = vmatpush1.xpose.msra.mxu0 %v3688
        %3866 = vmatprep.subr.mxu0 0.0
        %3867 = vmatpush1.xpose.msra.mxu0 %v3689
        %3868 = vmatprep.subr.mxu0 0.0
        %3869 = vmatpush1.xpose.msra.mxu0 %v3690
        %3870 = vmatprep.subr.mxu0 0.0
        %3871 = vmatpush1.xpose.msra.mxu0 %v3691
        %3872 = vmatprep.subr.mxu0 0.0
        %3873 = vmatpush1.xpose.msra.mxu0 %v3692
        %3874 = vmatprep.subr.mxu0 0.0
        %3875 = vmatpush1.xpose.msra.mxu0 %v3693
        %3876 = vmatprep.subr.mxu0 0.0
        %3877 = vmatpush1.xpose.msra.mxu0 %v3694
        %3878 = vmatprep.subr.mxu0 0.0
        %3879 = vmatpush1.xpose.msra.mxu0 %v3695
        %3880 = vmatprep.subr.mxu0 0.0
        %3881 = vmatpush1.xpose.msra.mxu0 %v3696
        %3882 = vmatprep.subr.mxu0 0.0
        %3883 = vmatpush1.xpose.msra.mxu0 %v3697
        %3884 = vmatprep.subr.mxu0 0.0
        %3885 = vmatpush1.xpose.msra.mxu0 %v3698
        %3886 = vmatprep.subr.mxu0 0.0
        %3887 = vmatpush1.xpose.msra.mxu0 %v3699
        %3888 = vmatprep.subr.mxu0 0.0
        %3889 = vmatpush1.xpose.msra.mxu0 0.0
        %3890 = vmatprep.subr.mxu0 0.0
        %3891 = vmatpush1.xpose.msra.mxu0 0.0
        %3892 = vmatprep.subr.mxu0 0.0
        %3893 = vmatpush1.xpose.msra.mxu0 0.0
        %3894 = vmatprep.subr.mxu0 0.0
        %3895 = vmatpush1.xpose.msra.mxu0 0.0
        %3896 = vmatprep.subr.mxu0 0.0
        %3897 = vmatpush1.xpose.msra.mxu0 0.0
        %3898 = vmatprep.subr.mxu0 0.0
        %3899 = vmatpush1.xpose.msra.mxu0 0.0
        %3900 = vmatprep.subr.mxu0 0.0
        %3901 = vmatpush1.xpose.msra.mxu0 0.0
        %3902 = vmatprep.subr.mxu0 0.0
        %3903 = vmatpush1.xpose.msra.mxu0 0.0
        %3904 = vmatprep.subr.mxu0 0.0
        %3905 = vmatpush1.xpose.msra.mxu0 0.0
        %3906 = vmatprep.subr.mxu0 0.0
        %3907 = vmatpush1.xpose.msra.mxu0 0.0
        %3908 = vmatprep.subr.mxu0 0.0
        %3909 = vmatpush1.xpose.msra.mxu0 0.0
        %3910 = vmatprep.subr.mxu0 0.0
        %3911 = vmatpush1.xpose.msra.mxu0 0.0
        %3912 = vmatprep.subr.mxu0 0.0
        %3913 = vmatpush1.xpose.msra.mxu0 0.0
        %3914 = vmatprep.subr.mxu0 0.0
        %3915 = vmatpush1.xpose.msra.mxu0 0.0
        %3916 = vmatprep.subr.mxu0 0.0
        %3917 = vmatpush1.xpose.msra.mxu0 0.0
        %3918 = vmatprep.subr.mxu0 0.0
        %3919 = vmatpush1.xpose.msra.mxu0 0.0
        %3920 = vmatprep.mubr.f32.mxu0 0.0
        %3921 = vmatmul.mubr.f32.gmra.mrb[0].mxu0 %v2223
        %v3922 = vpop.f32.mrb[0].mxu0
        %v3923 = vadd.f32 0.0, %v3922
        %v3924 = vpop.f32.mrb[0].mxu0
        %3925 = vdwg.mxu0
        %3926 = vmatprep.subr.mxu0 0.0
        %3927 = vmatpush1.xpose.msra.mxu0 %v3700
        %3928 = vmatprep.subr.mxu0 0.0
        %3929 = vmatpush1.xpose.msra.mxu0 %v3701
        %3930 = vmatprep.subr.mxu0 0.0
        %3931 = vmatpush1.xpose.msra.mxu0 %v3702
        %3932 = vmatprep.subr.mxu0 0.0
        %3933 = vmatpush1.xpose.msra.mxu0 %v3703
        %3934 = vmatprep.subr.mxu0 0.0
        %3935 = vmatpush1.xpose.msra.mxu0 %v3704
        %3936 = vmatprep.subr.mxu0 0.0
        %3937 = vmatpush1.xpose.msra.mxu0 %v3705
        %3938 = vmatprep.subr.mxu0 0.0
        %3939 = vmatpush1.xpose.msra.mxu0 %v3706
        %3940 = vmatprep.subr.mxu0 0.0
        %3941 = vmatpush1.xpose.msra.mxu0 %v3707
        %3942 = vmatprep.subr.mxu0 0.0
        %3943 = vmatpush1.xpose.msra.mxu0 %v3708
        %3944 = vmatprep.subr.mxu0 0.0
        %3945 = vmatpush1.xpose.msra.mxu0 %v3709
        %3946 = vmatprep.subr.mxu0 0.0
        %3947 = vmatpush1.xpose.msra.mxu0 %v3710
        %3948 = vmatprep.subr.mxu0 0.0
        %3949 = vmatpush1.xpose.msra.mxu0 %v3711
        %3950 = vmatprep.subr.mxu0 0.0
        %3951 = vmatpush1.xpose.msra.mxu0 %v3712
        %3952 = vmatprep.subr.mxu0 0.0
        %3953 = vmatpush1.xpose.msra.mxu0 %v3713
        %3954 = vmatprep.subr.mxu0 0.0
        %3955 = vmatpush1.xpose.msra.mxu0 %v3714
        %3956 = vmatprep.subr.mxu0 0.0
        %3957 = vmatpush1.xpose.msra.mxu0 %v3715
        %3958 = vmatprep.subr.mxu0 0.0
        %3959 = vmatpush1.xpose.msra.mxu0 0.0
        %3960 = vmatprep.subr.mxu0 0.0
        %3961 = vmatpush1.xpose.msra.mxu0 0.0
        %3962 = vmatprep.subr.mxu0 0.0
        %3963 = vmatpush1.xpose.msra.mxu0 0.0
        %3964 = vmatprep.subr.mxu0 0.0
        %3965 = vmatpush1.xpose.msra.mxu0 0.0
        %3966 = vmatprep.subr.mxu0 0.0
        %3967 = vmatpush1.xpose.msra.mxu0 0.0
        %3968 = vmatprep.subr.mxu0 0.0
        %3969 = vmatpush1.xpose.msra.mxu0 0.0
        %3970 = vmatprep.subr.mxu0 0.0
        %3971 = vmatpush1.xpose.msra.mxu0 0.0
        %3972 = vmatprep.subr.mxu0 0.0
        %3973 = vmatpush1.xpose.msra.mxu0 0.0
        %3974 = vmatprep.subr.mxu0 0.0
        %3975 = vmatpush1.xpose.msra.mxu0 0.0
        %3976 = vmatprep.subr.mxu0 0.0
        %3977 = vmatpush1.xpose.msra.mxu0 0.0
        %3978 = vmatprep.subr.mxu0 0.0
        %3979 = vmatpush1.xpose.msra.mxu0 0.0
        %3980 = vmatprep.subr.mxu0 0.0
        %3981 = vmatpush1.xpose.msra.mxu0 0.0
        %3982 = vmatprep.subr.mxu0 0.0
        %3983 = vmatpush1.xpose.msra.mxu0 0.0
        %3984 = vmatprep.subr.mxu0 0.0
        %3985 = vmatpush1.xpose.msra.mxu0 0.0
        %3986 = vmatprep.subr.mxu0 0.0
        %3987 = vmatpush1.xpose.msra.mxu0 0.0
        %3988 = vmatprep.subr.mxu0 0.0
        %3989 = vmatpush1.xpose.msra.mxu0 0.0
        %3990 = vmatprep.mubr.f32.mxu0 0.0
        %3991 = vmatmul.mubr.f32.gmra.mrb[0].mxu0 %v2228
        %v3992 = vpop.f32.mrb[0].mxu0
        %v3993 = vadd.f32 0.0, %v3992
        %v3994 = vpop.f32.mrb[0].mxu0
        %3995 = vdwg.mxu0
        %v3997 = vsel %vm1883, %v2231, 0
        %v4000 = vsel %vm1883, %v2232, 0
        %v4003 = vsel %vm1883, %v2233, 0
        %v4006 = vsel %vm1883, %v2234, 0
        %4008 = vmatprep.subr.mxu0 0.0
        %4009 = vmatpush1.msra.mxu0 %v3783
        %4010 = vmatprep.subr.mxu0 0.0
        %4011 = vmatpush1.msra.mxu0 %v3853
        %4012 = vmatprep.subr.mxu0 0.0
        %4013 = vmatpush1.msra.mxu0 %v3923
        %4014 = vmatprep.subr.mxu0 0.0
        %4015 = vmatpush1.msra.mxu0 %v3993
        %4016 = vmatprep.subr.mxu0 0.0
        %4017 = vmatpush1.msra.mxu0 0.0
        %4018 = vmatprep.subr.mxu0 0.0
        %4019 = vmatpush1.msra.mxu0 0.0
        %4020 = vmatprep.subr.mxu0 0.0
        %4021 = vmatpush1.msra.mxu0 0.0
        %4022 = vmatprep.subr.mxu0 0.0
        %4023 = vmatpush1.msra.mxu0 0.0
        %4024 = vmatprep.subr.mxu0 0.0
        %4025 = vmatpush1.msra.mxu0 0.0
        %4026 = vmatprep.subr.mxu0 0.0
        %4027 = vmatpush1.msra.mxu0 0.0
        %4028 = vmatprep.subr.mxu0 0.0
        %4029 = vmatpush1.msra.mxu0 0.0
        %4030 = vmatprep.subr.mxu0 0.0
        %4031 = vmatpush1.msra.mxu0 0.0
        %4032 = vmatprep.subr.mxu0 0.0
        %4033 = vmatpush1.msra.mxu0 0.0
        %4034 = vmatprep.subr.mxu0 0.0
        %4035 = vmatpush1.msra.mxu0 0.0
        %4036 = vmatprep.subr.mxu0 0.0
        %4037 = vmatpush1.msra.mxu0 0.0
        %4038 = vmatprep.subr.mxu0 0.0
        %4039 = vmatpush1.msra.mxu0 0.0
        %4040 = vmatprep.subr.mxu0 0.0
        %4041 = vmatpush1.msra.mxu0 0.0
        %4042 = vmatprep.subr.mxu0 0.0
        %4043 = vmatpush1.msra.mxu0 0.0
        %4044 = vmatprep.subr.mxu0 0.0
        %4045 = vmatpush1.msra.mxu0 0.0
        %4046 = vmatprep.subr.mxu0 0.0
        %4047 = vmatpush1.msra.mxu0 0.0
        %4048 = vmatprep.subr.mxu0 0.0
        %4049 = vmatpush1.msra.mxu0 0.0
        %4050 = vmatprep.subr.mxu0 0.0
        %4051 = vmatpush1.msra.mxu0 0.0
        %4052 = vmatprep.subr.mxu0 0.0
        %4053 = vmatpush1.msra.mxu0 0.0
        %4054 = vmatprep.subr.mxu0 0.0
        %4055 = vmatpush1.msra.mxu0 0.0
        %4056 = vmatprep.subr.mxu0 0.0
        %4057 = vmatpush1.msra.mxu0 0.0
        %4058 = vmatprep.subr.mxu0 0.0
        %4059 = vmatpush1.msra.mxu0 0.0
        %4060 = vmatprep.subr.mxu0 0.0
        %4061 = vmatpush1.msra.mxu0 0.0
        %4062 = vmatprep.subr.mxu0 0.0
        %4063 = vmatpush1.msra.mxu0 0.0
        %4064 = vmatprep.subr.mxu0 0.0
        %4065 = vmatpush1.msra.mxu0 0.0
        %4066 = vmatprep.subr.mxu0 0.0
        %4067 = vmatpush1.msra.mxu0 0.0
        %4068 = vmatprep.subr.mxu0 0.0
        %4069 = vmatpush1.msra.mxu0 0.0
        %4070 = vmatprep.subr.mxu0 0.0
        %4071 = vmatpush1.msra.mxu0 0.0
        %4072 = vmatprep.mubr.f32.mxu0 0.0
        %4073 = vmatmul.mubr.f32.gmra.mrb[0].mxu0 %v3997
        %v4074 = vpop.f32.mrb[0].mxu0
        %v4075 = vadd.f32 0.0, %v4074
        %v4076 = vpop.f32.mrb[0].mxu0
        %4077 = vmatprep.mubr.f32.mxu0 0.0
        %4078 = vmatmul.mubr.f32.gmra.mrb[0].mxu0 %v4000
        %v4079 = vpop.f32.mrb[0].mxu0
        %v4080 = vadd.f32 0.0, %v4079
        %v4081 = vpop.f32.mrb[0].mxu0
        %4082 = vmatprep.mubr.f32.mxu0 0.0
        %4083 = vmatmul.mubr.f32.gmra.mrb[0].mxu0 %v4003
        %v4084 = vpop.f32.mrb[0].mxu0
        %v4085 = vadd.f32 0.0, %v4084
        %v4086 = vpop.f32.mrb[0].mxu0
        %4087 = vmatprep.mubr.f32.mxu0 0.0
        %4088 = vmatmul.mubr.f32.gmra.mrb[0].mxu0 %v4006
        %v4089 = vpop.f32.mrb[0].mxu0
        %v4090 = vadd.f32 0.0, %v4089
        %v4091 = vpop.f32.mrb[0].mxu0
        %4092 = vdwg.mxu0
        %v4093 = vadd.f32 %v385, %v4075
        %v4094 = vadd.f32 %v386, %v4080
        %v4095 = vadd.f32 %v387, %v4085
        %v4096 = vadd.f32 %v388, %v4090
        %4098 = vset.pattern.permute.xlu0 0
        %4099 = vperm.xlu0 %4098, %v2235
        %v4100 = vpop.permute.xlu0 %4099
        %4103 = vset.pattern.permute.xlu0 0
        %4104 = vperm.xlu0 %4103, %v2236
        %v4105 = vpop.permute.xlu0 %4104
        %4108 = vset.pattern.permute.xlu0 0
        %4109 = vperm.xlu0 %4108, %v2237
        %v4110 = vpop.permute.xlu0 %4109
        %4113 = vset.pattern.permute.xlu0 0
        %4114 = vperm.xlu0 %4113, %v2238
        %v4115 = vpop.permute.xlu0 %4114
        %v4117 = vadd.f32 %v4093, %v4100
        %v4118 = vadd.f32 %v4094, %v4105
        %v4119 = vadd.f32 %v4095, %v4110
        %v4120 = vadd.f32 %v4096, %v4115
        %4121 = vst [vmem:[%s379] sm:$0xff] %v4117
        %4122 = vst [vmem:[%s379 + $0x8] sm:$0xff] %v4118
        %4123 = vst [vmem:[%s379 + $0x10] sm:$0xff] %v4119
        %4124 = vst [vmem:[%s379 + $0x18] sm:$0xff] %v4120
        %s4125 = sand.u32 %s269, 1
        %s4126 = scalar_lea.sflag [#allocation3], %s4125
        %s4127 = sand.u32 %s269, 1
        %s4128 = smul.addr %s4127, 32
        %s4129 = scalar_lea.vmem [#allocation2], %s4128
        // Predicated region
        $region65: #{tpu_custom_call.1} parent=63 // pred_check
          %p4130 = pneg %p279
        $region66: #{tpu_custom_call.1} parent=63 // pred_check_branch
          %4132 = sbr.rel (%p4130) target = $region68
        $region67: #{tpu_custom_call.1} parent=63 // pred_region
          %s4134 = ssub.s32 512, 512
          %4135 = vsyncadd %s4126, %s4134
          %s4136 = smul.addr %s25, 4
          %s4137 = smul.addr %s4136, 128
          %s4138 = scalar_lea.hbm %s11, %s4137
          %s4139 = sshll.u32 %s4129, 4
          %s4140 = int_to_ptr.vmem [resolvable:$true] %s4139
          %4145 = dma.vmem_to_hbm [thread:$0]  %s4140, 512, %s4138, %s4126, 128, 128, 8
        $region68: #{tpu_custom_call.1} parent=63 // pred_fallthru
          _
      $region64: #{tpu_custom_call.1} parent=5 // pred_fallthru
        _
      %p4146 = scmp.le.s32.totalorder 2, %s20
      // Predicated region
      $region69: #{tpu_custom_call.1} parent=5 // pred_check
        %p4147 = pneg %p4146
      $region70: #{tpu_custom_call.1} parent=5 // pred_check_branch
        %4149 = sbr.rel (%p4147) target = $region72
      $region71: #{tpu_custom_call.1} parent=5 // pred_region
        %s4150 = ssub.s32 %s20, 2
        // Predicated region
        $region73: #{tpu_custom_call.1} parent=71 // pred_check
          %p4151 = pneg %p285
        $region74: #{tpu_custom_call.1} parent=71 // pred_check_branch
          %4153 = sbr.rel (%p4151) target = $region76
        $region75: #{tpu_custom_call.1} parent=71 // pred_region
          %s4154 = sand.u32 %s270, 1
          %s4155 = scalar_lea.sflag [#allocation3], %s4154
          %s4156 = sand.u32 %s270, 1
          %s4157 = smul.addr %s4156, 32
          %s4158 = scalar_lea.vmem [#allocation2], %s4157
          %4159 = dma.done %s4155, 512
        $region76: #{tpu_custom_call.1} parent=71 // pred_fallthru
          _
      $region72: #{tpu_custom_call.1} parent=5 // pred_fallthru
        _
    $region6: #{tpu_custom_call.1} parent=1 // loop_footer
      %s24 = sadd.s32 1, %s20
    $region7: #{tpu_custom_call.1} parent=1 // loop_footer_branch
      %19 = sbr.rel target = $region3
    $region8: #{tpu_custom_call.1} parent=1 // loop_exit
      _
    %4160 = vsyncpa [#allocation3], 1
    %s4161 = scalar_lea.sflag [#allocation3], 1
    %4162 = vsyncpa %s4161, 1

</llo_original>
